<compile_context>
chip_gen: v7x
topology: tpu7x:2x2x1
jax: 0.10.0
libtpu: 0.0.40
codegen_flags: <defaults>
</compile_context>

<pallas_src>
import functools
import math

import jax
import jax.numpy as jnp
from jax import lax
from jax.experimental import pallas as pl
from jax.experimental.pallas import tpu as pltpu


D_MODEL = 256
N_HEADS = 8
LN_EPS = 1e-5
NEG_BIG = -1e30
F32_MAX = 3.4028235e38


# ----------------------------- in-kernel helpers -----------------------------

def _bf16(x):
    return x.astype(jnp.bfloat16)


def _layernorm(x, g, b, eps=LN_EPS):
    mu = jnp.mean(x, axis=-1, keepdims=True)
    var = jnp.mean(jnp.square(x - mu), axis=-1, keepdims=True)
    return (x - mu) * lax.rsqrt(var + eps) * g + b


def _gelu_exact(y):
    # torch.nn.functional.gelu default (erf based)
    return 0.5 * y * (1.0 + lax.erf(y * (1.0 / math.sqrt(2.0))))


def _softmax_rows(s):
    s = s - jnp.max(s, axis=-1, keepdims=True)
    p = jnp.exp(s)
    return p * pl.reciprocal(jnp.sum(p, axis=-1, keepdims=True), approx=True)


# ----------------------------- Pallas kernels -----------------------------

def _embed_qkv_kernel(tgt_ref, pe_ref, pres_ref, cnt_ref,
                      w_in_ref, b_in_ref, w_tok_ref, b_tok_ref,
                      w_qkv_ref, b_qkv_ref,
                      emb_ref, qkv_ref, m_ref,
                      *, L, H, E, d_model):
    # torch.nan_to_num (NaN -> 0, +-inf -> +-f32max)
    x = tgt_ref[0]
    x = jnp.where(jnp.isnan(x), 0.0, x)
    x = jnp.clip(x, -F32_MAX, F32_MAX)

    # input_fc (K is tiny, keep f32)
    x = jnp.dot(x, w_in_ref[...], preferred_element_type=jnp.float32) + b_in_ref[...]

    # TokenEmbedding: Conv1d(k=3, circular) as one long-K matmul on [x(t-1) | x(t) | x(t+1)]
    xm = jnp.concatenate([x[L - 1:L, :], x[:L - 1, :]], axis=0)   # circular shift +1
    xp = jnp.concatenate([x[1:, :], x[0:1, :]], axis=0)           # circular shift -1
    xcat = jnp.concatenate([xm, x, xp], axis=1)                   # (L, 3d)
    conv = jnp.dot(_bf16(xcat), w_tok_ref[...],
                   preferred_element_type=jnp.float32) + b_tok_ref[...]

    # dec_emb = pos_embedding(x) + value_embedding(x) + x = conv(x) + pe + 2*x
    # (the double residual is what Trajectory_Decoder.forward computes)
    emb = conv + pe_ref[...] + 2.0 * x
    emb_ref[0] = emb

    # fused self-attention Q|K|V projection (lane-dense (L, 3d) output)
    qkv = jnp.dot(_bf16(emb), w_qkv_ref[...],
                  preferred_element_type=jnp.float32) + b_qkv_ref[...]
    qkv_ref[0] = qkv

    # ProbAttention sparsity measure M = max_sampled(QK) - sum_sampled(QK)/L_K per head
    # (sampled-key gather expressed densely via presence / multiplicity-count matrices)
    pres = pres_ref[...]
    cnt = cnt_ref[...]
    m_cols = []
    for h in range(H):
        qh = _bf16(qkv[:, h * E:(h + 1) * E])
        kh = _bf16(qkv[:, d_model + h * E:d_model + (h + 1) * E])
        s = lax.dot_general(qh, kh, (((1,), (1,)), ((), ())),
                            preferred_element_type=jnp.float32)   # (L, L) unscaled
        smax = jnp.max(jnp.where(pres > 0.5, s, NEG_BIG), axis=-1, keepdims=True)
        ssum = jnp.sum(s * cnt, axis=-1, keepdims=True)
        m_cols.append(smax - ssum * (1.0 / L))
    m_ref[0] = jnp.concatenate(m_cols, axis=1)                    # (L, H)


def _self_attn_norm_kernel(qkv_ref, member_ref, emb_ref,
                           wo_ref, bo_ref, g1_ref, b1_ref,
                           x1_ref, *, L, H, E, d_model, scale):
    qkv = qkv_ref[0]                       # (L, 3d)
    member = member_ref[0]                 # (L, H)  1.0 where query is in top-u set
    x0 = emb_ref[0]                        # (L, d)  residual input

    row = lax.broadcasted_iota(jnp.int32, (L, L), 0)
    col = lax.broadcasted_iota(jnp.int32, (L, L), 1)
    causal = col > row                                   # ProbMask rows == causal rows
    tril = (col <= row).astype(jnp.float32)              # cumsum operator (initial context)

    ctx_heads = []
    for h in range(H):
        qh = qkv[:, h * E:(h + 1) * E]
        kh = qkv[:, d_model + h * E:d_model + (h + 1) * E]
        vh = qkv[:, 2 * d_model + h * E:2 * d_model + (h + 1) * E]
        s = lax.dot_general(_bf16(qh), _bf16(kh), (((1,), (1,)), ((), ())),
                            preferred_element_type=jnp.float32) * scale
        s = jnp.where(causal, NEG_BIG, s)
        p = _softmax_rows(s)
        pv = jnp.dot(_bf16(p), _bf16(vh), preferred_element_type=jnp.float32)
        cum = jnp.dot(tril, vh, preferred_element_type=jnp.float32)   # V.cumsum over L
        sel = member[:, h:h + 1]
        ctx_heads.append(jnp.where(sel > 0.5, pv, cum))               # (L, E)

    # mix=True: flat view of the contiguous (H, L, E) context as (L, H*E)
    # (built with static slices / lane concats; needs L % H == 0)
    rph = L // H
    rows = []
    for h in range(H):
        ch = ctx_heads[h]
        for i in range(rph):
            pieces = [ch[i * H + j:i * H + j + 1, :] for j in range(H)]
            rows.append(jnp.concatenate(pieces, axis=1))
    mixed = jnp.concatenate(rows, axis=0)                             # (L, d)

    self_out = jnp.dot(_bf16(mixed), wo_ref[...],
                       preferred_element_type=jnp.float32) + bo_ref[...]
    x1_ref[0] = _layernorm(x0 + self_out, g1_ref[...], b1_ref[...])


def _cross_ffn_proj_kernel(x1_ref, mem_ref,
                           wq_ref, bq_ref, wkv_ref, bkv_ref, wo_ref, bo_ref,
                           ln_ref, wf1_ref, bf1_ref, wf2_ref, bf2_ref,
                           wp_ref, bp_ref, out_ref,
                           *, H, E, d_model, scale):
    x1 = x1_ref[0]                         # (L, d)
    mem = mem_ref[0]                       # (Sm, d)

    qc = jnp.dot(_bf16(x1), wq_ref[...],
                 preferred_element_type=jnp.float32) + bq_ref[...]
    kv = jnp.dot(_bf16(mem), wkv_ref[...],
                 preferred_element_type=jnp.float32) + bkv_ref[...]   # (Sm, 2d)

    ctx_cols = []
    for h in range(H):
        qh = qc[:, h * E:(h + 1) * E]
        kh = kv[:, h * E:(h + 1) * E]
        vh = kv[:, d_model + h * E:d_model + (h + 1) * E]
        s = lax.dot_general(_bf16(qh), _bf16(kh), (((1,), (1,)), ((), ())),
                            preferred_element_type=jnp.float32) * scale
        p = _softmax_rows(s)               # FullAttention, mask_flag=False
        ctx_cols.append(jnp.dot(_bf16(p), _bf16(vh),
                                preferred_element_type=jnp.float32))
    cross_flat = jnp.concatenate(ctx_cols, axis=1)                    # mix=False, lane-dense (L, d)

    cross_out = jnp.dot(_bf16(cross_flat), wo_ref[...],
                        preferred_element_type=jnp.float32) + bo_ref[...]
    ln = ln_ref[...]                       # rows: [g2,b2,g3,b3,gdec,bdec]
    x2 = _layernorm(x1 + cross_out, ln[0:1, :], ln[1:2, :])

    # position-wise FFN (1x1 convs) with exact GELU, intermediate stays in VMEM
    h1 = _gelu_exact(jnp.dot(_bf16(x2), wf1_ref[...],
                             preferred_element_type=jnp.float32) + bf1_ref[...])
    h2 = jnp.dot(_bf16(h1), wf2_ref[...],
                 preferred_element_type=jnp.float32) + bf2_ref[...]
    x3 = _layernorm(x2 + h2, ln[2:3, :], ln[3:4, :])
    x4 = _layernorm(x3, ln[4:5, :], ln[5:6, :])                       # InformerDecoder norm
    out_ref[0] = jnp.dot(x4, wp_ref[...],
                         preferred_element_type=jnp.float32) + bp_ref[...]


# ----------------------------- parameters -----------------------------

def make_pe(d_model, max_len=5000):
    position = jnp.arange(max_len, dtype=jnp.float32)[:, None]
    div_term = jnp.exp(jnp.arange(0, d_model, 2, dtype=jnp.float32)
                       * (-math.log(10000.0) / d_model))
    pe = jnp.zeros((max_len, d_model), jnp.float32)
    pe = pe.at[:, 0::2].set(jnp.sin(position * div_term))
    pe = pe.at[:, 1::2].set(jnp.cos(position * div_term))
    return pe


def init_params(key, ninp, d_model=256, d_ff=256, noutput=2):
    ks = jax.random.split(key, 24)

    def lin(k, din, dout):
        return jax.random.normal(k, (din, dout), jnp.float32) / math.sqrt(din)

    p = {}
    p["input_fc_w"] = lin(ks[0], ninp, d_model)
    p["input_fc_b"] = jnp.zeros((d_model,), jnp.float32)
    # TokenEmbedding Conv1d(d_model, d_model, k=3, circular): one (Cin, Cout) matrix per tap
    p["tok_w0"] = lin(ks[1], d_model, d_model)   # x[t-1]
    p["tok_w1"] = lin(ks[2], d_model, d_model)   # x[t]
    p["tok_w2"] = lin(ks[3], d_model, d_model)   # x[t+1]
    p["tok_b"] = jnp.zeros((d_model,), jnp.float32)
    names = [("self_q", 4), ("self_k", 5), ("self_v", 6), ("self_o", 7),
             ("cross_q", 8), ("cross_k", 9), ("cross_v", 10), ("cross_o", 11)]
    for name, i in names:
        p[f"{name}_w"] = lin(ks[i], d_model, d_model)
        p[f"{name}_b"] = 0.01 * jax.random.normal(jax.random.fold_in(ks[i], 1),
                                                  (d_model,), jnp.float32)
    p["conv1_w"] = lin(ks[12], d_model, d_ff)
    p["conv1_b"] = jnp.zeros((d_ff,), jnp.float32)
    p["conv2_w"] = lin(ks[13], d_ff, d_model)
    p["conv2_b"] = jnp.zeros((d_model,), jnp.float32)
    for name in ("norm1", "norm2", "norm3", "dec_norm"):
        p[f"{name}_g"] = jnp.ones((d_model,), jnp.float32)
        p[f"{name}_b"] = jnp.zeros((d_model,), jnp.float32)
    p["proj_w"] = lin(ks[18], d_model, noutput)
    p["proj_b"] = jnp.zeros((noutput,), jnp.float32)
    p["pe"] = make_pe(d_model)
    return p


# ----------------------------- forward pass -----------------------------

def trajectory_decoder_forward(params, prediction_horizon, tgt, memory,
                               tgt_mask, memory_mask, memory_key_padding_mask,
                               sample_key):
    # The masks are accepted for parity but mathematically unused: ProbAttention
    # (mask_flag=True) builds its own causal ProbMask, FullAttention here has
    # mask_flag=False, and the key-padding mask is never consumed by the module.
    del tgt_mask, memory_mask, memory_key_padding_mask

    B, L, _ = tgt.shape
    d_model, H = D_MODEL, N_HEADS
    E = d_model // H
    noutput = params["proj_w"].shape[1]
    scale = 1.0 / math.sqrt(E)
    assert L % H == 0, "mix=True flat-view fast path needs L % n_heads == 0"

    f32 = jnp.float32
    bf16 = jnp.bfloat16
    tgt = tgt.astype(f32)
    memory = memory.astype(f32)

    # ---- ProbAttention sampling bookkeeping (tiny, data dependent, XLA glue) ----
    U_part = min(5 * int(math.ceil(math.log(L))), L)
    u = min(5 * int(math.ceil(math.log(L))), L)
    index_sample = jax.random.randint(sample_key, (L, U_part), 0, L)
    count = jnp.zeros((L, L), f32).at[jnp.arange(L)[:, None], index_sample].add(1.0)
    presence = (count > 0).astype(f32)

    # ---- fused / bf16 weight bundles ----
    w_in = params["input_fc_w"]
    b_in = params["input_fc_b"].reshape(1, -1)
    w_tok = jnp.concatenate([params["tok_w0"], params["tok_w1"],
                             params["tok_w2"]], axis=0).astype(bf16)        # (3d, d)
    b_tok = params["tok_b"].reshape(1, -1)
    w_qkv = jnp.concatenate([params["self_q_w"], params["self_k_w"],
                             params["self_v_w"]], axis=1).astype(bf16)      # (d, 3d)
    b_qkv = jnp.concatenate([params["self_q_b"], params["self_k_b"],
                             params["self_v_b"]]).reshape(1, -1)
    pe = params["pe"][:L]

    shared2d = lambda a: pl.BlockSpec(a.shape, lambda b: (0, 0))
    batched3d = lambda a: pl.BlockSpec((1,) + tuple(a.shape[1:]), lambda b: (b, 0, 0))
    parallel1 = pltpu.CompilerParams(dimension_semantics=("parallel",))

    # ---- kernel 1: embed + PE + fused QKV + sparsity measure M ----
    emb, qkv, m_blh = pl.pallas_call(
        functools.partial(_embed_qkv_kernel, L=L, H=H, E=E, d_model=d_model),
        grid=(B,),
        in_specs=[batched3d(tgt), shared2d(pe), shared2d(presence), shared2d(count),
                  shared2d(w_in), shared2d(b_in), shared2d(w_tok), shared2d(b_tok),
                  shared2d(w_qkv), shared2d(b_qkv)],
        out_specs=[pl.BlockSpec((1, L, d_model), lambda b: (b, 0, 0)),
                   pl.BlockSpec((1, L, 3 * d_model), lambda b: (b, 0, 0)),
                   pl.BlockSpec((1, L, H), lambda b: (b, 0, 0))],
        out_shape=(jax.ShapeDtypeStruct((B, L, d_model), f32),
                   jax.ShapeDtypeStruct((B, L, 3 * d_model), f32),
                   jax.ShapeDtypeStruct((B, L, H), f32)),
        compiler_params=parallel1,
    )(tgt, pe, presence, count, w_in, b_in, w_tok, b_tok, w_qkv, b_qkv)

    # ---- glue: top-u query selection -> membership mask (B, L, H) ----
    m_bhl = jnp.swapaxes(m_blh, 1, 2)
    _, m_top = lax.top_k(m_bhl, u)                                          # (B, H, u)
    member = (m_top[..., None] == jnp.arange(L)[None, None, None, :]).any(axis=2)
    member = jnp.swapaxes(member, 1, 2).astype(f32)                         # (B, L, H)

    # ---- kernel 2: ProbAttention (dense equivalent) + mix + out proj + norm1 ----
    w_so = params["self_o_w"].astype(bf16)
    b_so = params["self_o_b"].reshape(1, -1)
    g1 = params["norm1_g"].reshape(1, -1)
    b1 = params["norm1_b"].reshape(1, -1)
    x1 = pl.pallas_call(
        functools.partial(_self_attn_norm_kernel, L=L, H=H, E=E,
                          d_model=d_model, scale=scale),
        grid=(B,),
        in_specs=[batched3d(qkv), batched3d(member), batched3d(emb),
                  shared2d(w_so), shared2d(b_so), shared2d(g1), shared2d(b1)],
        out_specs=pl.BlockSpec((1, L, d_model), lambda b: (b, 0, 0)),
        out_shape=jax.ShapeDtypeStruct((B, L, d_model), f32),
        compiler_params=parallel1,
    )(qkv, member, emb, w_so, b_so, g1, b1)

    # ---- kernel 3: cross attention + norm2 + FFN + norm3 + dec norm + projection ----
    w_cq = params["cross_q_w"].astype(bf16)
    b_cq = params["cross_q_b"].reshape(1, -1)
    w_ckv = jnp.concatenate([params["cross_k_w"], params["cross_v_w"]],
                            axis=1).astype(bf16)                            # (d, 2d)
    b_ckv = jnp.concatenate([params["cross_k_b"], params["cross_v_b"]]).reshape(1, -1)
    w_co = params["cross_o_w"].astype(bf16)
    b_co = params["cross_o_b"].reshape(1, -1)
    ln = jnp.stack([params["norm2_g"], params["norm2_b"],
                    params["norm3_g"], params["norm3_b"],
                    params["dec_norm_g"], params["dec_norm_b"]], axis=0)    # (6, d)
    w_f1 = params["conv1_w"].astype(bf16)
    b_f1 = params["conv1_b"].reshape(1, -1)
    w_f2 = params["conv2_w"].astype(bf16)
    b_f2 = params["conv2_b"].reshape(1, -1)
    w_p = params["proj_w"]
    b_p = params["proj_b"].reshape(1, -1)

    out = pl.pallas_call(
        functools.partial(_cross_ffn_proj_kernel, H=H, E=E,
                          d_model=d_model, scale=scale),
        grid=(B,),
        in_specs=[batched3d(x1), batched3d(memory),
                  shared2d(w_cq), shared2d(b_cq), shared2d(w_ckv), shared2d(b_ckv),
                  shared2d(w_co), shared2d(b_co), shared2d(ln),
                  shared2d(w_f1), shared2d(b_f1), shared2d(w_f2), shared2d(b_f2),
                  shared2d(w_p), shared2d(b_p)],
        out_specs=pl.BlockSpec((1, L, noutput), lambda b: (b, 0, 0)),
        out_shape=jax.ShapeDtypeStruct((B, L, noutput), f32),
        compiler_params=parallel1,
    )(x1, memory, w_cq, b_cq, w_ckv, b_ckv, w_co, b_co, ln,
      w_f1, b_f1, w_f2, b_f2, w_p, b_p)

    return out[:, -prediction_horizon:, :]


# ----------------------------- demo -----------------------------

if __name__ == "__main__":
    key = jax.random.PRNGKey(0)
    B, L, Sm = 2, 16, 16
    ninp, noutput = 8, 2          # decoder d_model is hard-coded to 256 in the module
    prediction_horizon = 8

    k_param, k_tgt, k_mem, k_sample = jax.random.split(key, 4)
    params = init_params(k_param, ninp, d_model=D_MODEL, d_ff=256, noutput=noutput)

    tgt = jax.random.normal(k_tgt, (B, L, ninp), jnp.float32)
    memory = jax.random.normal(k_mem, (B, Sm, D_MODEL), jnp.float32)
    tgt_mask = jnp.triu(jnp.ones((L, L), jnp.bool_), k=1)
    memory_mask = jnp.zeros((L, Sm), jnp.bool_)

    fwd = jax.jit(trajectory_decoder_forward, static_argnums=(1,))
    out = fwd(params, prediction_horizon, tgt, memory, tgt_mask, memory_mask,
              None, k_sample)
    out = jax.block_until_ready(out)
    assert out.shape == (B, prediction_horizon, noutput)
    assert bool(jnp.all(jnp.isfinite(out)))
    print("KERNEL_OK")
</pallas_src>

<mosaic_0001>
module attributes {stable_mosaic.version = 11 : i64} {
  func.func private @main(%arg0: i32) attributes {dimension_semantics = [#tpu.dimension_semantics<core_parallel>], iteration_bounds = array<i64: 2>, tpu.core_type = #tpu.core_type<sc_scalar_subcore>, window_params = []} {
    return
  }
}

module attributes {stable_mosaic.version = 11 : i64} {
  func.func private @main(%arg0: i32) attributes {dimension_semantics = [#tpu.dimension_semantics<core_parallel>], iteration_bounds = array<i64: 2>, tpu.core_type = #tpu.core_type<sc_scalar_subcore>, window_params = []} {
    return
  }
}

module attributes {stable_mosaic.version = 11 : i64} {
  func.func @_embed_qkv_kernel(%arg0: i32, %arg1: memref<1x16x8xf32, #tpu.memory_space<vmem>>, %arg2: memref<16x256xf32, #tpu.memory_space<vmem>>, %arg3: memref<16x16xf32, #tpu.memory_space<vmem>>, %arg4: memref<16x16xf32, #tpu.memory_space<vmem>>, %arg5: memref<8x256xf32, #tpu.memory_space<vmem>>, %arg6: memref<1x256xf32, #tpu.memory_space<vmem>>, %arg7: memref<768x256xbf16, #tpu.memory_space<vmem>>, %arg8: memref<1x256xf32, #tpu.memory_space<vmem>>, %arg9: memref<256x768xbf16, #tpu.memory_space<vmem>>, %arg10: memref<1x768xf32, #tpu.memory_space<vmem>>, %arg11: memref<1x16x256xf32, #tpu.memory_space<vmem>>, %arg12: memref<1x16x768xf32, #tpu.memory_space<vmem>>, %arg13: memref<1x16x8xf32, #tpu.memory_space<vmem>>) attributes {dimension_semantics = [#tpu.dimension_semantics<parallel>], iteration_bounds = array<i64: 2>, scalar_prefetch = 0 : i64, scratch_operands = 0 : i64, tpu.core_type = #tpu.core_type<tc>, window_params = [{transform_indices = @transform_0, window_bounds = array<i64: 1, 16, 8>}, {pipeline_mode = #tpu.pipeline_mode<synchronous>, transform_indices = @transform_1, window_bounds = array<i64: 16, 256>}, {pipeline_mode = #tpu.pipeline_mode<synchronous>, transform_indices = @transform_2, window_bounds = array<i64: 16, 16>}, {pipeline_mode = #tpu.pipeline_mode<synchronous>, transform_indices = @transform_3, window_bounds = array<i64: 16, 16>}, {pipeline_mode = #tpu.pipeline_mode<synchronous>, transform_indices = @transform_4, window_bounds = array<i64: 8, 256>}, {pipeline_mode = #tpu.pipeline_mode<synchronous>, transform_indices = @transform_5, window_bounds = array<i64: 1, 256>}, {pipeline_mode = #tpu.pipeline_mode<synchronous>, transform_indices = @transform_6, window_bounds = array<i64: 768, 256>}, {pipeline_mode = #tpu.pipeline_mode<synchronous>, transform_indices = @transform_7, window_bounds = array<i64: 1, 256>}, {pipeline_mode = #tpu.pipeline_mode<synchronous>, transform_indices = @transform_8, window_bounds = array<i64: 256, 768>}, {pipeline_mode = #tpu.pipeline_mode<synchronous>, transform_indices = @transform_9, window_bounds = array<i64: 1, 768>}, {transform_indices = @transform_10, window_bounds = array<i64: 1, 16, 256>}, {transform_indices = @transform_11, window_bounds = array<i64: 1, 16, 768>}, {transform_indices = @transform_12, window_bounds = array<i64: 1, 16, 8>}]} {
    %c0 = arith.constant 0 : index
    %c0_0 = arith.constant 0 : index
    %c0_1 = arith.constant 0 : index
    %0 = vector.load %arg1[%c0, %c0_0, %c0_1] : memref<1x16x8xf32, #tpu.memory_space<vmem>>, vector<1x16x8xf32>
    %1 = vector.shape_cast %0 : vector<1x16x8xf32> to vector<16x8xf32>
    %2 = arith.cmpf one, %1, %1 : vector<16x8xf32>
    %cst = arith.constant 0.000000e+00 : f32
    %3 = vector.broadcast %cst : f32 to vector<16x8xf32>
    %4 = arith.select %2, %3, %1 : vector<16x8xi1>, vector<16x8xf32>
    %cst_2 = arith.constant -3.40282347E+38 : f32
    %cst_3 = arith.constant 3.40282347E+38 : f32
    %5 = vector.broadcast %cst_2 : f32 to vector<16x8xf32>
    %6 = arith.maximumf %5, %4 : vector<16x8xf32>
    %7 = vector.broadcast %cst_3 : f32 to vector<16x8xf32>
    %8 = arith.minimumf %7, %6 : vector<16x8xf32>
    %c0_4 = arith.constant 0 : index
    %c0_5 = arith.constant 0 : index
    %9 = vector.load %arg5[%c0_4, %c0_5] : memref<8x256xf32, #tpu.memory_space<vmem>>, vector<8x256xf32>
    %cst_6 = arith.constant dense<0.000000e+00> : vector<16x256xf32>
    %10 = tpu.matmul %8, %9, %cst_6 {dimension_numbers = #tpu.dot_dimension_numbers<[1], [0], [0], [1], [0, 0, 1, 1], [], []>} : vector<16x8xf32>, vector<8x256xf32>, vector<16x256xf32> -> vector<16x256xf32>
    %c0_7 = arith.constant 0 : index
    %c0_8 = arith.constant 0 : index
    %11 = vector.load %arg6[%c0_7, %c0_8] : memref<1x256xf32, #tpu.memory_space<vmem>>, vector<1x256xf32>
    %12 = vector.broadcast %11 : vector<1x256xf32> to vector<16x256xf32>
    %13 = arith.addf %10, %12 : vector<16x256xf32>
    %14 = vector.extract_strided_slice %13 {offsets = [15, 0], sizes = [1, 256], strides = [1, 1]} : vector<16x256xf32> to vector<1x256xf32>
    %15 = vector.extract_strided_slice %13 {offsets = [0, 0], sizes = [15, 256], strides = [1, 1]} : vector<16x256xf32> to vector<15x256xf32>
    %16 = tpu.concatenate %14, %15 in 0 : vector<1x256xf32>, vector<15x256xf32> -> vector<16x256xf32>
    %17 = vector.extract_strided_slice %13 {offsets = [1, 0], sizes = [15, 256], strides = [1, 1]} : vector<16x256xf32> to vector<15x256xf32>
    %18 = vector.extract_strided_slice %13 {offsets = [0, 0], sizes = [1, 256], strides = [1, 1]} : vector<16x256xf32> to vector<1x256xf32>
    %19 = tpu.concatenate %17, %18 in 0 : vector<15x256xf32>, vector<1x256xf32> -> vector<16x256xf32>
    %20 = tpu.concatenate %16, %13, %19 in 1 : vector<16x256xf32>, vector<16x256xf32>, vector<16x256xf32> -> vector<16x768xf32>
    %21 = arith.truncf %20 : vector<16x768xf32> to vector<16x768xbf16>
    %c0_9 = arith.constant 0 : index
    %c0_10 = arith.constant 0 : index
    %22 = vector.load %arg7[%c0_9, %c0_10] : memref<768x256xbf16, #tpu.memory_space<vmem>>, vector<768x256xbf16>
    %cst_11 = arith.constant dense<0.000000e+00> : vector<16x256xf32>
    %23 = tpu.matmul %21, %22, %cst_11 {dimension_numbers = #tpu.dot_dimension_numbers<[1], [0], [0], [1], [0, 0, 1, 1], [], []>} : vector<16x768xbf16>, vector<768x256xbf16>, vector<16x256xf32> -> vector<16x256xf32>
    %c0_12 = arith.constant 0 : index
    %c0_13 = arith.constant 0 : index
    %24 = vector.load %arg8[%c0_12, %c0_13] : memref<1x256xf32, #tpu.memory_space<vmem>>, vector<1x256xf32>
    %25 = vector.broadcast %24 : vector<1x256xf32> to vector<16x256xf32>
    %26 = arith.addf %23, %25 : vector<16x256xf32>
    %c0_14 = arith.constant 0 : index
    %c0_15 = arith.constant 0 : index
    %27 = vector.load %arg2[%c0_14, %c0_15] : memref<16x256xf32, #tpu.memory_space<vmem>>, vector<16x256xf32>
    %28 = arith.addf %26, %27 : vector<16x256xf32>
    %cst_16 = arith.constant 2.000000e+00 : f32
    %29 = vector.broadcast %cst_16 : f32 to vector<16x256xf32>
    %30 = arith.mulf %29, %13 : vector<16x256xf32>
    %31 = arith.addf %28, %30 : vector<16x256xf32>
    %c0_17 = arith.constant 0 : index
    %c0_18 = arith.constant 0 : index
    %c0_19 = arith.constant 0 : index
    %32 = vector.load %arg11[%c0_17, %c0_18, %c0_19] : memref<1x16x256xf32, #tpu.memory_space<vmem>>, vector<1x16x256xf32>
    %33 = vector.shape_cast %32 : vector<1x16x256xf32> to vector<16x256xf32>
    %34 = vector.shape_cast %31 : vector<16x256xf32> to vector<1x16x256xf32>
    tpu.vector_store %arg11[%c0_17, %c0_18, %c0_19], %34 {strides = array<i32>} : memref<1x16x256xf32, #tpu.memory_space<vmem>>, vector<1x16x256xf32>,
    %35 = arith.truncf %31 : vector<16x256xf32> to vector<16x256xbf16>
    %c0_20 = arith.constant 0 : index
    %c0_21 = arith.constant 0 : index
    %36 = vector.load %arg9[%c0_20, %c0_21] : memref<256x768xbf16, #tpu.memory_space<vmem>>, vector<256x768xbf16>
    %cst_22 = arith.constant dense<0.000000e+00> : vector<16x768xf32>
    %37 = tpu.matmul %35, %36, %cst_22 {dimension_numbers = #tpu.dot_dimension_numbers<[1], [0], [0], [1], [0, 0, 1, 1], [], []>} : vector<16x256xbf16>, vector<256x768xbf16>, vector<16x768xf32> -> vector<16x768xf32>
    %c0_23 = arith.constant 0 : index
    %c0_24 = arith.constant 0 : index
    %38 = vector.load %arg10[%c0_23, %c0_24] : memref<1x768xf32, #tpu.memory_space<vmem>>, vector<1x768xf32>
    %39 = vector.broadcast %38 : vector<1x768xf32> to vector<16x768xf32>
    %40 = arith.addf %37, %39 : vector<16x768xf32>
    %c0_25 = arith.constant 0 : index
    %c0_26 = arith.constant 0 : index
    %c0_27 = arith.constant 0 : index
    %41 = vector.load %arg12[%c0_25, %c0_26, %c0_27] : memref<1x16x768xf32, #tpu.memory_space<vmem>>, vector<1x16x768xf32>
    %42 = vector.shape_cast %41 : vector<1x16x768xf32> to vector<16x768xf32>
    %43 = vector.shape_cast %40 : vector<16x768xf32> to vector<1x16x768xf32>
    tpu.vector_store %arg12[%c0_25, %c0_26, %c0_27], %43 {strides = array<i32>} : memref<1x16x768xf32, #tpu.memory_space<vmem>>, vector<1x16x768xf32>,
    %c0_28 = arith.constant 0 : index
    %c0_29 = arith.constant 0 : index
    %44 = vector.load %arg3[%c0_28, %c0_29] : memref<16x16xf32, #tpu.memory_space<vmem>>, vector<16x16xf32>
    %c0_30 = arith.constant 0 : index
    %c0_31 = arith.constant 0 : index
    %45 = vector.load %arg4[%c0_30, %c0_31] : memref<16x16xf32, #tpu.memory_space<vmem>>, vector<16x16xf32>
    %46 = vector.extract_strided_slice %40 {offsets = [0, 0], sizes = [16, 32], strides = [1, 1]} : vector<16x768xf32> to vector<16x32xf32>
    %47 = arith.truncf %46 : vector<16x32xf32> to vector<16x32xbf16>
    %48 = vector.extract_strided_slice %40 {offsets = [0, 256], sizes = [16, 32], strides = [1, 1]} : vector<16x768xf32> to vector<16x32xf32>
    %49 = arith.truncf %48 : vector<16x32xf32> to vector<16x32xbf16>
    %cst_32 = arith.constant dense<0.000000e+00> : vector<16x16xf32>
    %50 = tpu.matmul %47, %49, %cst_32 {dimension_numbers = #tpu.dot_dimension_numbers<[1], [1], [0], [0], [0, 0, 1, 0], [], []>} : vector<16x32xbf16>, vector<16x32xbf16>, vector<16x16xf32> -> vector<16x16xf32>
    %cst_33 = arith.constant 5.000000e-01 : f32
    %51 = vector.broadcast %cst_33 : f32 to vector<16x16xf32>
    %52 = arith.cmpf ogt, %44, %51 : vector<16x16xf32>
    %cst_34 = arith.constant -1.000000e+30 : f32
    %53 = vector.broadcast %cst_34 : f32 to vector<16x16xf32>
    %54 = arith.select %52, %50, %53 : vector<16x16xi1>, vector<16x16xf32>
    %cst_35 = arith.constant dense<0xFF800000> : vector<16xf32>
    %55 = vector.multi_reduction <maximumf>, %54, %cst_35 [1] : vector<16x16xf32> to vector<16xf32>
    %56 = vector.shape_cast %55 : vector<16xf32> to vector<16x1xf32>
    %57 = arith.mulf %50, %45 : vector<16x16xf32>
    %cst_36 = arith.constant dense<0.000000e+00> : vector<16xf32>
    %58 = vector.multi_reduction <add>, %57, %cst_36 [1] : vector<16x16xf32> to vector<16xf32>
    %59 = vector.shape_cast %58 : vector<16xf32> to vector<16x1xf32>
    %cst_37 = arith.constant 6.250000e-02 : f32
    %60 = vector.broadcast %cst_37 : f32 to vector<16x1xf32>
    %61 = arith.mulf %59, %60 : vector<16x1xf32>
    %62 = arith.subf %56, %61 : vector<16x1xf32>
    %63 = vector.extract_strided_slice %40 {offsets = [0, 32], sizes = [16, 32], strides = [1, 1]} : vector<16x768xf32> to vector<16x32xf32>
    %64 = arith.truncf %63 : vector<16x32xf32> to vector<16x32xbf16>
    %65 = vector.extract_strided_slice %40 {offsets = [0, 288], sizes = [16, 32], strides = [1, 1]} : vector<16x768xf32> to vector<16x32xf32>
    %66 = arith.truncf %65 : vector<16x32xf32> to vector<16x32xbf16>
    %cst_38 = arith.constant dense<0.000000e+00> : vector<16x16xf32>
    %67 = tpu.matmul %64, %66, %cst_38 {dimension_numbers = #tpu.dot_dimension_numbers<[1], [1], [0], [0], [0, 0, 1, 0], [], []>} : vector<16x32xbf16>, vector<16x32xbf16>, vector<16x16xf32> -> vector<16x16xf32>
    %cst_39 = arith.constant 5.000000e-01 : f32
    %68 = vector.broadcast %cst_39 : f32 to vector<16x16xf32>
    %69 = arith.cmpf ogt, %44, %68 : vector<16x16xf32>
    %cst_40 = arith.constant -1.000000e+30 : f32
    %70 = vector.broadcast %cst_40 : f32 to vector<16x16xf32>
    %71 = arith.select %69, %67, %70 : vector<16x16xi1>, vector<16x16xf32>
    %cst_41 = arith.constant dense<0xFF800000> : vector<16xf32>
    %72 = vector.multi_reduction <maximumf>, %71, %cst_41 [1] : vector<16x16xf32> to vector<16xf32>
    %73 = vector.shape_cast %72 : vector<16xf32> to vector<16x1xf32>
    %74 = arith.mulf %67, %45 : vector<16x16xf32>
    %cst_42 = arith.constant dense<0.000000e+00> : vector<16xf32>
    %75 = vector.multi_reduction <add>, %74, %cst_42 [1] : vector<16x16xf32> to vector<16xf32>
    %76 = vector.shape_cast %75 : vector<16xf32> to vector<16x1xf32>
    %cst_43 = arith.constant 6.250000e-02 : f32
    %77 = vector.broadcast %cst_43 : f32 to vector<16x1xf32>
    %78 = arith.mulf %76, %77 : vector<16x1xf32>
    %79 = arith.subf %73, %78 : vector<16x1xf32>
    %80 = vector.extract_strided_slice %40 {offsets = [0, 64], sizes = [16, 32], strides = [1, 1]} : vector<16x768xf32> to vector<16x32xf32>
    %81 = arith.truncf %80 : vector<16x32xf32> to vector<16x32xbf16>
    %82 = vector.extract_strided_slice %40 {offsets = [0, 320], sizes = [16, 32], strides = [1, 1]} : vector<16x768xf32> to vector<16x32xf32>
    %83 = arith.truncf %82 : vector<16x32xf32> to vector<16x32xbf16>
    %cst_44 = arith.constant dense<0.000000e+00> : vector<16x16xf32>
    %84 = tpu.matmul %81, %83, %cst_44 {dimension_numbers = #tpu.dot_dimension_numbers<[1], [1], [0], [0], [0, 0, 1, 0], [], []>} : vector<16x32xbf16>, vector<16x32xbf16>, vector<16x16xf32> -> vector<16x16xf32>
    %cst_45 = arith.constant 5.000000e-01 : f32
    %85 = vector.broadcast %cst_45 : f32 to vector<16x16xf32>
    %86 = arith.cmpf ogt, %44, %85 : vector<16x16xf32>
    %cst_46 = arith.constant -1.000000e+30 : f32
    %87 = vector.broadcast %cst_46 : f32 to vector<16x16xf32>
    %88 = arith.select %86, %84, %87 : vector<16x16xi1>, vector<16x16xf32>
    %cst_47 = arith.constant dense<0xFF800000> : vector<16xf32>
    %89 = vector.multi_reduction <maximumf>, %88, %cst_47 [1] : vector<16x16xf32> to vector<16xf32>
    %90 = vector.shape_cast %89 : vector<16xf32> to vector<16x1xf32>
    %91 = arith.mulf %84, %45 : vector<16x16xf32>
    %cst_48 = arith.constant dense<0.000000e+00> : vector<16xf32>
    %92 = vector.multi_reduction <add>, %91, %cst_48 [1] : vector<16x16xf32> to vector<16xf32>
    %93 = vector.shape_cast %92 : vector<16xf32> to vector<16x1xf32>
    %cst_49 = arith.constant 6.250000e-02 : f32
    %94 = vector.broadcast %cst_49 : f32 to vector<16x1xf32>
    %95 = arith.mulf %93, %94 : vector<16x1xf32>
    %96 = arith.subf %90, %95 : vector<16x1xf32>
    %97 = vector.extract_strided_slice %40 {offsets = [0, 96], sizes = [16, 32], strides = [1, 1]} : vector<16x768xf32> to vector<16x32xf32>
    %98 = arith.truncf %97 : vector<16x32xf32> to vector<16x32xbf16>
    %99 = vector.extract_strided_slice %40 {offsets = [0, 352], sizes = [16, 32], strides = [1, 1]} : vector<16x768xf32> to vector<16x32xf32>
    %100 = arith.truncf %99 : vector<16x32xf32> to vector<16x32xbf16>
    %cst_50 = arith.constant dense<0.000000e+00> : vector<16x16xf32>
    %101 = tpu.matmul %98, %100, %cst_50 {dimension_numbers = #tpu.dot_dimension_numbers<[1], [1], [0], [0], [0, 0, 1, 0], [], []>} : vector<16x32xbf16>, vector<16x32xbf16>, vector<16x16xf32> -> vector<16x16xf32>
    %cst_51 = arith.constant 5.000000e-01 : f32
    %102 = vector.broadcast %cst_51 : f32 to vector<16x16xf32>
    %103 = arith.cmpf ogt, %44, %102 : vector<16x16xf32>
    %cst_52 = arith.constant -1.000000e+30 : f32
    %104 = vector.broadcast %cst_52 : f32 to vector<16x16xf32>
    %105 = arith.select %103, %101, %104 : vector<16x16xi1>, vector<16x16xf32>
    %cst_53 = arith.constant dense<0xFF800000> : vector<16xf32>
    %106 = vector.multi_reduction <maximumf>, %105, %cst_53 [1] : vector<16x16xf32> to vector<16xf32>
    %107 = vector.shape_cast %106 : vector<16xf32> to vector<16x1xf32>
    %108 = arith.mulf %101, %45 : vector<16x16xf32>
    %cst_54 = arith.constant dense<0.000000e+00> : vector<16xf32>
    %109 = vector.multi_reduction <add>, %108, %cst_54 [1] : vector<16x16xf32> to vector<16xf32>
    %110 = vector.shape_cast %109 : vector<16xf32> to vector<16x1xf32>
    %cst_55 = arith.constant 6.250000e-02 : f32
    %111 = vector.broadcast %cst_55 : f32 to vector<16x1xf32>
    %112 = arith.mulf %110, %111 : vector<16x1xf32>
    %113 = arith.subf %107, %112 : vector<16x1xf32>
    %114 = vector.extract_strided_slice %40 {offsets = [0, 128], sizes = [16, 32], strides = [1, 1]} : vector<16x768xf32> to vector<16x32xf32>
    %115 = arith.truncf %114 : vector<16x32xf32> to vector<16x32xbf16>
    %116 = vector.extract_strided_slice %40 {offsets = [0, 384], sizes = [16, 32], strides = [1, 1]} : vector<16x768xf32> to vector<16x32xf32>
    %117 = arith.truncf %116 : vector<16x32xf32> to vector<16x32xbf16>
    %cst_56 = arith.constant dense<0.000000e+00> : vector<16x16xf32>
    %118 = tpu.matmul %115, %117, %cst_56 {dimension_numbers = #tpu.dot_dimension_numbers<[1], [1], [0], [0], [0, 0, 1, 0], [], []>} : vector<16x32xbf16>, vector<16x32xbf16>, vector<16x16xf32> -> vector<16x16xf32>
    %cst_57 = arith.constant 5.000000e-01 : f32
    %119 = vector.broadcast %cst_57 : f32 to vector<16x16xf32>
    %120 = arith.cmpf ogt, %44, %119 : vector<16x16xf32>
    %cst_58 = arith.constant -1.000000e+30 : f32
    %121 = vector.broadcast %cst_58 : f32 to vector<16x16xf32>
    %122 = arith.select %120, %118, %121 : vector<16x16xi1>, vector<16x16xf32>
    %cst_59 = arith.constant dense<0xFF800000> : vector<16xf32>
    %123 = vector.multi_reduction <maximumf>, %122, %cst_59 [1] : vector<16x16xf32> to vector<16xf32>
    %124 = vector.shape_cast %123 : vector<16xf32> to vector<16x1xf32>
    %125 = arith.mulf %118, %45 : vector<16x16xf32>
    %cst_60 = arith.constant dense<0.000000e+00> : vector<16xf32>
    %126 = vector.multi_reduction <add>, %125, %cst_60 [1] : vector<16x16xf32> to vector<16xf32>
    %127 = vector.shape_cast %126 : vector<16xf32> to vector<16x1xf32>
    %cst_61 = arith.constant 6.250000e-02 : f32
    %128 = vector.broadcast %cst_61 : f32 to vector<16x1xf32>
    %129 = arith.mulf %127, %128 : vector<16x1xf32>
    %130 = arith.subf %124, %129 : vector<16x1xf32>
    %131 = vector.extract_strided_slice %40 {offsets = [0, 160], sizes = [16, 32], strides = [1, 1]} : vector<16x768xf32> to vector<16x32xf32>
    %132 = arith.truncf %131 : vector<16x32xf32> to vector<16x32xbf16>
    %133 = vector.extract_strided_slice %40 {offsets = [0, 416], sizes = [16, 32], strides = [1, 1]} : vector<16x768xf32> to vector<16x32xf32>
    %134 = arith.truncf %133 : vector<16x32xf32> to vector<16x32xbf16>
    %cst_62 = arith.constant dense<0.000000e+00> : vector<16x16xf32>
    %135 = tpu.matmul %132, %134, %cst_62 {dimension_numbers = #tpu.dot_dimension_numbers<[1], [1], [0], [0], [0, 0, 1, 0], [], []>} : vector<16x32xbf16>, vector<16x32xbf16>, vector<16x16xf32> -> vector<16x16xf32>
    %cst_63 = arith.constant 5.000000e-01 : f32
    %136 = vector.broadcast %cst_63 : f32 to vector<16x16xf32>
    %137 = arith.cmpf ogt, %44, %136 : vector<16x16xf32>
    %cst_64 = arith.constant -1.000000e+30 : f32
    %138 = vector.broadcast %cst_64 : f32 to vector<16x16xf32>
    %139 = arith.select %137, %135, %138 : vector<16x16xi1>, vector<16x16xf32>
    %cst_65 = arith.constant dense<0xFF800000> : vector<16xf32>
    %140 = vector.multi_reduction <maximumf>, %139, %cst_65 [1] : vector<16x16xf32> to vector<16xf32>
    %141 = vector.shape_cast %140 : vector<16xf32> to vector<16x1xf32>
    %142 = arith.mulf %135, %45 : vector<16x16xf32>
    %cst_66 = arith.constant dense<0.000000e+00> : vector<16xf32>
    %143 = vector.multi_reduction <add>, %142, %cst_66 [1] : vector<16x16xf32> to vector<16xf32>
    %144 = vector.shape_cast %143 : vector<16xf32> to vector<16x1xf32>
    %cst_67 = arith.constant 6.250000e-02 : f32
    %145 = vector.broadcast %cst_67 : f32 to vector<16x1xf32>
    %146 = arith.mulf %144, %145 : vector<16x1xf32>
    %147 = arith.subf %141, %146 : vector<16x1xf32>
    %148 = vector.extract_strided_slice %40 {offsets = [0, 192], sizes = [16, 32], strides = [1, 1]} : vector<16x768xf32> to vector<16x32xf32>
    %149 = arith.truncf %148 : vector<16x32xf32> to vector<16x32xbf16>
    %150 = vector.extract_strided_slice %40 {offsets = [0, 448], sizes = [16, 32], strides = [1, 1]} : vector<16x768xf32> to vector<16x32xf32>
    %151 = arith.truncf %150 : vector<16x32xf32> to vector<16x32xbf16>
    %cst_68 = arith.constant dense<0.000000e+00> : vector<16x16xf32>
    %152 = tpu.matmul %149, %151, %cst_68 {dimension_numbers = #tpu.dot_dimension_numbers<[1], [1], [0], [0], [0, 0, 1, 0], [], []>} : vector<16x32xbf16>, vector<16x32xbf16>, vector<16x16xf32> -> vector<16x16xf32>
    %cst_69 = arith.constant 5.000000e-01 : f32
    %153 = vector.broadcast %cst_69 : f32 to vector<16x16xf32>
    %154 = arith.cmpf ogt, %44, %153 : vector<16x16xf32>
    %cst_70 = arith.constant -1.000000e+30 : f32
    %155 = vector.broadcast %cst_70 : f32 to vector<16x16xf32>
    %156 = arith.select %154, %152, %155 : vector<16x16xi1>, vector<16x16xf32>
    %cst_71 = arith.constant dense<0xFF800000> : vector<16xf32>
    %157 = vector.multi_reduction <maximumf>, %156, %cst_71 [1] : vector<16x16xf32> to vector<16xf32>
    %158 = vector.shape_cast %157 : vector<16xf32> to vector<16x1xf32>
    %159 = arith.mulf %152, %45 : vector<16x16xf32>
    %cst_72 = arith.constant dense<0.000000e+00> : vector<16xf32>
    %160 = vector.multi_reduction <add>, %159, %cst_72 [1] : vector<16x16xf32> to vector<16xf32>
    %161 = vector.shape_cast %160 : vector<16xf32> to vector<16x1xf32>
    %cst_73 = arith.constant 6.250000e-02 : f32
    %162 = vector.broadcast %cst_73 : f32 to vector<16x1xf32>
    %163 = arith.mulf %161, %162 : vector<16x1xf32>
    %164 = arith.subf %158, %163 : vector<16x1xf32>
    %165 = vector.extract_strided_slice %40 {offsets = [0, 224], sizes = [16, 32], strides = [1, 1]} : vector<16x768xf32> to vector<16x32xf32>
    %166 = arith.truncf %165 : vector<16x32xf32> to vector<16x32xbf16>
    %167 = vector.extract_strided_slice %40 {offsets = [0, 480], sizes = [16, 32], strides = [1, 1]} : vector<16x768xf32> to vector<16x32xf32>
    %168 = arith.truncf %167 : vector<16x32xf32> to vector<16x32xbf16>
    %cst_74 = arith.constant dense<0.000000e+00> : vector<16x16xf32>
    %169 = tpu.matmul %166, %168, %cst_74 {dimension_numbers = #tpu.dot_dimension_numbers<[1], [1], [0], [0], [0, 0, 1, 0], [], []>} : vector<16x32xbf16>, vector<16x32xbf16>, vector<16x16xf32> -> vector<16x16xf32>
    %cst_75 = arith.constant 5.000000e-01 : f32
    %170 = vector.broadcast %cst_75 : f32 to vector<16x16xf32>
    %171 = arith.cmpf ogt, %44, %170 : vector<16x16xf32>
    %cst_76 = arith.constant -1.000000e+30 : f32
    %172 = vector.broadcast %cst_76 : f32 to vector<16x16xf32>
    %173 = arith.select %171, %169, %172 : vector<16x16xi1>, vector<16x16xf32>
    %cst_77 = arith.constant dense<0xFF800000> : vector<16xf32>
    %174 = vector.multi_reduction <maximumf>, %173, %cst_77 [1] : vector<16x16xf32> to vector<16xf32>
    %175 = vector.shape_cast %174 : vector<16xf32> to vector<16x1xf32>
    %176 = arith.mulf %169, %45 : vector<16x16xf32>
    %cst_78 = arith.constant dense<0.000000e+00> : vector<16xf32>
    %177 = vector.multi_reduction <add>, %176, %cst_78 [1] : vector<16x16xf32> to vector<16xf32>
    %178 = vector.shape_cast %177 : vector<16xf32> to vector<16x1xf32>
    %cst_79 = arith.constant 6.250000e-02 : f32
    %179 = vector.broadcast %cst_79 : f32 to vector<16x1xf32>
    %180 = arith.mulf %178, %179 : vector<16x1xf32>
    %181 = arith.subf %175, %180 : vector<16x1xf32>
    %182 = tpu.concatenate %62, %79, %96, %113, %130, %147, %164, %181 in 1 : vector<16x1xf32>, vector<16x1xf32>, vector<16x1xf32>, vector<16x1xf32>, vector<16x1xf32>, vector<16x1xf32>, vector<16x1xf32>, vector<16x1xf32> -> vector<16x8xf32>
    %c0_80 = arith.constant 0 : index
    %c0_81 = arith.constant 0 : index
    %c0_82 = arith.constant 0 : index
    %183 = vector.load %arg13[%c0_80, %c0_81, %c0_82] : memref<1x16x8xf32, #tpu.memory_space<vmem>>, vector<1x16x8xf32>
    %184 = vector.shape_cast %183 : vector<1x16x8xf32> to vector<16x8xf32>
    %185 = vector.shape_cast %182 : vector<16x8xf32> to vector<1x16x8xf32>
    tpu.vector_store %arg13[%c0_80, %c0_81, %c0_82], %185 {strides = array<i32>} : memref<1x16x8xf32, #tpu.memory_space<vmem>>, vector<1x16x8xf32>,
    return
  }
  func.func @transform_0(%arg0: i32) -> (i32, i32, i32) {
    %c0_i32 = arith.constant 0 : i32
    %c0_i32_0 = arith.constant 0 : i32
    %c0_i32_1 = arith.constant 0 : i32
    return %arg0, %c0_i32, %c0_i32_0 : i32, i32, i32
  }
  func.func @transform_1(%arg0: i32) -> (i32, i32) {
    %c0_i32 = arith.constant 0 : i32
    %c0_i32_0 = arith.constant 0 : i32
    %c0_i32_1 = arith.constant 0 : i32
    return %c0_i32, %c0_i32_0 : i32, i32
  }
  func.func @transform_2(%arg0: i32) -> (i32, i32) {
    %c0_i32 = arith.constant 0 : i32
    %c0_i32_0 = arith.constant 0 : i32
    %c0_i32_1 = arith.constant 0 : i32
    return %c0_i32, %c0_i32_0 : i32, i32
  }
  func.func @transform_3(%arg0: i32) -> (i32, i32) {
    %c0_i32 = arith.constant 0 : i32
    %c0_i32_0 = arith.constant 0 : i32
    %c0_i32_1 = arith.constant 0 : i32
    return %c0_i32, %c0_i32_0 : i32, i32
  }
  func.func @transform_4(%arg0: i32) -> (i32, i32) {
    %c0_i32 = arith.constant 0 : i32
    %c0_i32_0 = arith.constant 0 : i32
    %c0_i32_1 = arith.constant 0 : i32
    return %c0_i32, %c0_i32_0 : i32, i32
  }
  func.func @transform_5(%arg0: i32) -> (i32, i32) {
    %c0_i32 = arith.constant 0 : i32
    %c0_i32_0 = arith.constant 0 : i32
    %c0_i32_1 = arith.constant 0 : i32
    return %c0_i32, %c0_i32_0 : i32, i32
  }
  func.func @transform_6(%arg0: i32) -> (i32, i32) {
    %c0_i32 = arith.constant 0 : i32
    %c0_i32_0 = arith.constant 0 : i32
    %c0_i32_1 = arith.constant 0 : i32
    return %c0_i32, %c0_i32_0 : i32, i32
  }
  func.func @transform_7(%arg0: i32) -> (i32, i32) {
    %c0_i32 = arith.constant 0 : i32
    %c0_i32_0 = arith.constant 0 : i32
    %c0_i32_1 = arith.constant 0 : i32
    return %c0_i32, %c0_i32_0 : i32, i32
  }
  func.func @transform_8(%arg0: i32) -> (i32, i32) {
    %c0_i32 = arith.constant 0 : i32
    %c0_i32_0 = arith.constant 0 : i32
    %c0_i32_1 = arith.constant 0 : i32
    return %c0_i32, %c0_i32_0 : i32, i32
  }
  func.func @transform_9(%arg0: i32) -> (i32, i32) {
    %c0_i32 = arith.constant 0 : i32
    %c0_i32_0 = arith.constant 0 : i32
    %c0_i32_1 = arith.constant 0 : i32
    return %c0_i32, %c0_i32_0 : i32, i32
  }
  func.func @transform_10(%arg0: i32) -> (i32, i32, i32) {
    %c0_i32 = arith.constant 0 : i32
    %c0_i32_0 = arith.constant 0 : i32
    %c0_i32_1 = arith.constant 0 : i32
    return %arg0, %c0_i32, %c0_i32_0 : i32, i32, i32
  }
  func.func @transform_11(%arg0: i32) -> (i32, i32, i32) {
    %c0_i32 = arith.constant 0 : i32
    %c0_i32_0 = arith.constant 0 : i32
    %c0_i32_1 = arith.constant 0 : i32
    return %arg0, %c0_i32, %c0_i32_0 : i32, i32, i32
  }
  func.func @transform_12(%arg0: i32) -> (i32, i32, i32) {
    %c0_i32 = arith.constant 0 : i32
    %c0_i32_0 = arith.constant 0 : i32
    %c0_i32_1 = arith.constant 0 : i32
    return %arg0, %c0_i32, %c0_i32_0 : i32, i32, i32
  }
}

module attributes {stable_mosaic.version = 11 : i64} {
  func.func @_cross_ffn_proj_kernel(%arg0: i32, %arg1: memref<1x16x256xf32, #tpu.memory_space<vmem>>, %arg2: memref<1x16x256xf32, #tpu.memory_space<vmem>>, %arg3: memref<256x256xbf16, #tpu.memory_space<vmem>>, %arg4: memref<1x256xf32, #tpu.memory_space<vmem>>, %arg5: memref<256x512xbf16, #tpu.memory_space<vmem>>, %arg6: memref<1x512xf32, #tpu.memory_space<vmem>>, %arg7: memref<256x256xbf16, #tpu.memory_space<vmem>>, %arg8: memref<1x256xf32, #tpu.memory_space<vmem>>, %arg9: memref<6x256xf32, #tpu.memory_space<vmem>>, %arg10: memref<256x256xbf16, #tpu.memory_space<vmem>>, %arg11: memref<1x256xf32, #tpu.memory_space<vmem>>, %arg12: memref<256x256xbf16, #tpu.memory_space<vmem>>, %arg13: memref<1x256xf32, #tpu.memory_space<vmem>>, %arg14: memref<256x2xf32, #tpu.memory_space<vmem>>, %arg15: memref<1x2xf32, #tpu.memory_space<vmem>>, %arg16: memref<1x16x2xf32, #tpu.memory_space<vmem>>) attributes {dimension_semantics = [#tpu.dimension_semantics<parallel>], iteration_bounds = array<i64: 2>, scalar_prefetch = 0 : i64, scratch_operands = 0 : i64, tpu.core_type = #tpu.core_type<tc>, window_params = [{transform_indices = @transform_0, window_bounds = array<i64: 1, 16, 256>}, {transform_indices = @transform_1, window_bounds = array<i64: 1, 16, 256>}, {pipeline_mode = #tpu.pipeline_mode<synchronous>, transform_indices = @transform_2, window_bounds = array<i64: 256, 256>}, {pipeline_mode = #tpu.pipeline_mode<synchronous>, transform_indices = @transform_3, window_bounds = array<i64: 1, 256>}, {pipeline_mode = #tpu.pipeline_mode<synchronous>, transform_indices = @transform_4, window_bounds = array<i64: 256, 512>}, {pipeline_mode = #tpu.pipeline_mode<synchronous>, transform_indices = @transform_5, window_bounds = array<i64: 1, 512>}, {pipeline_mode = #tpu.pipeline_mode<synchronous>, transform_indices = @transform_6, window_bounds = array<i64: 256, 256>}, {pipeline_mode = #tpu.pipeline_mode<synchronous>, transform_indices = @transform_7, window_bounds = array<i64: 1, 256>}, {pipeline_mode = #tpu.pipeline_mode<synchronous>, transform_indices = @transform_8, window_bounds = array<i64: 6, 256>}, {pipeline_mode = #tpu.pipeline_mode<synchronous>, transform_indices = @transform_9, window_bounds = array<i64: 256, 256>}, {pipeline_mode = #tpu.pipeline_mode<synchronous>, transform_indices = @transform_10, window_bounds = array<i64: 1, 256>}, {pipeline_mode = #tpu.pipeline_mode<synchronous>, transform_indices = @transform_11, window_bounds = array<i64: 256, 256>}, {pipeline_mode = #tpu.pipeline_mode<synchronous>, transform_indices = @transform_12, window_bounds = array<i64: 1, 256>}, {pipeline_mode = #tpu.pipeline_mode<synchronous>, transform_indices = @transform_13, window_bounds = array<i64: 256, 2>}, {pipeline_mode = #tpu.pipeline_mode<synchronous>, transform_indices = @transform_14, window_bounds = array<i64: 1, 2>}, {transform_indices = @transform_15, window_bounds = array<i64: 1, 16, 2>}]} {
    %c0 = arith.constant 0 : index
    %c0_0 = arith.constant 0 : index
    %c0_1 = arith.constant 0 : index
    %0 = vector.load %arg1[%c0, %c0_0, %c0_1] : memref<1x16x256xf32, #tpu.memory_space<vmem>>, vector<1x16x256xf32>
    %1 = vector.shape_cast %0 : vector<1x16x256xf32> to vector<16x256xf32>
    %c0_2 = arith.constant 0 : index
    %c0_3 = arith.constant 0 : index
    %c0_4 = arith.constant 0 : index
    %2 = vector.load %arg2[%c0_2, %c0_3, %c0_4] : memref<1x16x256xf32, #tpu.memory_space<vmem>>, vector<1x16x256xf32>
    %3 = vector.shape_cast %2 : vector<1x16x256xf32> to vector<16x256xf32>
    %4 = arith.truncf %1 : vector<16x256xf32> to vector<16x256xbf16>
    %c0_5 = arith.constant 0 : index
    %c0_6 = arith.constant 0 : index
    %5 = vector.load %arg3[%c0_5, %c0_6] : memref<256x256xbf16, #tpu.memory_space<vmem>>, vector<256x256xbf16>
    %cst = arith.constant dense<0.000000e+00> : vector<16x256xf32>
    %6 = tpu.matmul %4, %5, %cst {dimension_numbers = #tpu.dot_dimension_numbers<[1], [0], [0], [1], [0, 0, 1, 1], [], []>} : vector<16x256xbf16>, vector<256x256xbf16>, vector<16x256xf32> -> vector<16x256xf32>
    %c0_7 = arith.constant 0 : index
    %c0_8 = arith.constant 0 : index
    %7 = vector.load %arg4[%c0_7, %c0_8] : memref<1x256xf32, #tpu.memory_space<vmem>>, vector<1x256xf32>
    %8 = vector.broadcast %7 : vector<1x256xf32> to vector<16x256xf32>
    %9 = arith.addf %6, %8 : vector<16x256xf32>
    %10 = arith.truncf %3 : vector<16x256xf32> to vector<16x256xbf16>
    %c0_9 = arith.constant 0 : index
    %c0_10 = arith.constant 0 : index
    %11 = vector.load %arg5[%c0_9, %c0_10] : memref<256x512xbf16, #tpu.memory_space<vmem>>, vector<256x512xbf16>
    %cst_11 = arith.constant dense<0.000000e+00> : vector<16x512xf32>
    %12 = tpu.matmul %10, %11, %cst_11 {dimension_numbers = #tpu.dot_dimension_numbers<[1], [0], [0], [1], [0, 0, 1, 1], [], []>} : vector<16x256xbf16>, vector<256x512xbf16>, vector<16x512xf32> -> vector<16x512xf32>
    %c0_12 = arith.constant 0 : index
    %c0_13 = arith.constant 0 : index
    %13 = vector.load %arg6[%c0_12, %c0_13] : memref<1x512xf32, #tpu.memory_space<vmem>>, vector<1x512xf32>
    %14 = vector.broadcast %13 : vector<1x512xf32> to vector<16x512xf32>
    %15 = arith.addf %12, %14 : vector<16x512xf32>
    %16 = vector.extract_strided_slice %9 {offsets = [0, 0], sizes = [16, 32], strides = [1, 1]} : vector<16x256xf32> to vector<16x32xf32>
    %17 = vector.extract_strided_slice %15 {offsets = [0, 0], sizes = [16, 32], strides = [1, 1]} : vector<16x512xf32> to vector<16x32xf32>
    %18 = vector.extract_strided_slice %15 {offsets = [0, 256], sizes = [16, 32], strides = [1, 1]} : vector<16x512xf32> to vector<16x32xf32>
    %19 = arith.truncf %16 : vector<16x32xf32> to vector<16x32xbf16>
    %20 = arith.truncf %17 : vector<16x32xf32> to vector<16x32xbf16>
    %cst_14 = arith.constant dense<0.000000e+00> : vector<16x16xf32>
    %21 = tpu.matmul %19, %20, %cst_14 {dimension_numbers = #tpu.dot_dimension_numbers<[1], [1], [0], [0], [0, 0, 1, 0], [], []>} : vector<16x32xbf16>, vector<16x32xbf16>, vector<16x16xf32> -> vector<16x16xf32>
    %cst_15 = arith.constant 0.176776692 : f32
    %22 = vector.broadcast %cst_15 : f32 to vector<16x16xf32>
    %23 = arith.mulf %21, %22 : vector<16x16xf32>
    %cst_16 = arith.constant dense<0xFF800000> : vector<16xf32>
    %24 = vector.multi_reduction <maximumf>, %23, %cst_16 [1] : vector<16x16xf32> to vector<16xf32>
    %25 = vector.shape_cast %24 : vector<16xf32> to vector<16x1xf32>
    %26 = vector.broadcast %25 : vector<16x1xf32> to vector<16x16xf32>
    %27 = arith.subf %23, %26 : vector<16x16xf32>
    %28 = math.exp %27 : vector<16x16xf32>
    %cst_17 = arith.constant dense<0.000000e+00> : vector<16xf32>
    %29 = vector.multi_reduction <add>, %28, %cst_17 [1] : vector<16x16xf32> to vector<16xf32>
    %30 = vector.shape_cast %29 : vector<16xf32> to vector<16x1xf32>
    %31 = tpu.reciprocal %30 {approx = true} : vector<16x1xf32> -> vector<16x1xf32>
    %32 = vector.broadcast %31 : vector<16x1xf32> to vector<16x16xf32>
    %33 = arith.mulf %28, %32 : vector<16x16xf32>
    %34 = arith.truncf %33 : vector<16x16xf32> to vector<16x16xbf16>
    %35 = arith.truncf %18 : vector<16x32xf32> to vector<16x32xbf16>
    %cst_18 = arith.constant dense<0.000000e+00> : vector<16x32xf32>
    %36 = tpu.matmul %34, %35, %cst_18 {dimension_numbers = #tpu.dot_dimension_numbers<[1], [0], [0], [1], [0, 0, 1, 1], [], []>} : vector<16x16xbf16>, vector<16x32xbf16>, vector<16x32xf32> -> vector<16x32xf32>
    %37 = vector.extract_strided_slice %9 {offsets = [0, 32], sizes = [16, 32], strides = [1, 1]} : vector<16x256xf32> to vector<16x32xf32>
    %38 = vector.extract_strided_slice %15 {offsets = [0, 32], sizes = [16, 32], strides = [1, 1]} : vector<16x512xf32> to vector<16x32xf32>
    %39 = vector.extract_strided_slice %15 {offsets = [0, 288], sizes = [16, 32], strides = [1, 1]} : vector<16x512xf32> to vector<16x32xf32>
    %40 = arith.truncf %37 : vector<16x32xf32> to vector<16x32xbf16>
    %41 = arith.truncf %38 : vector<16x32xf32> to vector<16x32xbf16>
    %cst_19 = arith.constant dense<0.000000e+00> : vector<16x16xf32>
    %42 = tpu.matmul %40, %41, %cst_19 {dimension_numbers = #tpu.dot_dimension_numbers<[1], [1], [0], [0], [0, 0, 1, 0], [], []>} : vector<16x32xbf16>, vector<16x32xbf16>, vector<16x16xf32> -> vector<16x16xf32>
    %cst_20 = arith.constant 0.176776692 : f32
    %43 = vector.broadcast %cst_20 : f32 to vector<16x16xf32>
    %44 = arith.mulf %42, %43 : vector<16x16xf32>
    %cst_21 = arith.constant dense<0xFF800000> : vector<16xf32>
    %45 = vector.multi_reduction <maximumf>, %44, %cst_21 [1] : vector<16x16xf32> to vector<16xf32>
    %46 = vector.shape_cast %45 : vector<16xf32> to vector<16x1xf32>
    %47 = vector.broadcast %46 : vector<16x1xf32> to vector<16x16xf32>
    %48 = arith.subf %44, %47 : vector<16x16xf32>
    %49 = math.exp %48 : vector<16x16xf32>
    %cst_22 = arith.constant dense<0.000000e+00> : vector<16xf32>
    %50 = vector.multi_reduction <add>, %49, %cst_22 [1] : vector<16x16xf32> to vector<16xf32>
    %51 = vector.shape_cast %50 : vector<16xf32> to vector<16x1xf32>
    %52 = tpu.reciprocal %51 {approx = true} : vector<16x1xf32> -> vector<16x1xf32>
    %53 = vector.broadcast %52 : vector<16x1xf32> to vector<16x16xf32>
    %54 = arith.mulf %49, %53 : vector<16x16xf32>
    %55 = arith.truncf %54 : vector<16x16xf32> to vector<16x16xbf16>
    %56 = arith.truncf %39 : vector<16x32xf32> to vector<16x32xbf16>
    %cst_23 = arith.constant dense<0.000000e+00> : vector<16x32xf32>
    %57 = tpu.matmul %55, %56, %cst_23 {dimension_numbers = #tpu.dot_dimension_numbers<[1], [0], [0], [1], [0, 0, 1, 1], [], []>} : vector<16x16xbf16>, vector<16x32xbf16>, vector<16x32xf32> -> vector<16x32xf32>
    %58 = vector.extract_strided_slice %9 {offsets = [0, 64], sizes = [16, 32], strides = [1, 1]} : vector<16x256xf32> to vector<16x32xf32>
    %59 = vector.extract_strided_slice %15 {offsets = [0, 64], sizes = [16, 32], strides = [1, 1]} : vector<16x512xf32> to vector<16x32xf32>
    %60 = vector.extract_strided_slice %15 {offsets = [0, 320], sizes = [16, 32], strides = [1, 1]} : vector<16x512xf32> to vector<16x32xf32>
    %61 = arith.truncf %58 : vector<16x32xf32> to vector<16x32xbf16>
    %62 = arith.truncf %59 : vector<16x32xf32> to vector<16x32xbf16>
    %cst_24 = arith.constant dense<0.000000e+00> : vector<16x16xf32>
    %63 = tpu.matmul %61, %62, %cst_24 {dimension_numbers = #tpu.dot_dimension_numbers<[1], [1], [0], [0], [0, 0, 1, 0], [], []>} : vector<16x32xbf16>, vector<16x32xbf16>, vector<16x16xf32> -> vector<16x16xf32>
    %cst_25 = arith.constant 0.176776692 : f32
    %64 = vector.broadcast %cst_25 : f32 to vector<16x16xf32>
    %65 = arith.mulf %63, %64 : vector<16x16xf32>
    %cst_26 = arith.constant dense<0xFF800000> : vector<16xf32>
    %66 = vector.multi_reduction <maximumf>, %65, %cst_26 [1] : vector<16x16xf32> to vector<16xf32>
    %67 = vector.shape_cast %66 : vector<16xf32> to vector<16x1xf32>
    %68 = vector.broadcast %67 : vector<16x1xf32> to vector<16x16xf32>
    %69 = arith.subf %65, %68 : vector<16x16xf32>
    %70 = math.exp %69 : vector<16x16xf32>
    %cst_27 = arith.constant dense<0.000000e+00> : vector<16xf32>
    %71 = vector.multi_reduction <add>, %70, %cst_27 [1] : vector<16x16xf32> to vector<16xf32>
    %72 = vector.shape_cast %71 : vector<16xf32> to vector<16x1xf32>
    %73 = tpu.reciprocal %72 {approx = true} : vector<16x1xf32> -> vector<16x1xf32>
    %74 = vector.broadcast %73 : vector<16x1xf32> to vector<16x16xf32>
    %75 = arith.mulf %70, %74 : vector<16x16xf32>
    %76 = arith.truncf %75 : vector<16x16xf32> to vector<16x16xbf16>
    %77 = arith.truncf %60 : vector<16x32xf32> to vector<16x32xbf16>
    %cst_28 = arith.constant dense<0.000000e+00> : vector<16x32xf32>
    %78 = tpu.matmul %76, %77, %cst_28 {dimension_numbers = #tpu.dot_dimension_numbers<[1], [0], [0], [1], [0, 0, 1, 1], [], []>} : vector<16x16xbf16>, vector<16x32xbf16>, vector<16x32xf32> -> vector<16x32xf32>
    %79 = vector.extract_strided_slice %9 {offsets = [0, 96], sizes = [16, 32], strides = [1, 1]} : vector<16x256xf32> to vector<16x32xf32>
    %80 = vector.extract_strided_slice %15 {offsets = [0, 96], sizes = [16, 32], strides = [1, 1]} : vector<16x512xf32> to vector<16x32xf32>
    %81 = vector.extract_strided_slice %15 {offsets = [0, 352], sizes = [16, 32], strides = [1, 1]} : vector<16x512xf32> to vector<16x32xf32>
    %82 = arith.truncf %79 : vector<16x32xf32> to vector<16x32xbf16>
    %83 = arith.truncf %80 : vector<16x32xf32> to vector<16x32xbf16>
    %cst_29 = arith.constant dense<0.000000e+00> : vector<16x16xf32>
    %84 = tpu.matmul %82, %83, %cst_29 {dimension_numbers = #tpu.dot_dimension_numbers<[1], [1], [0], [0], [0, 0, 1, 0], [], []>} : vector<16x32xbf16>, vector<16x32xbf16>, vector<16x16xf32> -> vector<16x16xf32>
    %cst_30 = arith.constant 0.176776692 : f32
    %85 = vector.broadcast %cst_30 : f32 to vector<16x16xf32>
    %86 = arith.mulf %84, %85 : vector<16x16xf32>
    %cst_31 = arith.constant dense<0xFF800000> : vector<16xf32>
    %87 = vector.multi_reduction <maximumf>, %86, %cst_31 [1] : vector<16x16xf32> to vector<16xf32>
    %88 = vector.shape_cast %87 : vector<16xf32> to vector<16x1xf32>
    %89 = vector.broadcast %88 : vector<16x1xf32> to vector<16x16xf32>
    %90 = arith.subf %86, %89 : vector<16x16xf32>
    %91 = math.exp %90 : vector<16x16xf32>
    %cst_32 = arith.constant dense<0.000000e+00> : vector<16xf32>
    %92 = vector.multi_reduction <add>, %91, %cst_32 [1] : vector<16x16xf32> to vector<16xf32>
    %93 = vector.shape_cast %92 : vector<16xf32> to vector<16x1xf32>
    %94 = tpu.reciprocal %93 {approx = true} : vector<16x1xf32> -> vector<16x1xf32>
    %95 = vector.broadcast %94 : vector<16x1xf32> to vector<16x16xf32>
    %96 = arith.mulf %91, %95 : vector<16x16xf32>
    %97 = arith.truncf %96 : vector<16x16xf32> to vector<16x16xbf16>
    %98 = arith.truncf %81 : vector<16x32xf32> to vector<16x32xbf16>
    %cst_33 = arith.constant dense<0.000000e+00> : vector<16x32xf32>
    %99 = tpu.matmul %97, %98, %cst_33 {dimension_numbers = #tpu.dot_dimension_numbers<[1], [0], [0], [1], [0, 0, 1, 1], [], []>} : vector<16x16xbf16>, vector<16x32xbf16>, vector<16x32xf32> -> vector<16x32xf32>
    %100 = vector.extract_strided_slice %9 {offsets = [0, 128], sizes = [16, 32], strides = [1, 1]} : vector<16x256xf32> to vector<16x32xf32>
    %101 = vector.extract_strided_slice %15 {offsets = [0, 128], sizes = [16, 32], strides = [1, 1]} : vector<16x512xf32> to vector<16x32xf32>
    %102 = vector.extract_strided_slice %15 {offsets = [0, 384], sizes = [16, 32], strides = [1, 1]} : vector<16x512xf32> to vector<16x32xf32>
    %103 = arith.truncf %100 : vector<16x32xf32> to vector<16x32xbf16>
    %104 = arith.truncf %101 : vector<16x32xf32> to vector<16x32xbf16>
    %cst_34 = arith.constant dense<0.000000e+00> : vector<16x16xf32>
    %105 = tpu.matmul %103, %104, %cst_34 {dimension_numbers = #tpu.dot_dimension_numbers<[1], [1], [0], [0], [0, 0, 1, 0], [], []>} : vector<16x32xbf16>, vector<16x32xbf16>, vector<16x16xf32> -> vector<16x16xf32>
    %cst_35 = arith.constant 0.176776692 : f32
    %106 = vector.broadcast %cst_35 : f32 to vector<16x16xf32>
    %107 = arith.mulf %105, %106 : vector<16x16xf32>
    %cst_36 = arith.constant dense<0xFF800000> : vector<16xf32>
    %108 = vector.multi_reduction <maximumf>, %107, %cst_36 [1] : vector<16x16xf32> to vector<16xf32>
    %109 = vector.shape_cast %108 : vector<16xf32> to vector<16x1xf32>
    %110 = vector.broadcast %109 : vector<16x1xf32> to vector<16x16xf32>
    %111 = arith.subf %107, %110 : vector<16x16xf32>
    %112 = math.exp %111 : vector<16x16xf32>
    %cst_37 = arith.constant dense<0.000000e+00> : vector<16xf32>
    %113 = vector.multi_reduction <add>, %112, %cst_37 [1] : vector<16x16xf32> to vector<16xf32>
    %114 = vector.shape_cast %113 : vector<16xf32> to vector<16x1xf32>
    %115 = tpu.reciprocal %114 {approx = true} : vector<16x1xf32> -> vector<16x1xf32>
    %116 = vector.broadcast %115 : vector<16x1xf32> to vector<16x16xf32>
    %117 = arith.mulf %112, %116 : vector<16x16xf32>
    %118 = arith.truncf %117 : vector<16x16xf32> to vector<16x16xbf16>
    %119 = arith.truncf %102 : vector<16x32xf32> to vector<16x32xbf16>
    %cst_38 = arith.constant dense<0.000000e+00> : vector<16x32xf32>
    %120 = tpu.matmul %118, %119, %cst_38 {dimension_numbers = #tpu.dot_dimension_numbers<[1], [0], [0], [1], [0, 0, 1, 1], [], []>} : vector<16x16xbf16>, vector<16x32xbf16>, vector<16x32xf32> -> vector<16x32xf32>
    %121 = vector.extract_strided_slice %9 {offsets = [0, 160], sizes = [16, 32], strides = [1, 1]} : vector<16x256xf32> to vector<16x32xf32>
    %122 = vector.extract_strided_slice %15 {offsets = [0, 160], sizes = [16, 32], strides = [1, 1]} : vector<16x512xf32> to vector<16x32xf32>
    %123 = vector.extract_strided_slice %15 {offsets = [0, 416], sizes = [16, 32], strides = [1, 1]} : vector<16x512xf32> to vector<16x32xf32>
    %124 = arith.truncf %121 : vector<16x32xf32> to vector<16x32xbf16>
    %125 = arith.truncf %122 : vector<16x32xf32> to vector<16x32xbf16>
    %cst_39 = arith.constant dense<0.000000e+00> : vector<16x16xf32>
    %126 = tpu.matmul %124, %125, %cst_39 {dimension_numbers = #tpu.dot_dimension_numbers<[1], [1], [0], [0], [0, 0, 1, 0], [], []>} : vector<16x32xbf16>, vector<16x32xbf16>, vector<16x16xf32> -> vector<16x16xf32>
    %cst_40 = arith.constant 0.176776692 : f32
    %127 = vector.broadcast %cst_40 : f32 to vector<16x16xf32>
    %128 = arith.mulf %126, %127 : vector<16x16xf32>
    %cst_41 = arith.constant dense<0xFF800000> : vector<16xf32>
    %129 = vector.multi_reduction <maximumf>, %128, %cst_41 [1] : vector<16x16xf32> to vector<16xf32>
    %130 = vector.shape_cast %129 : vector<16xf32> to vector<16x1xf32>
    %131 = vector.broadcast %130 : vector<16x1xf32> to vector<16x16xf32>
    %132 = arith.subf %128, %131 : vector<16x16xf32>
    %133 = math.exp %132 : vector<16x16xf32>
    %cst_42 = arith.constant dense<0.000000e+00> : vector<16xf32>
    %134 = vector.multi_reduction <add>, %133, %cst_42 [1] : vector<16x16xf32> to vector<16xf32>
    %135 = vector.shape_cast %134 : vector<16xf32> to vector<16x1xf32>
    %136 = tpu.reciprocal %135 {approx = true} : vector<16x1xf32> -> vector<16x1xf32>
    %137 = vector.broadcast %136 : vector<16x1xf32> to vector<16x16xf32>
    %138 = arith.mulf %133, %137 : vector<16x16xf32>
    %139 = arith.truncf %138 : vector<16x16xf32> to vector<16x16xbf16>
    %140 = arith.truncf %123 : vector<16x32xf32> to vector<16x32xbf16>
    %cst_43 = arith.constant dense<0.000000e+00> : vector<16x32xf32>
    %141 = tpu.matmul %139, %140, %cst_43 {dimension_numbers = #tpu.dot_dimension_numbers<[1], [0], [0], [1], [0, 0, 1, 1], [], []>} : vector<16x16xbf16>, vector<16x32xbf16>, vector<16x32xf32> -> vector<16x32xf32>
    %142 = vector.extract_strided_slice %9 {offsets = [0, 192], sizes = [16, 32], strides = [1, 1]} : vector<16x256xf32> to vector<16x32xf32>
    %143 = vector.extract_strided_slice %15 {offsets = [0, 192], sizes = [16, 32], strides = [1, 1]} : vector<16x512xf32> to vector<16x32xf32>
    %144 = vector.extract_strided_slice %15 {offsets = [0, 448], sizes = [16, 32], strides = [1, 1]} : vector<16x512xf32> to vector<16x32xf32>
    %145 = arith.truncf %142 : vector<16x32xf32> to vector<16x32xbf16>
    %146 = arith.truncf %143 : vector<16x32xf32> to vector<16x32xbf16>
    %cst_44 = arith.constant dense<0.000000e+00> : vector<16x16xf32>
    %147 = tpu.matmul %145, %146, %cst_44 {dimension_numbers = #tpu.dot_dimension_numbers<[1], [1], [0], [0], [0, 0, 1, 0], [], []>} : vector<16x32xbf16>, vector<16x32xbf16>, vector<16x16xf32> -> vector<16x16xf32>
    %cst_45 = arith.constant 0.176776692 : f32
    %148 = vector.broadcast %cst_45 : f32 to vector<16x16xf32>
    %149 = arith.mulf %147, %148 : vector<16x16xf32>
    %cst_46 = arith.constant dense<0xFF800000> : vector<16xf32>
    %150 = vector.multi_reduction <maximumf>, %149, %cst_46 [1] : vector<16x16xf32> to vector<16xf32>
    %151 = vector.shape_cast %150 : vector<16xf32> to vector<16x1xf32>
    %152 = vector.broadcast %151 : vector<16x1xf32> to vector<16x16xf32>
    %153 = arith.subf %149, %152 : vector<16x16xf32>
    %154 = math.exp %153 : vector<16x16xf32>
    %cst_47 = arith.constant dense<0.000000e+00> : vector<16xf32>
    %155 = vector.multi_reduction <add>, %154, %cst_47 [1] : vector<16x16xf32> to vector<16xf32>
    %156 = vector.shape_cast %155 : vector<16xf32> to vector<16x1xf32>
    %157 = tpu.reciprocal %156 {approx = true} : vector<16x1xf32> -> vector<16x1xf32>
    %158 = vector.broadcast %157 : vector<16x1xf32> to vector<16x16xf32>
    %159 = arith.mulf %154, %158 : vector<16x16xf32>
    %160 = arith.truncf %159 : vector<16x16xf32> to vector<16x16xbf16>
    %161 = arith.truncf %144 : vector<16x32xf32> to vector<16x32xbf16>
    %cst_48 = arith.constant dense<0.000000e+00> : vector<16x32xf32>
    %162 = tpu.matmul %160, %161, %cst_48 {dimension_numbers = #tpu.dot_dimension_numbers<[1], [0], [0], [1], [0, 0, 1, 1], [], []>} : vector<16x16xbf16>, vector<16x32xbf16>, vector<16x32xf32> -> vector<16x32xf32>
    %163 = vector.extract_strided_slice %9 {offsets = [0, 224], sizes = [16, 32], strides = [1, 1]} : vector<16x256xf32> to vector<16x32xf32>
    %164 = vector.extract_strided_slice %15 {offsets = [0, 224], sizes = [16, 32], strides = [1, 1]} : vector<16x512xf32> to vector<16x32xf32>
    %165 = vector.extract_strided_slice %15 {offsets = [0, 480], sizes = [16, 32], strides = [1, 1]} : vector<16x512xf32> to vector<16x32xf32>
    %166 = arith.truncf %163 : vector<16x32xf32> to vector<16x32xbf16>
    %167 = arith.truncf %164 : vector<16x32xf32> to vector<16x32xbf16>
    %cst_49 = arith.constant dense<0.000000e+00> : vector<16x16xf32>
    %168 = tpu.matmul %166, %167, %cst_49 {dimension_numbers = #tpu.dot_dimension_numbers<[1], [1], [0], [0], [0, 0, 1, 0], [], []>} : vector<16x32xbf16>, vector<16x32xbf16>, vector<16x16xf32> -> vector<16x16xf32>
    %cst_50 = arith.constant 0.176776692 : f32
    %169 = vector.broadcast %cst_50 : f32 to vector<16x16xf32>
    %170 = arith.mulf %168, %169 : vector<16x16xf32>
    %cst_51 = arith.constant dense<0xFF800000> : vector<16xf32>
    %171 = vector.multi_reduction <maximumf>, %170, %cst_51 [1] : vector<16x16xf32> to vector<16xf32>
    %172 = vector.shape_cast %171 : vector<16xf32> to vector<16x1xf32>
    %173 = vector.broadcast %172 : vector<16x1xf32> to vector<16x16xf32>
    %174 = arith.subf %170, %173 : vector<16x16xf32>
    %175 = math.exp %174 : vector<16x16xf32>
    %cst_52 = arith.constant dense<0.000000e+00> : vector<16xf32>
    %176 = vector.multi_reduction <add>, %175, %cst_52 [1] : vector<16x16xf32> to vector<16xf32>
    %177 = vector.shape_cast %176 : vector<16xf32> to vector<16x1xf32>
    %178 = tpu.reciprocal %177 {approx = true} : vector<16x1xf32> -> vector<16x1xf32>
    %179 = vector.broadcast %178 : vector<16x1xf32> to vector<16x16xf32>
    %180 = arith.mulf %175, %179 : vector<16x16xf32>
    %181 = arith.truncf %180 : vector<16x16xf32> to vector<16x16xbf16>
    %182 = arith.truncf %165 : vector<16x32xf32> to vector<16x32xbf16>
    %cst_53 = arith.constant dense<0.000000e+00> : vector<16x32xf32>
    %183 = tpu.matmul %181, %182, %cst_53 {dimension_numbers = #tpu.dot_dimension_numbers<[1], [0], [0], [1], [0, 0, 1, 1], [], []>} : vector<16x16xbf16>, vector<16x32xbf16>, vector<16x32xf32> -> vector<16x32xf32>
    %184 = tpu.concatenate %36, %57, %78, %99, %120, %141, %162, %183 in 1 : vector<16x32xf32>, vector<16x32xf32>, vector<16x32xf32>, vector<16x32xf32>, vector<16x32xf32>, vector<16x32xf32>, vector<16x32xf32>, vector<16x32xf32> -> vector<16x256xf32>
    %185 = arith.truncf %184 : vector<16x256xf32> to vector<16x256xbf16>
    %c0_54 = arith.constant 0 : index
    %c0_55 = arith.constant 0 : index
    %186 = vector.load %arg7[%c0_54, %c0_55] : memref<256x256xbf16, #tpu.memory_space<vmem>>, vector<256x256xbf16>
    %cst_56 = arith.constant dense<0.000000e+00> : vector<16x256xf32>
    %187 = tpu.matmul %185, %186, %cst_56 {dimension_numbers = #tpu.dot_dimension_numbers<[1], [0], [0], [1], [0, 0, 1, 1], [], []>} : vector<16x256xbf16>, vector<256x256xbf16>, vector<16x256xf32> -> vector<16x256xf32>
    %c0_57 = arith.constant 0 : index
    %c0_58 = arith.constant 0 : index
    %188 = vector.load %arg8[%c0_57, %c0_58] : memref<1x256xf32, #tpu.memory_space<vmem>>, vector<1x256xf32>
    %189 = vector.broadcast %188 : vector<1x256xf32> to vector<16x256xf32>
    %190 = arith.addf %187, %189 : vector<16x256xf32>
    %c0_59 = arith.constant 0 : index
    %c0_60 = arith.constant 0 : index
    %191 = vector.load %arg9[%c0_59, %c0_60] : memref<6x256xf32, #tpu.memory_space<vmem>>, vector<6x256xf32>
    %192 = arith.addf %1, %190 : vector<16x256xf32>
    %193 = vector.extract_strided_slice %191 {offsets = [0, 0], sizes = [1, 256], strides = [1, 1]} : vector<6x256xf32> to vector<1x256xf32>
    %194 = vector.extract_strided_slice %191 {offsets = [1, 0], sizes = [1, 256], strides = [1, 1]} : vector<6x256xf32> to vector<1x256xf32>
    %cst_61 = arith.constant dense<0.000000e+00> : vector<16xf32>
    %195 = vector.multi_reduction <add>, %192, %cst_61 [1] : vector<16x256xf32> to vector<16xf32>
    %196 = vector.shape_cast %195 : vector<16xf32> to vector<16x1xf32>
    %cst_62 = arith.constant 2.560000e+02 : f32
    %197 = vector.broadcast %cst_62 : f32 to vector<16x1xf32>
    %198 = arith.divf %196, %197 : vector<16x1xf32>
    %199 = vector.broadcast %198 : vector<16x1xf32> to vector<16x256xf32>
    %200 = arith.subf %192, %199 : vector<16x256xf32>
    %201 = arith.mulf %200, %200 : vector<16x256xf32>
    %cst_63 = arith.constant dense<0.000000e+00> : vector<16xf32>
    %202 = vector.multi_reduction <add>, %201, %cst_63 [1] : vector<16x256xf32> to vector<16xf32>
    %203 = vector.shape_cast %202 : vector<16xf32> to vector<16x1xf32>
    %cst_64 = arith.constant 2.560000e+02 : f32
    %204 = vector.broadcast %cst_64 : f32 to vector<16x1xf32>
    %205 = arith.divf %203, %204 : vector<16x1xf32>
    %206 = vector.broadcast %198 : vector<16x1xf32> to vector<16x256xf32>
    %207 = arith.subf %192, %206 : vector<16x256xf32>
    %cst_65 = arith.constant 9.99999974E-6 : f32
    %208 = vector.broadcast %cst_65 : f32 to vector<16x1xf32>
    %209 = arith.addf %205, %208 : vector<16x1xf32>
    %210 = math.rsqrt %209 : vector<16x1xf32>
    %211 = vector.broadcast %210 : vector<16x1xf32> to vector<16x256xf32>
    %212 = arith.mulf %207, %211 : vector<16x256xf32>
    %213 = vector.broadcast %193 : vector<1x256xf32> to vector<16x256xf32>
    %214 = arith.mulf %212, %213 : vector<16x256xf32>
    %215 = vector.broadcast %194 : vector<1x256xf32> to vector<16x256xf32>
    %216 = arith.addf %214, %215 : vector<16x256xf32>
    %217 = arith.truncf %216 : vector<16x256xf32> to vector<16x256xbf16>
    %c0_66 = arith.constant 0 : index
    %c0_67 = arith.constant 0 : index
    %218 = vector.load %arg10[%c0_66, %c0_67] : memref<256x256xbf16, #tpu.memory_space<vmem>>, vector<256x256xbf16>
    %cst_68 = arith.constant dense<0.000000e+00> : vector<16x256xf32>
    %219 = tpu.matmul %217, %218, %cst_68 {dimension_numbers = #tpu.dot_dimension_numbers<[1], [0], [0], [1], [0, 0, 1, 1], [], []>} : vector<16x256xbf16>, vector<256x256xbf16>, vector<16x256xf32> -> vector<16x256xf32>
    %c0_69 = arith.constant 0 : index
    %c0_70 = arith.constant 0 : index
    %220 = vector.load %arg11[%c0_69, %c0_70] : memref<1x256xf32, #tpu.memory_space<vmem>>, vector<1x256xf32>
    %221 = vector.broadcast %220 : vector<1x256xf32> to vector<16x256xf32>
    %222 = arith.addf %219, %221 : vector<16x256xf32>
    %cst_71 = arith.constant 5.000000e-01 : f32
    %223 = vector.broadcast %cst_71 : f32 to vector<16x256xf32>
    %224 = arith.mulf %223, %222 : vector<16x256xf32>
    %cst_72 = arith.constant 0.707106769 : f32
    %225 = vector.broadcast %cst_72 : f32 to vector<16x256xf32>
    %226 = arith.mulf %222, %225 : vector<16x256xf32>
    %227 = math.erf %226 : vector<16x256xf32>
    %cst_73 = arith.constant 1.000000e+00 : f32
    %228 = vector.broadcast %cst_73 : f32 to vector<16x256xf32>
    %229 = arith.addf %228, %227 : vector<16x256xf32>
    %230 = arith.mulf %224, %229 : vector<16x256xf32>
    %231 = arith.truncf %230 : vector<16x256xf32> to vector<16x256xbf16>
    %c0_74 = arith.constant 0 : index
    %c0_75 = arith.constant 0 : index
    %232 = vector.load %arg12[%c0_74, %c0_75] : memref<256x256xbf16, #tpu.memory_space<vmem>>, vector<256x256xbf16>
    %cst_76 = arith.constant dense<0.000000e+00> : vector<16x256xf32>
    %233 = tpu.matmul %231, %232, %cst_76 {dimension_numbers = #tpu.dot_dimension_numbers<[1], [0], [0], [1], [0, 0, 1, 1], [], []>} : vector<16x256xbf16>, vector<256x256xbf16>, vector<16x256xf32> -> vector<16x256xf32>
    %c0_77 = arith.constant 0 : index
    %c0_78 = arith.constant 0 : index
    %234 = vector.load %arg13[%c0_77, %c0_78] : memref<1x256xf32, #tpu.memory_space<vmem>>, vector<1x256xf32>
    %235 = vector.broadcast %234 : vector<1x256xf32> to vector<16x256xf32>
    %236 = arith.addf %233, %235 : vector<16x256xf32>
    %237 = arith.addf %216, %236 : vector<16x256xf32>
    %238 = vector.extract_strided_slice %191 {offsets = [2, 0], sizes = [1, 256], strides = [1, 1]} : vector<6x256xf32> to vector<1x256xf32>
    %239 = vector.extract_strided_slice %191 {offsets = [3, 0], sizes = [1, 256], strides = [1, 1]} : vector<6x256xf32> to vector<1x256xf32>
    %cst_79 = arith.constant dense<0.000000e+00> : vector<16xf32>
    %240 = vector.multi_reduction <add>, %237, %cst_79 [1] : vector<16x256xf32> to vector<16xf32>
    %241 = vector.shape_cast %240 : vector<16xf32> to vector<16x1xf32>
    %cst_80 = arith.constant 2.560000e+02 : f32
    %242 = vector.broadcast %cst_80 : f32 to vector<16x1xf32>
    %243 = arith.divf %241, %242 : vector<16x1xf32>
    %244 = vector.broadcast %243 : vector<16x1xf32> to vector<16x256xf32>
    %245 = arith.subf %237, %244 : vector<16x256xf32>
    %246 = arith.mulf %245, %245 : vector<16x256xf32>
    %cst_81 = arith.constant dense<0.000000e+00> : vector<16xf32>
    %247 = vector.multi_reduction <add>, %246, %cst_81 [1] : vector<16x256xf32> to vector<16xf32>
    %248 = vector.shape_cast %247 : vector<16xf32> to vector<16x1xf32>
    %cst_82 = arith.constant 2.560000e+02 : f32
    %249 = vector.broadcast %cst_82 : f32 to vector<16x1xf32>
    %250 = arith.divf %248, %249 : vector<16x1xf32>
    %251 = vector.broadcast %243 : vector<16x1xf32> to vector<16x256xf32>
    %252 = arith.subf %237, %251 : vector<16x256xf32>
    %cst_83 = arith.constant 9.99999974E-6 : f32
    %253 = vector.broadcast %cst_83 : f32 to vector<16x1xf32>
    %254 = arith.addf %250, %253 : vector<16x1xf32>
    %255 = math.rsqrt %254 : vector<16x1xf32>
    %256 = vector.broadcast %255 : vector<16x1xf32> to vector<16x256xf32>
    %257 = arith.mulf %252, %256 : vector<16x256xf32>
    %258 = vector.broadcast %238 : vector<1x256xf32> to vector<16x256xf32>
    %259 = arith.mulf %257, %258 : vector<16x256xf32>
    %260 = vector.broadcast %239 : vector<1x256xf32> to vector<16x256xf32>
    %261 = arith.addf %259, %260 : vector<16x256xf32>
    %262 = vector.extract_strided_slice %191 {offsets = [4, 0], sizes = [1, 256], strides = [1, 1]} : vector<6x256xf32> to vector<1x256xf32>
    %263 = vector.extract_strided_slice %191 {offsets = [5, 0], sizes = [1, 256], strides = [1, 1]} : vector<6x256xf32> to vector<1x256xf32>
    %cst_84 = arith.constant dense<0.000000e+00> : vector<16xf32>
    %264 = vector.multi_reduction <add>, %261, %cst_84 [1] : vector<16x256xf32> to vector<16xf32>
    %265 = vector.shape_cast %264 : vector<16xf32> to vector<16x1xf32>
    %cst_85 = arith.constant 2.560000e+02 : f32
    %266 = vector.broadcast %cst_85 : f32 to vector<16x1xf32>
    %267 = arith.divf %265, %266 : vector<16x1xf32>
    %268 = vector.broadcast %267 : vector<16x1xf32> to vector<16x256xf32>
    %269 = arith.subf %261, %268 : vector<16x256xf32>
    %270 = arith.mulf %269, %269 : vector<16x256xf32>
    %cst_86 = arith.constant dense<0.000000e+00> : vector<16xf32>
    %271 = vector.multi_reduction <add>, %270, %cst_86 [1] : vector<16x256xf32> to vector<16xf32>
    %272 = vector.shape_cast %271 : vector<16xf32> to vector<16x1xf32>
    %cst_87 = arith.constant 2.560000e+02 : f32
    %273 = vector.broadcast %cst_87 : f32 to vector<16x1xf32>
    %274 = arith.divf %272, %273 : vector<16x1xf32>
    %275 = vector.broadcast %267 : vector<16x1xf32> to vector<16x256xf32>
    %276 = arith.subf %261, %275 : vector<16x256xf32>
    %cst_88 = arith.constant 9.99999974E-6 : f32
    %277 = vector.broadcast %cst_88 : f32 to vector<16x1xf32>
    %278 = arith.addf %274, %277 : vector<16x1xf32>
    %279 = math.rsqrt %278 : vector<16x1xf32>
    %280 = vector.broadcast %279 : vector<16x1xf32> to vector<16x256xf32>
    %281 = arith.mulf %276, %280 : vector<16x256xf32>
    %282 = vector.broadcast %262 : vector<1x256xf32> to vector<16x256xf32>
    %283 = arith.mulf %281, %282 : vector<16x256xf32>
    %284 = vector.broadcast %263 : vector<1x256xf32> to vector<16x256xf32>
    %285 = arith.addf %283, %284 : vector<16x256xf32>
    %c0_89 = arith.constant 0 : index
    %c0_90 = arith.constant 0 : index
    %286 = vector.load %arg14[%c0_89, %c0_90] : memref<256x2xf32, #tpu.memory_space<vmem>>, vector<256x2xf32>
    %cst_91 = arith.constant dense<0.000000e+00> : vector<16x2xf32>
    %287 = tpu.matmul %285, %286, %cst_91 {dimension_numbers = #tpu.dot_dimension_numbers<[1], [0], [0], [1], [0, 0, 1, 1], [], []>} : vector<16x256xf32>, vector<256x2xf32>, vector<16x2xf32> -> vector<16x2xf32>
    %c0_92 = arith.constant 0 : index
    %c0_93 = arith.constant 0 : index
    %288 = vector.load %arg15[%c0_92, %c0_93] : memref<1x2xf32, #tpu.memory_space<vmem>>, vector<1x2xf32>
    %289 = vector.broadcast %288 : vector<1x2xf32> to vector<16x2xf32>
    %290 = arith.addf %287, %289 : vector<16x2xf32>
    %c0_94 = arith.constant 0 : index
    %c0_95 = arith.constant 0 : index
    %c0_96 = arith.constant 0 : index
    %291 = vector.load %arg16[%c0_94, %c0_95, %c0_96] : memref<1x16x2xf32, #tpu.memory_space<vmem>>, vector<1x16x2xf32>
    %292 = vector.shape_cast %291 : vector<1x16x2xf32> to vector<16x2xf32>
    %293 = vector.shape_cast %290 : vector<16x2xf32> to vector<1x16x2xf32>
    tpu.vector_store %arg16[%c0_94, %c0_95, %c0_96], %293 {strides = array<i32>} : memref<1x16x2xf32, #tpu.memory_space<vmem>>, vector<1x16x2xf32>,
    return
  }
  func.func @transform_0(%arg0: i32) -> (i32, i32, i32) {
    %c0_i32 = arith.constant 0 : i32
    %c0_i32_0 = arith.constant 0 : i32
    %c0_i32_1 = arith.constant 0 : i32
    return %arg0, %c0_i32, %c0_i32_0 : i32, i32, i32
  }
  func.func @transform_1(%arg0: i32) -> (i32, i32, i32) {
    %c0_i32 = arith.constant 0 : i32
    %c0_i32_0 = arith.constant 0 : i32
    %c0_i32_1 = arith.constant 0 : i32
    return %arg0, %c0_i32, %c0_i32_0 : i32, i32, i32
  }
  func.func @transform_2(%arg0: i32) -> (i32, i32) {
    %c0_i32 = arith.constant 0 : i32
    %c0_i32_0 = arith.constant 0 : i32
    %c0_i32_1 = arith.constant 0 : i32
    return %c0_i32, %c0_i32_0 : i32, i32
  }
  func.func @transform_3(%arg0: i32) -> (i32, i32) {
    %c0_i32 = arith.constant 0 : i32
    %c0_i32_0 = arith.constant 0 : i32
    %c0_i32_1 = arith.constant 0 : i32
    return %c0_i32, %c0_i32_0 : i32, i32
  }
  func.func @transform_4(%arg0: i32) -> (i32, i32) {
    %c0_i32 = arith.constant 0 : i32
    %c0_i32_0 = arith.constant 0 : i32
    %c0_i32_1 = arith.constant 0 : i32
    return %c0_i32, %c0_i32_0 : i32, i32
  }
  func.func @transform_5(%arg0: i32) -> (i32, i32) {
    %c0_i32 = arith.constant 0 : i32
    %c0_i32_0 = arith.constant 0 : i32
    %c0_i32_1 = arith.constant 0 : i32
    return %c0_i32, %c0_i32_0 : i32, i32
  }
  func.func @transform_6(%arg0: i32) -> (i32, i32) {
    %c0_i32 = arith.constant 0 : i32
    %c0_i32_0 = arith.constant 0 : i32
    %c0_i32_1 = arith.constant 0 : i32
    return %c0_i32, %c0_i32_0 : i32, i32
  }
  func.func @transform_7(%arg0: i32) -> (i32, i32) {
    %c0_i32 = arith.constant 0 : i32
    %c0_i32_0 = arith.constant 0 : i32
    %c0_i32_1 = arith.constant 0 : i32
    return %c0_i32, %c0_i32_0 : i32, i32
  }
  func.func @transform_8(%arg0: i32) -> (i32, i32) {
    %c0_i32 = arith.constant 0 : i32
    %c0_i32_0 = arith.constant 0 : i32
    %c0_i32_1 = arith.constant 0 : i32
    return %c0_i32, %c0_i32_0 : i32, i32
  }
  func.func @transform_9(%arg0: i32) -> (i32, i32) {
    %c0_i32 = arith.constant 0 : i32
    %c0_i32_0 = arith.constant 0 : i32
    %c0_i32_1 = arith.constant 0 : i32
    return %c0_i32, %c0_i32_0 : i32, i32
  }
  func.func @transform_10(%arg0: i32) -> (i32, i32) {
    %c0_i32 = arith.constant 0 : i32
    %c0_i32_0 = arith.constant 0 : i32
    %c0_i32_1 = arith.constant 0 : i32
    return %c0_i32, %c0_i32_0 : i32, i32
  }
  func.func @transform_11(%arg0: i32) -> (i32, i32) {
    %c0_i32 = arith.constant 0 : i32
    %c0_i32_0 = arith.constant 0 : i32
    %c0_i32_1 = arith.constant 0 : i32
    return %c0_i32, %c0_i32_0 : i32, i32
  }
  func.func @transform_12(%arg0: i32) -> (i32, i32) {
    %c0_i32 = arith.constant 0 : i32
    %c0_i32_0 = arith.constant 0 : i32
    %c0_i32_1 = arith.constant 0 : i32
    return %c0_i32, %c0_i32_0 : i32, i32
  }
  func.func @transform_13(%arg0: i32) -> (i32, i32) {
    %c0_i32 = arith.constant 0 : i32
    %c0_i32_0 = arith.constant 0 : i32
    %c0_i32_1 = arith.constant 0 : i32
    return %c0_i32, %c0_i32_0 : i32, i32
  }
  func.func @transform_14(%arg0: i32) -> (i32, i32) {
    %c0_i32 = arith.constant 0 : i32
    %c0_i32_0 = arith.constant 0 : i32
    %c0_i32_1 = arith.constant 0 : i32
    return %c0_i32, %c0_i32_0 : i32, i32
  }
  func.func @transform_15(%arg0: i32) -> (i32, i32, i32) {
    %c0_i32 = arith.constant 0 : i32
    %c0_i32_0 = arith.constant 0 : i32
    %c0_i32_1 = arith.constant 0 : i32
    return %arg0, %c0_i32, %c0_i32_0 : i32, i32, i32
  }
}

module attributes {stable_mosaic.version = 11 : i64} {
  func.func @_self_attn_norm_kernel(%arg0: i32, %arg1: memref<1x16x768xf32, #tpu.memory_space<vmem>>, %arg2: memref<1x16x8xf32, #tpu.memory_space<vmem>>, %arg3: memref<1x16x256xf32, #tpu.memory_space<vmem>>, %arg4: memref<256x256xbf16, #tpu.memory_space<vmem>>, %arg5: memref<1x256xf32, #tpu.memory_space<vmem>>, %arg6: memref<1x256xf32, #tpu.memory_space<vmem>>, %arg7: memref<1x256xf32, #tpu.memory_space<vmem>>, %arg8: memref<1x16x256xf32, #tpu.memory_space<vmem>>) attributes {dimension_semantics = [#tpu.dimension_semantics<parallel>], iteration_bounds = array<i64: 2>, scalar_prefetch = 0 : i64, scratch_operands = 0 : i64, tpu.core_type = #tpu.core_type<tc>, window_params = [{transform_indices = @transform_0, window_bounds = array<i64: 1, 16, 768>}, {transform_indices = @transform_1, window_bounds = array<i64: 1, 16, 8>}, {transform_indices = @transform_2, window_bounds = array<i64: 1, 16, 256>}, {pipeline_mode = #tpu.pipeline_mode<synchronous>, transform_indices = @transform_3, window_bounds = array<i64: 256, 256>}, {pipeline_mode = #tpu.pipeline_mode<synchronous>, transform_indices = @transform_4, window_bounds = array<i64: 1, 256>}, {pipeline_mode = #tpu.pipeline_mode<synchronous>, transform_indices = @transform_5, window_bounds = array<i64: 1, 256>}, {pipeline_mode = #tpu.pipeline_mode<synchronous>, transform_indices = @transform_6, window_bounds = array<i64: 1, 256>}, {transform_indices = @transform_7, window_bounds = array<i64: 1, 16, 256>}]} {
    %c0 = arith.constant 0 : index
    %c0_0 = arith.constant 0 : index
    %c0_1 = arith.constant 0 : index
    %0 = vector.load %arg1[%c0, %c0_0, %c0_1] : memref<1x16x768xf32, #tpu.memory_space<vmem>>, vector<1x16x768xf32>
    %1 = vector.shape_cast %0 : vector<1x16x768xf32> to vector<16x768xf32>
    %c0_2 = arith.constant 0 : index
    %c0_3 = arith.constant 0 : index
    %c0_4 = arith.constant 0 : index
    %2 = vector.load %arg2[%c0_2, %c0_3, %c0_4] : memref<1x16x8xf32, #tpu.memory_space<vmem>>, vector<1x16x8xf32>
    %3 = vector.shape_cast %2 : vector<1x16x8xf32> to vector<16x8xf32>
    %c0_5 = arith.constant 0 : index
    %c0_6 = arith.constant 0 : index
    %c0_7 = arith.constant 0 : index
    %4 = vector.load %arg3[%c0_5, %c0_6, %c0_7] : memref<1x16x256xf32, #tpu.memory_space<vmem>>, vector<1x16x256xf32>
    %5 = vector.shape_cast %4 : vector<1x16x256xf32> to vector<16x256xf32>
    %6 = tpu.iota {dimensions = array<i32: 0>} : vector<16x16xi32>
    %7 = tpu.iota {dimensions = array<i32: 1>} : vector<16x16xi32>
    %8 = arith.cmpi sgt, %7, %6 : vector<16x16xi32>
    %9 = arith.cmpi sle, %7, %6 : vector<16x16xi32>
    %10 = arith.extui %9 : vector<16x16xi1> to vector<16x16xi32>
    %11 = arith.sitofp %10 : vector<16x16xi32> to vector<16x16xf32>
    %12 = vector.extract_strided_slice %1 {offsets = [0, 0], sizes = [16, 32], strides = [1, 1]} : vector<16x768xf32> to vector<16x32xf32>
    %13 = vector.extract_strided_slice %1 {offsets = [0, 256], sizes = [16, 32], strides = [1, 1]} : vector<16x768xf32> to vector<16x32xf32>
    %14 = vector.extract_strided_slice %1 {offsets = [0, 512], sizes = [16, 32], strides = [1, 1]} : vector<16x768xf32> to vector<16x32xf32>
    %15 = arith.truncf %12 : vector<16x32xf32> to vector<16x32xbf16>
    %16 = arith.truncf %13 : vector<16x32xf32> to vector<16x32xbf16>
    %cst = arith.constant dense<0.000000e+00> : vector<16x16xf32>
    %17 = tpu.matmul %15, %16, %cst {dimension_numbers = #tpu.dot_dimension_numbers<[1], [1], [0], [0], [0, 0, 1, 0], [], []>} : vector<16x32xbf16>, vector<16x32xbf16>, vector<16x16xf32> -> vector<16x16xf32>
    %cst_8 = arith.constant 0.176776692 : f32
    %18 = vector.broadcast %cst_8 : f32 to vector<16x16xf32>
    %19 = arith.mulf %17, %18 : vector<16x16xf32>
    %cst_9 = arith.constant -1.000000e+30 : f32
    %20 = vector.broadcast %cst_9 : f32 to vector<16x16xf32>
    %21 = arith.select %8, %20, %19 : vector<16x16xi1>, vector<16x16xf32>
    %cst_10 = arith.constant dense<0xFF800000> : vector<16xf32>
    %22 = vector.multi_reduction <maximumf>, %21, %cst_10 [1] : vector<16x16xf32> to vector<16xf32>
    %23 = vector.shape_cast %22 : vector<16xf32> to vector<16x1xf32>
    %24 = vector.broadcast %23 : vector<16x1xf32> to vector<16x16xf32>
    %25 = arith.subf %21, %24 : vector<16x16xf32>
    %26 = math.exp %25 : vector<16x16xf32>
    %cst_11 = arith.constant dense<0.000000e+00> : vector<16xf32>
    %27 = vector.multi_reduction <add>, %26, %cst_11 [1] : vector<16x16xf32> to vector<16xf32>
    %28 = vector.shape_cast %27 : vector<16xf32> to vector<16x1xf32>
    %29 = tpu.reciprocal %28 {approx = true} : vector<16x1xf32> -> vector<16x1xf32>
    %30 = vector.broadcast %29 : vector<16x1xf32> to vector<16x16xf32>
    %31 = arith.mulf %26, %30 : vector<16x16xf32>
    %32 = arith.truncf %31 : vector<16x16xf32> to vector<16x16xbf16>
    %33 = arith.truncf %14 : vector<16x32xf32> to vector<16x32xbf16>
    %cst_12 = arith.constant dense<0.000000e+00> : vector<16x32xf32>
    %34 = tpu.matmul %32, %33, %cst_12 {dimension_numbers = #tpu.dot_dimension_numbers<[1], [0], [0], [1], [0, 0, 1, 1], [], []>} : vector<16x16xbf16>, vector<16x32xbf16>, vector<16x32xf32> -> vector<16x32xf32>
    %cst_13 = arith.constant dense<0.000000e+00> : vector<16x32xf32>
    %35 = tpu.matmul %11, %14, %cst_13 {dimension_numbers = #tpu.dot_dimension_numbers<[1], [0], [0], [1], [0, 0, 1, 1], [], []>} : vector<16x16xf32>, vector<16x32xf32>, vector<16x32xf32> -> vector<16x32xf32>
    %36 = vector.extract_strided_slice %3 {offsets = [0, 0], sizes = [16, 1], strides = [1, 1]} : vector<16x8xf32> to vector<16x1xf32>
    %cst_14 = arith.constant 5.000000e-01 : f32
    %37 = vector.broadcast %cst_14 : f32 to vector<16x1xf32>
    %38 = arith.cmpf ogt, %36, %37 : vector<16x1xf32>
    %39 = vector.shape_cast %38 : vector<16x1xi1> to vector<16x1xi1>
    %40 = vector.broadcast %39 : vector<16x1xi1> to vector<16x32xi1>
    %41 = arith.select %40, %34, %35 : vector<16x32xi1>, vector<16x32xf32>
    %42 = vector.extract_strided_slice %1 {offsets = [0, 32], sizes = [16, 32], strides = [1, 1]} : vector<16x768xf32> to vector<16x32xf32>
    %43 = vector.extract_strided_slice %1 {offsets = [0, 288], sizes = [16, 32], strides = [1, 1]} : vector<16x768xf32> to vector<16x32xf32>
    %44 = vector.extract_strided_slice %1 {offsets = [0, 544], sizes = [16, 32], strides = [1, 1]} : vector<16x768xf32> to vector<16x32xf32>
    %45 = arith.truncf %42 : vector<16x32xf32> to vector<16x32xbf16>
    %46 = arith.truncf %43 : vector<16x32xf32> to vector<16x32xbf16>
    %cst_15 = arith.constant dense<0.000000e+00> : vector<16x16xf32>
    %47 = tpu.matmul %45, %46, %cst_15 {dimension_numbers = #tpu.dot_dimension_numbers<[1], [1], [0], [0], [0, 0, 1, 0], [], []>} : vector<16x32xbf16>, vector<16x32xbf16>, vector<16x16xf32> -> vector<16x16xf32>
    %cst_16 = arith.constant 0.176776692 : f32
    %48 = vector.broadcast %cst_16 : f32 to vector<16x16xf32>
    %49 = arith.mulf %47, %48 : vector<16x16xf32>
    %cst_17 = arith.constant -1.000000e+30 : f32
    %50 = vector.broadcast %cst_17 : f32 to vector<16x16xf32>
    %51 = arith.select %8, %50, %49 : vector<16x16xi1>, vector<16x16xf32>
    %cst_18 = arith.constant dense<0xFF800000> : vector<16xf32>
    %52 = vector.multi_reduction <maximumf>, %51, %cst_18 [1] : vector<16x16xf32> to vector<16xf32>
    %53 = vector.shape_cast %52 : vector<16xf32> to vector<16x1xf32>
    %54 = vector.broadcast %53 : vector<16x1xf32> to vector<16x16xf32>
    %55 = arith.subf %51, %54 : vector<16x16xf32>
    %56 = math.exp %55 : vector<16x16xf32>
    %cst_19 = arith.constant dense<0.000000e+00> : vector<16xf32>
    %57 = vector.multi_reduction <add>, %56, %cst_19 [1] : vector<16x16xf32> to vector<16xf32>
    %58 = vector.shape_cast %57 : vector<16xf32> to vector<16x1xf32>
    %59 = tpu.reciprocal %58 {approx = true} : vector<16x1xf32> -> vector<16x1xf32>
    %60 = vector.broadcast %59 : vector<16x1xf32> to vector<16x16xf32>
    %61 = arith.mulf %56, %60 : vector<16x16xf32>
    %62 = arith.truncf %61 : vector<16x16xf32> to vector<16x16xbf16>
    %63 = arith.truncf %44 : vector<16x32xf32> to vector<16x32xbf16>
    %cst_20 = arith.constant dense<0.000000e+00> : vector<16x32xf32>
    %64 = tpu.matmul %62, %63, %cst_20 {dimension_numbers = #tpu.dot_dimension_numbers<[1], [0], [0], [1], [0, 0, 1, 1], [], []>} : vector<16x16xbf16>, vector<16x32xbf16>, vector<16x32xf32> -> vector<16x32xf32>
    %cst_21 = arith.constant dense<0.000000e+00> : vector<16x32xf32>
    %65 = tpu.matmul %11, %44, %cst_21 {dimension_numbers = #tpu.dot_dimension_numbers<[1], [0], [0], [1], [0, 0, 1, 1], [], []>} : vector<16x16xf32>, vector<16x32xf32>, vector<16x32xf32> -> vector<16x32xf32>
    %66 = vector.extract_strided_slice %3 {offsets = [0, 1], sizes = [16, 1], strides = [1, 1]} : vector<16x8xf32> to vector<16x1xf32>
    %cst_22 = arith.constant 5.000000e-01 : f32
    %67 = vector.broadcast %cst_22 : f32 to vector<16x1xf32>
    %68 = arith.cmpf ogt, %66, %67 : vector<16x1xf32>
    %69 = vector.shape_cast %68 : vector<16x1xi1> to vector<16x1xi1>
    %70 = vector.broadcast %69 : vector<16x1xi1> to vector<16x32xi1>
    %71 = arith.select %70, %64, %65 : vector<16x32xi1>, vector<16x32xf32>
    %72 = vector.extract_strided_slice %1 {offsets = [0, 64], sizes = [16, 32], strides = [1, 1]} : vector<16x768xf32> to vector<16x32xf32>
    %73 = vector.extract_strided_slice %1 {offsets = [0, 320], sizes = [16, 32], strides = [1, 1]} : vector<16x768xf32> to vector<16x32xf32>
    %74 = vector.extract_strided_slice %1 {offsets = [0, 576], sizes = [16, 32], strides = [1, 1]} : vector<16x768xf32> to vector<16x32xf32>
    %75 = arith.truncf %72 : vector<16x32xf32> to vector<16x32xbf16>
    %76 = arith.truncf %73 : vector<16x32xf32> to vector<16x32xbf16>
    %cst_23 = arith.constant dense<0.000000e+00> : vector<16x16xf32>
    %77 = tpu.matmul %75, %76, %cst_23 {dimension_numbers = #tpu.dot_dimension_numbers<[1], [1], [0], [0], [0, 0, 1, 0], [], []>} : vector<16x32xbf16>, vector<16x32xbf16>, vector<16x16xf32> -> vector<16x16xf32>
    %cst_24 = arith.constant 0.176776692 : f32
    %78 = vector.broadcast %cst_24 : f32 to vector<16x16xf32>
    %79 = arith.mulf %77, %78 : vector<16x16xf32>
    %cst_25 = arith.constant -1.000000e+30 : f32
    %80 = vector.broadcast %cst_25 : f32 to vector<16x16xf32>
    %81 = arith.select %8, %80, %79 : vector<16x16xi1>, vector<16x16xf32>
    %cst_26 = arith.constant dense<0xFF800000> : vector<16xf32>
    %82 = vector.multi_reduction <maximumf>, %81, %cst_26 [1] : vector<16x16xf32> to vector<16xf32>
    %83 = vector.shape_cast %82 : vector<16xf32> to vector<16x1xf32>
    %84 = vector.broadcast %83 : vector<16x1xf32> to vector<16x16xf32>
    %85 = arith.subf %81, %84 : vector<16x16xf32>
    %86 = math.exp %85 : vector<16x16xf32>
    %cst_27 = arith.constant dense<0.000000e+00> : vector<16xf32>
    %87 = vector.multi_reduction <add>, %86, %cst_27 [1] : vector<16x16xf32> to vector<16xf32>
    %88 = vector.shape_cast %87 : vector<16xf32> to vector<16x1xf32>
    %89 = tpu.reciprocal %88 {approx = true} : vector<16x1xf32> -> vector<16x1xf32>
    %90 = vector.broadcast %89 : vector<16x1xf32> to vector<16x16xf32>
    %91 = arith.mulf %86, %90 : vector<16x16xf32>
    %92 = arith.truncf %91 : vector<16x16xf32> to vector<16x16xbf16>
    %93 = arith.truncf %74 : vector<16x32xf32> to vector<16x32xbf16>
    %cst_28 = arith.constant dense<0.000000e+00> : vector<16x32xf32>
    %94 = tpu.matmul %92, %93, %cst_28 {dimension_numbers = #tpu.dot_dimension_numbers<[1], [0], [0], [1], [0, 0, 1, 1], [], []>} : vector<16x16xbf16>, vector<16x32xbf16>, vector<16x32xf32> -> vector<16x32xf32>
    %cst_29 = arith.constant dense<0.000000e+00> : vector<16x32xf32>
    %95 = tpu.matmul %11, %74, %cst_29 {dimension_numbers = #tpu.dot_dimension_numbers<[1], [0], [0], [1], [0, 0, 1, 1], [], []>} : vector<16x16xf32>, vector<16x32xf32>, vector<16x32xf32> -> vector<16x32xf32>
    %96 = vector.extract_strided_slice %3 {offsets = [0, 2], sizes = [16, 1], strides = [1, 1]} : vector<16x8xf32> to vector<16x1xf32>
    %cst_30 = arith.constant 5.000000e-01 : f32
    %97 = vector.broadcast %cst_30 : f32 to vector<16x1xf32>
    %98 = arith.cmpf ogt, %96, %97 : vector<16x1xf32>
    %99 = vector.shape_cast %98 : vector<16x1xi1> to vector<16x1xi1>
    %100 = vector.broadcast %99 : vector<16x1xi1> to vector<16x32xi1>
    %101 = arith.select %100, %94, %95 : vector<16x32xi1>, vector<16x32xf32>
    %102 = vector.extract_strided_slice %1 {offsets = [0, 96], sizes = [16, 32], strides = [1, 1]} : vector<16x768xf32> to vector<16x32xf32>
    %103 = vector.extract_strided_slice %1 {offsets = [0, 352], sizes = [16, 32], strides = [1, 1]} : vector<16x768xf32> to vector<16x32xf32>
    %104 = vector.extract_strided_slice %1 {offsets = [0, 608], sizes = [16, 32], strides = [1, 1]} : vector<16x768xf32> to vector<16x32xf32>
    %105 = arith.truncf %102 : vector<16x32xf32> to vector<16x32xbf16>
    %106 = arith.truncf %103 : vector<16x32xf32> to vector<16x32xbf16>
    %cst_31 = arith.constant dense<0.000000e+00> : vector<16x16xf32>
    %107 = tpu.matmul %105, %106, %cst_31 {dimension_numbers = #tpu.dot_dimension_numbers<[1], [1], [0], [0], [0, 0, 1, 0], [], []>} : vector<16x32xbf16>, vector<16x32xbf16>, vector<16x16xf32> -> vector<16x16xf32>
    %cst_32 = arith.constant 0.176776692 : f32
    %108 = vector.broadcast %cst_32 : f32 to vector<16x16xf32>
    %109 = arith.mulf %107, %108 : vector<16x16xf32>
    %cst_33 = arith.constant -1.000000e+30 : f32
    %110 = vector.broadcast %cst_33 : f32 to vector<16x16xf32>
    %111 = arith.select %8, %110, %109 : vector<16x16xi1>, vector<16x16xf32>
    %cst_34 = arith.constant dense<0xFF800000> : vector<16xf32>
    %112 = vector.multi_reduction <maximumf>, %111, %cst_34 [1] : vector<16x16xf32> to vector<16xf32>
    %113 = vector.shape_cast %112 : vector<16xf32> to vector<16x1xf32>
    %114 = vector.broadcast %113 : vector<16x1xf32> to vector<16x16xf32>
    %115 = arith.subf %111, %114 : vector<16x16xf32>
    %116 = math.exp %115 : vector<16x16xf32>
    %cst_35 = arith.constant dense<0.000000e+00> : vector<16xf32>
    %117 = vector.multi_reduction <add>, %116, %cst_35 [1] : vector<16x16xf32> to vector<16xf32>
    %118 = vector.shape_cast %117 : vector<16xf32> to vector<16x1xf32>
    %119 = tpu.reciprocal %118 {approx = true} : vector<16x1xf32> -> vector<16x1xf32>
    %120 = vector.broadcast %119 : vector<16x1xf32> to vector<16x16xf32>
    %121 = arith.mulf %116, %120 : vector<16x16xf32>
    %122 = arith.truncf %121 : vector<16x16xf32> to vector<16x16xbf16>
    %123 = arith.truncf %104 : vector<16x32xf32> to vector<16x32xbf16>
    %cst_36 = arith.constant dense<0.000000e+00> : vector<16x32xf32>
    %124 = tpu.matmul %122, %123, %cst_36 {dimension_numbers = #tpu.dot_dimension_numbers<[1], [0], [0], [1], [0, 0, 1, 1], [], []>} : vector<16x16xbf16>, vector<16x32xbf16>, vector<16x32xf32> -> vector<16x32xf32>
    %cst_37 = arith.constant dense<0.000000e+00> : vector<16x32xf32>
    %125 = tpu.matmul %11, %104, %cst_37 {dimension_numbers = #tpu.dot_dimension_numbers<[1], [0], [0], [1], [0, 0, 1, 1], [], []>} : vector<16x16xf32>, vector<16x32xf32>, vector<16x32xf32> -> vector<16x32xf32>
    %126 = vector.extract_strided_slice %3 {offsets = [0, 3], sizes = [16, 1], strides = [1, 1]} : vector<16x8xf32> to vector<16x1xf32>
    %cst_38 = arith.constant 5.000000e-01 : f32
    %127 = vector.broadcast %cst_38 : f32 to vector<16x1xf32>
    %128 = arith.cmpf ogt, %126, %127 : vector<16x1xf32>
    %129 = vector.shape_cast %128 : vector<16x1xi1> to vector<16x1xi1>
    %130 = vector.broadcast %129 : vector<16x1xi1> to vector<16x32xi1>
    %131 = arith.select %130, %124, %125 : vector<16x32xi1>, vector<16x32xf32>
    %132 = vector.extract_strided_slice %1 {offsets = [0, 128], sizes = [16, 32], strides = [1, 1]} : vector<16x768xf32> to vector<16x32xf32>
    %133 = vector.extract_strided_slice %1 {offsets = [0, 384], sizes = [16, 32], strides = [1, 1]} : vector<16x768xf32> to vector<16x32xf32>
    %134 = vector.extract_strided_slice %1 {offsets = [0, 640], sizes = [16, 32], strides = [1, 1]} : vector<16x768xf32> to vector<16x32xf32>
    %135 = arith.truncf %132 : vector<16x32xf32> to vector<16x32xbf16>
    %136 = arith.truncf %133 : vector<16x32xf32> to vector<16x32xbf16>
    %cst_39 = arith.constant dense<0.000000e+00> : vector<16x16xf32>
    %137 = tpu.matmul %135, %136, %cst_39 {dimension_numbers = #tpu.dot_dimension_numbers<[1], [1], [0], [0], [0, 0, 1, 0], [], []>} : vector<16x32xbf16>, vector<16x32xbf16>, vector<16x16xf32> -> vector<16x16xf32>
    %cst_40 = arith.constant 0.176776692 : f32
    %138 = vector.broadcast %cst_40 : f32 to vector<16x16xf32>
    %139 = arith.mulf %137, %138 : vector<16x16xf32>
    %cst_41 = arith.constant -1.000000e+30 : f32
    %140 = vector.broadcast %cst_41 : f32 to vector<16x16xf32>
    %141 = arith.select %8, %140, %139 : vector<16x16xi1>, vector<16x16xf32>
    %cst_42 = arith.constant dense<0xFF800000> : vector<16xf32>
    %142 = vector.multi_reduction <maximumf>, %141, %cst_42 [1] : vector<16x16xf32> to vector<16xf32>
    %143 = vector.shape_cast %142 : vector<16xf32> to vector<16x1xf32>
    %144 = vector.broadcast %143 : vector<16x1xf32> to vector<16x16xf32>
    %145 = arith.subf %141, %144 : vector<16x16xf32>
    %146 = math.exp %145 : vector<16x16xf32>
    %cst_43 = arith.constant dense<0.000000e+00> : vector<16xf32>
    %147 = vector.multi_reduction <add>, %146, %cst_43 [1] : vector<16x16xf32> to vector<16xf32>
    %148 = vector.shape_cast %147 : vector<16xf32> to vector<16x1xf32>
    %149 = tpu.reciprocal %148 {approx = true} : vector<16x1xf32> -> vector<16x1xf32>
    %150 = vector.broadcast %149 : vector<16x1xf32> to vector<16x16xf32>
    %151 = arith.mulf %146, %150 : vector<16x16xf32>
    %152 = arith.truncf %151 : vector<16x16xf32> to vector<16x16xbf16>
    %153 = arith.truncf %134 : vector<16x32xf32> to vector<16x32xbf16>
    %cst_44 = arith.constant dense<0.000000e+00> : vector<16x32xf32>
    %154 = tpu.matmul %152, %153, %cst_44 {dimension_numbers = #tpu.dot_dimension_numbers<[1], [0], [0], [1], [0, 0, 1, 1], [], []>} : vector<16x16xbf16>, vector<16x32xbf16>, vector<16x32xf32> -> vector<16x32xf32>
    %cst_45 = arith.constant dense<0.000000e+00> : vector<16x32xf32>
    %155 = tpu.matmul %11, %134, %cst_45 {dimension_numbers = #tpu.dot_dimension_numbers<[1], [0], [0], [1], [0, 0, 1, 1], [], []>} : vector<16x16xf32>, vector<16x32xf32>, vector<16x32xf32> -> vector<16x32xf32>
    %156 = vector.extract_strided_slice %3 {offsets = [0, 4], sizes = [16, 1], strides = [1, 1]} : vector<16x8xf32> to vector<16x1xf32>
    %cst_46 = arith.constant 5.000000e-01 : f32
    %157 = vector.broadcast %cst_46 : f32 to vector<16x1xf32>
    %158 = arith.cmpf ogt, %156, %157 : vector<16x1xf32>
    %159 = vector.shape_cast %158 : vector<16x1xi1> to vector<16x1xi1>
    %160 = vector.broadcast %159 : vector<16x1xi1> to vector<16x32xi1>
    %161 = arith.select %160, %154, %155 : vector<16x32xi1>, vector<16x32xf32>
    %162 = vector.extract_strided_slice %1 {offsets = [0, 160], sizes = [16, 32], strides = [1, 1]} : vector<16x768xf32> to vector<16x32xf32>
    %163 = vector.extract_strided_slice %1 {offsets = [0, 416], sizes = [16, 32], strides = [1, 1]} : vector<16x768xf32> to vector<16x32xf32>
    %164 = vector.extract_strided_slice %1 {offsets = [0, 672], sizes = [16, 32], strides = [1, 1]} : vector<16x768xf32> to vector<16x32xf32>
    %165 = arith.truncf %162 : vector<16x32xf32> to vector<16x32xbf16>
    %166 = arith.truncf %163 : vector<16x32xf32> to vector<16x32xbf16>
    %cst_47 = arith.constant dense<0.000000e+00> : vector<16x16xf32>
    %167 = tpu.matmul %165, %166, %cst_47 {dimension_numbers = #tpu.dot_dimension_numbers<[1], [1], [0], [0], [0, 0, 1, 0], [], []>} : vector<16x32xbf16>, vector<16x32xbf16>, vector<16x16xf32> -> vector<16x16xf32>
    %cst_48 = arith.constant 0.176776692 : f32
    %168 = vector.broadcast %cst_48 : f32 to vector<16x16xf32>
    %169 = arith.mulf %167, %168 : vector<16x16xf32>
    %cst_49 = arith.constant -1.000000e+30 : f32
    %170 = vector.broadcast %cst_49 : f32 to vector<16x16xf32>
    %171 = arith.select %8, %170, %169 : vector<16x16xi1>, vector<16x16xf32>
    %cst_50 = arith.constant dense<0xFF800000> : vector<16xf32>
    %172 = vector.multi_reduction <maximumf>, %171, %cst_50 [1] : vector<16x16xf32> to vector<16xf32>
    %173 = vector.shape_cast %172 : vector<16xf32> to vector<16x1xf32>
    %174 = vector.broadcast %173 : vector<16x1xf32> to vector<16x16xf32>
    %175 = arith.subf %171, %174 : vector<16x16xf32>
    %176 = math.exp %175 : vector<16x16xf32>
    %cst_51 = arith.constant dense<0.000000e+00> : vector<16xf32>
    %177 = vector.multi_reduction <add>, %176, %cst_51 [1] : vector<16x16xf32> to vector<16xf32>
    %178 = vector.shape_cast %177 : vector<16xf32> to vector<16x1xf32>
    %179 = tpu.reciprocal %178 {approx = true} : vector<16x1xf32> -> vector<16x1xf32>
    %180 = vector.broadcast %179 : vector<16x1xf32> to vector<16x16xf32>
    %181 = arith.mulf %176, %180 : vector<16x16xf32>
    %182 = arith.truncf %181 : vector<16x16xf32> to vector<16x16xbf16>
    %183 = arith.truncf %164 : vector<16x32xf32> to vector<16x32xbf16>
    %cst_52 = arith.constant dense<0.000000e+00> : vector<16x32xf32>
    %184 = tpu.matmul %182, %183, %cst_52 {dimension_numbers = #tpu.dot_dimension_numbers<[1], [0], [0], [1], [0, 0, 1, 1], [], []>} : vector<16x16xbf16>, vector<16x32xbf16>, vector<16x32xf32> -> vector<16x32xf32>
    %cst_53 = arith.constant dense<0.000000e+00> : vector<16x32xf32>
    %185 = tpu.matmul %11, %164, %cst_53 {dimension_numbers = #tpu.dot_dimension_numbers<[1], [0], [0], [1], [0, 0, 1, 1], [], []>} : vector<16x16xf32>, vector<16x32xf32>, vector<16x32xf32> -> vector<16x32xf32>
    %186 = vector.extract_strided_slice %3 {offsets = [0, 5], sizes = [16, 1], strides = [1, 1]} : vector<16x8xf32> to vector<16x1xf32>
    %cst_54 = arith.constant 5.000000e-01 : f32
    %187 = vector.broadcast %cst_54 : f32 to vector<16x1xf32>
    %188 = arith.cmpf ogt, %186, %187 : vector<16x1xf32>
    %189 = vector.shape_cast %188 : vector<16x1xi1> to vector<16x1xi1>
    %190 = vector.broadcast %189 : vector<16x1xi1> to vector<16x32xi1>
    %191 = arith.select %190, %184, %185 : vector<16x32xi1>, vector<16x32xf32>
    %192 = vector.extract_strided_slice %1 {offsets = [0, 192], sizes = [16, 32], strides = [1, 1]} : vector<16x768xf32> to vector<16x32xf32>
    %193 = vector.extract_strided_slice %1 {offsets = [0, 448], sizes = [16, 32], strides = [1, 1]} : vector<16x768xf32> to vector<16x32xf32>
    %194 = vector.extract_strided_slice %1 {offsets = [0, 704], sizes = [16, 32], strides = [1, 1]} : vector<16x768xf32> to vector<16x32xf32>
    %195 = arith.truncf %192 : vector<16x32xf32> to vector<16x32xbf16>
    %196 = arith.truncf %193 : vector<16x32xf32> to vector<16x32xbf16>
    %cst_55 = arith.constant dense<0.000000e+00> : vector<16x16xf32>
    %197 = tpu.matmul %195, %196, %cst_55 {dimension_numbers = #tpu.dot_dimension_numbers<[1], [1], [0], [0], [0, 0, 1, 0], [], []>} : vector<16x32xbf16>, vector<16x32xbf16>, vector<16x16xf32> -> vector<16x16xf32>
    %cst_56 = arith.constant 0.176776692 : f32
    %198 = vector.broadcast %cst_56 : f32 to vector<16x16xf32>
    %199 = arith.mulf %197, %198 : vector<16x16xf32>
    %cst_57 = arith.constant -1.000000e+30 : f32
    %200 = vector.broadcast %cst_57 : f32 to vector<16x16xf32>
    %201 = arith.select %8, %200, %199 : vector<16x16xi1>, vector<16x16xf32>
    %cst_58 = arith.constant dense<0xFF800000> : vector<16xf32>
    %202 = vector.multi_reduction <maximumf>, %201, %cst_58 [1] : vector<16x16xf32> to vector<16xf32>
    %203 = vector.shape_cast %202 : vector<16xf32> to vector<16x1xf32>
    %204 = vector.broadcast %203 : vector<16x1xf32> to vector<16x16xf32>
    %205 = arith.subf %201, %204 : vector<16x16xf32>
    %206 = math.exp %205 : vector<16x16xf32>
    %cst_59 = arith.constant dense<0.000000e+00> : vector<16xf32>
    %207 = vector.multi_reduction <add>, %206, %cst_59 [1] : vector<16x16xf32> to vector<16xf32>
    %208 = vector.shape_cast %207 : vector<16xf32> to vector<16x1xf32>
    %209 = tpu.reciprocal %208 {approx = true} : vector<16x1xf32> -> vector<16x1xf32>
    %210 = vector.broadcast %209 : vector<16x1xf32> to vector<16x16xf32>
    %211 = arith.mulf %206, %210 : vector<16x16xf32>
    %212 = arith.truncf %211 : vector<16x16xf32> to vector<16x16xbf16>
    %213 = arith.truncf %194 : vector<16x32xf32> to vector<16x32xbf16>
    %cst_60 = arith.constant dense<0.000000e+00> : vector<16x32xf32>
    %214 = tpu.matmul %212, %213, %cst_60 {dimension_numbers = #tpu.dot_dimension_numbers<[1], [0], [0], [1], [0, 0, 1, 1], [], []>} : vector<16x16xbf16>, vector<16x32xbf16>, vector<16x32xf32> -> vector<16x32xf32>
    %cst_61 = arith.constant dense<0.000000e+00> : vector<16x32xf32>
    %215 = tpu.matmul %11, %194, %cst_61 {dimension_numbers = #tpu.dot_dimension_numbers<[1], [0], [0], [1], [0, 0, 1, 1], [], []>} : vector<16x16xf32>, vector<16x32xf32>, vector<16x32xf32> -> vector<16x32xf32>
    %216 = vector.extract_strided_slice %3 {offsets = [0, 6], sizes = [16, 1], strides = [1, 1]} : vector<16x8xf32> to vector<16x1xf32>
    %cst_62 = arith.constant 5.000000e-01 : f32
    %217 = vector.broadcast %cst_62 : f32 to vector<16x1xf32>
    %218 = arith.cmpf ogt, %216, %217 : vector<16x1xf32>
    %219 = vector.shape_cast %218 : vector<16x1xi1> to vector<16x1xi1>
    %220 = vector.broadcast %219 : vector<16x1xi1> to vector<16x32xi1>
    %221 = arith.select %220, %214, %215 : vector<16x32xi1>, vector<16x32xf32>
    %222 = vector.extract_strided_slice %1 {offsets = [0, 224], sizes = [16, 32], strides = [1, 1]} : vector<16x768xf32> to vector<16x32xf32>
    %223 = vector.extract_strided_slice %1 {offsets = [0, 480], sizes = [16, 32], strides = [1, 1]} : vector<16x768xf32> to vector<16x32xf32>
    %224 = vector.extract_strided_slice %1 {offsets = [0, 736], sizes = [16, 32], strides = [1, 1]} : vector<16x768xf32> to vector<16x32xf32>
    %225 = arith.truncf %222 : vector<16x32xf32> to vector<16x32xbf16>
    %226 = arith.truncf %223 : vector<16x32xf32> to vector<16x32xbf16>
    %cst_63 = arith.constant dense<0.000000e+00> : vector<16x16xf32>
    %227 = tpu.matmul %225, %226, %cst_63 {dimension_numbers = #tpu.dot_dimension_numbers<[1], [1], [0], [0], [0, 0, 1, 0], [], []>} : vector<16x32xbf16>, vector<16x32xbf16>, vector<16x16xf32> -> vector<16x16xf32>
    %cst_64 = arith.constant 0.176776692 : f32
    %228 = vector.broadcast %cst_64 : f32 to vector<16x16xf32>
    %229 = arith.mulf %227, %228 : vector<16x16xf32>
    %cst_65 = arith.constant -1.000000e+30 : f32
    %230 = vector.broadcast %cst_65 : f32 to vector<16x16xf32>
    %231 = arith.select %8, %230, %229 : vector<16x16xi1>, vector<16x16xf32>
    %cst_66 = arith.constant dense<0xFF800000> : vector<16xf32>
    %232 = vector.multi_reduction <maximumf>, %231, %cst_66 [1] : vector<16x16xf32> to vector<16xf32>
    %233 = vector.shape_cast %232 : vector<16xf32> to vector<16x1xf32>
    %234 = vector.broadcast %233 : vector<16x1xf32> to vector<16x16xf32>
    %235 = arith.subf %231, %234 : vector<16x16xf32>
    %236 = math.exp %235 : vector<16x16xf32>
    %cst_67 = arith.constant dense<0.000000e+00> : vector<16xf32>
    %237 = vector.multi_reduction <add>, %236, %cst_67 [1] : vector<16x16xf32> to vector<16xf32>
    %238 = vector.shape_cast %237 : vector<16xf32> to vector<16x1xf32>
    %239 = tpu.reciprocal %238 {approx = true} : vector<16x1xf32> -> vector<16x1xf32>
    %240 = vector.broadcast %239 : vector<16x1xf32> to vector<16x16xf32>
    %241 = arith.mulf %236, %240 : vector<16x16xf32>
    %242 = arith.truncf %241 : vector<16x16xf32> to vector<16x16xbf16>
    %243 = arith.truncf %224 : vector<16x32xf32> to vector<16x32xbf16>
    %cst_68 = arith.constant dense<0.000000e+00> : vector<16x32xf32>
    %244 = tpu.matmul %242, %243, %cst_68 {dimension_numbers = #tpu.dot_dimension_numbers<[1], [0], [0], [1], [0, 0, 1, 1], [], []>} : vector<16x16xbf16>, vector<16x32xbf16>, vector<16x32xf32> -> vector<16x32xf32>
    %cst_69 = arith.constant dense<0.000000e+00> : vector<16x32xf32>
    %245 = tpu.matmul %11, %224, %cst_69 {dimension_numbers = #tpu.dot_dimension_numbers<[1], [0], [0], [1], [0, 0, 1, 1], [], []>} : vector<16x16xf32>, vector<16x32xf32>, vector<16x32xf32> -> vector<16x32xf32>
    %246 = vector.extract_strided_slice %3 {offsets = [0, 7], sizes = [16, 1], strides = [1, 1]} : vector<16x8xf32> to vector<16x1xf32>
    %cst_70 = arith.constant 5.000000e-01 : f32
    %247 = vector.broadcast %cst_70 : f32 to vector<16x1xf32>
    %248 = arith.cmpf ogt, %246, %247 : vector<16x1xf32>
    %249 = vector.shape_cast %248 : vector<16x1xi1> to vector<16x1xi1>
    %250 = vector.broadcast %249 : vector<16x1xi1> to vector<16x32xi1>
    %251 = arith.select %250, %244, %245 : vector<16x32xi1>, vector<16x32xf32>
    %252 = vector.extract_strided_slice %41 {offsets = [0, 0], sizes = [1, 32], strides = [1, 1]} : vector<16x32xf32> to vector<1x32xf32>
    %253 = vector.extract_strided_slice %41 {offsets = [1, 0], sizes = [1, 32], strides = [1, 1]} : vector<16x32xf32> to vector<1x32xf32>
    %254 = vector.extract_strided_slice %41 {offsets = [2, 0], sizes = [1, 32], strides = [1, 1]} : vector<16x32xf32> to vector<1x32xf32>
    %255 = vector.extract_strided_slice %41 {offsets = [3, 0], sizes = [1, 32], strides = [1, 1]} : vector<16x32xf32> to vector<1x32xf32>
    %256 = vector.extract_strided_slice %41 {offsets = [4, 0], sizes = [1, 32], strides = [1, 1]} : vector<16x32xf32> to vector<1x32xf32>
    %257 = vector.extract_strided_slice %41 {offsets = [5, 0], sizes = [1, 32], strides = [1, 1]} : vector<16x32xf32> to vector<1x32xf32>
    %258 = vector.extract_strided_slice %41 {offsets = [6, 0], sizes = [1, 32], strides = [1, 1]} : vector<16x32xf32> to vector<1x32xf32>
    %259 = vector.extract_strided_slice %41 {offsets = [7, 0], sizes = [1, 32], strides = [1, 1]} : vector<16x32xf32> to vector<1x32xf32>
    %260 = tpu.concatenate %252, %253, %254, %255, %256, %257, %258, %259 in 1 : vector<1x32xf32>, vector<1x32xf32>, vector<1x32xf32>, vector<1x32xf32>, vector<1x32xf32>, vector<1x32xf32>, vector<1x32xf32>, vector<1x32xf32> -> vector<1x256xf32>
    %261 = vector.extract_strided_slice %41 {offsets = [8, 0], sizes = [1, 32], strides = [1, 1]} : vector<16x32xf32> to vector<1x32xf32>
    %262 = vector.extract_strided_slice %41 {offsets = [9, 0], sizes = [1, 32], strides = [1, 1]} : vector<16x32xf32> to vector<1x32xf32>
    %263 = vector.extract_strided_slice %41 {offsets = [10, 0], sizes = [1, 32], strides = [1, 1]} : vector<16x32xf32> to vector<1x32xf32>
    %264 = vector.extract_strided_slice %41 {offsets = [11, 0], sizes = [1, 32], strides = [1, 1]} : vector<16x32xf32> to vector<1x32xf32>
    %265 = vector.extract_strided_slice %41 {offsets = [12, 0], sizes = [1, 32], strides = [1, 1]} : vector<16x32xf32> to vector<1x32xf32>
    %266 = vector.extract_strided_slice %41 {offsets = [13, 0], sizes = [1, 32], strides = [1, 1]} : vector<16x32xf32> to vector<1x32xf32>
    %267 = vector.extract_strided_slice %41 {offsets = [14, 0], sizes = [1, 32], strides = [1, 1]} : vector<16x32xf32> to vector<1x32xf32>
    %268 = vector.extract_strided_slice %41 {offsets = [15, 0], sizes = [1, 32], strides = [1, 1]} : vector<16x32xf32> to vector<1x32xf32>
    %269 = tpu.concatenate %261, %262, %263, %264, %265, %266, %267, %268 in 1 : vector<1x32xf32>, vector<1x32xf32>, vector<1x32xf32>, vector<1x32xf32>, vector<1x32xf32>, vector<1x32xf32>, vector<1x32xf32>, vector<1x32xf32> -> vector<1x256xf32>
    %270 = vector.extract_strided_slice %71 {offsets = [0, 0], sizes = [1, 32], strides = [1, 1]} : vector<16x32xf32> to vector<1x32xf32>
    %271 = vector.extract_strided_slice %71 {offsets = [1, 0], sizes = [1, 32], strides = [1, 1]} : vector<16x32xf32> to vector<1x32xf32>
    %272 = vector.extract_strided_slice %71 {offsets = [2, 0], sizes = [1, 32], strides = [1, 1]} : vector<16x32xf32> to vector<1x32xf32>
    %273 = vector.extract_strided_slice %71 {offsets = [3, 0], sizes = [1, 32], strides = [1, 1]} : vector<16x32xf32> to vector<1x32xf32>
    %274 = vector.extract_strided_slice %71 {offsets = [4, 0], sizes = [1, 32], strides = [1, 1]} : vector<16x32xf32> to vector<1x32xf32>
    %275 = vector.extract_strided_slice %71 {offsets = [5, 0], sizes = [1, 32], strides = [1, 1]} : vector<16x32xf32> to vector<1x32xf32>
    %276 = vector.extract_strided_slice %71 {offsets = [6, 0], sizes = [1, 32], strides = [1, 1]} : vector<16x32xf32> to vector<1x32xf32>
    %277 = vector.extract_strided_slice %71 {offsets = [7, 0], sizes = [1, 32], strides = [1, 1]} : vector<16x32xf32> to vector<1x32xf32>
    %278 = tpu.concatenate %270, %271, %272, %273, %274, %275, %276, %277 in 1 : vector<1x32xf32>, vector<1x32xf32>, vector<1x32xf32>, vector<1x32xf32>, vector<1x32xf32>, vector<1x32xf32>, vector<1x32xf32>, vector<1x32xf32> -> vector<1x256xf32>
    %279 = vector.extract_strided_slice %71 {offsets = [8, 0], sizes = [1, 32], strides = [1, 1]} : vector<16x32xf32> to vector<1x32xf32>
    %280 = vector.extract_strided_slice %71 {offsets = [9, 0], sizes = [1, 32], strides = [1, 1]} : vector<16x32xf32> to vector<1x32xf32>
    %281 = vector.extract_strided_slice %71 {offsets = [10, 0], sizes = [1, 32], strides = [1, 1]} : vector<16x32xf32> to vector<1x32xf32>
    %282 = vector.extract_strided_slice %71 {offsets = [11, 0], sizes = [1, 32], strides = [1, 1]} : vector<16x32xf32> to vector<1x32xf32>
    %283 = vector.extract_strided_slice %71 {offsets = [12, 0], sizes = [1, 32], strides = [1, 1]} : vector<16x32xf32> to vector<1x32xf32>
    %284 = vector.extract_strided_slice %71 {offsets = [13, 0], sizes = [1, 32], strides = [1, 1]} : vector<16x32xf32> to vector<1x32xf32>
    %285 = vector.extract_strided_slice %71 {offsets = [14, 0], sizes = [1, 32], strides = [1, 1]} : vector<16x32xf32> to vector<1x32xf32>
    %286 = vector.extract_strided_slice %71 {offsets = [15, 0], sizes = [1, 32], strides = [1, 1]} : vector<16x32xf32> to vector<1x32xf32>
    %287 = tpu.concatenate %279, %280, %281, %282, %283, %284, %285, %286 in 1 : vector<1x32xf32>, vector<1x32xf32>, vector<1x32xf32>, vector<1x32xf32>, vector<1x32xf32>, vector<1x32xf32>, vector<1x32xf32>, vector<1x32xf32> -> vector<1x256xf32>
    %288 = vector.extract_strided_slice %101 {offsets = [0, 0], sizes = [1, 32], strides = [1, 1]} : vector<16x32xf32> to vector<1x32xf32>
    %289 = vector.extract_strided_slice %101 {offsets = [1, 0], sizes = [1, 32], strides = [1, 1]} : vector<16x32xf32> to vector<1x32xf32>
    %290 = vector.extract_strided_slice %101 {offsets = [2, 0], sizes = [1, 32], strides = [1, 1]} : vector<16x32xf32> to vector<1x32xf32>
    %291 = vector.extract_strided_slice %101 {offsets = [3, 0], sizes = [1, 32], strides = [1, 1]} : vector<16x32xf32> to vector<1x32xf32>
    %292 = vector.extract_strided_slice %101 {offsets = [4, 0], sizes = [1, 32], strides = [1, 1]} : vector<16x32xf32> to vector<1x32xf32>
    %293 = vector.extract_strided_slice %101 {offsets = [5, 0], sizes = [1, 32], strides = [1, 1]} : vector<16x32xf32> to vector<1x32xf32>
    %294 = vector.extract_strided_slice %101 {offsets = [6, 0], sizes = [1, 32], strides = [1, 1]} : vector<16x32xf32> to vector<1x32xf32>
    %295 = vector.extract_strided_slice %101 {offsets = [7, 0], sizes = [1, 32], strides = [1, 1]} : vector<16x32xf32> to vector<1x32xf32>
    %296 = tpu.concatenate %288, %289, %290, %291, %292, %293, %294, %295 in 1 : vector<1x32xf32>, vector<1x32xf32>, vector<1x32xf32>, vector<1x32xf32>, vector<1x32xf32>, vector<1x32xf32>, vector<1x32xf32>, vector<1x32xf32> -> vector<1x256xf32>
    %297 = vector.extract_strided_slice %101 {offsets = [8, 0], sizes = [1, 32], strides = [1, 1]} : vector<16x32xf32> to vector<1x32xf32>
    %298 = vector.extract_strided_slice %101 {offsets = [9, 0], sizes = [1, 32], strides = [1, 1]} : vector<16x32xf32> to vector<1x32xf32>
    %299 = vector.extract_strided_slice %101 {offsets = [10, 0], sizes = [1, 32], strides = [1, 1]} : vector<16x32xf32> to vector<1x32xf32>
    %300 = vector.extract_strided_slice %101 {offsets = [11, 0], sizes = [1, 32], strides = [1, 1]} : vector<16x32xf32> to vector<1x32xf32>
    %301 = vector.extract_strided_slice %101 {offsets = [12, 0], sizes = [1, 32], strides = [1, 1]} : vector<16x32xf32> to vector<1x32xf32>
    %302 = vector.extract_strided_slice %101 {offsets = [13, 0], sizes = [1, 32], strides = [1, 1]} : vector<16x32xf32> to vector<1x32xf32>
    %303 = vector.extract_strided_slice %101 {offsets = [14, 0], sizes = [1, 32], strides = [1, 1]} : vector<16x32xf32> to vector<1x32xf32>
    %304 = vector.extract_strided_slice %101 {offsets = [15, 0], sizes = [1, 32], strides = [1, 1]} : vector<16x32xf32> to vector<1x32xf32>
    %305 = tpu.concatenate %297, %298, %299, %300, %301, %302, %303, %304 in 1 : vector<1x32xf32>, vector<1x32xf32>, vector<1x32xf32>, vector<1x32xf32>, vector<1x32xf32>, vector<1x32xf32>, vector<1x32xf32>, vector<1x32xf32> -> vector<1x256xf32>
    %306 = vector.extract_strided_slice %131 {offsets = [0, 0], sizes = [1, 32], strides = [1, 1]} : vector<16x32xf32> to vector<1x32xf32>
    %307 = vector.extract_strided_slice %131 {offsets = [1, 0], sizes = [1, 32], strides = [1, 1]} : vector<16x32xf32> to vector<1x32xf32>
    %308 = vector.extract_strided_slice %131 {offsets = [2, 0], sizes = [1, 32], strides = [1, 1]} : vector<16x32xf32> to vector<1x32xf32>
    %309 = vector.extract_strided_slice %131 {offsets = [3, 0], sizes = [1, 32], strides = [1, 1]} : vector<16x32xf32> to vector<1x32xf32>
    %310 = vector.extract_strided_slice %131 {offsets = [4, 0], sizes = [1, 32], strides = [1, 1]} : vector<16x32xf32> to vector<1x32xf32>
    %311 = vector.extract_strided_slice %131 {offsets = [5, 0], sizes = [1, 32], strides = [1, 1]} : vector<16x32xf32> to vector<1x32xf32>
    %312 = vector.extract_strided_slice %131 {offsets = [6, 0], sizes = [1, 32], strides = [1, 1]} : vector<16x32xf32> to vector<1x32xf32>
    %313 = vector.extract_strided_slice %131 {offsets = [7, 0], sizes = [1, 32], strides = [1, 1]} : vector<16x32xf32> to vector<1x32xf32>
    %314 = tpu.concatenate %306, %307, %308, %309, %310, %311, %312, %313 in 1 : vector<1x32xf32>, vector<1x32xf32>, vector<1x32xf32>, vector<1x32xf32>, vector<1x32xf32>, vector<1x32xf32>, vector<1x32xf32>, vector<1x32xf32> -> vector<1x256xf32>
    %315 = vector.extract_strided_slice %131 {offsets = [8, 0], sizes = [1, 32], strides = [1, 1]} : vector<16x32xf32> to vector<1x32xf32>
    %316 = vector.extract_strided_slice %131 {offsets = [9, 0], sizes = [1, 32], strides = [1, 1]} : vector<16x32xf32> to vector<1x32xf32>
    %317 = vector.extract_strided_slice %131 {offsets = [10, 0], sizes = [1, 32], strides = [1, 1]} : vector<16x32xf32> to vector<1x32xf32>
    %318 = vector.extract_strided_slice %131 {offsets = [11, 0], sizes = [1, 32], strides = [1, 1]} : vector<16x32xf32> to vector<1x32xf32>
    %319 = vector.extract_strided_slice %131 {offsets = [12, 0], sizes = [1, 32], strides = [1, 1]} : vector<16x32xf32> to vector<1x32xf32>
    %320 = vector.extract_strided_slice %131 {offsets = [13, 0], sizes = [1, 32], strides = [1, 1]} : vector<16x32xf32> to vector<1x32xf32>
    %321 = vector.extract_strided_slice %131 {offsets = [14, 0], sizes = [1, 32], strides = [1, 1]} : vector<16x32xf32> to vector<1x32xf32>
    %322 = vector.extract_strided_slice %131 {offsets = [15, 0], sizes = [1, 32], strides = [1, 1]} : vector<16x32xf32> to vector<1x32xf32>
    %323 = tpu.concatenate %315, %316, %317, %318, %319, %320, %321, %322 in 1 : vector<1x32xf32>, vector<1x32xf32>, vector<1x32xf32>, vector<1x32xf32>, vector<1x32xf32>, vector<1x32xf32>, vector<1x32xf32>, vector<1x32xf32> -> vector<1x256xf32>
    %324 = vector.extract_strided_slice %161 {offsets = [0, 0], sizes = [1, 32], strides = [1, 1]} : vector<16x32xf32> to vector<1x32xf32>
    %325 = vector.extract_strided_slice %161 {offsets = [1, 0], sizes = [1, 32], strides = [1, 1]} : vector<16x32xf32> to vector<1x32xf32>
    %326 = vector.extract_strided_slice %161 {offsets = [2, 0], sizes = [1, 32], strides = [1, 1]} : vector<16x32xf32> to vector<1x32xf32>
    %327 = vector.extract_strided_slice %161 {offsets = [3, 0], sizes = [1, 32], strides = [1, 1]} : vector<16x32xf32> to vector<1x32xf32>
    %328 = vector.extract_strided_slice %161 {offsets = [4, 0], sizes = [1, 32], strides = [1, 1]} : vector<16x32xf32> to vector<1x32xf32>
    %329 = vector.extract_strided_slice %161 {offsets = [5, 0], sizes = [1, 32], strides = [1, 1]} : vector<16x32xf32> to vector<1x32xf32>
    %330 = vector.extract_strided_slice %161 {offsets = [6, 0], sizes = [1, 32], strides = [1, 1]} : vector<16x32xf32> to vector<1x32xf32>
    %331 = vector.extract_strided_slice %161 {offsets = [7, 0], sizes = [1, 32], strides = [1, 1]} : vector<16x32xf32> to vector<1x32xf32>
    %332 = tpu.concatenate %324, %325, %326, %327, %328, %329, %330, %331 in 1 : vector<1x32xf32>, vector<1x32xf32>, vector<1x32xf32>, vector<1x32xf32>, vector<1x32xf32>, vector<1x32xf32>, vector<1x32xf32>, vector<1x32xf32> -> vector<1x256xf32>
    %333 = vector.extract_strided_slice %161 {offsets = [8, 0], sizes = [1, 32], strides = [1, 1]} : vector<16x32xf32> to vector<1x32xf32>
    %334 = vector.extract_strided_slice %161 {offsets = [9, 0], sizes = [1, 32], strides = [1, 1]} : vector<16x32xf32> to vector<1x32xf32>
    %335 = vector.extract_strided_slice %161 {offsets = [10, 0], sizes = [1, 32], strides = [1, 1]} : vector<16x32xf32> to vector<1x32xf32>
    %336 = vector.extract_strided_slice %161 {offsets = [11, 0], sizes = [1, 32], strides = [1, 1]} : vector<16x32xf32> to vector<1x32xf32>
    %337 = vector.extract_strided_slice %161 {offsets = [12, 0], sizes = [1, 32], strides = [1, 1]} : vector<16x32xf32> to vector<1x32xf32>
    %338 = vector.extract_strided_slice %161 {offsets = [13, 0], sizes = [1, 32], strides = [1, 1]} : vector<16x32xf32> to vector<1x32xf32>
    %339 = vector.extract_strided_slice %161 {offsets = [14, 0], sizes = [1, 32], strides = [1, 1]} : vector<16x32xf32> to vector<1x32xf32>
    %340 = vector.extract_strided_slice %161 {offsets = [15, 0], sizes = [1, 32], strides = [1, 1]} : vector<16x32xf32> to vector<1x32xf32>
    %341 = tpu.concatenate %333, %334, %335, %336, %337, %338, %339, %340 in 1 : vector<1x32xf32>, vector<1x32xf32>, vector<1x32xf32>, vector<1x32xf32>, vector<1x32xf32>, vector<1x32xf32>, vector<1x32xf32>, vector<1x32xf32> -> vector<1x256xf32>
    %342 = vector.extract_strided_slice %191 {offsets = [0, 0], sizes = [1, 32], strides = [1, 1]} : vector<16x32xf32> to vector<1x32xf32>
    %343 = vector.extract_strided_slice %191 {offsets = [1, 0], sizes = [1, 32], strides = [1, 1]} : vector<16x32xf32> to vector<1x32xf32>
    %344 = vector.extract_strided_slice %191 {offsets = [2, 0], sizes = [1, 32], strides = [1, 1]} : vector<16x32xf32> to vector<1x32xf32>
    %345 = vector.extract_strided_slice %191 {offsets = [3, 0], sizes = [1, 32], strides = [1, 1]} : vector<16x32xf32> to vector<1x32xf32>
    %346 = vector.extract_strided_slice %191 {offsets = [4, 0], sizes = [1, 32], strides = [1, 1]} : vector<16x32xf32> to vector<1x32xf32>
    %347 = vector.extract_strided_slice %191 {offsets = [5, 0], sizes = [1, 32], strides = [1, 1]} : vector<16x32xf32> to vector<1x32xf32>
    %348 = vector.extract_strided_slice %191 {offsets = [6, 0], sizes = [1, 32], strides = [1, 1]} : vector<16x32xf32> to vector<1x32xf32>
    %349 = vector.extract_strided_slice %191 {offsets = [7, 0], sizes = [1, 32], strides = [1, 1]} : vector<16x32xf32> to vector<1x32xf32>
    %350 = tpu.concatenate %342, %343, %344, %345, %346, %347, %348, %349 in 1 : vector<1x32xf32>, vector<1x32xf32>, vector<1x32xf32>, vector<1x32xf32>, vector<1x32xf32>, vector<1x32xf32>, vector<1x32xf32>, vector<1x32xf32> -> vector<1x256xf32>
    %351 = vector.extract_strided_slice %191 {offsets = [8, 0], sizes = [1, 32], strides = [1, 1]} : vector<16x32xf32> to vector<1x32xf32>
    %352 = vector.extract_strided_slice %191 {offsets = [9, 0], sizes = [1, 32], strides = [1, 1]} : vector<16x32xf32> to vector<1x32xf32>
    %353 = vector.extract_strided_slice %191 {offsets = [10, 0], sizes = [1, 32], strides = [1, 1]} : vector<16x32xf32> to vector<1x32xf32>
    %354 = vector.extract_strided_slice %191 {offsets = [11, 0], sizes = [1, 32], strides = [1, 1]} : vector<16x32xf32> to vector<1x32xf32>
    %355 = vector.extract_strided_slice %191 {offsets = [12, 0], sizes = [1, 32], strides = [1, 1]} : vector<16x32xf32> to vector<1x32xf32>
    %356 = vector.extract_strided_slice %191 {offsets = [13, 0], sizes = [1, 32], strides = [1, 1]} : vector<16x32xf32> to vector<1x32xf32>
    %357 = vector.extract_strided_slice %191 {offsets = [14, 0], sizes = [1, 32], strides = [1, 1]} : vector<16x32xf32> to vector<1x32xf32>
    %358 = vector.extract_strided_slice %191 {offsets = [15, 0], sizes = [1, 32], strides = [1, 1]} : vector<16x32xf32> to vector<1x32xf32>
    %359 = tpu.concatenate %351, %352, %353, %354, %355, %356, %357, %358 in 1 : vector<1x32xf32>, vector<1x32xf32>, vector<1x32xf32>, vector<1x32xf32>, vector<1x32xf32>, vector<1x32xf32>, vector<1x32xf32>, vector<1x32xf32> -> vector<1x256xf32>
    %360 = vector.extract_strided_slice %221 {offsets = [0, 0], sizes = [1, 32], strides = [1, 1]} : vector<16x32xf32> to vector<1x32xf32>
    %361 = vector.extract_strided_slice %221 {offsets = [1, 0], sizes = [1, 32], strides = [1, 1]} : vector<16x32xf32> to vector<1x32xf32>
    %362 = vector.extract_strided_slice %221 {offsets = [2, 0], sizes = [1, 32], strides = [1, 1]} : vector<16x32xf32> to vector<1x32xf32>
    %363 = vector.extract_strided_slice %221 {offsets = [3, 0], sizes = [1, 32], strides = [1, 1]} : vector<16x32xf32> to vector<1x32xf32>
    %364 = vector.extract_strided_slice %221 {offsets = [4, 0], sizes = [1, 32], strides = [1, 1]} : vector<16x32xf32> to vector<1x32xf32>
    %365 = vector.extract_strided_slice %221 {offsets = [5, 0], sizes = [1, 32], strides = [1, 1]} : vector<16x32xf32> to vector<1x32xf32>
    %366 = vector.extract_strided_slice %221 {offsets = [6, 0], sizes = [1, 32], strides = [1, 1]} : vector<16x32xf32> to vector<1x32xf32>
    %367 = vector.extract_strided_slice %221 {offsets = [7, 0], sizes = [1, 32], strides = [1, 1]} : vector<16x32xf32> to vector<1x32xf32>
    %368 = tpu.concatenate %360, %361, %362, %363, %364, %365, %366, %367 in 1 : vector<1x32xf32>, vector<1x32xf32>, vector<1x32xf32>, vector<1x32xf32>, vector<1x32xf32>, vector<1x32xf32>, vector<1x32xf32>, vector<1x32xf32> -> vector<1x256xf32>
    %369 = vector.extract_strided_slice %221 {offsets = [8, 0], sizes = [1, 32], strides = [1, 1]} : vector<16x32xf32> to vector<1x32xf32>
    %370 = vector.extract_strided_slice %221 {offsets = [9, 0], sizes = [1, 32], strides = [1, 1]} : vector<16x32xf32> to vector<1x32xf32>
    %371 = vector.extract_strided_slice %221 {offsets = [10, 0], sizes = [1, 32], strides = [1, 1]} : vector<16x32xf32> to vector<1x32xf32>
    %372 = vector.extract_strided_slice %221 {offsets = [11, 0], sizes = [1, 32], strides = [1, 1]} : vector<16x32xf32> to vector<1x32xf32>
    %373 = vector.extract_strided_slice %221 {offsets = [12, 0], sizes = [1, 32], strides = [1, 1]} : vector<16x32xf32> to vector<1x32xf32>
    %374 = vector.extract_strided_slice %221 {offsets = [13, 0], sizes = [1, 32], strides = [1, 1]} : vector<16x32xf32> to vector<1x32xf32>
    %375 = vector.extract_strided_slice %221 {offsets = [14, 0], sizes = [1, 32], strides = [1, 1]} : vector<16x32xf32> to vector<1x32xf32>
    %376 = vector.extract_strided_slice %221 {offsets = [15, 0], sizes = [1, 32], strides = [1, 1]} : vector<16x32xf32> to vector<1x32xf32>
    %377 = tpu.concatenate %369, %370, %371, %372, %373, %374, %375, %376 in 1 : vector<1x32xf32>, vector<1x32xf32>, vector<1x32xf32>, vector<1x32xf32>, vector<1x32xf32>, vector<1x32xf32>, vector<1x32xf32>, vector<1x32xf32> -> vector<1x256xf32>
    %378 = vector.extract_strided_slice %251 {offsets = [0, 0], sizes = [1, 32], strides = [1, 1]} : vector<16x32xf32> to vector<1x32xf32>
    %379 = vector.extract_strided_slice %251 {offsets = [1, 0], sizes = [1, 32], strides = [1, 1]} : vector<16x32xf32> to vector<1x32xf32>
    %380 = vector.extract_strided_slice %251 {offsets = [2, 0], sizes = [1, 32], strides = [1, 1]} : vector<16x32xf32> to vector<1x32xf32>
    %381 = vector.extract_strided_slice %251 {offsets = [3, 0], sizes = [1, 32], strides = [1, 1]} : vector<16x32xf32> to vector<1x32xf32>
    %382 = vector.extract_strided_slice %251 {offsets = [4, 0], sizes = [1, 32], strides = [1, 1]} : vector<16x32xf32> to vector<1x32xf32>
    %383 = vector.extract_strided_slice %251 {offsets = [5, 0], sizes = [1, 32], strides = [1, 1]} : vector<16x32xf32> to vector<1x32xf32>
    %384 = vector.extract_strided_slice %251 {offsets = [6, 0], sizes = [1, 32], strides = [1, 1]} : vector<16x32xf32> to vector<1x32xf32>
    %385 = vector.extract_strided_slice %251 {offsets = [7, 0], sizes = [1, 32], strides = [1, 1]} : vector<16x32xf32> to vector<1x32xf32>
    %386 = tpu.concatenate %378, %379, %380, %381, %382, %383, %384, %385 in 1 : vector<1x32xf32>, vector<1x32xf32>, vector<1x32xf32>, vector<1x32xf32>, vector<1x32xf32>, vector<1x32xf32>, vector<1x32xf32>, vector<1x32xf32> -> vector<1x256xf32>
    %387 = vector.extract_strided_slice %251 {offsets = [8, 0], sizes = [1, 32], strides = [1, 1]} : vector<16x32xf32> to vector<1x32xf32>
    %388 = vector.extract_strided_slice %251 {offsets = [9, 0], sizes = [1, 32], strides = [1, 1]} : vector<16x32xf32> to vector<1x32xf32>
    %389 = vector.extract_strided_slice %251 {offsets = [10, 0], sizes = [1, 32], strides = [1, 1]} : vector<16x32xf32> to vector<1x32xf32>
    %390 = vector.extract_strided_slice %251 {offsets = [11, 0], sizes = [1, 32], strides = [1, 1]} : vector<16x32xf32> to vector<1x32xf32>
    %391 = vector.extract_strided_slice %251 {offsets = [12, 0], sizes = [1, 32], strides = [1, 1]} : vector<16x32xf32> to vector<1x32xf32>
    %392 = vector.extract_strided_slice %251 {offsets = [13, 0], sizes = [1, 32], strides = [1, 1]} : vector<16x32xf32> to vector<1x32xf32>
    %393 = vector.extract_strided_slice %251 {offsets = [14, 0], sizes = [1, 32], strides = [1, 1]} : vector<16x32xf32> to vector<1x32xf32>
    %394 = vector.extract_strided_slice %251 {offsets = [15, 0], sizes = [1, 32], strides = [1, 1]} : vector<16x32xf32> to vector<1x32xf32>
    %395 = tpu.concatenate %387, %388, %389, %390, %391, %392, %393, %394 in 1 : vector<1x32xf32>, vector<1x32xf32>, vector<1x32xf32>, vector<1x32xf32>, vector<1x32xf32>, vector<1x32xf32>, vector<1x32xf32>, vector<1x32xf32> -> vector<1x256xf32>
    %396 = tpu.concatenate %260, %269, %278, %287, %296, %305, %314, %323, %332, %341, %350, %359, %368, %377, %386, %395 in 0 : vector<1x256xf32>, vector<1x256xf32>, vector<1x256xf32>, vector<1x256xf32>, vector<1x256xf32>, vector<1x256xf32>, vector<1x256xf32>, vector<1x256xf32>, vector<1x256xf32>, vector<1x256xf32>, vector<1x256xf32>, vector<1x256xf32>, vector<1x256xf32>, vector<1x256xf32>, vector<1x256xf32>, vector<1x256xf32> -> vector<16x256xf32>
    %397 = arith.truncf %396 : vector<16x256xf32> to vector<16x256xbf16>
    %c0_71 = arith.constant 0 : index
    %c0_72 = arith.constant 0 : index
    %398 = vector.load %arg4[%c0_71, %c0_72] : memref<256x256xbf16, #tpu.memory_space<vmem>>, vector<256x256xbf16>
    %cst_73 = arith.constant dense<0.000000e+00> : vector<16x256xf32>
    %399 = tpu.matmul %397, %398, %cst_73 {dimension_numbers = #tpu.dot_dimension_numbers<[1], [0], [0], [1], [0, 0, 1, 1], [], []>} : vector<16x256xbf16>, vector<256x256xbf16>, vector<16x256xf32> -> vector<16x256xf32>
    %c0_74 = arith.constant 0 : index
    %c0_75 = arith.constant 0 : index
    %400 = vector.load %arg5[%c0_74, %c0_75] : memref<1x256xf32, #tpu.memory_space<vmem>>, vector<1x256xf32>
    %401 = vector.broadcast %400 : vector<1x256xf32> to vector<16x256xf32>
    %402 = arith.addf %399, %401 : vector<16x256xf32>
    %403 = arith.addf %5, %402 : vector<16x256xf32>
    %c0_76 = arith.constant 0 : index
    %c0_77 = arith.constant 0 : index
    %404 = vector.load %arg6[%c0_76, %c0_77] : memref<1x256xf32, #tpu.memory_space<vmem>>, vector<1x256xf32>
    %c0_78 = arith.constant 0 : index
    %c0_79 = arith.constant 0 : index
    %405 = vector.load %arg7[%c0_78, %c0_79] : memref<1x256xf32, #tpu.memory_space<vmem>>, vector<1x256xf32>
    %cst_80 = arith.constant dense<0.000000e+00> : vector<16xf32>
    %406 = vector.multi_reduction <add>, %403, %cst_80 [1] : vector<16x256xf32> to vector<16xf32>
    %407 = vector.shape_cast %406 : vector<16xf32> to vector<16x1xf32>
    %cst_81 = arith.constant 2.560000e+02 : f32
    %408 = vector.broadcast %cst_81 : f32 to vector<16x1xf32>
    %409 = arith.divf %407, %408 : vector<16x1xf32>
    %410 = vector.broadcast %409 : vector<16x1xf32> to vector<16x256xf32>
    %411 = arith.subf %403, %410 : vector<16x256xf32>
    %412 = arith.mulf %411, %411 : vector<16x256xf32>
    %cst_82 = arith.constant dense<0.000000e+00> : vector<16xf32>
    %413 = vector.multi_reduction <add>, %412, %cst_82 [1] : vector<16x256xf32> to vector<16xf32>
    %414 = vector.shape_cast %413 : vector<16xf32> to vector<16x1xf32>
    %cst_83 = arith.constant 2.560000e+02 : f32
    %415 = vector.broadcast %cst_83 : f32 to vector<16x1xf32>
    %416 = arith.divf %414, %415 : vector<16x1xf32>
    %417 = vector.broadcast %409 : vector<16x1xf32> to vector<16x256xf32>
    %418 = arith.subf %403, %417 : vector<16x256xf32>
    %cst_84 = arith.constant 9.99999974E-6 : f32
    %419 = vector.broadcast %cst_84 : f32 to vector<16x1xf32>
    %420 = arith.addf %416, %419 : vector<16x1xf32>
    %421 = math.rsqrt %420 : vector<16x1xf32>
    %422 = vector.broadcast %421 : vector<16x1xf32> to vector<16x256xf32>
    %423 = arith.mulf %418, %422 : vector<16x256xf32>
    %424 = vector.broadcast %404 : vector<1x256xf32> to vector<16x256xf32>
    %425 = arith.mulf %423, %424 : vector<16x256xf32>
    %426 = vector.broadcast %405 : vector<1x256xf32> to vector<16x256xf32>
    %427 = arith.addf %425, %426 : vector<16x256xf32>
    %c0_85 = arith.constant 0 : index
    %c0_86 = arith.constant 0 : index
    %c0_87 = arith.constant 0 : index
    %428 = vector.load %arg8[%c0_85, %c0_86, %c0_87] : memref<1x16x256xf32, #tpu.memory_space<vmem>>, vector<1x16x256xf32>
    %429 = vector.shape_cast %428 : vector<1x16x256xf32> to vector<16x256xf32>
    %430 = vector.shape_cast %427 : vector<16x256xf32> to vector<1x16x256xf32>
    tpu.vector_store %arg8[%c0_85, %c0_86, %c0_87], %430 {strides = array<i32>} : memref<1x16x256xf32, #tpu.memory_space<vmem>>, vector<1x16x256xf32>,
    return
  }
  func.func @transform_0(%arg0: i32) -> (i32, i32, i32) {
    %c0_i32 = arith.constant 0 : i32
    %c0_i32_0 = arith.constant 0 : i32
    %c0_i32_1 = arith.constant 0 : i32
    return %arg0, %c0_i32, %c0_i32_0 : i32, i32, i32
  }
  func.func @transform_1(%arg0: i32) -> (i32, i32, i32) {
    %c0_i32 = arith.constant 0 : i32
    %c0_i32_0 = arith.constant 0 : i32
    %c0_i32_1 = arith.constant 0 : i32
    return %arg0, %c0_i32, %c0_i32_0 : i32, i32, i32
  }
  func.func @transform_2(%arg0: i32) -> (i32, i32, i32) {
    %c0_i32 = arith.constant 0 : i32
    %c0_i32_0 = arith.constant 0 : i32
    %c0_i32_1 = arith.constant 0 : i32
    return %arg0, %c0_i32, %c0_i32_0 : i32, i32, i32
  }
  func.func @transform_3(%arg0: i32) -> (i32, i32) {
    %c0_i32 = arith.constant 0 : i32
    %c0_i32_0 = arith.constant 0 : i32
    %c0_i32_1 = arith.constant 0 : i32
    return %c0_i32, %c0_i32_0 : i32, i32
  }
  func.func @transform_4(%arg0: i32) -> (i32, i32) {
    %c0_i32 = arith.constant 0 : i32
    %c0_i32_0 = arith.constant 0 : i32
    %c0_i32_1 = arith.constant 0 : i32
    return %c0_i32, %c0_i32_0 : i32, i32
  }
  func.func @transform_5(%arg0: i32) -> (i32, i32) {
    %c0_i32 = arith.constant 0 : i32
    %c0_i32_0 = arith.constant 0 : i32
    %c0_i32_1 = arith.constant 0 : i32
    return %c0_i32, %c0_i32_0 : i32, i32
  }
  func.func @transform_6(%arg0: i32) -> (i32, i32) {
    %c0_i32 = arith.constant 0 : i32
    %c0_i32_0 = arith.constant 0 : i32
    %c0_i32_1 = arith.constant 0 : i32
    return %c0_i32, %c0_i32_0 : i32, i32
  }
  func.func @transform_7(%arg0: i32) -> (i32, i32, i32) {
    %c0_i32 = arith.constant 0 : i32
    %c0_i32_0 = arith.constant 0 : i32
    %c0_i32_1 = arith.constant 0 : i32
    return %arg0, %c0_i32, %c0_i32_0 : i32, i32, i32
  }
}

</mosaic_0001>

<llo_original>
// kernel: trajectory_decoder_forward.3
$region0: #{trajectory_decoder_forward.3}
  #allocation0 [shape = 'u32[]', space=smem, size = 0x4, offset = 0x4, fixed_abs, tag = 'smem constant byte address 0x4 - core index']
  #allocation1 [shape = 'u32[144,128]{1,0:T(1,128)}', space=vmem, size = 0x12000, scoped, tag = 'internal scratch']
  %s0 = inlined_call_operand.vmem [shape: f32[2,16,8], index: 0, kind: input, shape index: {}]
  %s1 = inlined_call_operand.vmem [shape: f32[16,256], index: 1, kind: input, shape index: {}]
  %s2 = inlined_call_operand.vmem [shape: f32[16,16], index: 2, kind: input, shape index: {}]
  %s3 = inlined_call_operand.hbm [shape: f32[16,16], index: 3, kind: input, shape index: {}]
  %s4 = inlined_call_operand.vmem [shape: f32[8,256], index: 4, kind: input, shape index: {}]
  %s5 = inlined_call_operand.vmem [shape: f32[1,256], index: 5, kind: input, shape index: {}]
  %s6 = inlined_call_operand.vmem [shape: bf16[768,256], index: 6, kind: input, shape index: {}]
  %s7 = inlined_call_operand.vmem [shape: f32[1,256], index: 7, kind: input, shape index: {}]
  %s8 = inlined_call_operand.vmem [shape: bf16[256,768], index: 8, kind: input, shape index: {}]
  %s9 = inlined_call_operand.vmem [shape: f32[1,768], index: 9, kind: input, shape index: {}]
  %s10 = inlined_call_operand.vmem [shape: f32[2,16,256], index: 10, kind: output, shape index: {0}]
  %s11 = inlined_call_operand.vmem [shape: f32[2,16,768], index: 11, kind: output, shape index: {1}]
  %s12 = inlined_call_operand.vmem [shape: f32[2,16,8], index: 12, kind: output, shape index: {2}]
  %13 = xla_tuple %s10, %s11, %s12
  %s14 = sld [smem:[#allocation0]]
  $region93: #{trajectory_decoder_forward.3} parent=0
    _
  %s16 = ssub.s32 1, %s14
  %s17 = scalar_select 0, %s16, %s14
  $region1: #{trajectory_decoder_forward.3} parent=0
    #allocation2 [shape = 'u8[8192]{0}', space=vmem, size = 0x2000, scoped, tag = 'input window, operand 3, single buffered']
    #allocation3 [shape = 's32[2]{0}', space=sflag, size = 0x8, scoped, tag = 'scoped memory for trajectory_decoder_forward.3']
    %18 = vsyncpa [#allocation3], 0
    loop: start=0, step=1, limit=4
    $region2: #{trajectory_decoder_forward.3} parent=1 // loop_pre_header
      _
    $region3: #{trajectory_decoder_forward.3} parent=1 // loop_header
      %s20 = sphi 0, %s24
      %p21 = scmp.ge.s32.totalorder %s20, 4
      %s30 = sphi 0, %s32
      %s33 = sphi 0, %s30
      %s34 = sphi 0, %s33
      %s50 = sphi 0, %s34
      %s54 = sphi 0, %s54
      %s56 = sphi 0, %s54
      %s57 = sphi 0, %s56
      %s71 = sphi 0, %s57
      %s75 = sphi 0, %s75
      %s77 = sphi 0, %s75
      %s78 = sphi 0, %s77
      %s92 = sphi 0, %s78
      %s96 = sphi 0, %s96
      %s98 = sphi 0, %s96
      %s99 = sphi 0, %s98
      %s113 = sphi 0, %s99
      %s117 = sphi 0, %s117
      %s119 = sphi 0, %s117
      %s120 = sphi 0, %s119
      %s134 = sphi 0, %s120
      %s138 = sphi 0, %s138
      %s140 = sphi 0, %s138
      %s141 = sphi 0, %s140
      %s155 = sphi 0, %s141
      %s159 = sphi 0, %s159
      %s161 = sphi 0, %s159
      %s162 = sphi 0, %s161
      %s176 = sphi 0, %s162
      %s180 = sphi 0, %s180
      %s182 = sphi 0, %s180
      %s183 = sphi 0, %s182
      %s197 = sphi 0, %s183
      %s201 = sphi 0, %s201
      %s203 = sphi 0, %s201
      %s204 = sphi 0, %s203
      %s218 = sphi 0, %s204
      %s222 = sphi 0, %s222
      %s224 = sphi 0, %s222
      %s225 = sphi 0, %s224
      %s239 = sphi 0, %s225
      %s245 = sphi 0, %s247
      %s248 = sphi 0, %s245
      %s249 = sphi 0, %s248
      %s265 = sphi 0, %s249
      %s271 = sphi 0, %s273
      %s274 = sphi 0, %s271
      %s275 = sphi 0, %s274
      %s291 = sphi 0, %s275
      %s297 = sphi 0, %s299
      %s300 = sphi 0, %s297
      %s301 = sphi 0, %s300
      %s317 = sphi 0, %s301
    $region4: #{trajectory_decoder_forward.3} parent=1 // loop_header_branch
      %23 = sbr.rel (%p21) target = $region8
    $region5: #{trajectory_decoder_forward.3} parent=1 // loop_body
      %s25 = ssub.s32 %s20, 1
      %s26 = ssub.s32 %s20, 2
      %s27 = sadd.s32 %s20, 1
      %s28 = ssub.s32 %s20, %s27
      %p29 = scmp.eq.s32.totalorder %s28, 0
      %s31 = sadd.s32 %s30, 1
      %s32 = scalar_select %p29, %s30, %s31
      %p35 = pneg %p29
      %p36 = scmp.eq.s32.totalorder %s20, 1
      %p37 = por %p35, %p36
      %p38 = scmp.ne.s32.totalorder %s30, %s33
      %p39 = scmp.eq.s32.totalorder %s20, 0
      %p40 = por %p38, %p39
      %p41 = scmp.ne.s32.totalorder %s30, %s33
      %p42 = scmp.eq.s32.totalorder %s25, 1
      %p43 = por %p41, %p42
      %p44 = scmp.ne.s32.totalorder %s33, %s34
      %p45 = scmp.eq.s32.totalorder %s25, 0
      %p46 = por %p44, %p45
      %p47 = scmp.ne.s32.totalorder %s33, %s34
      %p48 = scmp.eq.s32.totalorder %s26, 1
      %p49 = por %p47, %p48
      %p51 = scmp.ne.s32.totalorder %s34, %s50
      %p52 = scmp.eq.s32.totalorder %s26, 0
      %p53 = por %p51, %p52
      %s55 = sadd.s32 %s54, 1
      %p58 = scmp.eq.s32.totalorder %s20, 1
      %p59 = scmp.ne.s32.totalorder %s54, %s56
      %p60 = scmp.eq.s32.totalorder %s20, 0
      %p61 = por %p59, %p60
      %p62 = scmp.ne.s32.totalorder %s54, %s56
      %p63 = scmp.eq.s32.totalorder %s25, 1
      %p64 = por %p62, %p63
      %p65 = scmp.ne.s32.totalorder %s56, %s57
      %p66 = scmp.eq.s32.totalorder %s25, 0
      %p67 = por %p65, %p66
      %p68 = scmp.ne.s32.totalorder %s56, %s57
      %p69 = scmp.eq.s32.totalorder %s26, 1
      %p70 = por %p68, %p69
      %p72 = scmp.ne.s32.totalorder %s57, %s71
      %p73 = scmp.eq.s32.totalorder %s26, 0
      %p74 = por %p72, %p73
      %s76 = sadd.s32 %s75, 1
      %p79 = scmp.eq.s32.totalorder %s20, 1
      %p80 = scmp.ne.s32.totalorder %s75, %s77
      %p81 = scmp.eq.s32.totalorder %s20, 0
      %p82 = por %p80, %p81
      %p83 = scmp.ne.s32.totalorder %s75, %s77
      %p84 = scmp.eq.s32.totalorder %s25, 1
      %p85 = por %p83, %p84
      %p86 = scmp.ne.s32.totalorder %s77, %s78
      %p87 = scmp.eq.s32.totalorder %s25, 0
      %p88 = por %p86, %p87
      %p89 = scmp.ne.s32.totalorder %s77, %s78
      %p90 = scmp.eq.s32.totalorder %s26, 1
      %p91 = por %p89, %p90
      %p93 = scmp.ne.s32.totalorder %s78, %s92
      %p94 = scmp.eq.s32.totalorder %s26, 0
      %p95 = por %p93, %p94
      %s97 = sadd.s32 %s96, 1
      %p100 = scmp.eq.s32.totalorder %s20, 1
      %p101 = scmp.ne.s32.totalorder %s96, %s98
      %p102 = scmp.eq.s32.totalorder %s20, 0
      %p103 = por %p101, %p102
      %p104 = scmp.ne.s32.totalorder %s96, %s98
      %p105 = scmp.eq.s32.totalorder %s25, 1
      %p106 = por %p104, %p105
      %p107 = scmp.ne.s32.totalorder %s98, %s99
      %p108 = scmp.eq.s32.totalorder %s25, 0
      %p109 = por %p107, %p108
      %p110 = scmp.ne.s32.totalorder %s98, %s99
      %p111 = scmp.eq.s32.totalorder %s26, 1
      %p112 = por %p110, %p111
      %p114 = scmp.ne.s32.totalorder %s99, %s113
      %p115 = scmp.eq.s32.totalorder %s26, 0
      %p116 = por %p114, %p115
      %s118 = sadd.s32 %s117, 1
      %p121 = scmp.eq.s32.totalorder %s20, 1
      %p122 = scmp.ne.s32.totalorder %s117, %s119
      %p123 = scmp.eq.s32.totalorder %s20, 0
      %p124 = por %p122, %p123
      %p125 = scmp.ne.s32.totalorder %s117, %s119
      %p126 = scmp.eq.s32.totalorder %s25, 1
      %p127 = por %p125, %p126
      %p128 = scmp.ne.s32.totalorder %s119, %s120
      %p129 = scmp.eq.s32.totalorder %s25, 0
      %p130 = por %p128, %p129
      %p131 = scmp.ne.s32.totalorder %s119, %s120
      %p132 = scmp.eq.s32.totalorder %s26, 1
      %p133 = por %p131, %p132
      %p135 = scmp.ne.s32.totalorder %s120, %s134
      %p136 = scmp.eq.s32.totalorder %s26, 0
      %p137 = por %p135, %p136
      %s139 = sadd.s32 %s138, 1
      %p142 = scmp.eq.s32.totalorder %s20, 1
      %p143 = scmp.ne.s32.totalorder %s138, %s140
      %p144 = scmp.eq.s32.totalorder %s20, 0
      %p145 = por %p143, %p144
      %p146 = scmp.ne.s32.totalorder %s138, %s140
      %p147 = scmp.eq.s32.totalorder %s25, 1
      %p148 = por %p146, %p147
      %p149 = scmp.ne.s32.totalorder %s140, %s141
      %p150 = scmp.eq.s32.totalorder %s25, 0
      %p151 = por %p149, %p150
      %p152 = scmp.ne.s32.totalorder %s140, %s141
      %p153 = scmp.eq.s32.totalorder %s26, 1
      %p154 = por %p152, %p153
      %p156 = scmp.ne.s32.totalorder %s141, %s155
      %p157 = scmp.eq.s32.totalorder %s26, 0
      %p158 = por %p156, %p157
      %s160 = sadd.s32 %s159, 1
      %p163 = scmp.eq.s32.totalorder %s20, 1
      %p164 = scmp.ne.s32.totalorder %s159, %s161
      %p165 = scmp.eq.s32.totalorder %s20, 0
      %p166 = por %p164, %p165
      %p167 = scmp.ne.s32.totalorder %s159, %s161
      %p168 = scmp.eq.s32.totalorder %s25, 1
      %p169 = por %p167, %p168
      %p170 = scmp.ne.s32.totalorder %s161, %s162
      %p171 = scmp.eq.s32.totalorder %s25, 0
      %p172 = por %p170, %p171
      %p173 = scmp.ne.s32.totalorder %s161, %s162
      %p174 = scmp.eq.s32.totalorder %s26, 1
      %p175 = por %p173, %p174
      %p177 = scmp.ne.s32.totalorder %s162, %s176
      %p178 = scmp.eq.s32.totalorder %s26, 0
      %p179 = por %p177, %p178
      %s181 = sadd.s32 %s180, 1
      %p184 = scmp.eq.s32.totalorder %s20, 1
      %p185 = scmp.ne.s32.totalorder %s180, %s182
      %p186 = scmp.eq.s32.totalorder %s20, 0
      %p187 = por %p185, %p186
      %p188 = scmp.ne.s32.totalorder %s180, %s182
      %p189 = scmp.eq.s32.totalorder %s25, 1
      %p190 = por %p188, %p189
      %p191 = scmp.ne.s32.totalorder %s182, %s183
      %p192 = scmp.eq.s32.totalorder %s25, 0
      %p193 = por %p191, %p192
      %p194 = scmp.ne.s32.totalorder %s182, %s183
      %p195 = scmp.eq.s32.totalorder %s26, 1
      %p196 = por %p194, %p195
      %p198 = scmp.ne.s32.totalorder %s183, %s197
      %p199 = scmp.eq.s32.totalorder %s26, 0
      %p200 = por %p198, %p199
      %s202 = sadd.s32 %s201, 1
      %p205 = scmp.eq.s32.totalorder %s20, 1
      %p206 = scmp.ne.s32.totalorder %s201, %s203
      %p207 = scmp.eq.s32.totalorder %s20, 0
      %p208 = por %p206, %p207
      %p209 = scmp.ne.s32.totalorder %s201, %s203
      %p210 = scmp.eq.s32.totalorder %s25, 1
      %p211 = por %p209, %p210
      %p212 = scmp.ne.s32.totalorder %s203, %s204
      %p213 = scmp.eq.s32.totalorder %s25, 0
      %p214 = por %p212, %p213
      %p215 = scmp.ne.s32.totalorder %s203, %s204
      %p216 = scmp.eq.s32.totalorder %s26, 1
      %p217 = por %p215, %p216
      %p219 = scmp.ne.s32.totalorder %s204, %s218
      %p220 = scmp.eq.s32.totalorder %s26, 0
      %p221 = por %p219, %p220
      %s223 = sadd.s32 %s222, 1
      %p226 = scmp.eq.s32.totalorder %s20, 1
      %p227 = scmp.ne.s32.totalorder %s222, %s224
      %p228 = scmp.eq.s32.totalorder %s20, 0
      %p229 = por %p227, %p228
      %p230 = scmp.ne.s32.totalorder %s222, %s224
      %p231 = scmp.eq.s32.totalorder %s25, 1
      %p232 = por %p230, %p231
      %p233 = scmp.ne.s32.totalorder %s224, %s225
      %p234 = scmp.eq.s32.totalorder %s25, 0
      %p235 = por %p233, %p234
      %p236 = scmp.ne.s32.totalorder %s224, %s225
      %p237 = scmp.eq.s32.totalorder %s26, 1
      %p238 = por %p236, %p237
      %p240 = scmp.ne.s32.totalorder %s225, %s239
      %p241 = scmp.eq.s32.totalorder %s26, 0
      %p242 = por %p240, %p241
      %s243 = ssub.s32 %s20, %s27
      %p244 = scmp.eq.s32.totalorder %s243, 0
      %s246 = sadd.s32 %s245, 1
      %s247 = scalar_select %p244, %s245, %s246
      %p250 = pneg %p244
      %p251 = scmp.eq.s32.totalorder %s20, 1
      %p252 = por %p250, %p251
      %p253 = scmp.ne.s32.totalorder %s245, %s248
      %p254 = scmp.eq.s32.totalorder %s20, 0
      %p255 = por %p253, %p254
      %p256 = scmp.ne.s32.totalorder %s245, %s248
      %p257 = scmp.eq.s32.totalorder %s25, 1
      %p258 = por %p256, %p257
      %p259 = scmp.ne.s32.totalorder %s248, %s249
      %p260 = scmp.eq.s32.totalorder %s25, 0
      %p261 = por %p259, %p260
      %p262 = scmp.ne.s32.totalorder %s248, %s249
      %p263 = scmp.eq.s32.totalorder %s26, 1
      %p264 = por %p262, %p263
      %p266 = scmp.ne.s32.totalorder %s249, %s265
      %p267 = scmp.eq.s32.totalorder %s26, 0
      %p268 = por %p266, %p267
      %s269 = ssub.s32 %s20, %s27
      %p270 = scmp.eq.s32.totalorder %s269, 0
      %s272 = sadd.s32 %s271, 1
      %s273 = scalar_select %p270, %s271, %s272
      %p276 = pneg %p270
      %p277 = scmp.eq.s32.totalorder %s20, 1
      %p278 = por %p276, %p277
      %p279 = scmp.ne.s32.totalorder %s271, %s274
      %p280 = scmp.eq.s32.totalorder %s20, 0
      %p281 = por %p279, %p280
      %p282 = scmp.ne.s32.totalorder %s271, %s274
      %p283 = scmp.eq.s32.totalorder %s25, 1
      %p284 = por %p282, %p283
      %p285 = scmp.ne.s32.totalorder %s274, %s275
      %p286 = scmp.eq.s32.totalorder %s25, 0
      %p287 = por %p285, %p286
      %p288 = scmp.ne.s32.totalorder %s274, %s275
      %p289 = scmp.eq.s32.totalorder %s26, 1
      %p290 = por %p288, %p289
      %p292 = scmp.ne.s32.totalorder %s275, %s291
      %p293 = scmp.eq.s32.totalorder %s26, 0
      %p294 = por %p292, %p293
      %s295 = ssub.s32 %s20, %s27
      %p296 = scmp.eq.s32.totalorder %s295, 0
      %s298 = sadd.s32 %s297, 1
      %s299 = scalar_select %p296, %s297, %s298
      %p302 = pneg %p296
      %p303 = scmp.eq.s32.totalorder %s20, 1
      %p304 = por %p302, %p303
      %p305 = scmp.ne.s32.totalorder %s297, %s300
      %p306 = scmp.eq.s32.totalorder %s20, 0
      %p307 = por %p305, %p306
      %p308 = scmp.ne.s32.totalorder %s297, %s300
      %p309 = scmp.eq.s32.totalorder %s25, 1
      %p310 = por %p308, %p309
      %p311 = scmp.ne.s32.totalorder %s300, %s301
      %p312 = scmp.eq.s32.totalorder %s25, 0
      %p313 = por %p311, %p312
      %p314 = scmp.ne.s32.totalorder %s300, %s301
      %p315 = scmp.eq.s32.totalorder %s26, 1
      %p316 = por %p314, %p315
      %p318 = scmp.ne.s32.totalorder %s301, %s317
      %p319 = scmp.eq.s32.totalorder %s26, 0
      %p320 = por %p318, %p319
      %p321 = scmp.le.s32.totalorder 1, %s20
      %p322 = scmp.lt.s32.totalorder %s20, 3
      %p323 = pnand %p321, %p322
      %p324 = pneg %p323
      // Predicated region
      $region9: #{trajectory_decoder_forward.3} parent=5 // pred_check
        _
      $region10: #{trajectory_decoder_forward.3} parent=5 // pred_check_branch
        %326 = sbr.rel (%p323) target = $region12
      $region11: #{trajectory_decoder_forward.3} parent=5 // pred_region
        %s327 = ssub.s32 %s20, 1
        // Predicated region
        $region13: #{trajectory_decoder_forward.3} parent=11 // pred_check
          %p328 = pneg %p67
        $region14: #{trajectory_decoder_forward.3} parent=11 // pred_check_branch
          %330 = sbr.rel (%p328) target = $region16
        $region15: #{trajectory_decoder_forward.3} parent=11 // pred_region
          _
        $region16: #{trajectory_decoder_forward.3} parent=11 // pred_fallthru
          _
        // Predicated region
        $region17: #{trajectory_decoder_forward.3} parent=11 // pred_check
          %p331 = pneg %p88
        $region18: #{trajectory_decoder_forward.3} parent=11 // pred_check_branch
          %333 = sbr.rel (%p331) target = $region20
        $region19: #{trajectory_decoder_forward.3} parent=11 // pred_region
          _
        $region20: #{trajectory_decoder_forward.3} parent=11 // pred_fallthru
          _
        // Predicated region
        $region21: #{trajectory_decoder_forward.3} parent=11 // pred_check
          %p334 = pneg %p109
        $region22: #{trajectory_decoder_forward.3} parent=11 // pred_check_branch
          %336 = sbr.rel (%p334) target = $region24
        $region23: #{trajectory_decoder_forward.3} parent=11 // pred_region
          %s338 = ssub.s32 256, 256
          %339 = vsyncadd [#allocation3], %s338
          %s340 = sshll.u32 [#allocation2], 4
          %s341 = int_to_ptr.vmem [resolvable:$true] %s340
          %346 = dma.hbm_to_vmem [thread:$0]  %s3, 256, %s341, [#allocation3], 128, 128, 8
        $region24: #{trajectory_decoder_forward.3} parent=11 // pred_fallthru
          _
        // Predicated region
        $region25: #{trajectory_decoder_forward.3} parent=11 // pred_check
          %p347 = pneg %p130
        $region26: #{trajectory_decoder_forward.3} parent=11 // pred_check_branch
          %349 = sbr.rel (%p347) target = $region28
        $region27: #{trajectory_decoder_forward.3} parent=11 // pred_region
          _
        $region28: #{trajectory_decoder_forward.3} parent=11 // pred_fallthru
          _
        // Predicated region
        $region29: #{trajectory_decoder_forward.3} parent=11 // pred_check
          %p350 = pneg %p151
        $region30: #{trajectory_decoder_forward.3} parent=11 // pred_check_branch
          %352 = sbr.rel (%p350) target = $region32
        $region31: #{trajectory_decoder_forward.3} parent=11 // pred_region
          _
        $region32: #{trajectory_decoder_forward.3} parent=11 // pred_fallthru
          _
        // Predicated region
        $region33: #{trajectory_decoder_forward.3} parent=11 // pred_check
          %p353 = pneg %p172
        $region34: #{trajectory_decoder_forward.3} parent=11 // pred_check_branch
          %355 = sbr.rel (%p353) target = $region36
        $region35: #{trajectory_decoder_forward.3} parent=11 // pred_region
          _
        $region36: #{trajectory_decoder_forward.3} parent=11 // pred_fallthru
          _
        // Predicated region
        $region37: #{trajectory_decoder_forward.3} parent=11 // pred_check
          %p356 = pneg %p193
        $region38: #{trajectory_decoder_forward.3} parent=11 // pred_check_branch
          %358 = sbr.rel (%p356) target = $region40
        $region39: #{trajectory_decoder_forward.3} parent=11 // pred_region
          _
        $region40: #{trajectory_decoder_forward.3} parent=11 // pred_fallthru
          _
        // Predicated region
        $region41: #{trajectory_decoder_forward.3} parent=11 // pred_check
          %p359 = pneg %p214
        $region42: #{trajectory_decoder_forward.3} parent=11 // pred_check_branch
          %361 = sbr.rel (%p359) target = $region44
        $region43: #{trajectory_decoder_forward.3} parent=11 // pred_region
          _
        $region44: #{trajectory_decoder_forward.3} parent=11 // pred_fallthru
          _
        // Predicated region
        $region45: #{trajectory_decoder_forward.3} parent=11 // pred_check
          %p362 = pneg %p235
        $region46: #{trajectory_decoder_forward.3} parent=11 // pred_check_branch
          %364 = sbr.rel (%p362) target = $region48
        $region47: #{trajectory_decoder_forward.3} parent=11 // pred_region
          _
        $region48: #{trajectory_decoder_forward.3} parent=11 // pred_fallthru
          _
      $region12: #{trajectory_decoder_forward.3} parent=5 // pred_fallthru
        _
      %p365 = scmp.lt.s32.totalorder %s20, 2
      // Predicated region
      $region49: #{trajectory_decoder_forward.3} parent=5 // pred_check
        %p366 = pneg %p365
      $region50: #{trajectory_decoder_forward.3} parent=5 // pred_check_branch
        %368 = sbr.rel (%p366) target = $region52
      $region51: #{trajectory_decoder_forward.3} parent=5 // pred_region
        // Predicated region
        $region53: #{trajectory_decoder_forward.3} parent=51 // pred_check
          %p369 = pneg %p40
        $region54: #{trajectory_decoder_forward.3} parent=51 // pred_check_branch
          %371 = sbr.rel (%p369) target = $region56
        $region55: #{trajectory_decoder_forward.3} parent=51 // pred_region
          %p372 = scmp.lt.s32.totalorder %s20, 1
          %s373 = scalar_select %p372, %s20, 1
          %s374 = smul.addr %s373, 2
          %s375 = smul.addr %s374, 8
          %s376 = scalar_lea.vmem %s0, %s375
        $region56: #{trajectory_decoder_forward.3} parent=51 // pred_fallthru
          _
      $region52: #{trajectory_decoder_forward.3} parent=5 // pred_fallthru
        _
      %p377 = scmp.le.s32.totalorder 1, %s20
      %p378 = scmp.lt.s32.totalorder %s20, 3
      %p379 = pnand %p377, %p378
      %p380 = pneg %p379
      // Predicated region
      $region57: #{trajectory_decoder_forward.3} parent=5 // pred_check
        _
      $region58: #{trajectory_decoder_forward.3} parent=5 // pred_check_branch
        %382 = sbr.rel (%p379) target = $region60
      $region59: #{trajectory_decoder_forward.3} parent=5 // pred_region
        %s383 = ssub.s32 %s20, 1
        // Predicated region
        $region61: #{trajectory_decoder_forward.3} parent=59 // pred_check
          %p384 = pneg %p109
        $region62: #{trajectory_decoder_forward.3} parent=59 // pred_check_branch
          %386 = sbr.rel (%p384) target = $region64
        $region63: #{trajectory_decoder_forward.3} parent=59 // pred_region
          %387 = dma.done [#allocation3], 256
        $region64: #{trajectory_decoder_forward.3} parent=59 // pred_fallthru
          _
        %p388 = scmp.lt.s32.totalorder %s25, 1
        %s389 = scalar_select %p388, %s25, 1
        %s390 = smul.addr %s389, 2
        %s391 = smul.addr %s390, 8
        %s392 = scalar_lea.vmem %s0, %s391
        %p393 = pneg %p46
        %p394 = pneg %p43
        %p395 = pneg %p67
        %p396 = pneg %p64
        %p397 = pneg %p88
        %p398 = pneg %p85
        %p399 = pneg %p109
        %p400 = pneg %p106
        %p401 = pneg %p130
        %p402 = pneg %p127
        %p403 = pneg %p151
        %p404 = pneg %p148
        %p405 = pneg %p172
        %p406 = pneg %p169
        %p407 = pneg %p193
        %p408 = pneg %p190
        %p409 = pneg %p214
        %p410 = pneg %p211
        %p411 = pneg %p235
        %p412 = pneg %p232
        %p413 = pneg %p261
        %p414 = pneg %p258
        %p415 = scmp.lt.s32.totalorder %s25, 1
        %s416 = scalar_select %p415, %s25, 1
        %s417 = smul.addr %s416, 4
        %s418 = smul.addr %s417, 8
        %s419 = scalar_lea.vmem %s10, %s418
        %p420 = pneg %p287
        %p421 = pneg %p284
        %p422 = scmp.lt.s32.totalorder %s25, 1
        %s423 = scalar_select %p422, %s25, 1
        %s424 = smul.addr %s423, 12
        %s425 = smul.addr %s424, 8
        %s426 = scalar_lea.vmem %s11, %s425
        %p427 = pneg %p313
        %p428 = pneg %p310
        %p429 = scmp.lt.s32.totalorder %s25, 1
        %s430 = scalar_select %p429, %s25, 1
        %s431 = smul.addr %s430, 2
        %s432 = smul.addr %s431, 8
        %s433 = scalar_lea.vmem %s12, %s432
        %p434 = scmp.lt.s32.totalorder %s25, 1
        %s435 = scalar_select %p434, %s25, 1
        %s436 = smul.addr %s435, 2
        %s437 = smul.addr %s436, 8
        %s438 = scalar_lea.vmem %s0, %s437
        %p439 = scmp.lt.s32.totalorder %s25, 1
        %s440 = scalar_select %p439, %s25, 1
        %s441 = smul.addr %s440, 4
        %s442 = smul.addr %s441, 8
        %s443 = scalar_lea.vmem %s10, %s442
        %p444 = scmp.lt.s32.totalorder %s25, 1
        %s445 = scalar_select %p444, %s25, 1
        %s446 = smul.addr %s445, 12
        %s447 = smul.addr %s446, 8
        %s448 = scalar_lea.vmem %s11, %s447
        %p449 = scmp.lt.s32.totalorder %s25, 1
        %s450 = scalar_select %p449, %s25, 1
        %s451 = smul.addr %s450, 2
        %s452 = smul.addr %s451, 8
        %s453 = scalar_lea.vmem %s12, %s452
        %v455 = vld [vmem:[%s438] sm:$0xff]
        %v456 = vld [vmem:[%s438 + $0x8] sm:$0xff]
        %vm457 = vcmp.ne.f32.partialorder %v455, %v455
        %vm458 = vcmp.ne.f32.partialorder %v456, %v456
        %v459 = vsel %vm457, 0.0, %v455
        %v460 = vsel %vm458, 0.0, %v456
        %v461 = vmax.f32 %v459, -3.4028235e+38
        %v462 = vmax.f32 %v460, -3.4028235e+38
        %v463 = vmin.f32 %v461, 3.4028235e+38
        %v464 = vmin.f32 %v462, 3.4028235e+38
        %v465 = vld [vmem:[%s4] sm:$0xff]
        %v466 = vld [vmem:[%s4 + $0x8] sm:$0xff]
        %v467 = vld [vmem:[%s5] sm:$0x3]
        %v469 = vlaneseq
        %v470 = vshrl.u32 %v469, 7
        %v471 = vsub.s32 0, %v470
        %v472 = vrot.slane %v467, %v471
        %v473 = vlaneseq
        %v474 = vshrl.u32 %v473, 7
        %v475 = vsub.s32 1, %v474
        %v476 = vrot.slane %v467, %v475
        %vm479 = vcmask 64512
        %v481 = vsel %vm479, %v463, 0
        %v484 = vsel %vm479, %v464, 0
        %486 = vmatprep.subr.mxu0 %v466
        %487 = vmatpush1.msra.mxu0 %v465
        %488 = vmatprep.subr.mxu0 0.0
        %489 = vmatpush1.msra.mxu0 0.0
        %490 = vmatprep.subr.mxu0 0.0
        %491 = vmatpush1.msra.mxu0 0.0
        %492 = vmatprep.subr.mxu0 0.0
        %493 = vmatpush1.msra.mxu0 0.0
        %494 = vmatprep.subr.mxu0 0.0
        %495 = vmatpush1.msra.mxu0 0.0
        %496 = vmatprep.subr.mxu0 0.0
        %497 = vmatpush1.msra.mxu0 0.0
        %498 = vmatprep.subr.mxu0 0.0
        %499 = vmatpush1.msra.mxu0 0.0
        %500 = vmatprep.subr.mxu0 0.0
        %501 = vmatpush1.msra.mxu0 0.0
        %502 = vmatprep.subr.mxu0 0.0
        %503 = vmatpush1.msra.mxu0 0.0
        %504 = vmatprep.subr.mxu0 0.0
        %505 = vmatpush1.msra.mxu0 0.0
        %506 = vmatprep.subr.mxu0 0.0
        %507 = vmatpush1.msra.mxu0 0.0
        %508 = vmatprep.subr.mxu0 0.0
        %509 = vmatpush1.msra.mxu0 0.0
        %510 = vmatprep.subr.mxu0 0.0
        %511 = vmatpush1.msra.mxu0 0.0
        %512 = vmatprep.subr.mxu0 0.0
        %513 = vmatpush1.msra.mxu0 0.0
        %514 = vmatprep.subr.mxu0 0.0
        %515 = vmatpush1.msra.mxu0 0.0
        %516 = vmatprep.subr.mxu0 0.0
        %517 = vmatpush1.msra.mxu0 0.0
        %518 = vmatprep.subr.mxu0 0.0
        %519 = vmatpush1.msra.mxu0 0.0
        %520 = vmatprep.subr.mxu0 0.0
        %521 = vmatpush1.msra.mxu0 0.0
        %522 = vmatprep.subr.mxu0 0.0
        %523 = vmatpush1.msra.mxu0 0.0
        %524 = vmatprep.subr.mxu0 0.0
        %525 = vmatpush1.msra.mxu0 0.0
        %526 = vmatprep.subr.mxu0 0.0
        %527 = vmatpush1.msra.mxu0 0.0
        %528 = vmatprep.subr.mxu0 0.0
        %529 = vmatpush1.msra.mxu0 0.0
        %530 = vmatprep.subr.mxu0 0.0
        %531 = vmatpush1.msra.mxu0 0.0
        %532 = vmatprep.subr.mxu0 0.0
        %533 = vmatpush1.msra.mxu0 0.0
        %534 = vmatprep.subr.mxu0 0.0
        %535 = vmatpush1.msra.mxu0 0.0
        %536 = vmatprep.subr.mxu0 0.0
        %537 = vmatpush1.msra.mxu0 0.0
        %538 = vmatprep.subr.mxu0 0.0
        %539 = vmatpush1.msra.mxu0 0.0
        %540 = vmatprep.subr.mxu0 0.0
        %541 = vmatpush1.msra.mxu0 0.0
        %542 = vmatprep.subr.mxu0 0.0
        %543 = vmatpush1.msra.mxu0 0.0
        %544 = vmatprep.subr.mxu0 0.0
        %545 = vmatpush1.msra.mxu0 0.0
        %546 = vmatprep.subr.mxu0 0.0
        %547 = vmatpush1.msra.mxu0 0.0
        %548 = vmatprep.subr.mxu0 0.0
        %549 = vmatpush1.msra.mxu0 0.0
        %550 = vmatprep.mubr.f32.mxu0 0.0
        %551 = vmatmul.mubr.f32.gmra.mrb[0].mxu0 %v481
        %v552 = vpop.f32.mrb[0].mxu0
        %v553 = vadd.f32 %v472, %v552
        %v554 = vpop.f32.mrb[0].mxu0
        %v555 = vadd.f32 %v476, %v554
        %556 = vmatprep.mubr.f32.mxu0 0.0
        %557 = vmatmul.mubr.f32.gmra.mrb[0].mxu0 %v484
        %v558 = vpop.f32.mrb[0].mxu0
        %v559 = vadd.f32 %v472, %v558
        %v560 = vpop.f32.mrb[0].mxu0
        %v561 = vadd.f32 %v476, %v560
        %562 = vdwg.mxu0
        %v565 = vrot.slane %v559, 7
        %v566 = vrot.slane %v561, 7
        %vm571 = vcmask 1040384
        %v572 = vrot.slane %v553, 7
        %v573 = vrot.slane %v555, 7
        %v574 = vsel %vm571, %v572, %v565
        %v575 = vsel %vm571, %v573, %v566
        %v580 = vsel %vm571, %v565, %v572
        %v581 = vsel %vm571, %v566, %v573
        %vm582 = vcmask 1046528
        %v583 = vrot.slane %v553, 1
        %v584 = vrot.slane %v559, 1
        %v585 = vsel %vm582, %v583, %v584
        %v586 = vrot.slane %v555, 1
        %v587 = vrot.slane %v561, 1
        %v588 = vsel %vm582, %v586, %v587
        %v595 = vsel %vm582, %v584, %v583
        %v596 = vsel %vm582, %v587, %v586
        %v597 = vpack.c.bf16 %v574, %v580
        %v598 = vpack.c.bf16 %v575, %v581
        %v599 = vpack.c.bf16 %v559, %v553
        %v600 = vpack.c.bf16 %v561, %v555
        %v601 = vpack.c.bf16 %v595, %v585
        %v602 = vpack.c.bf16 %v596, %v588
        %v603 = vld [vmem:[%s6] sm:$0xff]
        %v604 = vld [vmem:[%s6 + $0x8] sm:$0xff]
        %v605 = vld [vmem:[%s6 + $0x10] sm:$0xff]
        %v606 = vld [vmem:[%s6 + $0x18] sm:$0xff]
        %v607 = vld [vmem:[%s6 + $0x20] sm:$0xff]
        %v608 = vld [vmem:[%s6 + $0x28] sm:$0xff]
        %v609 = vld [vmem:[%s6 + $0x30] sm:$0xff]
        %v610 = vld [vmem:[%s6 + $0x38] sm:$0xff]
        %v611 = vld [vmem:[%s6 + $0x40] sm:$0xff]
        %v612 = vld [vmem:[%s6 + $0x48] sm:$0xff]
        %v613 = vld [vmem:[%s6 + $0x50] sm:$0xff]
        %v614 = vld [vmem:[%s6 + $0x58] sm:$0xff]
        %v615 = vld [vmem:[%s6 + $0x60] sm:$0xff]
        %v616 = vld [vmem:[%s6 + $0x68] sm:$0xff]
        %v617 = vld [vmem:[%s6 + $0x70] sm:$0xff]
        %v618 = vld [vmem:[%s6 + $0x78] sm:$0xff]
        %v619 = vld [vmem:[%s6 + $0x80] sm:$0xff]
        %v620 = vld [vmem:[%s6 + $0x88] sm:$0xff]
        %v621 = vld [vmem:[%s6 + $0x90] sm:$0xff]
        %v622 = vld [vmem:[%s6 + $0x98] sm:$0xff]
        %v623 = vld [vmem:[%s6 + $0xa0] sm:$0xff]
        %v624 = vld [vmem:[%s6 + $0xa8] sm:$0xff]
        %v625 = vld [vmem:[%s6 + $0xb0] sm:$0xff]
        %v626 = vld [vmem:[%s6 + $0xb8] sm:$0xff]
        %v627 = vld [vmem:[%s6 + $0xc0] sm:$0xff]
        %v628 = vld [vmem:[%s6 + $0xc8] sm:$0xff]
        %v629 = vld [vmem:[%s6 + $0xd0] sm:$0xff]
        %v630 = vld [vmem:[%s6 + $0xd8] sm:$0xff]
        %v631 = vld [vmem:[%s6 + $0xe0] sm:$0xff]
        %v632 = vld [vmem:[%s6 + $0xe8] sm:$0xff]
        %v633 = vld [vmem:[%s6 + $0xf0] sm:$0xff]
        %v634 = vld [vmem:[%s6 + $0xf8] sm:$0xff]
        %v635 = vld [vmem:[%s6 + $0x100] sm:$0xff]
        %v636 = vld [vmem:[%s6 + $0x108] sm:$0xff]
        %v637 = vld [vmem:[%s6 + $0x110] sm:$0xff]
        %v638 = vld [vmem:[%s6 + $0x118] sm:$0xff]
        %v639 = vld [vmem:[%s6 + $0x120] sm:$0xff]
        %v640 = vld [vmem:[%s6 + $0x128] sm:$0xff]
        %v641 = vld [vmem:[%s6 + $0x130] sm:$0xff]
        %v642 = vld [vmem:[%s6 + $0x138] sm:$0xff]
        %v643 = vld [vmem:[%s6 + $0x140] sm:$0xff]
        %v644 = vld [vmem:[%s6 + $0x148] sm:$0xff]
        %v645 = vld [vmem:[%s6 + $0x150] sm:$0xff]
        %v646 = vld [vmem:[%s6 + $0x158] sm:$0xff]
        %v647 = vld [vmem:[%s6 + $0x160] sm:$0xff]
        %v648 = vld [vmem:[%s6 + $0x168] sm:$0xff]
        %v649 = vld [vmem:[%s6 + $0x170] sm:$0xff]
        %v650 = vld [vmem:[%s6 + $0x178] sm:$0xff]
        %v651 = vld [vmem:[%s6 + $0x180] sm:$0xff]
        %v652 = vld [vmem:[%s6 + $0x188] sm:$0xff]
        %v653 = vld [vmem:[%s6 + $0x190] sm:$0xff]
        %v654 = vld [vmem:[%s6 + $0x198] sm:$0xff]
        %v655 = vld [vmem:[%s6 + $0x1a0] sm:$0xff]
        %v656 = vld [vmem:[%s6 + $0x1a8] sm:$0xff]
        %v657 = vld [vmem:[%s6 + $0x1b0] sm:$0xff]
        %v658 = vld [vmem:[%s6 + $0x1b8] sm:$0xff]
        %v659 = vld [vmem:[%s6 + $0x1c0] sm:$0xff]
        %v660 = vld [vmem:[%s6 + $0x1c8] sm:$0xff]
        %v661 = vld [vmem:[%s6 + $0x1d0] sm:$0xff]
        %v662 = vld [vmem:[%s6 + $0x1d8] sm:$0xff]
        %v663 = vld [vmem:[%s6 + $0x1e0] sm:$0xff]
        %v664 = vld [vmem:[%s6 + $0x1e8] sm:$0xff]
        %v665 = vld [vmem:[%s6 + $0x1f0] sm:$0xff]
        %v666 = vld [vmem:[%s6 + $0x1f8] sm:$0xff]
        %v667 = vld [vmem:[%s6 + $0x200] sm:$0xff]
        %v668 = vld [vmem:[%s6 + $0x208] sm:$0xff]
        %v669 = vld [vmem:[%s6 + $0x210] sm:$0xff]
        %v670 = vld [vmem:[%s6 + $0x218] sm:$0xff]
        %v671 = vld [vmem:[%s6 + $0x220] sm:$0xff]
        %v672 = vld [vmem:[%s6 + $0x228] sm:$0xff]
        %v673 = vld [vmem:[%s6 + $0x230] sm:$0xff]
        %v674 = vld [vmem:[%s6 + $0x238] sm:$0xff]
        %v675 = vld [vmem:[%s6 + $0x240] sm:$0xff]
        %v676 = vld [vmem:[%s6 + $0x248] sm:$0xff]
        %v677 = vld [vmem:[%s6 + $0x250] sm:$0xff]
        %v678 = vld [vmem:[%s6 + $0x258] sm:$0xff]
        %v679 = vld [vmem:[%s6 + $0x260] sm:$0xff]
        %v680 = vld [vmem:[%s6 + $0x268] sm:$0xff]
        %v681 = vld [vmem:[%s6 + $0x270] sm:$0xff]
        %v682 = vld [vmem:[%s6 + $0x278] sm:$0xff]
        %v683 = vld [vmem:[%s6 + $0x280] sm:$0xff]
        %v684 = vld [vmem:[%s6 + $0x288] sm:$0xff]
        %v685 = vld [vmem:[%s6 + $0x290] sm:$0xff]
        %v686 = vld [vmem:[%s6 + $0x298] sm:$0xff]
        %v687 = vld [vmem:[%s6 + $0x2a0] sm:$0xff]
        %v688 = vld [vmem:[%s6 + $0x2a8] sm:$0xff]
        %v689 = vld [vmem:[%s6 + $0x2b0] sm:$0xff]
        %v690 = vld [vmem:[%s6 + $0x2b8] sm:$0xff]
        %v691 = vld [vmem:[%s6 + $0x2c0] sm:$0xff]
        %v692 = vld [vmem:[%s6 + $0x2c8] sm:$0xff]
        %v693 = vld [vmem:[%s6 + $0x2d0] sm:$0xff]
        %v694 = vld [vmem:[%s6 + $0x2d8] sm:$0xff]
        %v695 = vld [vmem:[%s6 + $0x2e0] sm:$0xff]
        %v696 = vld [vmem:[%s6 + $0x2e8] sm:$0xff]
        %v697 = vld [vmem:[%s6 + $0x2f0] sm:$0xff]
        %v698 = vld [vmem:[%s6 + $0x2f8] sm:$0xff]
        %v699 = vld [vmem:[%s7] sm:$0x3]
        %v701 = vlaneseq
        %v702 = vshrl.u32 %v701, 7
        %v703 = vsub.s32 0, %v702
        %v704 = vrot.slane %v699, %v703
        %v705 = vlaneseq
        %v706 = vshrl.u32 %v705, 7
        %v707 = vsub.s32 1, %v706
        %v708 = vrot.slane %v699, %v707
        %v807 = vunpack.c.l.b16 %v603
        %v808 = vunpack.c.h.b16 %v603
        %v809 = vunpack.c.l.b16 %v604
        %v810 = vunpack.c.h.b16 %v604
        %v811 = vunpack.c.l.b16 %v605
        %v812 = vunpack.c.h.b16 %v605
        %v813 = vunpack.c.l.b16 %v606
        %v814 = vunpack.c.h.b16 %v606
        %v815 = vunpack.c.l.b16 %v607
        %v816 = vunpack.c.h.b16 %v607
        %v817 = vunpack.c.l.b16 %v608
        %v818 = vunpack.c.h.b16 %v608
        %v819 = vunpack.c.l.b16 %v609
        %v820 = vunpack.c.h.b16 %v609
        %v821 = vunpack.c.l.b16 %v610
        %v822 = vunpack.c.h.b16 %v610
        %v823 = vunpack.c.l.b16 %v611
        %v824 = vunpack.c.h.b16 %v611
        %v825 = vunpack.c.l.b16 %v612
        %v826 = vunpack.c.h.b16 %v612
        %v827 = vunpack.c.l.b16 %v613
        %v828 = vunpack.c.h.b16 %v613
        %v829 = vunpack.c.l.b16 %v614
        %v830 = vunpack.c.h.b16 %v614
        %v831 = vunpack.c.l.b16 %v615
        %v832 = vunpack.c.h.b16 %v615
        %v833 = vunpack.c.l.b16 %v616
        %v834 = vunpack.c.h.b16 %v616
        %v835 = vunpack.c.l.b16 %v617
        %v836 = vunpack.c.h.b16 %v617
        %v837 = vunpack.c.l.b16 %v618
        %v838 = vunpack.c.h.b16 %v618
        %v839 = vunpack.c.l.b16 %v619
        %v840 = vunpack.c.h.b16 %v619
        %v841 = vunpack.c.l.b16 %v620
        %v842 = vunpack.c.h.b16 %v620
        %v843 = vunpack.c.l.b16 %v621
        %v844 = vunpack.c.h.b16 %v621
        %v845 = vunpack.c.l.b16 %v622
        %v846 = vunpack.c.h.b16 %v622
        %v847 = vunpack.c.l.b16 %v623
        %v848 = vunpack.c.h.b16 %v623
        %v849 = vunpack.c.l.b16 %v624
        %v850 = vunpack.c.h.b16 %v624
        %v851 = vunpack.c.l.b16 %v625
        %v852 = vunpack.c.h.b16 %v625
        %v853 = vunpack.c.l.b16 %v626
        %v854 = vunpack.c.h.b16 %v626
        %v855 = vunpack.c.l.b16 %v627
        %v856 = vunpack.c.h.b16 %v627
        %v857 = vunpack.c.l.b16 %v628
        %v858 = vunpack.c.h.b16 %v628
        %v859 = vunpack.c.l.b16 %v629
        %v860 = vunpack.c.h.b16 %v629
        %v861 = vunpack.c.l.b16 %v630
        %v862 = vunpack.c.h.b16 %v630
        %v863 = vunpack.c.l.b16 %v631
        %v864 = vunpack.c.h.b16 %v631
        %v865 = vunpack.c.l.b16 %v632
        %v866 = vunpack.c.h.b16 %v632
        %v867 = vunpack.c.l.b16 %v633
        %v868 = vunpack.c.h.b16 %v633
        %v869 = vunpack.c.l.b16 %v634
        %v870 = vunpack.c.h.b16 %v634
        %v871 = vunpack.c.l.b16 %v635
        %v872 = vunpack.c.h.b16 %v635
        %v873 = vunpack.c.l.b16 %v636
        %v874 = vunpack.c.h.b16 %v636
        %v875 = vunpack.c.l.b16 %v637
        %v876 = vunpack.c.h.b16 %v637
        %v877 = vunpack.c.l.b16 %v638
        %v878 = vunpack.c.h.b16 %v638
        %v879 = vunpack.c.l.b16 %v639
        %v880 = vunpack.c.h.b16 %v639
        %v881 = vunpack.c.l.b16 %v640
        %v882 = vunpack.c.h.b16 %v640
        %v883 = vunpack.c.l.b16 %v641
        %v884 = vunpack.c.h.b16 %v641
        %v885 = vunpack.c.l.b16 %v642
        %v886 = vunpack.c.h.b16 %v642
        %v887 = vunpack.c.l.b16 %v643
        %v888 = vunpack.c.h.b16 %v643
        %v889 = vunpack.c.l.b16 %v644
        %v890 = vunpack.c.h.b16 %v644
        %v891 = vunpack.c.l.b16 %v645
        %v892 = vunpack.c.h.b16 %v645
        %v893 = vunpack.c.l.b16 %v646
        %v894 = vunpack.c.h.b16 %v646
        %v895 = vunpack.c.l.b16 %v647
        %v896 = vunpack.c.h.b16 %v647
        %v897 = vunpack.c.l.b16 %v648
        %v898 = vunpack.c.h.b16 %v648
        %v899 = vunpack.c.l.b16 %v649
        %v900 = vunpack.c.h.b16 %v649
        %v901 = vunpack.c.l.b16 %v650
        %v902 = vunpack.c.h.b16 %v650
        %v903 = vunpack.c.l.b16 %v651
        %v904 = vunpack.c.h.b16 %v651
        %v905 = vunpack.c.l.b16 %v652
        %v906 = vunpack.c.h.b16 %v652
        %v907 = vunpack.c.l.b16 %v653
        %v908 = vunpack.c.h.b16 %v653
        %v909 = vunpack.c.l.b16 %v654
        %v910 = vunpack.c.h.b16 %v654
        %v911 = vunpack.c.l.b16 %v655
        %v912 = vunpack.c.h.b16 %v655
        %v913 = vunpack.c.l.b16 %v656
        %v914 = vunpack.c.h.b16 %v656
        %v915 = vunpack.c.l.b16 %v657
        %v916 = vunpack.c.h.b16 %v657
        %v917 = vunpack.c.l.b16 %v658
        %v918 = vunpack.c.h.b16 %v658
        %v919 = vunpack.c.l.b16 %v659
        %v920 = vunpack.c.h.b16 %v659
        %v921 = vunpack.c.l.b16 %v660
        %v922 = vunpack.c.h.b16 %v660
        %v923 = vunpack.c.l.b16 %v661
        %v924 = vunpack.c.h.b16 %v661
        %v925 = vunpack.c.l.b16 %v662
        %v926 = vunpack.c.h.b16 %v662
        %v927 = vunpack.c.l.b16 %v663
        %v928 = vunpack.c.h.b16 %v663
        %v929 = vunpack.c.l.b16 %v664
        %v930 = vunpack.c.h.b16 %v664
        %v931 = vunpack.c.l.b16 %v665
        %v932 = vunpack.c.h.b16 %v665
        %v933 = vunpack.c.l.b16 %v666
        %v934 = vunpack.c.h.b16 %v666
        %v935 = vunpack.c.l.b16 %v667
        %v936 = vunpack.c.h.b16 %v667
        %v937 = vunpack.c.l.b16 %v668
        %v938 = vunpack.c.h.b16 %v668
        %v939 = vunpack.c.l.b16 %v669
        %v940 = vunpack.c.h.b16 %v669
        %v941 = vunpack.c.l.b16 %v670
        %v942 = vunpack.c.h.b16 %v670
        %v943 = vunpack.c.l.b16 %v671
        %v944 = vunpack.c.h.b16 %v671
        %v945 = vunpack.c.l.b16 %v672
        %v946 = vunpack.c.h.b16 %v672
        %v947 = vunpack.c.l.b16 %v673
        %v948 = vunpack.c.h.b16 %v673
        %v949 = vunpack.c.l.b16 %v674
        %v950 = vunpack.c.h.b16 %v674
        %v951 = vunpack.c.l.b16 %v675
        %v952 = vunpack.c.h.b16 %v675
        %v953 = vunpack.c.l.b16 %v676
        %v954 = vunpack.c.h.b16 %v676
        %v955 = vunpack.c.l.b16 %v677
        %v956 = vunpack.c.h.b16 %v677
        %v957 = vunpack.c.l.b16 %v678
        %v958 = vunpack.c.h.b16 %v678
        %v959 = vunpack.c.l.b16 %v679
        %v960 = vunpack.c.h.b16 %v679
        %v961 = vunpack.c.l.b16 %v680
        %v962 = vunpack.c.h.b16 %v680
        %v963 = vunpack.c.l.b16 %v681
        %v964 = vunpack.c.h.b16 %v681
        %v965 = vunpack.c.l.b16 %v682
        %v966 = vunpack.c.h.b16 %v682
        %v967 = vunpack.c.l.b16 %v683
        %v968 = vunpack.c.h.b16 %v683
        %v969 = vunpack.c.l.b16 %v684
        %v970 = vunpack.c.h.b16 %v684
        %v971 = vunpack.c.l.b16 %v685
        %v972 = vunpack.c.h.b16 %v685
        %v973 = vunpack.c.l.b16 %v686
        %v974 = vunpack.c.h.b16 %v686
        %v975 = vunpack.c.l.b16 %v687
        %v976 = vunpack.c.h.b16 %v687
        %v977 = vunpack.c.l.b16 %v688
        %v978 = vunpack.c.h.b16 %v688
        %v979 = vunpack.c.l.b16 %v689
        %v980 = vunpack.c.h.b16 %v689
        %v981 = vunpack.c.l.b16 %v690
        %v982 = vunpack.c.h.b16 %v690
        %v983 = vunpack.c.l.b16 %v691
        %v984 = vunpack.c.h.b16 %v691
        %v985 = vunpack.c.l.b16 %v692
        %v986 = vunpack.c.h.b16 %v692
        %v987 = vunpack.c.l.b16 %v693
        %v988 = vunpack.c.h.b16 %v693
        %v989 = vunpack.c.l.b16 %v694
        %v990 = vunpack.c.h.b16 %v694
        %v991 = vunpack.c.l.b16 %v695
        %v992 = vunpack.c.h.b16 %v695
        %v993 = vunpack.c.l.b16 %v696
        %v994 = vunpack.c.h.b16 %v696
        %v995 = vunpack.c.l.b16 %v697
        %v996 = vunpack.c.h.b16 %v697
        %v997 = vunpack.c.l.b16 %v698
        %v998 = vunpack.c.h.b16 %v698
        %v999 = vpack.c.b16 %v809, %v807
        %v1000 = vpack.c.b16 %v810, %v808
        %v1001 = vpack.c.b16 %v813, %v811
        %v1002 = vpack.c.b16 %v814, %v812
        %v1003 = vpack.c.b16 %v817, %v815
        %v1004 = vpack.c.b16 %v818, %v816
        %v1005 = vpack.c.b16 %v821, %v819
        %v1006 = vpack.c.b16 %v822, %v820
        %v1007 = vpack.c.b16 %v825, %v823
        %v1008 = vpack.c.b16 %v826, %v824
        %v1009 = vpack.c.b16 %v829, %v827
        %v1010 = vpack.c.b16 %v830, %v828
        %v1011 = vpack.c.b16 %v833, %v831
        %v1012 = vpack.c.b16 %v834, %v832
        %v1013 = vpack.c.b16 %v837, %v835
        %v1014 = vpack.c.b16 %v838, %v836
        %v1015 = vpack.c.b16 %v841, %v839
        %v1016 = vpack.c.b16 %v842, %v840
        %v1017 = vpack.c.b16 %v845, %v843
        %v1018 = vpack.c.b16 %v846, %v844
        %v1019 = vpack.c.b16 %v849, %v847
        %v1020 = vpack.c.b16 %v850, %v848
        %v1021 = vpack.c.b16 %v853, %v851
        %v1022 = vpack.c.b16 %v854, %v852
        %v1023 = vpack.c.b16 %v857, %v855
        %v1024 = vpack.c.b16 %v858, %v856
        %v1025 = vpack.c.b16 %v861, %v859
        %v1026 = vpack.c.b16 %v862, %v860
        %v1027 = vpack.c.b16 %v865, %v863
        %v1028 = vpack.c.b16 %v866, %v864
        %v1029 = vpack.c.b16 %v869, %v867
        %v1030 = vpack.c.b16 %v870, %v868
        %v1031 = vpack.c.b16 %v873, %v871
        %v1032 = vpack.c.b16 %v874, %v872
        %v1033 = vpack.c.b16 %v877, %v875
        %v1034 = vpack.c.b16 %v878, %v876
        %v1035 = vpack.c.b16 %v881, %v879
        %v1036 = vpack.c.b16 %v882, %v880
        %v1037 = vpack.c.b16 %v885, %v883
        %v1038 = vpack.c.b16 %v886, %v884
        %v1039 = vpack.c.b16 %v889, %v887
        %v1040 = vpack.c.b16 %v890, %v888
        %v1041 = vpack.c.b16 %v893, %v891
        %v1042 = vpack.c.b16 %v894, %v892
        %v1043 = vpack.c.b16 %v897, %v895
        %v1044 = vpack.c.b16 %v898, %v896
        %v1045 = vpack.c.b16 %v901, %v899
        %v1046 = vpack.c.b16 %v902, %v900
        %v1047 = vpack.c.b16 %v905, %v903
        %v1048 = vpack.c.b16 %v906, %v904
        %v1049 = vpack.c.b16 %v909, %v907
        %v1050 = vpack.c.b16 %v910, %v908
        %v1051 = vpack.c.b16 %v913, %v911
        %v1052 = vpack.c.b16 %v914, %v912
        %v1053 = vpack.c.b16 %v917, %v915
        %v1054 = vpack.c.b16 %v918, %v916
        %v1055 = vpack.c.b16 %v921, %v919
        %v1056 = vpack.c.b16 %v922, %v920
        %v1057 = vpack.c.b16 %v925, %v923
        %v1058 = vpack.c.b16 %v926, %v924
        %v1059 = vpack.c.b16 %v929, %v927
        %v1060 = vpack.c.b16 %v930, %v928
        %v1061 = vpack.c.b16 %v933, %v931
        %v1062 = vpack.c.b16 %v934, %v932
        %v1063 = vpack.c.b16 %v937, %v935
        %v1064 = vpack.c.b16 %v938, %v936
        %v1065 = vpack.c.b16 %v941, %v939
        %v1066 = vpack.c.b16 %v942, %v940
        %v1067 = vpack.c.b16 %v945, %v943
        %v1068 = vpack.c.b16 %v946, %v944
        %v1069 = vpack.c.b16 %v949, %v947
        %v1070 = vpack.c.b16 %v950, %v948
        %v1071 = vpack.c.b16 %v953, %v951
        %v1072 = vpack.c.b16 %v954, %v952
        %v1073 = vpack.c.b16 %v957, %v955
        %v1074 = vpack.c.b16 %v958, %v956
        %v1075 = vpack.c.b16 %v961, %v959
        %v1076 = vpack.c.b16 %v962, %v960
        %v1077 = vpack.c.b16 %v965, %v963
        %v1078 = vpack.c.b16 %v966, %v964
        %v1079 = vpack.c.b16 %v969, %v967
        %v1080 = vpack.c.b16 %v970, %v968
        %v1081 = vpack.c.b16 %v973, %v971
        %v1082 = vpack.c.b16 %v974, %v972
        %v1083 = vpack.c.b16 %v977, %v975
        %v1084 = vpack.c.b16 %v978, %v976
        %v1085 = vpack.c.b16 %v981, %v979
        %v1086 = vpack.c.b16 %v982, %v980
        %v1087 = vpack.c.b16 %v985, %v983
        %v1088 = vpack.c.b16 %v986, %v984
        %v1089 = vpack.c.b16 %v989, %v987
        %v1090 = vpack.c.b16 %v990, %v988
        %v1091 = vpack.c.b16 %v993, %v991
        %v1092 = vpack.c.b16 %v994, %v992
        %v1093 = vpack.c.b16 %v997, %v995
        %v1094 = vpack.c.b16 %v998, %v996
        %1191 = vmatprep.subr.bf16.mxu0 %v1000
        %1192 = vmatpush1.bf16.msra.mxu0 %v999
        %1193 = vmatprep.subr.bf16.mxu0 %v1002
        %1194 = vmatpush1.bf16.msra.mxu0 %v1001
        %1195 = vmatprep.subr.bf16.mxu0 %v1004
        %1196 = vmatpush1.bf16.msra.mxu0 %v1003
        %1197 = vmatprep.subr.bf16.mxu0 %v1006
        %1198 = vmatpush1.bf16.msra.mxu0 %v1005
        %1199 = vmatprep.subr.bf16.mxu0 %v1008
        %1200 = vmatpush1.bf16.msra.mxu0 %v1007
        %1201 = vmatprep.subr.bf16.mxu0 %v1010
        %1202 = vmatpush1.bf16.msra.mxu0 %v1009
        %1203 = vmatprep.subr.bf16.mxu0 %v1012
        %1204 = vmatpush1.bf16.msra.mxu0 %v1011
        %1205 = vmatprep.subr.bf16.mxu0 %v1014
        %1206 = vmatpush1.bf16.msra.mxu0 %v1013
        %1207 = vmatprep.subr.bf16.mxu0 %v1016
        %1208 = vmatpush1.bf16.msra.mxu0 %v1015
        %1209 = vmatprep.subr.bf16.mxu0 %v1018
        %1210 = vmatpush1.bf16.msra.mxu0 %v1017
        %1211 = vmatprep.subr.bf16.mxu0 %v1020
        %1212 = vmatpush1.bf16.msra.mxu0 %v1019
        %1213 = vmatprep.subr.bf16.mxu0 %v1022
        %1214 = vmatpush1.bf16.msra.mxu0 %v1021
        %1215 = vmatprep.subr.bf16.mxu0 %v1024
        %1216 = vmatpush1.bf16.msra.mxu0 %v1023
        %1217 = vmatprep.subr.bf16.mxu0 %v1026
        %1218 = vmatpush1.bf16.msra.mxu0 %v1025
        %1219 = vmatprep.subr.bf16.mxu0 %v1028
        %1220 = vmatpush1.bf16.msra.mxu0 %v1027
        %1221 = vmatprep.subr.bf16.mxu0 %v1030
        %1222 = vmatpush1.bf16.msra.mxu0 %v1029
        %1223 = vmatprep.mubr.bf16.mxu0 %v598
        %1224 = vmatmul.mubr.bf16.gmra.mrb[0].mxu0 %v597
        %v1225 = vpop.f32.mrb[0].mxu0
        %v1226 = vadd.f32 %v704, %v1225
        %v1227 = vpop.f32.mrb[0].mxu0
        %v1228 = vadd.f32 %v708, %v1227
        %v1229 = vpop.f32.mrb[0].mxu0
        %v1230 = vadd.f32 %v704, %v1229
        %v1231 = vpop.f32.mrb[0].mxu0
        %v1232 = vadd.f32 %v708, %v1231
        %1233 = vdwg.mxu0
        %1234 = vmatprep.subr.bf16.mxu0 %v1032
        %1235 = vmatpush1.bf16.msra.mxu0 %v1031
        %1236 = vmatprep.subr.bf16.mxu0 %v1034
        %1237 = vmatpush1.bf16.msra.mxu0 %v1033
        %1238 = vmatprep.subr.bf16.mxu0 %v1036
        %1239 = vmatpush1.bf16.msra.mxu0 %v1035
        %1240 = vmatprep.subr.bf16.mxu0 %v1038
        %1241 = vmatpush1.bf16.msra.mxu0 %v1037
        %1242 = vmatprep.subr.bf16.mxu0 %v1040
        %1243 = vmatpush1.bf16.msra.mxu0 %v1039
        %1244 = vmatprep.subr.bf16.mxu0 %v1042
        %1245 = vmatpush1.bf16.msra.mxu0 %v1041
        %1246 = vmatprep.subr.bf16.mxu0 %v1044
        %1247 = vmatpush1.bf16.msra.mxu0 %v1043
        %1248 = vmatprep.subr.bf16.mxu0 %v1046
        %1249 = vmatpush1.bf16.msra.mxu0 %v1045
        %1250 = vmatprep.subr.bf16.mxu0 %v1048
        %1251 = vmatpush1.bf16.msra.mxu0 %v1047
        %1252 = vmatprep.subr.bf16.mxu0 %v1050
        %1253 = vmatpush1.bf16.msra.mxu0 %v1049
        %1254 = vmatprep.subr.bf16.mxu0 %v1052
        %1255 = vmatpush1.bf16.msra.mxu0 %v1051
        %1256 = vmatprep.subr.bf16.mxu0 %v1054
        %1257 = vmatpush1.bf16.msra.mxu0 %v1053
        %1258 = vmatprep.subr.bf16.mxu0 %v1056
        %1259 = vmatpush1.bf16.msra.mxu0 %v1055
        %1260 = vmatprep.subr.bf16.mxu0 %v1058
        %1261 = vmatpush1.bf16.msra.mxu0 %v1057
        %1262 = vmatprep.subr.bf16.mxu0 %v1060
        %1263 = vmatpush1.bf16.msra.mxu0 %v1059
        %1264 = vmatprep.subr.bf16.mxu0 %v1062
        %1265 = vmatpush1.bf16.msra.mxu0 %v1061
        %1266 = vmatprep.mubr.bf16.mxu0 %v600
        %1267 = vmatmul.mubr.bf16.gmra.mrb[0].mxu0 %v599
        %v1268 = vpop.f32.mrb[0].mxu0
        %v1269 = vadd.f32 %v1226, %v1268
        %v1270 = vpop.f32.mrb[0].mxu0
        %v1271 = vadd.f32 %v1228, %v1270
        %v1272 = vpop.f32.mrb[0].mxu0
        %v1273 = vadd.f32 %v1230, %v1272
        %v1274 = vpop.f32.mrb[0].mxu0
        %v1275 = vadd.f32 %v1232, %v1274
        %1276 = vdwg.mxu0
        %1277 = vmatprep.subr.bf16.mxu0 %v1064
        %1278 = vmatpush1.bf16.msra.mxu0 %v1063
        %1279 = vmatprep.subr.bf16.mxu0 %v1066
        %1280 = vmatpush1.bf16.msra.mxu0 %v1065
        %1281 = vmatprep.subr.bf16.mxu0 %v1068
        %1282 = vmatpush1.bf16.msra.mxu0 %v1067
        %1283 = vmatprep.subr.bf16.mxu0 %v1070
        %1284 = vmatpush1.bf16.msra.mxu0 %v1069
        %1285 = vmatprep.subr.bf16.mxu0 %v1072
        %1286 = vmatpush1.bf16.msra.mxu0 %v1071
        %1287 = vmatprep.subr.bf16.mxu0 %v1074
        %1288 = vmatpush1.bf16.msra.mxu0 %v1073
        %1289 = vmatprep.subr.bf16.mxu0 %v1076
        %1290 = vmatpush1.bf16.msra.mxu0 %v1075
        %1291 = vmatprep.subr.bf16.mxu0 %v1078
        %1292 = vmatpush1.bf16.msra.mxu0 %v1077
        %1293 = vmatprep.subr.bf16.mxu0 %v1080
        %1294 = vmatpush1.bf16.msra.mxu0 %v1079
        %1295 = vmatprep.subr.bf16.mxu0 %v1082
        %1296 = vmatpush1.bf16.msra.mxu0 %v1081
        %1297 = vmatprep.subr.bf16.mxu0 %v1084
        %1298 = vmatpush1.bf16.msra.mxu0 %v1083
        %1299 = vmatprep.subr.bf16.mxu0 %v1086
        %1300 = vmatpush1.bf16.msra.mxu0 %v1085
        %1301 = vmatprep.subr.bf16.mxu0 %v1088
        %1302 = vmatpush1.bf16.msra.mxu0 %v1087
        %1303 = vmatprep.subr.bf16.mxu0 %v1090
        %1304 = vmatpush1.bf16.msra.mxu0 %v1089
        %1305 = vmatprep.subr.bf16.mxu0 %v1092
        %1306 = vmatpush1.bf16.msra.mxu0 %v1091
        %1307 = vmatprep.subr.bf16.mxu0 %v1094
        %1308 = vmatpush1.bf16.msra.mxu0 %v1093
        %1309 = vmatprep.mubr.bf16.mxu0 %v602
        %1310 = vmatmul.mubr.bf16.gmra.mrb[0].mxu0 %v601
        %v1311 = vpop.f32.mrb[0].mxu0
        %v1312 = vadd.f32 %v1269, %v1311
        %v1313 = vpop.f32.mrb[0].mxu0
        %v1314 = vadd.f32 %v1271, %v1313
        %v1315 = vpop.f32.mrb[0].mxu0
        %v1316 = vadd.f32 %v1273, %v1315
        %v1317 = vpop.f32.mrb[0].mxu0
        %v1318 = vadd.f32 %v1275, %v1317
        %1319 = vdwg.mxu0
        %v1320 = vld [vmem:[%s1] sm:$0xff]
        %v1321 = vld [vmem:[%s1 + $0x8] sm:$0xff]
        %v1322 = vld [vmem:[%s1 + $0x10] sm:$0xff]
        %v1323 = vld [vmem:[%s1 + $0x18] sm:$0xff]
        %v1324 = vadd.f32 %v1312, %v1320
        %v1325 = vadd.f32 %v1314, %v1321
        %v1326 = vadd.f32 %v1316, %v1322
        %v1327 = vadd.f32 %v1318, %v1323
        %v1328 = vmul.f32 %v553, 2.0
        %v1329 = vmul.f32 %v555, 2.0
        %v1330 = vmul.f32 %v559, 2.0
        %v1331 = vmul.f32 %v561, 2.0
        %v1332 = vadd.f32 %v1324, %v1328
        %v1333 = vadd.f32 %v1325, %v1329
        %v1334 = vadd.f32 %v1326, %v1330
        %v1335 = vadd.f32 %v1327, %v1331
        %1336 = vst [vmem:[%s443] sm:$0xff] %v1332
        %1337 = vst [vmem:[%s443 + $0x8] sm:$0xff] %v1333
        %1338 = vst [vmem:[%s443 + $0x10] sm:$0xff] %v1334
        %1339 = vst [vmem:[%s443 + $0x18] sm:$0xff] %v1335
        %v1340 = vpack.c.bf16 %v1334, %v1332
        %v1341 = vpack.c.bf16 %v1335, %v1333
        %v1342 = vld [vmem:[%s8] sm:$0xff]
        %v1343 = vld [vmem:[%s8 + $0x8] sm:$0xff]
        %v1344 = vld [vmem:[%s8 + $0x10] sm:$0xff]
        %v1345 = vld [vmem:[%s8 + $0x18] sm:$0xff]
        %v1346 = vld [vmem:[%s8 + $0x20] sm:$0xff]
        %v1347 = vld [vmem:[%s8 + $0x28] sm:$0xff]
        %v1348 = vld [vmem:[%s8 + $0x30] sm:$0xff]
        %v1349 = vld [vmem:[%s8 + $0x38] sm:$0xff]
        %v1350 = vld [vmem:[%s8 + $0x40] sm:$0xff]
        %v1351 = vld [vmem:[%s8 + $0x48] sm:$0xff]
        %v1352 = vld [vmem:[%s8 + $0x50] sm:$0xff]
        %v1353 = vld [vmem:[%s8 + $0x58] sm:$0xff]
        %v1354 = vld [vmem:[%s8 + $0x60] sm:$0xff]
        %v1355 = vld [vmem:[%s8 + $0x68] sm:$0xff]
        %v1356 = vld [vmem:[%s8 + $0x70] sm:$0xff]
        %v1357 = vld [vmem:[%s8 + $0x78] sm:$0xff]
        %v1358 = vld [vmem:[%s8 + $0x80] sm:$0xff]
        %v1359 = vld [vmem:[%s8 + $0x88] sm:$0xff]
        %v1360 = vld [vmem:[%s8 + $0x90] sm:$0xff]
        %v1361 = vld [vmem:[%s8 + $0x98] sm:$0xff]
        %v1362 = vld [vmem:[%s8 + $0xa0] sm:$0xff]
        %v1363 = vld [vmem:[%s8 + $0xa8] sm:$0xff]
        %v1364 = vld [vmem:[%s8 + $0xb0] sm:$0xff]
        %v1365 = vld [vmem:[%s8 + $0xb8] sm:$0xff]
        %v1366 = vld [vmem:[%s8 + $0xc0] sm:$0xff]
        %v1367 = vld [vmem:[%s8 + $0xc8] sm:$0xff]
        %v1368 = vld [vmem:[%s8 + $0xd0] sm:$0xff]
        %v1369 = vld [vmem:[%s8 + $0xd8] sm:$0xff]
        %v1370 = vld [vmem:[%s8 + $0xe0] sm:$0xff]
        %v1371 = vld [vmem:[%s8 + $0xe8] sm:$0xff]
        %v1372 = vld [vmem:[%s8 + $0xf0] sm:$0xff]
        %v1373 = vld [vmem:[%s8 + $0xf8] sm:$0xff]
        %v1374 = vld [vmem:[%s8 + $0x100] sm:$0xff]
        %v1375 = vld [vmem:[%s8 + $0x108] sm:$0xff]
        %v1376 = vld [vmem:[%s8 + $0x110] sm:$0xff]
        %v1377 = vld [vmem:[%s8 + $0x118] sm:$0xff]
        %v1378 = vld [vmem:[%s8 + $0x120] sm:$0xff]
        %v1379 = vld [vmem:[%s8 + $0x128] sm:$0xff]
        %v1380 = vld [vmem:[%s8 + $0x130] sm:$0xff]
        %v1381 = vld [vmem:[%s8 + $0x138] sm:$0xff]
        %v1382 = vld [vmem:[%s8 + $0x140] sm:$0xff]
        %v1383 = vld [vmem:[%s8 + $0x148] sm:$0xff]
        %v1384 = vld [vmem:[%s8 + $0x150] sm:$0xff]
        %v1385 = vld [vmem:[%s8 + $0x158] sm:$0xff]
        %v1386 = vld [vmem:[%s8 + $0x160] sm:$0xff]
        %v1387 = vld [vmem:[%s8 + $0x168] sm:$0xff]
        %v1388 = vld [vmem:[%s8 + $0x170] sm:$0xff]
        %v1389 = vld [vmem:[%s8 + $0x178] sm:$0xff]
        %v1390 = vld [vmem:[%s8 + $0x180] sm:$0xff]
        %v1391 = vld [vmem:[%s8 + $0x188] sm:$0xff]
        %v1392 = vld [vmem:[%s8 + $0x190] sm:$0xff]
        %v1393 = vld [vmem:[%s8 + $0x198] sm:$0xff]
        %v1394 = vld [vmem:[%s8 + $0x1a0] sm:$0xff]
        %v1395 = vld [vmem:[%s8 + $0x1a8] sm:$0xff]
        %v1396 = vld [vmem:[%s8 + $0x1b0] sm:$0xff]
        %v1397 = vld [vmem:[%s8 + $0x1b8] sm:$0xff]
        %v1398 = vld [vmem:[%s8 + $0x1c0] sm:$0xff]
        %v1399 = vld [vmem:[%s8 + $0x1c8] sm:$0xff]
        %v1400 = vld [vmem:[%s8 + $0x1d0] sm:$0xff]
        %v1401 = vld [vmem:[%s8 + $0x1d8] sm:$0xff]
        %v1402 = vld [vmem:[%s8 + $0x1e0] sm:$0xff]
        %v1403 = vld [vmem:[%s8 + $0x1e8] sm:$0xff]
        %v1404 = vld [vmem:[%s8 + $0x1f0] sm:$0xff]
        %v1405 = vld [vmem:[%s8 + $0x1f8] sm:$0xff]
        %v1406 = vld [vmem:[%s8 + $0x200] sm:$0xff]
        %v1407 = vld [vmem:[%s8 + $0x208] sm:$0xff]
        %v1408 = vld [vmem:[%s8 + $0x210] sm:$0xff]
        %v1409 = vld [vmem:[%s8 + $0x218] sm:$0xff]
        %v1410 = vld [vmem:[%s8 + $0x220] sm:$0xff]
        %v1411 = vld [vmem:[%s8 + $0x228] sm:$0xff]
        %v1412 = vld [vmem:[%s8 + $0x230] sm:$0xff]
        %v1413 = vld [vmem:[%s8 + $0x238] sm:$0xff]
        %v1414 = vld [vmem:[%s8 + $0x240] sm:$0xff]
        %v1415 = vld [vmem:[%s8 + $0x248] sm:$0xff]
        %v1416 = vld [vmem:[%s8 + $0x250] sm:$0xff]
        %v1417 = vld [vmem:[%s8 + $0x258] sm:$0xff]
        %v1418 = vld [vmem:[%s8 + $0x260] sm:$0xff]
        %v1419 = vld [vmem:[%s8 + $0x268] sm:$0xff]
        %v1420 = vld [vmem:[%s8 + $0x270] sm:$0xff]
        %v1421 = vld [vmem:[%s8 + $0x278] sm:$0xff]
        %v1422 = vld [vmem:[%s8 + $0x280] sm:$0xff]
        %v1423 = vld [vmem:[%s8 + $0x288] sm:$0xff]
        %v1424 = vld [vmem:[%s8 + $0x290] sm:$0xff]
        %v1425 = vld [vmem:[%s8 + $0x298] sm:$0xff]
        %v1426 = vld [vmem:[%s8 + $0x2a0] sm:$0xff]
        %v1427 = vld [vmem:[%s8 + $0x2a8] sm:$0xff]
        %v1428 = vld [vmem:[%s8 + $0x2b0] sm:$0xff]
        %v1429 = vld [vmem:[%s8 + $0x2b8] sm:$0xff]
        %v1430 = vld [vmem:[%s8 + $0x2c0] sm:$0xff]
        %v1431 = vld [vmem:[%s8 + $0x2c8] sm:$0xff]
        %v1432 = vld [vmem:[%s8 + $0x2d0] sm:$0xff]
        %v1433 = vld [vmem:[%s8 + $0x2d8] sm:$0xff]
        %v1434 = vld [vmem:[%s8 + $0x2e0] sm:$0xff]
        %v1435 = vld [vmem:[%s8 + $0x2e8] sm:$0xff]
        %v1436 = vld [vmem:[%s8 + $0x2f0] sm:$0xff]
        %v1437 = vld [vmem:[%s8 + $0x2f8] sm:$0xff]
        %v1438 = vld [vmem:[%s9] sm:$0x3f]
        %v1440 = vlaneseq
        %v1441 = vshrl.u32 %v1440, 7
        %v1442 = vsub.s32 0, %v1441
        %v1443 = vrot.slane %v1438, %v1442
        %v1444 = vlaneseq
        %v1445 = vshrl.u32 %v1444, 7
        %v1446 = vsub.s32 1, %v1445
        %v1447 = vrot.slane %v1438, %v1446
        %v1448 = vlaneseq
        %v1449 = vshrl.u32 %v1448, 7
        %v1450 = vsub.s32 2, %v1449
        %v1451 = vrot.slane %v1438, %v1450
        %v1452 = vlaneseq
        %v1453 = vshrl.u32 %v1452, 7
        %v1454 = vsub.s32 3, %v1453
        %v1455 = vrot.slane %v1438, %v1454
        %v1456 = vlaneseq
        %v1457 = vshrl.u32 %v1456, 7
        %v1458 = vsub.s32 4, %v1457
        %v1459 = vrot.slane %v1438, %v1458
        %v1460 = vlaneseq
        %v1461 = vshrl.u32 %v1460, 7
        %v1462 = vsub.s32 5, %v1461
        %v1463 = vrot.slane %v1438, %v1462
        %v1566 = vunpack.c.l.b16 %v1342
        %v1567 = vunpack.c.h.b16 %v1342
        %v1568 = vunpack.c.l.b16 %v1343
        %v1569 = vunpack.c.h.b16 %v1343
        %v1570 = vunpack.c.l.b16 %v1344
        %v1571 = vunpack.c.h.b16 %v1344
        %v1572 = vunpack.c.l.b16 %v1345
        %v1573 = vunpack.c.h.b16 %v1345
        %v1574 = vunpack.c.l.b16 %v1346
        %v1575 = vunpack.c.h.b16 %v1346
        %v1576 = vunpack.c.l.b16 %v1347
        %v1577 = vunpack.c.h.b16 %v1347
        %v1578 = vunpack.c.l.b16 %v1348
        %v1579 = vunpack.c.h.b16 %v1348
        %v1580 = vunpack.c.l.b16 %v1349
        %v1581 = vunpack.c.h.b16 %v1349
        %v1582 = vunpack.c.l.b16 %v1350
        %v1583 = vunpack.c.h.b16 %v1350
        %v1584 = vunpack.c.l.b16 %v1351
        %v1585 = vunpack.c.h.b16 %v1351
        %v1586 = vunpack.c.l.b16 %v1352
        %v1587 = vunpack.c.h.b16 %v1352
        %v1588 = vunpack.c.l.b16 %v1353
        %v1589 = vunpack.c.h.b16 %v1353
        %v1590 = vunpack.c.l.b16 %v1354
        %v1591 = vunpack.c.h.b16 %v1354
        %v1592 = vunpack.c.l.b16 %v1355
        %v1593 = vunpack.c.h.b16 %v1355
        %v1594 = vunpack.c.l.b16 %v1356
        %v1595 = vunpack.c.h.b16 %v1356
        %v1596 = vunpack.c.l.b16 %v1357
        %v1597 = vunpack.c.h.b16 %v1357
        %v1598 = vunpack.c.l.b16 %v1358
        %v1599 = vunpack.c.h.b16 %v1358
        %v1600 = vunpack.c.l.b16 %v1359
        %v1601 = vunpack.c.h.b16 %v1359
        %v1602 = vunpack.c.l.b16 %v1360
        %v1603 = vunpack.c.h.b16 %v1360
        %v1604 = vunpack.c.l.b16 %v1361
        %v1605 = vunpack.c.h.b16 %v1361
        %v1606 = vunpack.c.l.b16 %v1362
        %v1607 = vunpack.c.h.b16 %v1362
        %v1608 = vunpack.c.l.b16 %v1363
        %v1609 = vunpack.c.h.b16 %v1363
        %v1610 = vunpack.c.l.b16 %v1364
        %v1611 = vunpack.c.h.b16 %v1364
        %v1612 = vunpack.c.l.b16 %v1365
        %v1613 = vunpack.c.h.b16 %v1365
        %v1614 = vunpack.c.l.b16 %v1366
        %v1615 = vunpack.c.h.b16 %v1366
        %v1616 = vunpack.c.l.b16 %v1367
        %v1617 = vunpack.c.h.b16 %v1367
        %v1618 = vunpack.c.l.b16 %v1368
        %v1619 = vunpack.c.h.b16 %v1368
        %v1620 = vunpack.c.l.b16 %v1369
        %v1621 = vunpack.c.h.b16 %v1369
        %v1622 = vunpack.c.l.b16 %v1370
        %v1623 = vunpack.c.h.b16 %v1370
        %v1624 = vunpack.c.l.b16 %v1371
        %v1625 = vunpack.c.h.b16 %v1371
        %v1626 = vunpack.c.l.b16 %v1372
        %v1627 = vunpack.c.h.b16 %v1372
        %v1628 = vunpack.c.l.b16 %v1373
        %v1629 = vunpack.c.h.b16 %v1373
        %v1630 = vunpack.c.l.b16 %v1374
        %v1631 = vunpack.c.h.b16 %v1374
        %v1632 = vunpack.c.l.b16 %v1375
        %v1633 = vunpack.c.h.b16 %v1375
        %v1634 = vunpack.c.l.b16 %v1376
        %v1635 = vunpack.c.h.b16 %v1376
        %v1636 = vunpack.c.l.b16 %v1377
        %v1637 = vunpack.c.h.b16 %v1377
        %v1638 = vunpack.c.l.b16 %v1378
        %v1639 = vunpack.c.h.b16 %v1378
        %v1640 = vunpack.c.l.b16 %v1379
        %v1641 = vunpack.c.h.b16 %v1379
        %v1642 = vunpack.c.l.b16 %v1380
        %v1643 = vunpack.c.h.b16 %v1380
        %v1644 = vunpack.c.l.b16 %v1381
        %v1645 = vunpack.c.h.b16 %v1381
        %v1646 = vunpack.c.l.b16 %v1382
        %v1647 = vunpack.c.h.b16 %v1382
        %v1648 = vunpack.c.l.b16 %v1383
        %v1649 = vunpack.c.h.b16 %v1383
        %v1650 = vunpack.c.l.b16 %v1384
        %v1651 = vunpack.c.h.b16 %v1384
        %v1652 = vunpack.c.l.b16 %v1385
        %v1653 = vunpack.c.h.b16 %v1385
        %v1654 = vunpack.c.l.b16 %v1386
        %v1655 = vunpack.c.h.b16 %v1386
        %v1656 = vunpack.c.l.b16 %v1387
        %v1657 = vunpack.c.h.b16 %v1387
        %v1658 = vunpack.c.l.b16 %v1388
        %v1659 = vunpack.c.h.b16 %v1388
        %v1660 = vunpack.c.l.b16 %v1389
        %v1661 = vunpack.c.h.b16 %v1389
        %v1662 = vunpack.c.l.b16 %v1390
        %v1663 = vunpack.c.h.b16 %v1390
        %v1664 = vunpack.c.l.b16 %v1391
        %v1665 = vunpack.c.h.b16 %v1391
        %v1666 = vunpack.c.l.b16 %v1392
        %v1667 = vunpack.c.h.b16 %v1392
        %v1668 = vunpack.c.l.b16 %v1393
        %v1669 = vunpack.c.h.b16 %v1393
        %v1670 = vunpack.c.l.b16 %v1394
        %v1671 = vunpack.c.h.b16 %v1394
        %v1672 = vunpack.c.l.b16 %v1395
        %v1673 = vunpack.c.h.b16 %v1395
        %v1674 = vunpack.c.l.b16 %v1396
        %v1675 = vunpack.c.h.b16 %v1396
        %v1676 = vunpack.c.l.b16 %v1397
        %v1677 = vunpack.c.h.b16 %v1397
        %v1678 = vunpack.c.l.b16 %v1398
        %v1679 = vunpack.c.h.b16 %v1398
        %v1680 = vunpack.c.l.b16 %v1399
        %v1681 = vunpack.c.h.b16 %v1399
        %v1682 = vunpack.c.l.b16 %v1400
        %v1683 = vunpack.c.h.b16 %v1400
        %v1684 = vunpack.c.l.b16 %v1401
        %v1685 = vunpack.c.h.b16 %v1401
        %v1686 = vunpack.c.l.b16 %v1402
        %v1687 = vunpack.c.h.b16 %v1402
        %v1688 = vunpack.c.l.b16 %v1403
        %v1689 = vunpack.c.h.b16 %v1403
        %v1690 = vunpack.c.l.b16 %v1404
        %v1691 = vunpack.c.h.b16 %v1404
        %v1692 = vunpack.c.l.b16 %v1405
        %v1693 = vunpack.c.h.b16 %v1405
        %v1694 = vunpack.c.l.b16 %v1406
        %v1695 = vunpack.c.h.b16 %v1406
        %v1696 = vunpack.c.l.b16 %v1407
        %v1697 = vunpack.c.h.b16 %v1407
        %v1698 = vunpack.c.l.b16 %v1408
        %v1699 = vunpack.c.h.b16 %v1408
        %v1700 = vunpack.c.l.b16 %v1409
        %v1701 = vunpack.c.h.b16 %v1409
        %v1702 = vunpack.c.l.b16 %v1410
        %v1703 = vunpack.c.h.b16 %v1410
        %v1704 = vunpack.c.l.b16 %v1411
        %v1705 = vunpack.c.h.b16 %v1411
        %v1706 = vunpack.c.l.b16 %v1412
        %v1707 = vunpack.c.h.b16 %v1412
        %v1708 = vunpack.c.l.b16 %v1413
        %v1709 = vunpack.c.h.b16 %v1413
        %v1710 = vunpack.c.l.b16 %v1414
        %v1711 = vunpack.c.h.b16 %v1414
        %v1712 = vunpack.c.l.b16 %v1415
        %v1713 = vunpack.c.h.b16 %v1415
        %v1714 = vunpack.c.l.b16 %v1416
        %v1715 = vunpack.c.h.b16 %v1416
        %v1716 = vunpack.c.l.b16 %v1417
        %v1717 = vunpack.c.h.b16 %v1417
        %v1718 = vunpack.c.l.b16 %v1418
        %v1719 = vunpack.c.h.b16 %v1418
        %v1720 = vunpack.c.l.b16 %v1419
        %v1721 = vunpack.c.h.b16 %v1419
        %v1722 = vunpack.c.l.b16 %v1420
        %v1723 = vunpack.c.h.b16 %v1420
        %v1724 = vunpack.c.l.b16 %v1421
        %v1725 = vunpack.c.h.b16 %v1421
        %v1726 = vunpack.c.l.b16 %v1422
        %v1727 = vunpack.c.h.b16 %v1422
        %v1728 = vunpack.c.l.b16 %v1423
        %v1729 = vunpack.c.h.b16 %v1423
        %v1730 = vunpack.c.l.b16 %v1424
        %v1731 = vunpack.c.h.b16 %v1424
        %v1732 = vunpack.c.l.b16 %v1425
        %v1733 = vunpack.c.h.b16 %v1425
        %v1734 = vunpack.c.l.b16 %v1426
        %v1735 = vunpack.c.h.b16 %v1426
        %v1736 = vunpack.c.l.b16 %v1427
        %v1737 = vunpack.c.h.b16 %v1427
        %v1738 = vunpack.c.l.b16 %v1428
        %v1739 = vunpack.c.h.b16 %v1428
        %v1740 = vunpack.c.l.b16 %v1429
        %v1741 = vunpack.c.h.b16 %v1429
        %v1742 = vunpack.c.l.b16 %v1430
        %v1743 = vunpack.c.h.b16 %v1430
        %v1744 = vunpack.c.l.b16 %v1431
        %v1745 = vunpack.c.h.b16 %v1431
        %v1746 = vunpack.c.l.b16 %v1432
        %v1747 = vunpack.c.h.b16 %v1432
        %v1748 = vunpack.c.l.b16 %v1433
        %v1749 = vunpack.c.h.b16 %v1433
        %v1750 = vunpack.c.l.b16 %v1434
        %v1751 = vunpack.c.h.b16 %v1434
        %v1752 = vunpack.c.l.b16 %v1435
        %v1753 = vunpack.c.h.b16 %v1435
        %v1754 = vunpack.c.l.b16 %v1436
        %v1755 = vunpack.c.h.b16 %v1436
        %v1756 = vunpack.c.l.b16 %v1437
        %v1757 = vunpack.c.h.b16 %v1437
        %v1758 = vpack.c.b16 %v1572, %v1566
        %v1759 = vpack.c.b16 %v1573, %v1567
        %v1760 = vpack.c.b16 %v1574, %v1568
        %v1761 = vpack.c.b16 %v1575, %v1569
        %v1762 = vpack.c.b16 %v1576, %v1570
        %v1763 = vpack.c.b16 %v1577, %v1571
        %v1764 = vpack.c.b16 %v1584, %v1578
        %v1765 = vpack.c.b16 %v1585, %v1579
        %v1766 = vpack.c.b16 %v1586, %v1580
        %v1767 = vpack.c.b16 %v1587, %v1581
        %v1768 = vpack.c.b16 %v1588, %v1582
        %v1769 = vpack.c.b16 %v1589, %v1583
        %v1770 = vpack.c.b16 %v1596, %v1590
        %v1771 = vpack.c.b16 %v1597, %v1591
        %v1772 = vpack.c.b16 %v1598, %v1592
        %v1773 = vpack.c.b16 %v1599, %v1593
        %v1774 = vpack.c.b16 %v1600, %v1594
        %v1775 = vpack.c.b16 %v1601, %v1595
        %v1776 = vpack.c.b16 %v1608, %v1602
        %v1777 = vpack.c.b16 %v1609, %v1603
        %v1778 = vpack.c.b16 %v1610, %v1604
        %v1779 = vpack.c.b16 %v1611, %v1605
        %v1780 = vpack.c.b16 %v1612, %v1606
        %v1781 = vpack.c.b16 %v1613, %v1607
        %v1782 = vpack.c.b16 %v1620, %v1614
        %v1783 = vpack.c.b16 %v1621, %v1615
        %v1784 = vpack.c.b16 %v1622, %v1616
        %v1785 = vpack.c.b16 %v1623, %v1617
        %v1786 = vpack.c.b16 %v1624, %v1618
        %v1787 = vpack.c.b16 %v1625, %v1619
        %v1788 = vpack.c.b16 %v1632, %v1626
        %v1789 = vpack.c.b16 %v1633, %v1627
        %v1790 = vpack.c.b16 %v1634, %v1628
        %v1791 = vpack.c.b16 %v1635, %v1629
        %v1792 = vpack.c.b16 %v1636, %v1630
        %v1793 = vpack.c.b16 %v1637, %v1631
        %v1794 = vpack.c.b16 %v1644, %v1638
        %v1795 = vpack.c.b16 %v1645, %v1639
        %v1796 = vpack.c.b16 %v1646, %v1640
        %v1797 = vpack.c.b16 %v1647, %v1641
        %v1798 = vpack.c.b16 %v1648, %v1642
        %v1799 = vpack.c.b16 %v1649, %v1643
        %v1800 = vpack.c.b16 %v1656, %v1650
        %v1801 = vpack.c.b16 %v1657, %v1651
        %v1802 = vpack.c.b16 %v1658, %v1652
        %v1803 = vpack.c.b16 %v1659, %v1653
        %v1804 = vpack.c.b16 %v1660, %v1654
        %v1805 = vpack.c.b16 %v1661, %v1655
        %v1806 = vpack.c.b16 %v1668, %v1662
        %v1807 = vpack.c.b16 %v1669, %v1663
        %v1808 = vpack.c.b16 %v1670, %v1664
        %v1809 = vpack.c.b16 %v1671, %v1665
        %v1810 = vpack.c.b16 %v1672, %v1666
        %v1811 = vpack.c.b16 %v1673, %v1667
        %v1812 = vpack.c.b16 %v1680, %v1674
        %v1813 = vpack.c.b16 %v1681, %v1675
        %v1814 = vpack.c.b16 %v1682, %v1676
        %v1815 = vpack.c.b16 %v1683, %v1677
        %v1816 = vpack.c.b16 %v1684, %v1678
        %v1817 = vpack.c.b16 %v1685, %v1679
        %v1818 = vpack.c.b16 %v1692, %v1686
        %v1819 = vpack.c.b16 %v1693, %v1687
        %v1820 = vpack.c.b16 %v1694, %v1688
        %v1821 = vpack.c.b16 %v1695, %v1689
        %v1822 = vpack.c.b16 %v1696, %v1690
        %v1823 = vpack.c.b16 %v1697, %v1691
        %v1824 = vpack.c.b16 %v1704, %v1698
        %v1825 = vpack.c.b16 %v1705, %v1699
        %v1826 = vpack.c.b16 %v1706, %v1700
        %v1827 = vpack.c.b16 %v1707, %v1701
        %v1828 = vpack.c.b16 %v1708, %v1702
        %v1829 = vpack.c.b16 %v1709, %v1703
        %v1830 = vpack.c.b16 %v1716, %v1710
        %v1831 = vpack.c.b16 %v1717, %v1711
        %v1832 = vpack.c.b16 %v1718, %v1712
        %v1833 = vpack.c.b16 %v1719, %v1713
        %v1834 = vpack.c.b16 %v1720, %v1714
        %v1835 = vpack.c.b16 %v1721, %v1715
        %v1836 = vpack.c.b16 %v1728, %v1722
        %v1837 = vpack.c.b16 %v1729, %v1723
        %v1838 = vpack.c.b16 %v1730, %v1724
        %v1839 = vpack.c.b16 %v1731, %v1725
        %v1840 = vpack.c.b16 %v1732, %v1726
        %v1841 = vpack.c.b16 %v1733, %v1727
        %v1842 = vpack.c.b16 %v1740, %v1734
        %v1843 = vpack.c.b16 %v1741, %v1735
        %v1844 = vpack.c.b16 %v1742, %v1736
        %v1845 = vpack.c.b16 %v1743, %v1737
        %v1846 = vpack.c.b16 %v1744, %v1738
        %v1847 = vpack.c.b16 %v1745, %v1739
        %v1848 = vpack.c.b16 %v1752, %v1746
        %v1849 = vpack.c.b16 %v1753, %v1747
        %v1850 = vpack.c.b16 %v1754, %v1748
        %v1851 = vpack.c.b16 %v1755, %v1749
        %v1852 = vpack.c.b16 %v1756, %v1750
        %v1853 = vpack.c.b16 %v1757, %v1751
        %1950 = vmatprep.subr.bf16.mxu0 %v1759
        %1951 = vmatpush1.bf16.msra.mxu0 %v1758
        %1952 = vmatprep.subr.bf16.mxu0 %v1765
        %1953 = vmatpush1.bf16.msra.mxu0 %v1764
        %1954 = vmatprep.subr.bf16.mxu0 %v1771
        %1955 = vmatpush1.bf16.msra.mxu0 %v1770
        %1956 = vmatprep.subr.bf16.mxu0 %v1777
        %1957 = vmatpush1.bf16.msra.mxu0 %v1776
        %1958 = vmatprep.subr.bf16.mxu0 %v1783
        %1959 = vmatpush1.bf16.msra.mxu0 %v1782
        %1960 = vmatprep.subr.bf16.mxu0 %v1789
        %1961 = vmatpush1.bf16.msra.mxu0 %v1788
        %1962 = vmatprep.subr.bf16.mxu0 %v1795
        %1963 = vmatpush1.bf16.msra.mxu0 %v1794
        %1964 = vmatprep.subr.bf16.mxu0 %v1801
        %1965 = vmatpush1.bf16.msra.mxu0 %v1800
        %1966 = vmatprep.subr.bf16.mxu0 %v1807
        %1967 = vmatpush1.bf16.msra.mxu0 %v1806
        %1968 = vmatprep.subr.bf16.mxu0 %v1813
        %1969 = vmatpush1.bf16.msra.mxu0 %v1812
        %1970 = vmatprep.subr.bf16.mxu0 %v1819
        %1971 = vmatpush1.bf16.msra.mxu0 %v1818
        %1972 = vmatprep.subr.bf16.mxu0 %v1825
        %1973 = vmatpush1.bf16.msra.mxu0 %v1824
        %1974 = vmatprep.subr.bf16.mxu0 %v1831
        %1975 = vmatpush1.bf16.msra.mxu0 %v1830
        %1976 = vmatprep.subr.bf16.mxu0 %v1837
        %1977 = vmatpush1.bf16.msra.mxu0 %v1836
        %1978 = vmatprep.subr.bf16.mxu0 %v1843
        %1979 = vmatpush1.bf16.msra.mxu0 %v1842
        %1980 = vmatprep.subr.bf16.mxu0 %v1849
        %1981 = vmatpush1.bf16.msra.mxu0 %v1848
        %1982 = vmatprep.mubr.bf16.mxu0 %v1341
        %1983 = vmatmul.mubr.bf16.gmra.mrb[0].mxu0 %v1340
        %v1984 = vpop.f32.mrb[0].mxu0
        %v1985 = vadd.f32 %v1443, %v1984
        %v1986 = vpop.f32.mrb[0].mxu0
        %v1987 = vadd.f32 %v1447, %v1986
        %v1988 = vpop.f32.mrb[0].mxu0
        %v1989 = vadd.f32 %v1443, %v1988
        %v1990 = vpop.f32.mrb[0].mxu0
        %v1991 = vadd.f32 %v1447, %v1990
        %1992 = vdwg.mxu0
        %1993 = vmatprep.subr.bf16.mxu0 %v1761
        %1994 = vmatpush1.bf16.msra.mxu0 %v1760
        %1995 = vmatprep.subr.bf16.mxu0 %v1767
        %1996 = vmatpush1.bf16.msra.mxu0 %v1766
        %1997 = vmatprep.subr.bf16.mxu0 %v1773
        %1998 = vmatpush1.bf16.msra.mxu0 %v1772
        %1999 = vmatprep.subr.bf16.mxu0 %v1779
        %2000 = vmatpush1.bf16.msra.mxu0 %v1778
        %2001 = vmatprep.subr.bf16.mxu0 %v1785
        %2002 = vmatpush1.bf16.msra.mxu0 %v1784
        %2003 = vmatprep.subr.bf16.mxu0 %v1791
        %2004 = vmatpush1.bf16.msra.mxu0 %v1790
        %2005 = vmatprep.subr.bf16.mxu0 %v1797
        %2006 = vmatpush1.bf16.msra.mxu0 %v1796
        %2007 = vmatprep.subr.bf16.mxu0 %v1803
        %2008 = vmatpush1.bf16.msra.mxu0 %v1802
        %2009 = vmatprep.subr.bf16.mxu0 %v1809
        %2010 = vmatpush1.bf16.msra.mxu0 %v1808
        %2011 = vmatprep.subr.bf16.mxu0 %v1815
        %2012 = vmatpush1.bf16.msra.mxu0 %v1814
        %2013 = vmatprep.subr.bf16.mxu0 %v1821
        %2014 = vmatpush1.bf16.msra.mxu0 %v1820
        %2015 = vmatprep.subr.bf16.mxu0 %v1827
        %2016 = vmatpush1.bf16.msra.mxu0 %v1826
        %2017 = vmatprep.subr.bf16.mxu0 %v1833
        %2018 = vmatpush1.bf16.msra.mxu0 %v1832
        %2019 = vmatprep.subr.bf16.mxu0 %v1839
        %2020 = vmatpush1.bf16.msra.mxu0 %v1838
        %2021 = vmatprep.subr.bf16.mxu0 %v1845
        %2022 = vmatpush1.bf16.msra.mxu0 %v1844
        %2023 = vmatprep.subr.bf16.mxu0 %v1851
        %2024 = vmatpush1.bf16.msra.mxu0 %v1850
        %2025 = vmatprep.mubr.bf16.mxu0 %v1341
        %2026 = vmatmul.mubr.bf16.gmra.mrb[0].mxu0 %v1340
        %v2027 = vpop.f32.mrb[0].mxu0
        %v2028 = vadd.f32 %v1451, %v2027
        %v2029 = vpop.f32.mrb[0].mxu0
        %v2030 = vadd.f32 %v1455, %v2029
        %v2031 = vpop.f32.mrb[0].mxu0
        %v2032 = vadd.f32 %v1451, %v2031
        %v2033 = vpop.f32.mrb[0].mxu0
        %v2034 = vadd.f32 %v1455, %v2033
        %2035 = vdwg.mxu0
        %2036 = vmatprep.subr.bf16.mxu0 %v1763
        %2037 = vmatpush1.bf16.msra.mxu0 %v1762
        %2038 = vmatprep.subr.bf16.mxu0 %v1769
        %2039 = vmatpush1.bf16.msra.mxu0 %v1768
        %2040 = vmatprep.subr.bf16.mxu0 %v1775
        %2041 = vmatpush1.bf16.msra.mxu0 %v1774
        %2042 = vmatprep.subr.bf16.mxu0 %v1781
        %2043 = vmatpush1.bf16.msra.mxu0 %v1780
        %2044 = vmatprep.subr.bf16.mxu0 %v1787
        %2045 = vmatpush1.bf16.msra.mxu0 %v1786
        %2046 = vmatprep.subr.bf16.mxu0 %v1793
        %2047 = vmatpush1.bf16.msra.mxu0 %v1792
        %2048 = vmatprep.subr.bf16.mxu0 %v1799
        %2049 = vmatpush1.bf16.msra.mxu0 %v1798
        %2050 = vmatprep.subr.bf16.mxu0 %v1805
        %2051 = vmatpush1.bf16.msra.mxu0 %v1804
        %2052 = vmatprep.subr.bf16.mxu0 %v1811
        %2053 = vmatpush1.bf16.msra.mxu0 %v1810
        %2054 = vmatprep.subr.bf16.mxu0 %v1817
        %2055 = vmatpush1.bf16.msra.mxu0 %v1816
        %2056 = vmatprep.subr.bf16.mxu0 %v1823
        %2057 = vmatpush1.bf16.msra.mxu0 %v1822
        %2058 = vmatprep.subr.bf16.mxu0 %v1829
        %2059 = vmatpush1.bf16.msra.mxu0 %v1828
        %2060 = vmatprep.subr.bf16.mxu0 %v1835
        %2061 = vmatpush1.bf16.msra.mxu0 %v1834
        %2062 = vmatprep.subr.bf16.mxu0 %v1841
        %2063 = vmatpush1.bf16.msra.mxu0 %v1840
        %2064 = vmatprep.subr.bf16.mxu0 %v1847
        %2065 = vmatpush1.bf16.msra.mxu0 %v1846
        %2066 = vmatprep.subr.bf16.mxu0 %v1853
        %2067 = vmatpush1.bf16.msra.mxu0 %v1852
        %2068 = vmatprep.mubr.bf16.mxu0 %v1341
        %2069 = vmatmul.mubr.bf16.gmra.mrb[0].mxu0 %v1340
        %v2070 = vpop.f32.mrb[0].mxu0
        %v2071 = vadd.f32 %v1459, %v2070
        %v2072 = vpop.f32.mrb[0].mxu0
        %v2073 = vadd.f32 %v1463, %v2072
        %v2074 = vpop.f32.mrb[0].mxu0
        %v2075 = vadd.f32 %v1459, %v2074
        %v2076 = vpop.f32.mrb[0].mxu0
        %v2077 = vadd.f32 %v1463, %v2076
        %2078 = vdwg.mxu0
        %2079 = vst [vmem:[%s448] sm:$0xff] %v1985
        %2080 = vst [vmem:[%s448 + $0x8] sm:$0xff] %v1987
        %2081 = vst [vmem:[%s448 + $0x10] sm:$0xff] %v2028
        %2082 = vst [vmem:[%s448 + $0x18] sm:$0xff] %v2030
        %2083 = vst [vmem:[%s448 + $0x20] sm:$0xff] %v2071
        %2084 = vst [vmem:[%s448 + $0x28] sm:$0xff] %v2073
        %2085 = vst [vmem:[%s448 + $0x30] sm:$0xff] %v1989
        %2086 = vst [vmem:[%s448 + $0x38] sm:$0xff] %v1991
        %2087 = vst [vmem:[%s448 + $0x40] sm:$0xff] %v2032
        %2088 = vst [vmem:[%s448 + $0x48] sm:$0xff] %v2034
        %2089 = vst [vmem:[%s448 + $0x50] sm:$0xff] %v2075
        %2090 = vst [vmem:[%s448 + $0x58] sm:$0xff] %v2077
        %v2091 = vld [vmem:[%s2] sm:$0xff]
        %v2092 = vld [vmem:[%s2 + $0x8] sm:$0xff]
        %v2093 = vld [vmem:[#allocation2] sm:$0xff]
        %v2094 = vld [vmem:[#allocation2 + $0x8] sm:$0xff]
        %v2095 = vpack.c.bf16 %v1989, %v1985
        %v2096 = vpack.c.bf16 %v2032, %v2028
        %vm2097 = vcmask 261120
        %v2099 = vsel %vm2097, %v2095, 0
        %v2102 = vsel %vm2097, %v2096, 0
        %2104 = vmatprep.subr.bf16.mxu0 0
        %2105 = vmatpush1.bf16.xpose.msra.mxu0 %v2102
        %2106 = vmatprep.subr.bf16.mxu0 0
        %2107 = vmatpush1.bf16.xpose.msra.mxu0 0
        %2108 = vmatprep.subr.bf16.mxu0 0
        %2109 = vmatpush1.bf16.xpose.msra.mxu0 0
        %2110 = vmatprep.subr.bf16.mxu0 0
        %2111 = vmatpush1.bf16.xpose.msra.mxu0 0
        %2112 = vmatprep.subr.bf16.mxu0 0
        %2113 = vmatpush1.bf16.xpose.msra.mxu0 0
        %2114 = vmatprep.subr.bf16.mxu0 0
        %2115 = vmatpush1.bf16.xpose.msra.mxu0 0
        %2116 = vmatprep.subr.bf16.mxu0 0
        %2117 = vmatpush1.bf16.xpose.msra.mxu0 0
        %2118 = vmatprep.subr.bf16.mxu0 0
        %2119 = vmatpush1.bf16.xpose.msra.mxu0 0
        %2120 = vmatprep.subr.bf16.mxu0 0
        %2121 = vmatpush1.bf16.xpose.msra.mxu0 0
        %2122 = vmatprep.subr.bf16.mxu0 0
        %2123 = vmatpush1.bf16.xpose.msra.mxu0 0
        %2124 = vmatprep.subr.bf16.mxu0 0
        %2125 = vmatpush1.bf16.xpose.msra.mxu0 0
        %2126 = vmatprep.subr.bf16.mxu0 0
        %2127 = vmatpush1.bf16.xpose.msra.mxu0 0
        %2128 = vmatprep.subr.bf16.mxu0 0
        %2129 = vmatpush1.bf16.xpose.msra.mxu0 0
        %2130 = vmatprep.subr.bf16.mxu0 0
        %2131 = vmatpush1.bf16.xpose.msra.mxu0 0
        %2132 = vmatprep.subr.bf16.mxu0 0
        %2133 = vmatpush1.bf16.xpose.msra.mxu0 0
        %2134 = vmatprep.subr.bf16.mxu0 0
        %2135 = vmatpush1.bf16.xpose.msra.mxu0 0
        %2136 = vmatprep.mubr.bf16.mxu0 0
        %2137 = vmatmul.mubr.bf16.gmra.mrb[0].mxu0 %v2099
        %v2138 = vpop.f32.mrb[0].mxu0
        %v2139 = vadd.f32 0.0, %v2138
        %v2140 = vpop.f32.mrb[0].mxu0
        %v2141 = vpop.f32.mrb[0].mxu0
        %v2142 = vadd.f32 0.0, %v2141
        %v2143 = vpop.f32.mrb[0].mxu0
        %2144 = vdwg.mxu0
        %vm2145 = vcmp.gt.f32.partialorder %v2091, 0.5
        %vm2146 = vcmp.gt.f32.partialorder %v2092, 0.5
        %v2147 = vsel %vm2145, %v2139, -1e+30
        %v2148 = vsel %vm2146, %v2142, -1e+30
        %vm2149 = vcmask 130048
        %v2150 = vsel %vm2149, %v2147, -inf
        %2151 = vmax.xlane.f32.xlu0 %v2150
        %v2152 = vpop.xlane.xlu0 %2151
        %v2153 = vsel %vm2149, %v2148, -inf
        %2154 = vmax.xlane.f32.xlu0 %v2153
        %v2155 = vpop.xlane.xlu0 %2154
        %v2156 = vmul.f32 %v2139, %v2093
        %v2157 = vmul.f32 %v2142, %v2094
        %v2158 = vsel %vm2149, %v2156, 0.0
        %2159 = vadd.xlane.f32.xlu0 %v2158
        %v2160 = vpop.xlane.xlu0 %2159
        %v2161 = vsel %vm2149, %v2157, 0.0
        %2162 = vadd.xlane.f32.xlu0 %v2161
        %v2163 = vpop.xlane.xlu0 %2162
        %v2164 = vmul.f32 %v2160, 0.0625
        %v2165 = vmul.f32 %v2163, 0.0625
        %v2166 = vsub.f32 %v2152, %v2164
        %v2167 = vsub.f32 %v2155, %v2165
        %2169 = vrot.lane.b32.xlu0 %v2095, 96
        %v2170 = vpop.permute.xlu0 %2169
        %2172 = vrot.lane.b32.xlu0 %v2096, 96
        %v2173 = vpop.permute.xlu0 %2172
        %v2175 = vsel %vm2097, %v2170, 0
        %v2178 = vsel %vm2097, %v2173, 0
        %2180 = vmatprep.subr.bf16.mxu0 0
        %2181 = vmatpush1.bf16.xpose.msra.mxu0 %v2178
        %2182 = vmatprep.subr.bf16.mxu0 0
        %2183 = vmatpush1.bf16.xpose.msra.mxu0 0
        %2184 = vmatprep.subr.bf16.mxu0 0
        %2185 = vmatpush1.bf16.xpose.msra.mxu0 0
        %2186 = vmatprep.subr.bf16.mxu0 0
        %2187 = vmatpush1.bf16.xpose.msra.mxu0 0
        %2188 = vmatprep.subr.bf16.mxu0 0
        %2189 = vmatpush1.bf16.xpose.msra.mxu0 0
        %2190 = vmatprep.subr.bf16.mxu0 0
        %2191 = vmatpush1.bf16.xpose.msra.mxu0 0
        %2192 = vmatprep.subr.bf16.mxu0 0
        %2193 = vmatpush1.bf16.xpose.msra.mxu0 0
        %2194 = vmatprep.subr.bf16.mxu0 0
        %2195 = vmatpush1.bf16.xpose.msra.mxu0 0
        %2196 = vmatprep.subr.bf16.mxu0 0
        %2197 = vmatpush1.bf16.xpose.msra.mxu0 0
        %2198 = vmatprep.subr.bf16.mxu0 0
        %2199 = vmatpush1.bf16.xpose.msra.mxu0 0
        %2200 = vmatprep.subr.bf16.mxu0 0
        %2201 = vmatpush1.bf16.xpose.msra.mxu0 0
        %2202 = vmatprep.subr.bf16.mxu0 0
        %2203 = vmatpush1.bf16.xpose.msra.mxu0 0
        %2204 = vmatprep.subr.bf16.mxu0 0
        %2205 = vmatpush1.bf16.xpose.msra.mxu0 0
        %2206 = vmatprep.subr.bf16.mxu0 0
        %2207 = vmatpush1.bf16.xpose.msra.mxu0 0
        %2208 = vmatprep.subr.bf16.mxu0 0
        %2209 = vmatpush1.bf16.xpose.msra.mxu0 0
        %2210 = vmatprep.subr.bf16.mxu0 0
        %2211 = vmatpush1.bf16.xpose.msra.mxu0 0
        %2212 = vmatprep.mubr.bf16.mxu0 0
        %2213 = vmatmul.mubr.bf16.gmra.mrb[0].mxu0 %v2175
        %v2214 = vpop.f32.mrb[0].mxu0
        %v2215 = vadd.f32 0.0, %v2214
        %v2216 = vpop.f32.mrb[0].mxu0
        %v2217 = vpop.f32.mrb[0].mxu0
        %v2218 = vadd.f32 0.0, %v2217
        %v2219 = vpop.f32.mrb[0].mxu0
        %2220 = vdwg.mxu0
        %v2221 = vsel %vm2145, %v2215, -1e+30
        %v2222 = vsel %vm2146, %v2218, -1e+30
        %v2223 = vsel %vm2149, %v2221, -inf
        %2224 = vmax.xlane.f32.xlu0 %v2223
        %v2225 = vpop.xlane.xlu0 %2224
        %v2226 = vsel %vm2149, %v2222, -inf
        %2227 = vmax.xlane.f32.xlu0 %v2226
        %v2228 = vpop.xlane.xlu0 %2227
        %v2229 = vmul.f32 %v2215, %v2093
        %v2230 = vmul.f32 %v2218, %v2094
        %v2231 = vsel %vm2149, %v2229, 0.0
        %2232 = vadd.xlane.f32.xlu0 %v2231
        %v2233 = vpop.xlane.xlu0 %2232
        %v2234 = vsel %vm2149, %v2230, 0.0
        %2235 = vadd.xlane.f32.xlu0 %v2234
        %v2236 = vpop.xlane.xlu0 %2235
        %v2237 = vmul.f32 %v2233, 0.0625
        %v2238 = vmul.f32 %v2236, 0.0625
        %v2239 = vsub.f32 %v2225, %v2237
        %v2240 = vsub.f32 %v2228, %v2238
        %2241 = vrot.lane.b32.xlu0 %v2095, 64
        %v2242 = vpop.permute.xlu0 %2241
        %2243 = vrot.lane.b32.xlu0 %v2096, 64
        %v2244 = vpop.permute.xlu0 %2243
        %v2246 = vsel %vm2097, %v2242, 0
        %v2249 = vsel %vm2097, %v2244, 0
        %2251 = vmatprep.subr.bf16.mxu0 0
        %2252 = vmatpush1.bf16.xpose.msra.mxu0 %v2249
        %2253 = vmatprep.subr.bf16.mxu0 0
        %2254 = vmatpush1.bf16.xpose.msra.mxu0 0
        %2255 = vmatprep.subr.bf16.mxu0 0
        %2256 = vmatpush1.bf16.xpose.msra.mxu0 0
        %2257 = vmatprep.subr.bf16.mxu0 0
        %2258 = vmatpush1.bf16.xpose.msra.mxu0 0
        %2259 = vmatprep.subr.bf16.mxu0 0
        %2260 = vmatpush1.bf16.xpose.msra.mxu0 0
        %2261 = vmatprep.subr.bf16.mxu0 0
        %2262 = vmatpush1.bf16.xpose.msra.mxu0 0
        %2263 = vmatprep.subr.bf16.mxu0 0
        %2264 = vmatpush1.bf16.xpose.msra.mxu0 0
        %2265 = vmatprep.subr.bf16.mxu0 0
        %2266 = vmatpush1.bf16.xpose.msra.mxu0 0
        %2267 = vmatprep.subr.bf16.mxu0 0
        %2268 = vmatpush1.bf16.xpose.msra.mxu0 0
        %2269 = vmatprep.subr.bf16.mxu0 0
        %2270 = vmatpush1.bf16.xpose.msra.mxu0 0
        %2271 = vmatprep.subr.bf16.mxu0 0
        %2272 = vmatpush1.bf16.xpose.msra.mxu0 0
        %2273 = vmatprep.subr.bf16.mxu0 0
        %2274 = vmatpush1.bf16.xpose.msra.mxu0 0
        %2275 = vmatprep.subr.bf16.mxu0 0
        %2276 = vmatpush1.bf16.xpose.msra.mxu0 0
        %2277 = vmatprep.subr.bf16.mxu0 0
        %2278 = vmatpush1.bf16.xpose.msra.mxu0 0
        %2279 = vmatprep.subr.bf16.mxu0 0
        %2280 = vmatpush1.bf16.xpose.msra.mxu0 0
        %2281 = vmatprep.subr.bf16.mxu0 0
        %2282 = vmatpush1.bf16.xpose.msra.mxu0 0
        %2283 = vmatprep.mubr.bf16.mxu0 0
        %2284 = vmatmul.mubr.bf16.gmra.mrb[0].mxu0 %v2246
        %v2285 = vpop.f32.mrb[0].mxu0
        %v2286 = vadd.f32 0.0, %v2285
        %v2287 = vpop.f32.mrb[0].mxu0
        %v2288 = vpop.f32.mrb[0].mxu0
        %v2289 = vadd.f32 0.0, %v2288
        %v2290 = vpop.f32.mrb[0].mxu0
        %2291 = vdwg.mxu0
        %v2292 = vsel %vm2145, %v2286, -1e+30
        %v2293 = vsel %vm2146, %v2289, -1e+30
        %v2294 = vsel %vm2149, %v2292, -inf
        %2295 = vmax.xlane.f32.xlu0 %v2294
        %v2296 = vpop.xlane.xlu0 %2295
        %v2297 = vsel %vm2149, %v2293, -inf
        %2298 = vmax.xlane.f32.xlu0 %v2297
        %v2299 = vpop.xlane.xlu0 %2298
        %v2300 = vmul.f32 %v2286, %v2093
        %v2301 = vmul.f32 %v2289, %v2094
        %v2302 = vsel %vm2149, %v2300, 0.0
        %2303 = vadd.xlane.f32.xlu0 %v2302
        %v2304 = vpop.xlane.xlu0 %2303
        %v2305 = vsel %vm2149, %v2301, 0.0
        %2306 = vadd.xlane.f32.xlu0 %v2305
        %v2307 = vpop.xlane.xlu0 %2306
        %v2308 = vmul.f32 %v2304, 0.0625
        %v2309 = vmul.f32 %v2307, 0.0625
        %v2310 = vsub.f32 %v2296, %v2308
        %v2311 = vsub.f32 %v2299, %v2309
        %2312 = vrot.lane.b32.xlu0 %v2095, 32
        %v2313 = vpop.permute.xlu0 %2312
        %2314 = vrot.lane.b32.xlu0 %v2096, 32
        %v2315 = vpop.permute.xlu0 %2314
        %v2317 = vsel %vm2097, %v2313, 0
        %v2320 = vsel %vm2097, %v2315, 0
        %2322 = vmatprep.subr.bf16.mxu0 0
        %2323 = vmatpush1.bf16.xpose.msra.mxu0 %v2320
        %2324 = vmatprep.subr.bf16.mxu0 0
        %2325 = vmatpush1.bf16.xpose.msra.mxu0 0
        %2326 = vmatprep.subr.bf16.mxu0 0
        %2327 = vmatpush1.bf16.xpose.msra.mxu0 0
        %2328 = vmatprep.subr.bf16.mxu0 0
        %2329 = vmatpush1.bf16.xpose.msra.mxu0 0
        %2330 = vmatprep.subr.bf16.mxu0 0
        %2331 = vmatpush1.bf16.xpose.msra.mxu0 0
        %2332 = vmatprep.subr.bf16.mxu0 0
        %2333 = vmatpush1.bf16.xpose.msra.mxu0 0
        %2334 = vmatprep.subr.bf16.mxu0 0
        %2335 = vmatpush1.bf16.xpose.msra.mxu0 0
        %2336 = vmatprep.subr.bf16.mxu0 0
        %2337 = vmatpush1.bf16.xpose.msra.mxu0 0
        %2338 = vmatprep.subr.bf16.mxu0 0
        %2339 = vmatpush1.bf16.xpose.msra.mxu0 0
        %2340 = vmatprep.subr.bf16.mxu0 0
        %2341 = vmatpush1.bf16.xpose.msra.mxu0 0
        %2342 = vmatprep.subr.bf16.mxu0 0
        %2343 = vmatpush1.bf16.xpose.msra.mxu0 0
        %2344 = vmatprep.subr.bf16.mxu0 0
        %2345 = vmatpush1.bf16.xpose.msra.mxu0 0
        %2346 = vmatprep.subr.bf16.mxu0 0
        %2347 = vmatpush1.bf16.xpose.msra.mxu0 0
        %2348 = vmatprep.subr.bf16.mxu0 0
        %2349 = vmatpush1.bf16.xpose.msra.mxu0 0
        %2350 = vmatprep.subr.bf16.mxu0 0
        %2351 = vmatpush1.bf16.xpose.msra.mxu0 0
        %2352 = vmatprep.subr.bf16.mxu0 0
        %2353 = vmatpush1.bf16.xpose.msra.mxu0 0
        %2354 = vmatprep.mubr.bf16.mxu0 0
        %2355 = vmatmul.mubr.bf16.gmra.mrb[0].mxu0 %v2317
        %v2356 = vpop.f32.mrb[0].mxu0
        %v2357 = vadd.f32 0.0, %v2356
        %v2358 = vpop.f32.mrb[0].mxu0
        %v2359 = vpop.f32.mrb[0].mxu0
        %v2360 = vadd.f32 0.0, %v2359
        %v2361 = vpop.f32.mrb[0].mxu0
        %2362 = vdwg.mxu0
        %v2363 = vsel %vm2145, %v2357, -1e+30
        %v2364 = vsel %vm2146, %v2360, -1e+30
        %v2365 = vsel %vm2149, %v2363, -inf
        %2366 = vmax.xlane.f32.xlu0 %v2365
        %v2367 = vpop.xlane.xlu0 %2366
        %v2368 = vsel %vm2149, %v2364, -inf
        %2369 = vmax.xlane.f32.xlu0 %v2368
        %v2370 = vpop.xlane.xlu0 %2369
        %v2371 = vmul.f32 %v2357, %v2093
        %v2372 = vmul.f32 %v2360, %v2094
        %v2373 = vsel %vm2149, %v2371, 0.0
        %2374 = vadd.xlane.f32.xlu0 %v2373
        %v2375 = vpop.xlane.xlu0 %2374
        %v2376 = vsel %vm2149, %v2372, 0.0
        %2377 = vadd.xlane.f32.xlu0 %v2376
        %v2378 = vpop.xlane.xlu0 %2377
        %v2379 = vmul.f32 %v2375, 0.0625
        %v2380 = vmul.f32 %v2378, 0.0625
        %v2381 = vsub.f32 %v2367, %v2379
        %v2382 = vsub.f32 %v2370, %v2380
        %v2383 = vpack.c.bf16 %v1991, %v1987
        %v2384 = vpack.c.bf16 %v2034, %v2030
        %v2386 = vsel %vm2097, %v2383, 0
        %v2389 = vsel %vm2097, %v2384, 0
        %2391 = vmatprep.subr.bf16.mxu0 0
        %2392 = vmatpush1.bf16.xpose.msra.mxu0 %v2389
        %2393 = vmatprep.subr.bf16.mxu0 0
        %2394 = vmatpush1.bf16.xpose.msra.mxu0 0
        %2395 = vmatprep.subr.bf16.mxu0 0
        %2396 = vmatpush1.bf16.xpose.msra.mxu0 0
        %2397 = vmatprep.subr.bf16.mxu0 0
        %2398 = vmatpush1.bf16.xpose.msra.mxu0 0
        %2399 = vmatprep.subr.bf16.mxu0 0
        %2400 = vmatpush1.bf16.xpose.msra.mxu0 0
        %2401 = vmatprep.subr.bf16.mxu0 0
        %2402 = vmatpush1.bf16.xpose.msra.mxu0 0
        %2403 = vmatprep.subr.bf16.mxu0 0
        %2404 = vmatpush1.bf16.xpose.msra.mxu0 0
        %2405 = vmatprep.subr.bf16.mxu0 0
        %2406 = vmatpush1.bf16.xpose.msra.mxu0 0
        %2407 = vmatprep.subr.bf16.mxu0 0
        %2408 = vmatpush1.bf16.xpose.msra.mxu0 0
        %2409 = vmatprep.subr.bf16.mxu0 0
        %2410 = vmatpush1.bf16.xpose.msra.mxu0 0
        %2411 = vmatprep.subr.bf16.mxu0 0
        %2412 = vmatpush1.bf16.xpose.msra.mxu0 0
        %2413 = vmatprep.subr.bf16.mxu0 0
        %2414 = vmatpush1.bf16.xpose.msra.mxu0 0
        %2415 = vmatprep.subr.bf16.mxu0 0
        %2416 = vmatpush1.bf16.xpose.msra.mxu0 0
        %2417 = vmatprep.subr.bf16.mxu0 0
        %2418 = vmatpush1.bf16.xpose.msra.mxu0 0
        %2419 = vmatprep.subr.bf16.mxu0 0
        %2420 = vmatpush1.bf16.xpose.msra.mxu0 0
        %2421 = vmatprep.subr.bf16.mxu0 0
        %2422 = vmatpush1.bf16.xpose.msra.mxu0 0
        %2423 = vmatprep.mubr.bf16.mxu0 0
        %2424 = vmatmul.mubr.bf16.gmra.mrb[0].mxu0 %v2386
        %v2425 = vpop.f32.mrb[0].mxu0
        %v2426 = vadd.f32 0.0, %v2425
        %v2427 = vpop.f32.mrb[0].mxu0
        %v2428 = vpop.f32.mrb[0].mxu0
        %v2429 = vadd.f32 0.0, %v2428
        %v2430 = vpop.f32.mrb[0].mxu0
        %2431 = vdwg.mxu0
        %v2432 = vsel %vm2145, %v2426, -1e+30
        %v2433 = vsel %vm2146, %v2429, -1e+30
        %v2434 = vsel %vm2149, %v2432, -inf
        %2435 = vmax.xlane.f32.xlu0 %v2434
        %v2436 = vpop.xlane.xlu0 %2435
        %v2437 = vsel %vm2149, %v2433, -inf
        %2438 = vmax.xlane.f32.xlu0 %v2437
        %v2439 = vpop.xlane.xlu0 %2438
        %v2440 = vmul.f32 %v2426, %v2093
        %v2441 = vmul.f32 %v2429, %v2094
        %v2442 = vsel %vm2149, %v2440, 0.0
        %2443 = vadd.xlane.f32.xlu0 %v2442
        %v2444 = vpop.xlane.xlu0 %2443
        %v2445 = vsel %vm2149, %v2441, 0.0
        %2446 = vadd.xlane.f32.xlu0 %v2445
        %v2447 = vpop.xlane.xlu0 %2446
        %v2448 = vmul.f32 %v2444, 0.0625
        %v2449 = vmul.f32 %v2447, 0.0625
        %v2450 = vsub.f32 %v2436, %v2448
        %v2451 = vsub.f32 %v2439, %v2449
        %2453 = vrot.lane.b32.xlu0 %v2383, 96
        %v2454 = vpop.permute.xlu0 %2453
        %2456 = vrot.lane.b32.xlu0 %v2384, 96
        %v2457 = vpop.permute.xlu0 %2456
        %v2459 = vsel %vm2097, %v2454, 0
        %v2462 = vsel %vm2097, %v2457, 0
        %2464 = vmatprep.subr.bf16.mxu0 0
        %2465 = vmatpush1.bf16.xpose.msra.mxu0 %v2462
        %2466 = vmatprep.subr.bf16.mxu0 0
        %2467 = vmatpush1.bf16.xpose.msra.mxu0 0
        %2468 = vmatprep.subr.bf16.mxu0 0
        %2469 = vmatpush1.bf16.xpose.msra.mxu0 0
        %2470 = vmatprep.subr.bf16.mxu0 0
        %2471 = vmatpush1.bf16.xpose.msra.mxu0 0
        %2472 = vmatprep.subr.bf16.mxu0 0
        %2473 = vmatpush1.bf16.xpose.msra.mxu0 0
        %2474 = vmatprep.subr.bf16.mxu0 0
        %2475 = vmatpush1.bf16.xpose.msra.mxu0 0
        %2476 = vmatprep.subr.bf16.mxu0 0
        %2477 = vmatpush1.bf16.xpose.msra.mxu0 0
        %2478 = vmatprep.subr.bf16.mxu0 0
        %2479 = vmatpush1.bf16.xpose.msra.mxu0 0
        %2480 = vmatprep.subr.bf16.mxu0 0
        %2481 = vmatpush1.bf16.xpose.msra.mxu0 0
        %2482 = vmatprep.subr.bf16.mxu0 0
        %2483 = vmatpush1.bf16.xpose.msra.mxu0 0
        %2484 = vmatprep.subr.bf16.mxu0 0
        %2485 = vmatpush1.bf16.xpose.msra.mxu0 0
        %2486 = vmatprep.subr.bf16.mxu0 0
        %2487 = vmatpush1.bf16.xpose.msra.mxu0 0
        %2488 = vmatprep.subr.bf16.mxu0 0
        %2489 = vmatpush1.bf16.xpose.msra.mxu0 0
        %2490 = vmatprep.subr.bf16.mxu0 0
        %2491 = vmatpush1.bf16.xpose.msra.mxu0 0
        %2492 = vmatprep.subr.bf16.mxu0 0
        %2493 = vmatpush1.bf16.xpose.msra.mxu0 0
        %2494 = vmatprep.subr.bf16.mxu0 0
        %2495 = vmatpush1.bf16.xpose.msra.mxu0 0
        %2496 = vmatprep.mubr.bf16.mxu0 0
        %2497 = vmatmul.mubr.bf16.gmra.mrb[0].mxu0 %v2459
        %v2498 = vpop.f32.mrb[0].mxu0
        %v2499 = vadd.f32 0.0, %v2498
        %v2500 = vpop.f32.mrb[0].mxu0
        %v2501 = vpop.f32.mrb[0].mxu0
        %v2502 = vadd.f32 0.0, %v2501
        %v2503 = vpop.f32.mrb[0].mxu0
        %2504 = vdwg.mxu0
        %v2505 = vsel %vm2145, %v2499, -1e+30
        %v2506 = vsel %vm2146, %v2502, -1e+30
        %v2507 = vsel %vm2149, %v2505, -inf
        %2508 = vmax.xlane.f32.xlu0 %v2507
        %v2509 = vpop.xlane.xlu0 %2508
        %v2510 = vsel %vm2149, %v2506, -inf
        %2511 = vmax.xlane.f32.xlu0 %v2510
        %v2512 = vpop.xlane.xlu0 %2511
        %v2513 = vmul.f32 %v2499, %v2093
        %v2514 = vmul.f32 %v2502, %v2094
        %v2515 = vsel %vm2149, %v2513, 0.0
        %2516 = vadd.xlane.f32.xlu0 %v2515
        %v2517 = vpop.xlane.xlu0 %2516
        %v2518 = vsel %vm2149, %v2514, 0.0
        %2519 = vadd.xlane.f32.xlu0 %v2518
        %v2520 = vpop.xlane.xlu0 %2519
        %v2521 = vmul.f32 %v2517, 0.0625
        %v2522 = vmul.f32 %v2520, 0.0625
        %v2523 = vsub.f32 %v2509, %v2521
        %v2524 = vsub.f32 %v2512, %v2522
        %2525 = vrot.lane.b32.xlu0 %v2383, 64
        %v2526 = vpop.permute.xlu0 %2525
        %2527 = vrot.lane.b32.xlu0 %v2384, 64
        %v2528 = vpop.permute.xlu0 %2527
        %v2530 = vsel %vm2097, %v2526, 0
        %v2533 = vsel %vm2097, %v2528, 0
        %2535 = vmatprep.subr.bf16.mxu0 0
        %2536 = vmatpush1.bf16.xpose.msra.mxu0 %v2533
        %2537 = vmatprep.subr.bf16.mxu0 0
        %2538 = vmatpush1.bf16.xpose.msra.mxu0 0
        %2539 = vmatprep.subr.bf16.mxu0 0
        %2540 = vmatpush1.bf16.xpose.msra.mxu0 0
        %2541 = vmatprep.subr.bf16.mxu0 0
        %2542 = vmatpush1.bf16.xpose.msra.mxu0 0
        %2543 = vmatprep.subr.bf16.mxu0 0
        %2544 = vmatpush1.bf16.xpose.msra.mxu0 0
        %2545 = vmatprep.subr.bf16.mxu0 0
        %2546 = vmatpush1.bf16.xpose.msra.mxu0 0
        %2547 = vmatprep.subr.bf16.mxu0 0
        %2548 = vmatpush1.bf16.xpose.msra.mxu0 0
        %2549 = vmatprep.subr.bf16.mxu0 0
        %2550 = vmatpush1.bf16.xpose.msra.mxu0 0
        %2551 = vmatprep.subr.bf16.mxu0 0
        %2552 = vmatpush1.bf16.xpose.msra.mxu0 0
        %2553 = vmatprep.subr.bf16.mxu0 0
        %2554 = vmatpush1.bf16.xpose.msra.mxu0 0
        %2555 = vmatprep.subr.bf16.mxu0 0
        %2556 = vmatpush1.bf16.xpose.msra.mxu0 0
        %2557 = vmatprep.subr.bf16.mxu0 0
        %2558 = vmatpush1.bf16.xpose.msra.mxu0 0
        %2559 = vmatprep.subr.bf16.mxu0 0
        %2560 = vmatpush1.bf16.xpose.msra.mxu0 0
        %2561 = vmatprep.subr.bf16.mxu0 0
        %2562 = vmatpush1.bf16.xpose.msra.mxu0 0
        %2563 = vmatprep.subr.bf16.mxu0 0
        %2564 = vmatpush1.bf16.xpose.msra.mxu0 0
        %2565 = vmatprep.subr.bf16.mxu0 0
        %2566 = vmatpush1.bf16.xpose.msra.mxu0 0
        %2567 = vmatprep.mubr.bf16.mxu0 0
        %2568 = vmatmul.mubr.bf16.gmra.mrb[0].mxu0 %v2530
        %v2569 = vpop.f32.mrb[0].mxu0
        %v2570 = vadd.f32 0.0, %v2569
        %v2571 = vpop.f32.mrb[0].mxu0
        %v2572 = vpop.f32.mrb[0].mxu0
        %v2573 = vadd.f32 0.0, %v2572
        %v2574 = vpop.f32.mrb[0].mxu0
        %2575 = vdwg.mxu0
        %v2576 = vsel %vm2145, %v2570, -1e+30
        %v2577 = vsel %vm2146, %v2573, -1e+30
        %v2578 = vsel %vm2149, %v2576, -inf
        %2579 = vmax.xlane.f32.xlu0 %v2578
        %v2580 = vpop.xlane.xlu0 %2579
        %v2581 = vsel %vm2149, %v2577, -inf
        %2582 = vmax.xlane.f32.xlu0 %v2581
        %v2583 = vpop.xlane.xlu0 %2582
        %v2584 = vmul.f32 %v2570, %v2093
        %v2585 = vmul.f32 %v2573, %v2094
        %v2586 = vsel %vm2149, %v2584, 0.0
        %2587 = vadd.xlane.f32.xlu0 %v2586
        %v2588 = vpop.xlane.xlu0 %2587
        %v2589 = vsel %vm2149, %v2585, 0.0
        %2590 = vadd.xlane.f32.xlu0 %v2589
        %v2591 = vpop.xlane.xlu0 %2590
        %v2592 = vmul.f32 %v2588, 0.0625
        %v2593 = vmul.f32 %v2591, 0.0625
        %v2594 = vsub.f32 %v2580, %v2592
        %v2595 = vsub.f32 %v2583, %v2593
        %2596 = vrot.lane.b32.xlu0 %v2383, 32
        %v2597 = vpop.permute.xlu0 %2596
        %2598 = vrot.lane.b32.xlu0 %v2384, 32
        %v2599 = vpop.permute.xlu0 %2598
        %v2601 = vsel %vm2097, %v2597, 0
        %v2604 = vsel %vm2097, %v2599, 0
        %2606 = vmatprep.subr.bf16.mxu0 0
        %2607 = vmatpush1.bf16.xpose.msra.mxu0 %v2604
        %2608 = vmatprep.subr.bf16.mxu0 0
        %2609 = vmatpush1.bf16.xpose.msra.mxu0 0
        %2610 = vmatprep.subr.bf16.mxu0 0
        %2611 = vmatpush1.bf16.xpose.msra.mxu0 0
        %2612 = vmatprep.subr.bf16.mxu0 0
        %2613 = vmatpush1.bf16.xpose.msra.mxu0 0
        %2614 = vmatprep.subr.bf16.mxu0 0
        %2615 = vmatpush1.bf16.xpose.msra.mxu0 0
        %2616 = vmatprep.subr.bf16.mxu0 0
        %2617 = vmatpush1.bf16.xpose.msra.mxu0 0
        %2618 = vmatprep.subr.bf16.mxu0 0
        %2619 = vmatpush1.bf16.xpose.msra.mxu0 0
        %2620 = vmatprep.subr.bf16.mxu0 0
        %2621 = vmatpush1.bf16.xpose.msra.mxu0 0
        %2622 = vmatprep.subr.bf16.mxu0 0
        %2623 = vmatpush1.bf16.xpose.msra.mxu0 0
        %2624 = vmatprep.subr.bf16.mxu0 0
        %2625 = vmatpush1.bf16.xpose.msra.mxu0 0
        %2626 = vmatprep.subr.bf16.mxu0 0
        %2627 = vmatpush1.bf16.xpose.msra.mxu0 0
        %2628 = vmatprep.subr.bf16.mxu0 0
        %2629 = vmatpush1.bf16.xpose.msra.mxu0 0
        %2630 = vmatprep.subr.bf16.mxu0 0
        %2631 = vmatpush1.bf16.xpose.msra.mxu0 0
        %2632 = vmatprep.subr.bf16.mxu0 0
        %2633 = vmatpush1.bf16.xpose.msra.mxu0 0
        %2634 = vmatprep.subr.bf16.mxu0 0
        %2635 = vmatpush1.bf16.xpose.msra.mxu0 0
        %2636 = vmatprep.subr.bf16.mxu0 0
        %2637 = vmatpush1.bf16.xpose.msra.mxu0 0
        %2638 = vmatprep.mubr.bf16.mxu0 0
        %2639 = vmatmul.mubr.bf16.gmra.mrb[0].mxu0 %v2601
        %v2640 = vpop.f32.mrb[0].mxu0
        %v2641 = vadd.f32 0.0, %v2640
        %v2642 = vpop.f32.mrb[0].mxu0
        %v2643 = vpop.f32.mrb[0].mxu0
        %v2644 = vadd.f32 0.0, %v2643
        %v2645 = vpop.f32.mrb[0].mxu0
        %2646 = vdwg.mxu0
        %v2647 = vsel %vm2145, %v2641, -1e+30
        %v2648 = vsel %vm2146, %v2644, -1e+30
        %v2649 = vsel %vm2149, %v2647, -inf
        %2650 = vmax.xlane.f32.xlu0 %v2649
        %v2651 = vpop.xlane.xlu0 %2650
        %v2652 = vsel %vm2149, %v2648, -inf
        %2653 = vmax.xlane.f32.xlu0 %v2652
        %v2654 = vpop.xlane.xlu0 %2653
        %v2655 = vmul.f32 %v2641, %v2093
        %v2656 = vmul.f32 %v2644, %v2094
        %v2657 = vsel %vm2149, %v2655, 0.0
        %2658 = vadd.xlane.f32.xlu0 %v2657
        %v2659 = vpop.xlane.xlu0 %2658
        %v2660 = vsel %vm2149, %v2656, 0.0
        %2661 = vadd.xlane.f32.xlu0 %v2660
        %v2662 = vpop.xlane.xlu0 %2661
        %v2663 = vmul.f32 %v2659, 0.0625
        %v2664 = vmul.f32 %v2662, 0.0625
        %v2665 = vsub.f32 %v2651, %v2663
        %v2666 = vsub.f32 %v2654, %v2664
        %vm2667 = vcmask 7168
        %v2668 = vsel %vm2667, %v2166, %v2239
        %v2669 = vsel %vm2667, %v2167, %v2240
        %vm2670 = vcmask 15360
        %v2671 = vsel %vm2670, %v2668, %v2310
        %v2672 = vsel %vm2670, %v2669, %v2311
        %vm2673 = vcmask 23552
        %v2674 = vsel %vm2673, %v2671, %v2381
        %v2675 = vsel %vm2673, %v2672, %v2382
        %vm2676 = vcmask 31744
        %v2677 = vsel %vm2676, %v2674, %v2450
        %v2678 = vsel %vm2676, %v2675, %v2451
        %vm2679 = vcmask 39936
        %v2680 = vsel %vm2679, %v2677, %v2523
        %v2681 = vsel %vm2679, %v2678, %v2524
        %vm2682 = vcmask 48128
        %v2683 = vsel %vm2682, %v2680, %v2594
        %v2684 = vsel %vm2682, %v2681, %v2595
        %vm2685 = vcmask 56320
        %v2686 = vsel %vm2685, %v2683, %v2665
        %v2687 = vsel %vm2685, %v2684, %v2666
        %2688 = vst.msk [vmem:[%s453] sm:$0xff] %vm479, %v2686
        %2689 = vst.msk [vmem:[%s453 + $0x8] sm:$0xff] %vm479, %v2687
        %p2690 = scmp.lt.s32.totalorder %s25, 1
        %s2691 = scalar_select %p2690, %s25, 1
        %s2692 = smul.addr %s2691, 4
        %s2693 = smul.addr %s2692, 8
        %s2694 = scalar_lea.vmem %s10, %s2693
        %p2695 = scmp.lt.s32.totalorder %s25, 1
        %s2696 = scalar_select %p2695, %s25, 1
        %s2697 = smul.addr %s2696, 12
        %s2698 = smul.addr %s2697, 8
        %s2699 = scalar_lea.vmem %s11, %s2698
        %p2700 = scmp.lt.s32.totalorder %s25, 1
        %s2701 = scalar_select %p2700, %s25, 1
        %s2702 = smul.addr %s2701, 2
        %s2703 = smul.addr %s2702, 8
        %s2704 = scalar_lea.vmem %s12, %s2703
        // Predicated region
        $region65: #{trajectory_decoder_forward.3} parent=59 // pred_check
          %p2705 = pneg %p258
        $region66: #{trajectory_decoder_forward.3} parent=59 // pred_check_branch
          %2707 = sbr.rel (%p2705) target = $region68
        $region67: #{trajectory_decoder_forward.3} parent=59 // pred_region
          _
        $region68: #{trajectory_decoder_forward.3} parent=59 // pred_fallthru
          _
        // Predicated region
        $region69: #{trajectory_decoder_forward.3} parent=59 // pred_check
          %p2708 = pneg %p284
        $region70: #{trajectory_decoder_forward.3} parent=59 // pred_check_branch
          %2710 = sbr.rel (%p2708) target = $region72
        $region71: #{trajectory_decoder_forward.3} parent=59 // pred_region
          _
        $region72: #{trajectory_decoder_forward.3} parent=59 // pred_fallthru
          _
        // Predicated region
        $region73: #{trajectory_decoder_forward.3} parent=59 // pred_check
          %p2711 = pneg %p310
        $region74: #{trajectory_decoder_forward.3} parent=59 // pred_check_branch
          %2713 = sbr.rel (%p2711) target = $region76
        $region75: #{trajectory_decoder_forward.3} parent=59 // pred_region
          _
        $region76: #{trajectory_decoder_forward.3} parent=59 // pred_fallthru
          _
      $region60: #{trajectory_decoder_forward.3} parent=5 // pred_fallthru
        _
      %p2714 = scmp.le.s32.totalorder 2, %s20
      // Predicated region
      $region77: #{trajectory_decoder_forward.3} parent=5 // pred_check
        %p2715 = pneg %p2714
      $region78: #{trajectory_decoder_forward.3} parent=5 // pred_check_branch
        %2717 = sbr.rel (%p2715) target = $region80
      $region79: #{trajectory_decoder_forward.3} parent=5 // pred_region
        %s2718 = ssub.s32 %s20, 2
        // Predicated region
        $region81: #{trajectory_decoder_forward.3} parent=79 // pred_check
          %p2719 = pneg %p264
        $region82: #{trajectory_decoder_forward.3} parent=79 // pred_check_branch
          %2721 = sbr.rel (%p2719) target = $region84
        $region83: #{trajectory_decoder_forward.3} parent=79 // pred_region
          %p2722 = scmp.lt.s32.totalorder %s26, 1
          %s2723 = scalar_select %p2722, %s26, 1
          %s2724 = smul.addr %s2723, 4
          %s2725 = smul.addr %s2724, 8
          %s2726 = scalar_lea.vmem %s10, %s2725
        $region84: #{trajectory_decoder_forward.3} parent=79 // pred_fallthru
          _
        // Predicated region
        $region85: #{trajectory_decoder_forward.3} parent=79 // pred_check
          %p2727 = pneg %p290
        $region86: #{trajectory_decoder_forward.3} parent=79 // pred_check_branch
          %2729 = sbr.rel (%p2727) target = $region88
        $region87: #{trajectory_decoder_forward.3} parent=79 // pred_region
          %p2730 = scmp.lt.s32.totalorder %s26, 1
          %s2731 = scalar_select %p2730, %s26, 1
          %s2732 = smul.addr %s2731, 12
          %s2733 = smul.addr %s2732, 8
          %s2734 = scalar_lea.vmem %s11, %s2733
        $region88: #{trajectory_decoder_forward.3} parent=79 // pred_fallthru
          _
        // Predicated region
        $region89: #{trajectory_decoder_forward.3} parent=79 // pred_check
          %p2735 = pneg %p316
        $region90: #{trajectory_decoder_forward.3} parent=79 // pred_check_branch
          %2737 = sbr.rel (%p2735) target = $region92
        $region91: #{trajectory_decoder_forward.3} parent=79 // pred_region
          %p2738 = scmp.lt.s32.totalorder %s26, 1
          %s2739 = scalar_select %p2738, %s26, 1
          %s2740 = smul.addr %s2739, 2
          %s2741 = smul.addr %s2740, 8
          %s2742 = scalar_lea.vmem %s12, %s2741
        $region92: #{trajectory_decoder_forward.3} parent=79 // pred_fallthru
          _
      $region80: #{trajectory_decoder_forward.3} parent=5 // pred_fallthru
        _
    $region6: #{trajectory_decoder_forward.3} parent=1 // loop_footer
      %s24 = sadd.s32 1, %s20
    $region7: #{trajectory_decoder_forward.3} parent=1 // loop_footer_branch
      %19 = sbr.rel target = $region3
    $region8: #{trajectory_decoder_forward.3} parent=1 // loop_exit
      _
    %2743 = vsyncpa [#allocation3], 1
    %s2744 = scalar_lea.sflag [#allocation3], 1
    %2745 = vsyncpa %s2744, 1

// kernel: trajectory_decoder_forward.5
$region0: #{trajectory_decoder_forward.5}
  #allocation0 [shape = 'u32[]', space=smem, size = 0x4, offset = 0x4, fixed_abs, tag = 'smem constant byte address 0x4 - core index']
  #allocation1 [shape = 'u32[144,128]{1,0:T(1,128)}', space=vmem, size = 0x12000, scoped, tag = 'internal scratch']
  %s0 = inlined_call_operand.vmem [shape: f32[2,16,256], index: 0, kind: input, shape index: {}]
  %s1 = inlined_call_operand.vmem [shape: f32[2,16,256], index: 1, kind: input, shape index: {}]
  %s2 = inlined_call_operand.vmem [shape: bf16[256,256], index: 2, kind: input, shape index: {}]
  %s3 = inlined_call_operand.vmem [shape: f32[1,256], index: 3, kind: input, shape index: {}]
  %s4 = inlined_call_operand.vmem [shape: bf16[256,512], index: 4, kind: input, shape index: {}]
  %s5 = inlined_call_operand.vmem [shape: f32[1,512], index: 5, kind: input, shape index: {}]
  %s6 = inlined_call_operand.vmem [shape: bf16[256,256], index: 6, kind: input, shape index: {}]
  %s7 = inlined_call_operand.vmem [shape: f32[1,256], index: 7, kind: input, shape index: {}]
  %s8 = inlined_call_operand.vmem [shape: f32[6,256], index: 8, kind: input, shape index: {}]
  %s9 = inlined_call_operand.vmem [shape: bf16[256,256], index: 9, kind: input, shape index: {}]
  %s10 = inlined_call_operand.vmem [shape: f32[1,256], index: 10, kind: input, shape index: {}]
  %s11 = inlined_call_operand.vmem [shape: bf16[256,256], index: 11, kind: input, shape index: {}]
  %s12 = inlined_call_operand.vmem [shape: f32[1,256], index: 12, kind: input, shape index: {}]
  %s13 = inlined_call_operand.vmem [shape: f32[256,2], index: 13, kind: input, shape index: {}]
  %s14 = inlined_call_operand.vmem [shape: f32[1,2], index: 14, kind: input, shape index: {}]
  %s15 = inlined_call_operand.vmem [shape: f32[2,16,2], index: 15, kind: output, shape index: {}]
  %s16 = sld [smem:[#allocation0]]
  $region93: #{trajectory_decoder_forward.5} parent=0
    _
  %s18 = ssub.s32 1, %s16
  %s19 = scalar_select 0, %s18, %s16
  loop: start=0, step=1, limit=4
  $region2: #{trajectory_decoder_forward.5} parent=0 // loop_pre_header
    _
  $region3: #{trajectory_decoder_forward.5} parent=0 // loop_header
    %s21 = sphi 0, %s25
    %p22 = scmp.ge.s32.totalorder %s21, 4
    %s31 = sphi 0, %s33
    %s34 = sphi 0, %s31
    %s35 = sphi 0, %s34
    %s51 = sphi 0, %s35
    %s57 = sphi 0, %s59
    %s60 = sphi 0, %s57
    %s61 = sphi 0, %s60
    %s77 = sphi 0, %s61
    %s81 = sphi 0, %s81
    %s83 = sphi 0, %s81
    %s84 = sphi 0, %s83
    %s98 = sphi 0, %s84
    %s102 = sphi 0, %s102
    %s104 = sphi 0, %s102
    %s105 = sphi 0, %s104
    %s119 = sphi 0, %s105
    %s123 = sphi 0, %s123
    %s125 = sphi 0, %s123
    %s126 = sphi 0, %s125
    %s140 = sphi 0, %s126
    %s144 = sphi 0, %s144
    %s146 = sphi 0, %s144
    %s147 = sphi 0, %s146
    %s161 = sphi 0, %s147
    %s165 = sphi 0, %s165
    %s167 = sphi 0, %s165
    %s168 = sphi 0, %s167
    %s182 = sphi 0, %s168
    %s186 = sphi 0, %s186
    %s188 = sphi 0, %s186
    %s189 = sphi 0, %s188
    %s203 = sphi 0, %s189
    %s207 = sphi 0, %s207
    %s209 = sphi 0, %s207
    %s210 = sphi 0, %s209
    %s224 = sphi 0, %s210
    %s228 = sphi 0, %s228
    %s230 = sphi 0, %s228
    %s231 = sphi 0, %s230
    %s245 = sphi 0, %s231
    %s249 = sphi 0, %s249
    %s251 = sphi 0, %s249
    %s252 = sphi 0, %s251
    %s266 = sphi 0, %s252
    %s270 = sphi 0, %s270
    %s272 = sphi 0, %s270
    %s273 = sphi 0, %s272
    %s287 = sphi 0, %s273
    %s291 = sphi 0, %s291
    %s293 = sphi 0, %s291
    %s294 = sphi 0, %s293
    %s308 = sphi 0, %s294
    %s312 = sphi 0, %s312
    %s314 = sphi 0, %s312
    %s315 = sphi 0, %s314
    %s329 = sphi 0, %s315
    %s333 = sphi 0, %s333
    %s335 = sphi 0, %s333
    %s336 = sphi 0, %s335
    %s350 = sphi 0, %s336
    %s356 = sphi 0, %s358
    %s359 = sphi 0, %s356
    %s360 = sphi 0, %s359
    %s376 = sphi 0, %s360
  $region4: #{trajectory_decoder_forward.5} parent=0 // loop_header_branch
    %24 = sbr.rel (%p22) target = $region8
  $region5: #{trajectory_decoder_forward.5} parent=0 // loop_body
    %s26 = ssub.s32 %s21, 1
    %s27 = ssub.s32 %s21, 2
    %s28 = sadd.s32 %s21, 1
    %s29 = ssub.s32 %s21, %s28
    %p30 = scmp.eq.s32.totalorder %s29, 0
    %s32 = sadd.s32 %s31, 1
    %s33 = scalar_select %p30, %s31, %s32
    %p36 = pneg %p30
    %p37 = scmp.eq.s32.totalorder %s21, 1
    %p38 = por %p36, %p37
    %p39 = scmp.ne.s32.totalorder %s31, %s34
    %p40 = scmp.eq.s32.totalorder %s21, 0
    %p41 = por %p39, %p40
    %p42 = scmp.ne.s32.totalorder %s31, %s34
    %p43 = scmp.eq.s32.totalorder %s26, 1
    %p44 = por %p42, %p43
    %p45 = scmp.ne.s32.totalorder %s34, %s35
    %p46 = scmp.eq.s32.totalorder %s26, 0
    %p47 = por %p45, %p46
    %p48 = scmp.ne.s32.totalorder %s34, %s35
    %p49 = scmp.eq.s32.totalorder %s27, 1
    %p50 = por %p48, %p49
    %p52 = scmp.ne.s32.totalorder %s35, %s51
    %p53 = scmp.eq.s32.totalorder %s27, 0
    %p54 = por %p52, %p53
    %s55 = ssub.s32 %s21, %s28
    %p56 = scmp.eq.s32.totalorder %s55, 0
    %s58 = sadd.s32 %s57, 1
    %s59 = scalar_select %p56, %s57, %s58
    %p62 = pneg %p56
    %p63 = scmp.eq.s32.totalorder %s21, 1
    %p64 = por %p62, %p63
    %p65 = scmp.ne.s32.totalorder %s57, %s60
    %p66 = scmp.eq.s32.totalorder %s21, 0
    %p67 = por %p65, %p66
    %p68 = scmp.ne.s32.totalorder %s57, %s60
    %p69 = scmp.eq.s32.totalorder %s26, 1
    %p70 = por %p68, %p69
    %p71 = scmp.ne.s32.totalorder %s60, %s61
    %p72 = scmp.eq.s32.totalorder %s26, 0
    %p73 = por %p71, %p72
    %p74 = scmp.ne.s32.totalorder %s60, %s61
    %p75 = scmp.eq.s32.totalorder %s27, 1
    %p76 = por %p74, %p75
    %p78 = scmp.ne.s32.totalorder %s61, %s77
    %p79 = scmp.eq.s32.totalorder %s27, 0
    %p80 = por %p78, %p79
    %s82 = sadd.s32 %s81, 1
    %p85 = scmp.eq.s32.totalorder %s21, 1
    %p86 = scmp.ne.s32.totalorder %s81, %s83
    %p87 = scmp.eq.s32.totalorder %s21, 0
    %p88 = por %p86, %p87
    %p89 = scmp.ne.s32.totalorder %s81, %s83
    %p90 = scmp.eq.s32.totalorder %s26, 1
    %p91 = por %p89, %p90
    %p92 = scmp.ne.s32.totalorder %s83, %s84
    %p93 = scmp.eq.s32.totalorder %s26, 0
    %p94 = por %p92, %p93
    %p95 = scmp.ne.s32.totalorder %s83, %s84
    %p96 = scmp.eq.s32.totalorder %s27, 1
    %p97 = por %p95, %p96
    %p99 = scmp.ne.s32.totalorder %s84, %s98
    %p100 = scmp.eq.s32.totalorder %s27, 0
    %p101 = por %p99, %p100
    %s103 = sadd.s32 %s102, 1
    %p106 = scmp.eq.s32.totalorder %s21, 1
    %p107 = scmp.ne.s32.totalorder %s102, %s104
    %p108 = scmp.eq.s32.totalorder %s21, 0
    %p109 = por %p107, %p108
    %p110 = scmp.ne.s32.totalorder %s102, %s104
    %p111 = scmp.eq.s32.totalorder %s26, 1
    %p112 = por %p110, %p111
    %p113 = scmp.ne.s32.totalorder %s104, %s105
    %p114 = scmp.eq.s32.totalorder %s26, 0
    %p115 = por %p113, %p114
    %p116 = scmp.ne.s32.totalorder %s104, %s105
    %p117 = scmp.eq.s32.totalorder %s27, 1
    %p118 = por %p116, %p117
    %p120 = scmp.ne.s32.totalorder %s105, %s119
    %p121 = scmp.eq.s32.totalorder %s27, 0
    %p122 = por %p120, %p121
    %s124 = sadd.s32 %s123, 1
    %p127 = scmp.eq.s32.totalorder %s21, 1
    %p128 = scmp.ne.s32.totalorder %s123, %s125
    %p129 = scmp.eq.s32.totalorder %s21, 0
    %p130 = por %p128, %p129
    %p131 = scmp.ne.s32.totalorder %s123, %s125
    %p132 = scmp.eq.s32.totalorder %s26, 1
    %p133 = por %p131, %p132
    %p134 = scmp.ne.s32.totalorder %s125, %s126
    %p135 = scmp.eq.s32.totalorder %s26, 0
    %p136 = por %p134, %p135
    %p137 = scmp.ne.s32.totalorder %s125, %s126
    %p138 = scmp.eq.s32.totalorder %s27, 1
    %p139 = por %p137, %p138
    %p141 = scmp.ne.s32.totalorder %s126, %s140
    %p142 = scmp.eq.s32.totalorder %s27, 0
    %p143 = por %p141, %p142
    %s145 = sadd.s32 %s144, 1
    %p148 = scmp.eq.s32.totalorder %s21, 1
    %p149 = scmp.ne.s32.totalorder %s144, %s146
    %p150 = scmp.eq.s32.totalorder %s21, 0
    %p151 = por %p149, %p150
    %p152 = scmp.ne.s32.totalorder %s144, %s146
    %p153 = scmp.eq.s32.totalorder %s26, 1
    %p154 = por %p152, %p153
    %p155 = scmp.ne.s32.totalorder %s146, %s147
    %p156 = scmp.eq.s32.totalorder %s26, 0
    %p157 = por %p155, %p156
    %p158 = scmp.ne.s32.totalorder %s146, %s147
    %p159 = scmp.eq.s32.totalorder %s27, 1
    %p160 = por %p158, %p159
    %p162 = scmp.ne.s32.totalorder %s147, %s161
    %p163 = scmp.eq.s32.totalorder %s27, 0
    %p164 = por %p162, %p163
    %s166 = sadd.s32 %s165, 1
    %p169 = scmp.eq.s32.totalorder %s21, 1
    %p170 = scmp.ne.s32.totalorder %s165, %s167
    %p171 = scmp.eq.s32.totalorder %s21, 0
    %p172 = por %p170, %p171
    %p173 = scmp.ne.s32.totalorder %s165, %s167
    %p174 = scmp.eq.s32.totalorder %s26, 1
    %p175 = por %p173, %p174
    %p176 = scmp.ne.s32.totalorder %s167, %s168
    %p177 = scmp.eq.s32.totalorder %s26, 0
    %p178 = por %p176, %p177
    %p179 = scmp.ne.s32.totalorder %s167, %s168
    %p180 = scmp.eq.s32.totalorder %s27, 1
    %p181 = por %p179, %p180
    %p183 = scmp.ne.s32.totalorder %s168, %s182
    %p184 = scmp.eq.s32.totalorder %s27, 0
    %p185 = por %p183, %p184
    %s187 = sadd.s32 %s186, 1
    %p190 = scmp.eq.s32.totalorder %s21, 1
    %p191 = scmp.ne.s32.totalorder %s186, %s188
    %p192 = scmp.eq.s32.totalorder %s21, 0
    %p193 = por %p191, %p192
    %p194 = scmp.ne.s32.totalorder %s186, %s188
    %p195 = scmp.eq.s32.totalorder %s26, 1
    %p196 = por %p194, %p195
    %p197 = scmp.ne.s32.totalorder %s188, %s189
    %p198 = scmp.eq.s32.totalorder %s26, 0
    %p199 = por %p197, %p198
    %p200 = scmp.ne.s32.totalorder %s188, %s189
    %p201 = scmp.eq.s32.totalorder %s27, 1
    %p202 = por %p200, %p201
    %p204 = scmp.ne.s32.totalorder %s189, %s203
    %p205 = scmp.eq.s32.totalorder %s27, 0
    %p206 = por %p204, %p205
    %s208 = sadd.s32 %s207, 1
    %p211 = scmp.eq.s32.totalorder %s21, 1
    %p212 = scmp.ne.s32.totalorder %s207, %s209
    %p213 = scmp.eq.s32.totalorder %s21, 0
    %p214 = por %p212, %p213
    %p215 = scmp.ne.s32.totalorder %s207, %s209
    %p216 = scmp.eq.s32.totalorder %s26, 1
    %p217 = por %p215, %p216
    %p218 = scmp.ne.s32.totalorder %s209, %s210
    %p219 = scmp.eq.s32.totalorder %s26, 0
    %p220 = por %p218, %p219
    %p221 = scmp.ne.s32.totalorder %s209, %s210
    %p222 = scmp.eq.s32.totalorder %s27, 1
    %p223 = por %p221, %p222
    %p225 = scmp.ne.s32.totalorder %s210, %s224
    %p226 = scmp.eq.s32.totalorder %s27, 0
    %p227 = por %p225, %p226
    %s229 = sadd.s32 %s228, 1
    %p232 = scmp.eq.s32.totalorder %s21, 1
    %p233 = scmp.ne.s32.totalorder %s228, %s230
    %p234 = scmp.eq.s32.totalorder %s21, 0
    %p235 = por %p233, %p234
    %p236 = scmp.ne.s32.totalorder %s228, %s230
    %p237 = scmp.eq.s32.totalorder %s26, 1
    %p238 = por %p236, %p237
    %p239 = scmp.ne.s32.totalorder %s230, %s231
    %p240 = scmp.eq.s32.totalorder %s26, 0
    %p241 = por %p239, %p240
    %p242 = scmp.ne.s32.totalorder %s230, %s231
    %p243 = scmp.eq.s32.totalorder %s27, 1
    %p244 = por %p242, %p243
    %p246 = scmp.ne.s32.totalorder %s231, %s245
    %p247 = scmp.eq.s32.totalorder %s27, 0
    %p248 = por %p246, %p247
    %s250 = sadd.s32 %s249, 1
    %p253 = scmp.eq.s32.totalorder %s21, 1
    %p254 = scmp.ne.s32.totalorder %s249, %s251
    %p255 = scmp.eq.s32.totalorder %s21, 0
    %p256 = por %p254, %p255
    %p257 = scmp.ne.s32.totalorder %s249, %s251
    %p258 = scmp.eq.s32.totalorder %s26, 1
    %p259 = por %p257, %p258
    %p260 = scmp.ne.s32.totalorder %s251, %s252
    %p261 = scmp.eq.s32.totalorder %s26, 0
    %p262 = por %p260, %p261
    %p263 = scmp.ne.s32.totalorder %s251, %s252
    %p264 = scmp.eq.s32.totalorder %s27, 1
    %p265 = por %p263, %p264
    %p267 = scmp.ne.s32.totalorder %s252, %s266
    %p268 = scmp.eq.s32.totalorder %s27, 0
    %p269 = por %p267, %p268
    %s271 = sadd.s32 %s270, 1
    %p274 = scmp.eq.s32.totalorder %s21, 1
    %p275 = scmp.ne.s32.totalorder %s270, %s272
    %p276 = scmp.eq.s32.totalorder %s21, 0
    %p277 = por %p275, %p276
    %p278 = scmp.ne.s32.totalorder %s270, %s272
    %p279 = scmp.eq.s32.totalorder %s26, 1
    %p280 = por %p278, %p279
    %p281 = scmp.ne.s32.totalorder %s272, %s273
    %p282 = scmp.eq.s32.totalorder %s26, 0
    %p283 = por %p281, %p282
    %p284 = scmp.ne.s32.totalorder %s272, %s273
    %p285 = scmp.eq.s32.totalorder %s27, 1
    %p286 = por %p284, %p285
    %p288 = scmp.ne.s32.totalorder %s273, %s287
    %p289 = scmp.eq.s32.totalorder %s27, 0
    %p290 = por %p288, %p289
    %s292 = sadd.s32 %s291, 1
    %p295 = scmp.eq.s32.totalorder %s21, 1
    %p296 = scmp.ne.s32.totalorder %s291, %s293
    %p297 = scmp.eq.s32.totalorder %s21, 0
    %p298 = por %p296, %p297
    %p299 = scmp.ne.s32.totalorder %s291, %s293
    %p300 = scmp.eq.s32.totalorder %s26, 1
    %p301 = por %p299, %p300
    %p302 = scmp.ne.s32.totalorder %s293, %s294
    %p303 = scmp.eq.s32.totalorder %s26, 0
    %p304 = por %p302, %p303
    %p305 = scmp.ne.s32.totalorder %s293, %s294
    %p306 = scmp.eq.s32.totalorder %s27, 1
    %p307 = por %p305, %p306
    %p309 = scmp.ne.s32.totalorder %s294, %s308
    %p310 = scmp.eq.s32.totalorder %s27, 0
    %p311 = por %p309, %p310
    %s313 = sadd.s32 %s312, 1
    %p316 = scmp.eq.s32.totalorder %s21, 1
    %p317 = scmp.ne.s32.totalorder %s312, %s314
    %p318 = scmp.eq.s32.totalorder %s21, 0
    %p319 = por %p317, %p318
    %p320 = scmp.ne.s32.totalorder %s312, %s314
    %p321 = scmp.eq.s32.totalorder %s26, 1
    %p322 = por %p320, %p321
    %p323 = scmp.ne.s32.totalorder %s314, %s315
    %p324 = scmp.eq.s32.totalorder %s26, 0
    %p325 = por %p323, %p324
    %p326 = scmp.ne.s32.totalorder %s314, %s315
    %p327 = scmp.eq.s32.totalorder %s27, 1
    %p328 = por %p326, %p327
    %p330 = scmp.ne.s32.totalorder %s315, %s329
    %p331 = scmp.eq.s32.totalorder %s27, 0
    %p332 = por %p330, %p331
    %s334 = sadd.s32 %s333, 1
    %p337 = scmp.eq.s32.totalorder %s21, 1
    %p338 = scmp.ne.s32.totalorder %s333, %s335
    %p339 = scmp.eq.s32.totalorder %s21, 0
    %p340 = por %p338, %p339
    %p341 = scmp.ne.s32.totalorder %s333, %s335
    %p342 = scmp.eq.s32.totalorder %s26, 1
    %p343 = por %p341, %p342
    %p344 = scmp.ne.s32.totalorder %s335, %s336
    %p345 = scmp.eq.s32.totalorder %s26, 0
    %p346 = por %p344, %p345
    %p347 = scmp.ne.s32.totalorder %s335, %s336
    %p348 = scmp.eq.s32.totalorder %s27, 1
    %p349 = por %p347, %p348
    %p351 = scmp.ne.s32.totalorder %s336, %s350
    %p352 = scmp.eq.s32.totalorder %s27, 0
    %p353 = por %p351, %p352
    %s354 = ssub.s32 %s21, %s28
    %p355 = scmp.eq.s32.totalorder %s354, 0
    %s357 = sadd.s32 %s356, 1
    %s358 = scalar_select %p355, %s356, %s357
    %p361 = pneg %p355
    %p362 = scmp.eq.s32.totalorder %s21, 1
    %p363 = por %p361, %p362
    %p364 = scmp.ne.s32.totalorder %s356, %s359
    %p365 = scmp.eq.s32.totalorder %s21, 0
    %p366 = por %p364, %p365
    %p367 = scmp.ne.s32.totalorder %s356, %s359
    %p368 = scmp.eq.s32.totalorder %s26, 1
    %p369 = por %p367, %p368
    %p370 = scmp.ne.s32.totalorder %s359, %s360
    %p371 = scmp.eq.s32.totalorder %s26, 0
    %p372 = por %p370, %p371
    %p373 = scmp.ne.s32.totalorder %s359, %s360
    %p374 = scmp.eq.s32.totalorder %s27, 1
    %p375 = por %p373, %p374
    %p377 = scmp.ne.s32.totalorder %s360, %s376
    %p378 = scmp.eq.s32.totalorder %s27, 0
    %p379 = por %p377, %p378
    %p380 = scmp.le.s32.totalorder 1, %s21
    %p381 = scmp.lt.s32.totalorder %s21, 3
    %p382 = pnand %p380, %p381
    %p383 = pneg %p382
    // Predicated region
    $region9: #{trajectory_decoder_forward.5} parent=5 // pred_check
      _
    $region10: #{trajectory_decoder_forward.5} parent=5 // pred_check_branch
      %385 = sbr.rel (%p382) target = $region12
    $region11: #{trajectory_decoder_forward.5} parent=5 // pred_region
      %s386 = ssub.s32 %s21, 1
      // Predicated region
      $region13: #{trajectory_decoder_forward.5} parent=11 // pred_check
        %p387 = pneg %p94
      $region14: #{trajectory_decoder_forward.5} parent=11 // pred_check_branch
        %389 = sbr.rel (%p387) target = $region16
      $region15: #{trajectory_decoder_forward.5} parent=11 // pred_region
        _
      $region16: #{trajectory_decoder_forward.5} parent=11 // pred_fallthru
        _
      // Predicated region
      $region17: #{trajectory_decoder_forward.5} parent=11 // pred_check
        %p390 = pneg %p115
      $region18: #{trajectory_decoder_forward.5} parent=11 // pred_check_branch
        %392 = sbr.rel (%p390) target = $region20
      $region19: #{trajectory_decoder_forward.5} parent=11 // pred_region
        _
      $region20: #{trajectory_decoder_forward.5} parent=11 // pred_fallthru
        _
      // Predicated region
      $region21: #{trajectory_decoder_forward.5} parent=11 // pred_check
        %p393 = pneg %p136
      $region22: #{trajectory_decoder_forward.5} parent=11 // pred_check_branch
        %395 = sbr.rel (%p393) target = $region24
      $region23: #{trajectory_decoder_forward.5} parent=11 // pred_region
        _
      $region24: #{trajectory_decoder_forward.5} parent=11 // pred_fallthru
        _
      // Predicated region
      $region25: #{trajectory_decoder_forward.5} parent=11 // pred_check
        %p396 = pneg %p157
      $region26: #{trajectory_decoder_forward.5} parent=11 // pred_check_branch
        %398 = sbr.rel (%p396) target = $region28
      $region27: #{trajectory_decoder_forward.5} parent=11 // pred_region
        _
      $region28: #{trajectory_decoder_forward.5} parent=11 // pred_fallthru
        _
      // Predicated region
      $region29: #{trajectory_decoder_forward.5} parent=11 // pred_check
        %p399 = pneg %p178
      $region30: #{trajectory_decoder_forward.5} parent=11 // pred_check_branch
        %401 = sbr.rel (%p399) target = $region32
      $region31: #{trajectory_decoder_forward.5} parent=11 // pred_region
        _
      $region32: #{trajectory_decoder_forward.5} parent=11 // pred_fallthru
        _
      // Predicated region
      $region33: #{trajectory_decoder_forward.5} parent=11 // pred_check
        %p402 = pneg %p199
      $region34: #{trajectory_decoder_forward.5} parent=11 // pred_check_branch
        %404 = sbr.rel (%p402) target = $region36
      $region35: #{trajectory_decoder_forward.5} parent=11 // pred_region
        _
      $region36: #{trajectory_decoder_forward.5} parent=11 // pred_fallthru
        _
      // Predicated region
      $region37: #{trajectory_decoder_forward.5} parent=11 // pred_check
        %p405 = pneg %p220
      $region38: #{trajectory_decoder_forward.5} parent=11 // pred_check_branch
        %407 = sbr.rel (%p405) target = $region40
      $region39: #{trajectory_decoder_forward.5} parent=11 // pred_region
        _
      $region40: #{trajectory_decoder_forward.5} parent=11 // pred_fallthru
        _
      // Predicated region
      $region41: #{trajectory_decoder_forward.5} parent=11 // pred_check
        %p408 = pneg %p241
      $region42: #{trajectory_decoder_forward.5} parent=11 // pred_check_branch
        %410 = sbr.rel (%p408) target = $region44
      $region43: #{trajectory_decoder_forward.5} parent=11 // pred_region
        _
      $region44: #{trajectory_decoder_forward.5} parent=11 // pred_fallthru
        _
      // Predicated region
      $region45: #{trajectory_decoder_forward.5} parent=11 // pred_check
        %p411 = pneg %p262
      $region46: #{trajectory_decoder_forward.5} parent=11 // pred_check_branch
        %413 = sbr.rel (%p411) target = $region48
      $region47: #{trajectory_decoder_forward.5} parent=11 // pred_region
        _
      $region48: #{trajectory_decoder_forward.5} parent=11 // pred_fallthru
        _
      // Predicated region
      $region49: #{trajectory_decoder_forward.5} parent=11 // pred_check
        %p414 = pneg %p283
      $region50: #{trajectory_decoder_forward.5} parent=11 // pred_check_branch
        %416 = sbr.rel (%p414) target = $region52
      $region51: #{trajectory_decoder_forward.5} parent=11 // pred_region
        _
      $region52: #{trajectory_decoder_forward.5} parent=11 // pred_fallthru
        _
      // Predicated region
      $region53: #{trajectory_decoder_forward.5} parent=11 // pred_check
        %p417 = pneg %p304
      $region54: #{trajectory_decoder_forward.5} parent=11 // pred_check_branch
        %419 = sbr.rel (%p417) target = $region56
      $region55: #{trajectory_decoder_forward.5} parent=11 // pred_region
        _
      $region56: #{trajectory_decoder_forward.5} parent=11 // pred_fallthru
        _
      // Predicated region
      $region57: #{trajectory_decoder_forward.5} parent=11 // pred_check
        %p420 = pneg %p325
      $region58: #{trajectory_decoder_forward.5} parent=11 // pred_check_branch
        %422 = sbr.rel (%p420) target = $region60
      $region59: #{trajectory_decoder_forward.5} parent=11 // pred_region
        _
      $region60: #{trajectory_decoder_forward.5} parent=11 // pred_fallthru
        _
      // Predicated region
      $region61: #{trajectory_decoder_forward.5} parent=11 // pred_check
        %p423 = pneg %p346
      $region62: #{trajectory_decoder_forward.5} parent=11 // pred_check_branch
        %425 = sbr.rel (%p423) target = $region64
      $region63: #{trajectory_decoder_forward.5} parent=11 // pred_region
        _
      $region64: #{trajectory_decoder_forward.5} parent=11 // pred_fallthru
        _
    $region12: #{trajectory_decoder_forward.5} parent=5 // pred_fallthru
      _
    %p426 = scmp.lt.s32.totalorder %s21, 2
    // Predicated region
    $region65: #{trajectory_decoder_forward.5} parent=5 // pred_check
      %p427 = pneg %p426
    $region66: #{trajectory_decoder_forward.5} parent=5 // pred_check_branch
      %429 = sbr.rel (%p427) target = $region68
    $region67: #{trajectory_decoder_forward.5} parent=5 // pred_region
      // Predicated region
      $region69: #{trajectory_decoder_forward.5} parent=67 // pred_check
        %p430 = pneg %p41
      $region70: #{trajectory_decoder_forward.5} parent=67 // pred_check_branch
        %432 = sbr.rel (%p430) target = $region72
      $region71: #{trajectory_decoder_forward.5} parent=67 // pred_region
        %p433 = scmp.lt.s32.totalorder %s21, 1
        %s434 = scalar_select %p433, %s21, 1
        %s435 = smul.addr %s434, 4
        %s436 = smul.addr %s435, 8
        %s437 = scalar_lea.vmem %s0, %s436
      $region72: #{trajectory_decoder_forward.5} parent=67 // pred_fallthru
        _
      // Predicated region
      $region73: #{trajectory_decoder_forward.5} parent=67 // pred_check
        %p438 = pneg %p67
      $region74: #{trajectory_decoder_forward.5} parent=67 // pred_check_branch
        %440 = sbr.rel (%p438) target = $region76
      $region75: #{trajectory_decoder_forward.5} parent=67 // pred_region
        %p441 = scmp.lt.s32.totalorder %s21, 1
        %s442 = scalar_select %p441, %s21, 1
        %s443 = smul.addr %s442, 4
        %s444 = smul.addr %s443, 8
        %s445 = scalar_lea.vmem %s1, %s444
      $region76: #{trajectory_decoder_forward.5} parent=67 // pred_fallthru
        _
    $region68: #{trajectory_decoder_forward.5} parent=5 // pred_fallthru
      _
    %p446 = scmp.le.s32.totalorder 1, %s21
    %p447 = scmp.lt.s32.totalorder %s21, 3
    %p448 = pnand %p446, %p447
    %p449 = pneg %p448
    // Predicated region
    $region77: #{trajectory_decoder_forward.5} parent=5 // pred_check
      _
    $region78: #{trajectory_decoder_forward.5} parent=5 // pred_check_branch
      %451 = sbr.rel (%p448) target = $region80
    $region79: #{trajectory_decoder_forward.5} parent=5 // pred_region
      %s452 = ssub.s32 %s21, 1
      %p453 = scmp.lt.s32.totalorder %s26, 1
      %s454 = scalar_select %p453, %s26, 1
      %s455 = smul.addr %s454, 4
      %s456 = smul.addr %s455, 8
      %s457 = scalar_lea.vmem %s0, %s456
      %p458 = pneg %p47
      %p459 = pneg %p44
      %p460 = scmp.lt.s32.totalorder %s26, 1
      %s461 = scalar_select %p460, %s26, 1
      %s462 = smul.addr %s461, 4
      %s463 = smul.addr %s462, 8
      %s464 = scalar_lea.vmem %s1, %s463
      %p465 = pneg %p73
      %p466 = pneg %p70
      %p467 = pneg %p94
      %p468 = pneg %p91
      %p469 = pneg %p115
      %p470 = pneg %p112
      %p471 = pneg %p136
      %p472 = pneg %p133
      %p473 = pneg %p157
      %p474 = pneg %p154
      %p475 = pneg %p178
      %p476 = pneg %p175
      %p477 = pneg %p199
      %p478 = pneg %p196
      %p479 = pneg %p220
      %p480 = pneg %p217
      %p481 = pneg %p241
      %p482 = pneg %p238
      %p483 = pneg %p262
      %p484 = pneg %p259
      %p485 = pneg %p283
      %p486 = pneg %p280
      %p487 = pneg %p304
      %p488 = pneg %p301
      %p489 = pneg %p325
      %p490 = pneg %p322
      %p491 = pneg %p346
      %p492 = pneg %p343
      %p493 = pneg %p372
      %p494 = pneg %p369
      %p495 = scmp.lt.s32.totalorder %s26, 1
      %s496 = scalar_select %p495, %s26, 1
      %s497 = smul.addr %s496, 2
      %s498 = smul.addr %s497, 8
      %s499 = scalar_lea.vmem %s15, %s498
      %p500 = scmp.lt.s32.totalorder %s26, 1
      %s501 = scalar_select %p500, %s26, 1
      %s502 = smul.addr %s501, 4
      %s503 = smul.addr %s502, 8
      %s504 = scalar_lea.vmem %s0, %s503
      %p505 = scmp.lt.s32.totalorder %s26, 1
      %s506 = scalar_select %p505, %s26, 1
      %s507 = smul.addr %s506, 4
      %s508 = smul.addr %s507, 8
      %s509 = scalar_lea.vmem %s1, %s508
      %p510 = scmp.lt.s32.totalorder %s26, 1
      %s511 = scalar_select %p510, %s26, 1
      %s512 = smul.addr %s511, 2
      %s513 = smul.addr %s512, 8
      %s514 = scalar_lea.vmem %s15, %s513
      %v516 = vld [vmem:[%s504] sm:$0xff]
      %v517 = vld [vmem:[%s504 + $0x8] sm:$0xff]
      %v518 = vld [vmem:[%s504 + $0x10] sm:$0xff]
      %v519 = vld [vmem:[%s504 + $0x18] sm:$0xff]
      %v520 = vld [vmem:[%s509] sm:$0xff]
      %v521 = vld [vmem:[%s509 + $0x8] sm:$0xff]
      %v522 = vld [vmem:[%s509 + $0x10] sm:$0xff]
      %v523 = vld [vmem:[%s509 + $0x18] sm:$0xff]
      %v524 = vpack.c.bf16 %v518, %v516
      %v525 = vpack.c.bf16 %v519, %v517
      %v526 = vld [vmem:[%s2] sm:$0xff]
      %v527 = vld [vmem:[%s2 + $0x8] sm:$0xff]
      %v528 = vld [vmem:[%s2 + $0x10] sm:$0xff]
      %v529 = vld [vmem:[%s2 + $0x18] sm:$0xff]
      %v530 = vld [vmem:[%s2 + $0x20] sm:$0xff]
      %v531 = vld [vmem:[%s2 + $0x28] sm:$0xff]
      %v532 = vld [vmem:[%s2 + $0x30] sm:$0xff]
      %v533 = vld [vmem:[%s2 + $0x38] sm:$0xff]
      %v534 = vld [vmem:[%s2 + $0x40] sm:$0xff]
      %v535 = vld [vmem:[%s2 + $0x48] sm:$0xff]
      %v536 = vld [vmem:[%s2 + $0x50] sm:$0xff]
      %v537 = vld [vmem:[%s2 + $0x58] sm:$0xff]
      %v538 = vld [vmem:[%s2 + $0x60] sm:$0xff]
      %v539 = vld [vmem:[%s2 + $0x68] sm:$0xff]
      %v540 = vld [vmem:[%s2 + $0x70] sm:$0xff]
      %v541 = vld [vmem:[%s2 + $0x78] sm:$0xff]
      %v542 = vld [vmem:[%s2 + $0x80] sm:$0xff]
      %v543 = vld [vmem:[%s2 + $0x88] sm:$0xff]
      %v544 = vld [vmem:[%s2 + $0x90] sm:$0xff]
      %v545 = vld [vmem:[%s2 + $0x98] sm:$0xff]
      %v546 = vld [vmem:[%s2 + $0xa0] sm:$0xff]
      %v547 = vld [vmem:[%s2 + $0xa8] sm:$0xff]
      %v548 = vld [vmem:[%s2 + $0xb0] sm:$0xff]
      %v549 = vld [vmem:[%s2 + $0xb8] sm:$0xff]
      %v550 = vld [vmem:[%s2 + $0xc0] sm:$0xff]
      %v551 = vld [vmem:[%s2 + $0xc8] sm:$0xff]
      %v552 = vld [vmem:[%s2 + $0xd0] sm:$0xff]
      %v553 = vld [vmem:[%s2 + $0xd8] sm:$0xff]
      %v554 = vld [vmem:[%s2 + $0xe0] sm:$0xff]
      %v555 = vld [vmem:[%s2 + $0xe8] sm:$0xff]
      %v556 = vld [vmem:[%s2 + $0xf0] sm:$0xff]
      %v557 = vld [vmem:[%s2 + $0xf8] sm:$0xff]
      %v558 = vld [vmem:[%s3] sm:$0x3]
      %v560 = vlaneseq
      %v561 = vshrl.u32 %v560, 7
      %v562 = vsub.s32 0, %v561
      %v563 = vrot.slane %v558, %v562
      %v564 = vlaneseq
      %v565 = vshrl.u32 %v564, 7
      %v566 = vsub.s32 1, %v565
      %v567 = vrot.slane %v558, %v566
      %v602 = vunpack.c.l.b16 %v526
      %v603 = vunpack.c.h.b16 %v526
      %v604 = vunpack.c.l.b16 %v527
      %v605 = vunpack.c.h.b16 %v527
      %v606 = vunpack.c.l.b16 %v528
      %v607 = vunpack.c.h.b16 %v528
      %v608 = vunpack.c.l.b16 %v529
      %v609 = vunpack.c.h.b16 %v529
      %v610 = vunpack.c.l.b16 %v530
      %v611 = vunpack.c.h.b16 %v530
      %v612 = vunpack.c.l.b16 %v531
      %v613 = vunpack.c.h.b16 %v531
      %v614 = vunpack.c.l.b16 %v532
      %v615 = vunpack.c.h.b16 %v532
      %v616 = vunpack.c.l.b16 %v533
      %v617 = vunpack.c.h.b16 %v533
      %v618 = vunpack.c.l.b16 %v534
      %v619 = vunpack.c.h.b16 %v534
      %v620 = vunpack.c.l.b16 %v535
      %v621 = vunpack.c.h.b16 %v535
      %v622 = vunpack.c.l.b16 %v536
      %v623 = vunpack.c.h.b16 %v536
      %v624 = vunpack.c.l.b16 %v537
      %v625 = vunpack.c.h.b16 %v537
      %v626 = vunpack.c.l.b16 %v538
      %v627 = vunpack.c.h.b16 %v538
      %v628 = vunpack.c.l.b16 %v539
      %v629 = vunpack.c.h.b16 %v539
      %v630 = vunpack.c.l.b16 %v540
      %v631 = vunpack.c.h.b16 %v540
      %v632 = vunpack.c.l.b16 %v541
      %v633 = vunpack.c.h.b16 %v541
      %v634 = vunpack.c.l.b16 %v542
      %v635 = vunpack.c.h.b16 %v542
      %v636 = vunpack.c.l.b16 %v543
      %v637 = vunpack.c.h.b16 %v543
      %v638 = vunpack.c.l.b16 %v544
      %v639 = vunpack.c.h.b16 %v544
      %v640 = vunpack.c.l.b16 %v545
      %v641 = vunpack.c.h.b16 %v545
      %v642 = vunpack.c.l.b16 %v546
      %v643 = vunpack.c.h.b16 %v546
      %v644 = vunpack.c.l.b16 %v547
      %v645 = vunpack.c.h.b16 %v547
      %v646 = vunpack.c.l.b16 %v548
      %v647 = vunpack.c.h.b16 %v548
      %v648 = vunpack.c.l.b16 %v549
      %v649 = vunpack.c.h.b16 %v549
      %v650 = vunpack.c.l.b16 %v550
      %v651 = vunpack.c.h.b16 %v550
      %v652 = vunpack.c.l.b16 %v551
      %v653 = vunpack.c.h.b16 %v551
      %v654 = vunpack.c.l.b16 %v552
      %v655 = vunpack.c.h.b16 %v552
      %v656 = vunpack.c.l.b16 %v553
      %v657 = vunpack.c.h.b16 %v553
      %v658 = vunpack.c.l.b16 %v554
      %v659 = vunpack.c.h.b16 %v554
      %v660 = vunpack.c.l.b16 %v555
      %v661 = vunpack.c.h.b16 %v555
      %v662 = vunpack.c.l.b16 %v556
      %v663 = vunpack.c.h.b16 %v556
      %v664 = vunpack.c.l.b16 %v557
      %v665 = vunpack.c.h.b16 %v557
      %v666 = vpack.c.b16 %v604, %v602
      %v667 = vpack.c.b16 %v605, %v603
      %v668 = vpack.c.b16 %v608, %v606
      %v669 = vpack.c.b16 %v609, %v607
      %v670 = vpack.c.b16 %v612, %v610
      %v671 = vpack.c.b16 %v613, %v611
      %v672 = vpack.c.b16 %v616, %v614
      %v673 = vpack.c.b16 %v617, %v615
      %v674 = vpack.c.b16 %v620, %v618
      %v675 = vpack.c.b16 %v621, %v619
      %v676 = vpack.c.b16 %v624, %v622
      %v677 = vpack.c.b16 %v625, %v623
      %v678 = vpack.c.b16 %v628, %v626
      %v679 = vpack.c.b16 %v629, %v627
      %v680 = vpack.c.b16 %v632, %v630
      %v681 = vpack.c.b16 %v633, %v631
      %v682 = vpack.c.b16 %v636, %v634
      %v683 = vpack.c.b16 %v637, %v635
      %v684 = vpack.c.b16 %v640, %v638
      %v685 = vpack.c.b16 %v641, %v639
      %v686 = vpack.c.b16 %v644, %v642
      %v687 = vpack.c.b16 %v645, %v643
      %v688 = vpack.c.b16 %v648, %v646
      %v689 = vpack.c.b16 %v649, %v647
      %v690 = vpack.c.b16 %v652, %v650
      %v691 = vpack.c.b16 %v653, %v651
      %v692 = vpack.c.b16 %v656, %v654
      %v693 = vpack.c.b16 %v657, %v655
      %v694 = vpack.c.b16 %v660, %v658
      %v695 = vpack.c.b16 %v661, %v659
      %v696 = vpack.c.b16 %v664, %v662
      %v697 = vpack.c.b16 %v665, %v663
      %730 = vmatprep.subr.bf16.mxu0 %v667
      %731 = vmatpush1.bf16.msra.mxu0 %v666
      %732 = vmatprep.subr.bf16.mxu0 %v669
      %733 = vmatpush1.bf16.msra.mxu0 %v668
      %734 = vmatprep.subr.bf16.mxu0 %v671
      %735 = vmatpush1.bf16.msra.mxu0 %v670
      %736 = vmatprep.subr.bf16.mxu0 %v673
      %737 = vmatpush1.bf16.msra.mxu0 %v672
      %738 = vmatprep.subr.bf16.mxu0 %v675
      %739 = vmatpush1.bf16.msra.mxu0 %v674
      %740 = vmatprep.subr.bf16.mxu0 %v677
      %741 = vmatpush1.bf16.msra.mxu0 %v676
      %742 = vmatprep.subr.bf16.mxu0 %v679
      %743 = vmatpush1.bf16.msra.mxu0 %v678
      %744 = vmatprep.subr.bf16.mxu0 %v681
      %745 = vmatpush1.bf16.msra.mxu0 %v680
      %746 = vmatprep.subr.bf16.mxu0 %v683
      %747 = vmatpush1.bf16.msra.mxu0 %v682
      %748 = vmatprep.subr.bf16.mxu0 %v685
      %749 = vmatpush1.bf16.msra.mxu0 %v684
      %750 = vmatprep.subr.bf16.mxu0 %v687
      %751 = vmatpush1.bf16.msra.mxu0 %v686
      %752 = vmatprep.subr.bf16.mxu0 %v689
      %753 = vmatpush1.bf16.msra.mxu0 %v688
      %754 = vmatprep.subr.bf16.mxu0 %v691
      %755 = vmatpush1.bf16.msra.mxu0 %v690
      %756 = vmatprep.subr.bf16.mxu0 %v693
      %757 = vmatpush1.bf16.msra.mxu0 %v692
      %758 = vmatprep.subr.bf16.mxu0 %v695
      %759 = vmatpush1.bf16.msra.mxu0 %v694
      %760 = vmatprep.subr.bf16.mxu0 %v697
      %761 = vmatpush1.bf16.msra.mxu0 %v696
      %762 = vmatprep.mubr.bf16.mxu0 %v525
      %763 = vmatmul.mubr.bf16.gmra.mrb[0].mxu0 %v524
      %v764 = vpop.f32.mrb[0].mxu0
      %v765 = vadd.f32 %v563, %v764
      %v766 = vpop.f32.mrb[0].mxu0
      %v767 = vadd.f32 %v567, %v766
      %v768 = vpop.f32.mrb[0].mxu0
      %v769 = vadd.f32 %v563, %v768
      %v770 = vpop.f32.mrb[0].mxu0
      %v771 = vadd.f32 %v567, %v770
      %772 = vdwg.mxu0
      %v773 = vpack.c.bf16 %v522, %v520
      %v774 = vpack.c.bf16 %v523, %v521
      %v775 = vld [vmem:[%s4] sm:$0xff]
      %v776 = vld [vmem:[%s4 + $0x8] sm:$0xff]
      %v777 = vld [vmem:[%s4 + $0x10] sm:$0xff]
      %v778 = vld [vmem:[%s4 + $0x18] sm:$0xff]
      %v779 = vld [vmem:[%s4 + $0x20] sm:$0xff]
      %v780 = vld [vmem:[%s4 + $0x28] sm:$0xff]
      %v781 = vld [vmem:[%s4 + $0x30] sm:$0xff]
      %v782 = vld [vmem:[%s4 + $0x38] sm:$0xff]
      %v783 = vld [vmem:[%s4 + $0x40] sm:$0xff]
      %v784 = vld [vmem:[%s4 + $0x48] sm:$0xff]
      %v785 = vld [vmem:[%s4 + $0x50] sm:$0xff]
      %v786 = vld [vmem:[%s4 + $0x58] sm:$0xff]
      %v787 = vld [vmem:[%s4 + $0x60] sm:$0xff]
      %v788 = vld [vmem:[%s4 + $0x68] sm:$0xff]
      %v789 = vld [vmem:[%s4 + $0x70] sm:$0xff]
      %v790 = vld [vmem:[%s4 + $0x78] sm:$0xff]
      %v791 = vld [vmem:[%s4 + $0x80] sm:$0xff]
      %v792 = vld [vmem:[%s4 + $0x88] sm:$0xff]
      %v793 = vld [vmem:[%s4 + $0x90] sm:$0xff]
      %v794 = vld [vmem:[%s4 + $0x98] sm:$0xff]
      %v795 = vld [vmem:[%s4 + $0xa0] sm:$0xff]
      %v796 = vld [vmem:[%s4 + $0xa8] sm:$0xff]
      %v797 = vld [vmem:[%s4 + $0xb0] sm:$0xff]
      %v798 = vld [vmem:[%s4 + $0xb8] sm:$0xff]
      %v799 = vld [vmem:[%s4 + $0xc0] sm:$0xff]
      %v800 = vld [vmem:[%s4 + $0xc8] sm:$0xff]
      %v801 = vld [vmem:[%s4 + $0xd0] sm:$0xff]
      %v802 = vld [vmem:[%s4 + $0xd8] sm:$0xff]
      %v803 = vld [vmem:[%s4 + $0xe0] sm:$0xff]
      %v804 = vld [vmem:[%s4 + $0xe8] sm:$0xff]
      %v805 = vld [vmem:[%s4 + $0xf0] sm:$0xff]
      %v806 = vld [vmem:[%s4 + $0xf8] sm:$0xff]
      %v807 = vld [vmem:[%s4 + $0x100] sm:$0xff]
      %v808 = vld [vmem:[%s4 + $0x108] sm:$0xff]
      %v809 = vld [vmem:[%s4 + $0x110] sm:$0xff]
      %v810 = vld [vmem:[%s4 + $0x118] sm:$0xff]
      %v811 = vld [vmem:[%s4 + $0x120] sm:$0xff]
      %v812 = vld [vmem:[%s4 + $0x128] sm:$0xff]
      %v813 = vld [vmem:[%s4 + $0x130] sm:$0xff]
      %v814 = vld [vmem:[%s4 + $0x138] sm:$0xff]
      %v815 = vld [vmem:[%s4 + $0x140] sm:$0xff]
      %v816 = vld [vmem:[%s4 + $0x148] sm:$0xff]
      %v817 = vld [vmem:[%s4 + $0x150] sm:$0xff]
      %v818 = vld [vmem:[%s4 + $0x158] sm:$0xff]
      %v819 = vld [vmem:[%s4 + $0x160] sm:$0xff]
      %v820 = vld [vmem:[%s4 + $0x168] sm:$0xff]
      %v821 = vld [vmem:[%s4 + $0x170] sm:$0xff]
      %v822 = vld [vmem:[%s4 + $0x178] sm:$0xff]
      %v823 = vld [vmem:[%s4 + $0x180] sm:$0xff]
      %v824 = vld [vmem:[%s4 + $0x188] sm:$0xff]
      %v825 = vld [vmem:[%s4 + $0x190] sm:$0xff]
      %v826 = vld [vmem:[%s4 + $0x198] sm:$0xff]
      %v827 = vld [vmem:[%s4 + $0x1a0] sm:$0xff]
      %v828 = vld [vmem:[%s4 + $0x1a8] sm:$0xff]
      %v829 = vld [vmem:[%s4 + $0x1b0] sm:$0xff]
      %v830 = vld [vmem:[%s4 + $0x1b8] sm:$0xff]
      %v831 = vld [vmem:[%s4 + $0x1c0] sm:$0xff]
      %v832 = vld [vmem:[%s4 + $0x1c8] sm:$0xff]
      %v833 = vld [vmem:[%s4 + $0x1d0] sm:$0xff]
      %v834 = vld [vmem:[%s4 + $0x1d8] sm:$0xff]
      %v835 = vld [vmem:[%s4 + $0x1e0] sm:$0xff]
      %v836 = vld [vmem:[%s4 + $0x1e8] sm:$0xff]
      %v837 = vld [vmem:[%s4 + $0x1f0] sm:$0xff]
      %v838 = vld [vmem:[%s4 + $0x1f8] sm:$0xff]
      %v839 = vld [vmem:[%s5] sm:$0xf]
      %v841 = vlaneseq
      %v842 = vshrl.u32 %v841, 7
      %v843 = vsub.s32 0, %v842
      %v844 = vrot.slane %v839, %v843
      %v845 = vlaneseq
      %v846 = vshrl.u32 %v845, 7
      %v847 = vsub.s32 1, %v846
      %v848 = vrot.slane %v839, %v847
      %v849 = vlaneseq
      %v850 = vshrl.u32 %v849, 7
      %v851 = vsub.s32 2, %v850
      %v852 = vrot.slane %v839, %v851
      %v853 = vlaneseq
      %v854 = vshrl.u32 %v853, 7
      %v855 = vsub.s32 3, %v854
      %v856 = vrot.slane %v839, %v855
      %v925 = vunpack.c.l.b16 %v775
      %v926 = vunpack.c.h.b16 %v775
      %v927 = vunpack.c.l.b16 %v776
      %v928 = vunpack.c.h.b16 %v776
      %v929 = vunpack.c.l.b16 %v777
      %v930 = vunpack.c.h.b16 %v777
      %v931 = vunpack.c.l.b16 %v778
      %v932 = vunpack.c.h.b16 %v778
      %v933 = vunpack.c.l.b16 %v779
      %v934 = vunpack.c.h.b16 %v779
      %v935 = vunpack.c.l.b16 %v780
      %v936 = vunpack.c.h.b16 %v780
      %v937 = vunpack.c.l.b16 %v781
      %v938 = vunpack.c.h.b16 %v781
      %v939 = vunpack.c.l.b16 %v782
      %v940 = vunpack.c.h.b16 %v782
      %v941 = vunpack.c.l.b16 %v783
      %v942 = vunpack.c.h.b16 %v783
      %v943 = vunpack.c.l.b16 %v784
      %v944 = vunpack.c.h.b16 %v784
      %v945 = vunpack.c.l.b16 %v785
      %v946 = vunpack.c.h.b16 %v785
      %v947 = vunpack.c.l.b16 %v786
      %v948 = vunpack.c.h.b16 %v786
      %v949 = vunpack.c.l.b16 %v787
      %v950 = vunpack.c.h.b16 %v787
      %v951 = vunpack.c.l.b16 %v788
      %v952 = vunpack.c.h.b16 %v788
      %v953 = vunpack.c.l.b16 %v789
      %v954 = vunpack.c.h.b16 %v789
      %v955 = vunpack.c.l.b16 %v790
      %v956 = vunpack.c.h.b16 %v790
      %v957 = vunpack.c.l.b16 %v791
      %v958 = vunpack.c.h.b16 %v791
      %v959 = vunpack.c.l.b16 %v792
      %v960 = vunpack.c.h.b16 %v792
      %v961 = vunpack.c.l.b16 %v793
      %v962 = vunpack.c.h.b16 %v793
      %v963 = vunpack.c.l.b16 %v794
      %v964 = vunpack.c.h.b16 %v794
      %v965 = vunpack.c.l.b16 %v795
      %v966 = vunpack.c.h.b16 %v795
      %v967 = vunpack.c.l.b16 %v796
      %v968 = vunpack.c.h.b16 %v796
      %v969 = vunpack.c.l.b16 %v797
      %v970 = vunpack.c.h.b16 %v797
      %v971 = vunpack.c.l.b16 %v798
      %v972 = vunpack.c.h.b16 %v798
      %v973 = vunpack.c.l.b16 %v799
      %v974 = vunpack.c.h.b16 %v799
      %v975 = vunpack.c.l.b16 %v800
      %v976 = vunpack.c.h.b16 %v800
      %v977 = vunpack.c.l.b16 %v801
      %v978 = vunpack.c.h.b16 %v801
      %v979 = vunpack.c.l.b16 %v802
      %v980 = vunpack.c.h.b16 %v802
      %v981 = vunpack.c.l.b16 %v803
      %v982 = vunpack.c.h.b16 %v803
      %v983 = vunpack.c.l.b16 %v804
      %v984 = vunpack.c.h.b16 %v804
      %v985 = vunpack.c.l.b16 %v805
      %v986 = vunpack.c.h.b16 %v805
      %v987 = vunpack.c.l.b16 %v806
      %v988 = vunpack.c.h.b16 %v806
      %v989 = vunpack.c.l.b16 %v807
      %v990 = vunpack.c.h.b16 %v807
      %v991 = vunpack.c.l.b16 %v808
      %v992 = vunpack.c.h.b16 %v808
      %v993 = vunpack.c.l.b16 %v809
      %v994 = vunpack.c.h.b16 %v809
      %v995 = vunpack.c.l.b16 %v810
      %v996 = vunpack.c.h.b16 %v810
      %v997 = vunpack.c.l.b16 %v811
      %v998 = vunpack.c.h.b16 %v811
      %v999 = vunpack.c.l.b16 %v812
      %v1000 = vunpack.c.h.b16 %v812
      %v1001 = vunpack.c.l.b16 %v813
      %v1002 = vunpack.c.h.b16 %v813
      %v1003 = vunpack.c.l.b16 %v814
      %v1004 = vunpack.c.h.b16 %v814
      %v1005 = vunpack.c.l.b16 %v815
      %v1006 = vunpack.c.h.b16 %v815
      %v1007 = vunpack.c.l.b16 %v816
      %v1008 = vunpack.c.h.b16 %v816
      %v1009 = vunpack.c.l.b16 %v817
      %v1010 = vunpack.c.h.b16 %v817
      %v1011 = vunpack.c.l.b16 %v818
      %v1012 = vunpack.c.h.b16 %v818
      %v1013 = vunpack.c.l.b16 %v819
      %v1014 = vunpack.c.h.b16 %v819
      %v1015 = vunpack.c.l.b16 %v820
      %v1016 = vunpack.c.h.b16 %v820
      %v1017 = vunpack.c.l.b16 %v821
      %v1018 = vunpack.c.h.b16 %v821
      %v1019 = vunpack.c.l.b16 %v822
      %v1020 = vunpack.c.h.b16 %v822
      %v1021 = vunpack.c.l.b16 %v823
      %v1022 = vunpack.c.h.b16 %v823
      %v1023 = vunpack.c.l.b16 %v824
      %v1024 = vunpack.c.h.b16 %v824
      %v1025 = vunpack.c.l.b16 %v825
      %v1026 = vunpack.c.h.b16 %v825
      %v1027 = vunpack.c.l.b16 %v826
      %v1028 = vunpack.c.h.b16 %v826
      %v1029 = vunpack.c.l.b16 %v827
      %v1030 = vunpack.c.h.b16 %v827
      %v1031 = vunpack.c.l.b16 %v828
      %v1032 = vunpack.c.h.b16 %v828
      %v1033 = vunpack.c.l.b16 %v829
      %v1034 = vunpack.c.h.b16 %v829
      %v1035 = vunpack.c.l.b16 %v830
      %v1036 = vunpack.c.h.b16 %v830
      %v1037 = vunpack.c.l.b16 %v831
      %v1038 = vunpack.c.h.b16 %v831
      %v1039 = vunpack.c.l.b16 %v832
      %v1040 = vunpack.c.h.b16 %v832
      %v1041 = vunpack.c.l.b16 %v833
      %v1042 = vunpack.c.h.b16 %v833
      %v1043 = vunpack.c.l.b16 %v834
      %v1044 = vunpack.c.h.b16 %v834
      %v1045 = vunpack.c.l.b16 %v835
      %v1046 = vunpack.c.h.b16 %v835
      %v1047 = vunpack.c.l.b16 %v836
      %v1048 = vunpack.c.h.b16 %v836
      %v1049 = vunpack.c.l.b16 %v837
      %v1050 = vunpack.c.h.b16 %v837
      %v1051 = vunpack.c.l.b16 %v838
      %v1052 = vunpack.c.h.b16 %v838
      %v1053 = vpack.c.b16 %v929, %v925
      %v1054 = vpack.c.b16 %v930, %v926
      %v1055 = vpack.c.b16 %v931, %v927
      %v1056 = vpack.c.b16 %v932, %v928
      %v1057 = vpack.c.b16 %v937, %v933
      %v1058 = vpack.c.b16 %v938, %v934
      %v1059 = vpack.c.b16 %v939, %v935
      %v1060 = vpack.c.b16 %v940, %v936
      %v1061 = vpack.c.b16 %v945, %v941
      %v1062 = vpack.c.b16 %v946, %v942
      %v1063 = vpack.c.b16 %v947, %v943
      %v1064 = vpack.c.b16 %v948, %v944
      %v1065 = vpack.c.b16 %v953, %v949
      %v1066 = vpack.c.b16 %v954, %v950
      %v1067 = vpack.c.b16 %v955, %v951
      %v1068 = vpack.c.b16 %v956, %v952
      %v1069 = vpack.c.b16 %v961, %v957
      %v1070 = vpack.c.b16 %v962, %v958
      %v1071 = vpack.c.b16 %v963, %v959
      %v1072 = vpack.c.b16 %v964, %v960
      %v1073 = vpack.c.b16 %v969, %v965
      %v1074 = vpack.c.b16 %v970, %v966
      %v1075 = vpack.c.b16 %v971, %v967
      %v1076 = vpack.c.b16 %v972, %v968
      %v1077 = vpack.c.b16 %v977, %v973
      %v1078 = vpack.c.b16 %v978, %v974
      %v1079 = vpack.c.b16 %v979, %v975
      %v1080 = vpack.c.b16 %v980, %v976
      %v1081 = vpack.c.b16 %v985, %v981
      %v1082 = vpack.c.b16 %v986, %v982
      %v1083 = vpack.c.b16 %v987, %v983
      %v1084 = vpack.c.b16 %v988, %v984
      %v1085 = vpack.c.b16 %v993, %v989
      %v1086 = vpack.c.b16 %v994, %v990
      %v1087 = vpack.c.b16 %v995, %v991
      %v1088 = vpack.c.b16 %v996, %v992
      %v1089 = vpack.c.b16 %v1001, %v997
      %v1090 = vpack.c.b16 %v1002, %v998
      %v1091 = vpack.c.b16 %v1003, %v999
      %v1092 = vpack.c.b16 %v1004, %v1000
      %v1093 = vpack.c.b16 %v1009, %v1005
      %v1094 = vpack.c.b16 %v1010, %v1006
      %v1095 = vpack.c.b16 %v1011, %v1007
      %v1096 = vpack.c.b16 %v1012, %v1008
      %v1097 = vpack.c.b16 %v1017, %v1013
      %v1098 = vpack.c.b16 %v1018, %v1014
      %v1099 = vpack.c.b16 %v1019, %v1015
      %v1100 = vpack.c.b16 %v1020, %v1016
      %v1101 = vpack.c.b16 %v1025, %v1021
      %v1102 = vpack.c.b16 %v1026, %v1022
      %v1103 = vpack.c.b16 %v1027, %v1023
      %v1104 = vpack.c.b16 %v1028, %v1024
      %v1105 = vpack.c.b16 %v1033, %v1029
      %v1106 = vpack.c.b16 %v1034, %v1030
      %v1107 = vpack.c.b16 %v1035, %v1031
      %v1108 = vpack.c.b16 %v1036, %v1032
      %v1109 = vpack.c.b16 %v1041, %v1037
      %v1110 = vpack.c.b16 %v1042, %v1038
      %v1111 = vpack.c.b16 %v1043, %v1039
      %v1112 = vpack.c.b16 %v1044, %v1040
      %v1113 = vpack.c.b16 %v1049, %v1045
      %v1114 = vpack.c.b16 %v1050, %v1046
      %v1115 = vpack.c.b16 %v1051, %v1047
      %v1116 = vpack.c.b16 %v1052, %v1048
      %1181 = vmatprep.subr.bf16.mxu0 %v1054
      %1182 = vmatpush1.bf16.msra.mxu0 %v1053
      %1183 = vmatprep.subr.bf16.mxu0 %v1058
      %1184 = vmatpush1.bf16.msra.mxu0 %v1057
      %1185 = vmatprep.subr.bf16.mxu0 %v1062
      %1186 = vmatpush1.bf16.msra.mxu0 %v1061
      %1187 = vmatprep.subr.bf16.mxu0 %v1066
      %1188 = vmatpush1.bf16.msra.mxu0 %v1065
      %1189 = vmatprep.subr.bf16.mxu0 %v1070
      %1190 = vmatpush1.bf16.msra.mxu0 %v1069
      %1191 = vmatprep.subr.bf16.mxu0 %v1074
      %1192 = vmatpush1.bf16.msra.mxu0 %v1073
      %1193 = vmatprep.subr.bf16.mxu0 %v1078
      %1194 = vmatpush1.bf16.msra.mxu0 %v1077
      %1195 = vmatprep.subr.bf16.mxu0 %v1082
      %1196 = vmatpush1.bf16.msra.mxu0 %v1081
      %1197 = vmatprep.subr.bf16.mxu0 %v1086
      %1198 = vmatpush1.bf16.msra.mxu0 %v1085
      %1199 = vmatprep.subr.bf16.mxu0 %v1090
      %1200 = vmatpush1.bf16.msra.mxu0 %v1089
      %1201 = vmatprep.subr.bf16.mxu0 %v1094
      %1202 = vmatpush1.bf16.msra.mxu0 %v1093
      %1203 = vmatprep.subr.bf16.mxu0 %v1098
      %1204 = vmatpush1.bf16.msra.mxu0 %v1097
      %1205 = vmatprep.subr.bf16.mxu0 %v1102
      %1206 = vmatpush1.bf16.msra.mxu0 %v1101
      %1207 = vmatprep.subr.bf16.mxu0 %v1106
      %1208 = vmatpush1.bf16.msra.mxu0 %v1105
      %1209 = vmatprep.subr.bf16.mxu0 %v1110
      %1210 = vmatpush1.bf16.msra.mxu0 %v1109
      %1211 = vmatprep.subr.bf16.mxu0 %v1114
      %1212 = vmatpush1.bf16.msra.mxu0 %v1113
      %1213 = vmatprep.mubr.bf16.mxu0 %v774
      %1214 = vmatmul.mubr.bf16.gmra.mrb[0].mxu0 %v773
      %v1215 = vpop.f32.mrb[0].mxu0
      %v1216 = vadd.f32 %v844, %v1215
      %v1217 = vpop.f32.mrb[0].mxu0
      %v1218 = vadd.f32 %v848, %v1217
      %v1219 = vpop.f32.mrb[0].mxu0
      %v1220 = vadd.f32 %v844, %v1219
      %v1221 = vpop.f32.mrb[0].mxu0
      %v1222 = vadd.f32 %v848, %v1221
      %1223 = vdwg.mxu0
      %1224 = vmatprep.subr.bf16.mxu0 %v1056
      %1225 = vmatpush1.bf16.msra.mxu0 %v1055
      %1226 = vmatprep.subr.bf16.mxu0 %v1060
      %1227 = vmatpush1.bf16.msra.mxu0 %v1059
      %1228 = vmatprep.subr.bf16.mxu0 %v1064
      %1229 = vmatpush1.bf16.msra.mxu0 %v1063
      %1230 = vmatprep.subr.bf16.mxu0 %v1068
      %1231 = vmatpush1.bf16.msra.mxu0 %v1067
      %1232 = vmatprep.subr.bf16.mxu0 %v1072
      %1233 = vmatpush1.bf16.msra.mxu0 %v1071
      %1234 = vmatprep.subr.bf16.mxu0 %v1076
      %1235 = vmatpush1.bf16.msra.mxu0 %v1075
      %1236 = vmatprep.subr.bf16.mxu0 %v1080
      %1237 = vmatpush1.bf16.msra.mxu0 %v1079
      %1238 = vmatprep.subr.bf16.mxu0 %v1084
      %1239 = vmatpush1.bf16.msra.mxu0 %v1083
      %1240 = vmatprep.subr.bf16.mxu0 %v1088
      %1241 = vmatpush1.bf16.msra.mxu0 %v1087
      %1242 = vmatprep.subr.bf16.mxu0 %v1092
      %1243 = vmatpush1.bf16.msra.mxu0 %v1091
      %1244 = vmatprep.subr.bf16.mxu0 %v1096
      %1245 = vmatpush1.bf16.msra.mxu0 %v1095
      %1246 = vmatprep.subr.bf16.mxu0 %v1100
      %1247 = vmatpush1.bf16.msra.mxu0 %v1099
      %1248 = vmatprep.subr.bf16.mxu0 %v1104
      %1249 = vmatpush1.bf16.msra.mxu0 %v1103
      %1250 = vmatprep.subr.bf16.mxu0 %v1108
      %1251 = vmatpush1.bf16.msra.mxu0 %v1107
      %1252 = vmatprep.subr.bf16.mxu0 %v1112
      %1253 = vmatpush1.bf16.msra.mxu0 %v1111
      %1254 = vmatprep.subr.bf16.mxu0 %v1116
      %1255 = vmatpush1.bf16.msra.mxu0 %v1115
      %1256 = vmatprep.mubr.bf16.mxu0 %v774
      %1257 = vmatmul.mubr.bf16.gmra.mrb[0].mxu0 %v773
      %v1258 = vpop.f32.mrb[0].mxu0
      %v1259 = vadd.f32 %v852, %v1258
      %v1260 = vpop.f32.mrb[0].mxu0
      %v1261 = vadd.f32 %v856, %v1260
      %v1262 = vpop.f32.mrb[0].mxu0
      %v1263 = vadd.f32 %v852, %v1262
      %v1264 = vpop.f32.mrb[0].mxu0
      %v1265 = vadd.f32 %v856, %v1264
      %1266 = vdwg.mxu0
      %v1267 = vpack.c.bf16 %v769, %v765
      %v1268 = vpack.c.bf16 %v1220, %v1216
      %vm1269 = vcmask 261120
      %v1271 = vsel %vm1269, %v1267, 0
      %v1274 = vsel %vm1269, %v1268, 0
      %1276 = vmatprep.subr.bf16.mxu0 0
      %1277 = vmatpush1.bf16.xpose.msra.mxu0 %v1274
      %1278 = vmatprep.subr.bf16.mxu0 0
      %1279 = vmatpush1.bf16.xpose.msra.mxu0 0
      %1280 = vmatprep.subr.bf16.mxu0 0
      %1281 = vmatpush1.bf16.xpose.msra.mxu0 0
      %1282 = vmatprep.subr.bf16.mxu0 0
      %1283 = vmatpush1.bf16.xpose.msra.mxu0 0
      %1284 = vmatprep.subr.bf16.mxu0 0
      %1285 = vmatpush1.bf16.xpose.msra.mxu0 0
      %1286 = vmatprep.subr.bf16.mxu0 0
      %1287 = vmatpush1.bf16.xpose.msra.mxu0 0
      %1288 = vmatprep.subr.bf16.mxu0 0
      %1289 = vmatpush1.bf16.xpose.msra.mxu0 0
      %1290 = vmatprep.subr.bf16.mxu0 0
      %1291 = vmatpush1.bf16.xpose.msra.mxu0 0
      %1292 = vmatprep.subr.bf16.mxu0 0
      %1293 = vmatpush1.bf16.xpose.msra.mxu0 0
      %1294 = vmatprep.subr.bf16.mxu0 0
      %1295 = vmatpush1.bf16.xpose.msra.mxu0 0
      %1296 = vmatprep.subr.bf16.mxu0 0
      %1297 = vmatpush1.bf16.xpose.msra.mxu0 0
      %1298 = vmatprep.subr.bf16.mxu0 0
      %1299 = vmatpush1.bf16.xpose.msra.mxu0 0
      %1300 = vmatprep.subr.bf16.mxu0 0
      %1301 = vmatpush1.bf16.xpose.msra.mxu0 0
      %1302 = vmatprep.subr.bf16.mxu0 0
      %1303 = vmatpush1.bf16.xpose.msra.mxu0 0
      %1304 = vmatprep.subr.bf16.mxu0 0
      %1305 = vmatpush1.bf16.xpose.msra.mxu0 0
      %1306 = vmatprep.subr.bf16.mxu0 0
      %1307 = vmatpush1.bf16.xpose.msra.mxu0 0
      %1308 = vmatprep.mubr.bf16.mxu0 0
      %1309 = vmatmul.mubr.bf16.gmra.mrb[0].mxu0 %v1271
      %v1310 = vpop.f32.mrb[0].mxu0
      %v1311 = vadd.f32 0.0, %v1310
      %v1312 = vpop.f32.mrb[0].mxu0
      %v1313 = vpop.f32.mrb[0].mxu0
      %v1314 = vadd.f32 0.0, %v1313
      %v1315 = vpop.f32.mrb[0].mxu0
      %1316 = vdwg.mxu0
      %v1317 = vmul.f32 %v1311, 0.17677669
      %v1318 = vmul.f32 %v1314, 0.17677669
      %vm1319 = vcmask 130048
      %v1320 = vsel %vm1319, %v1317, -inf
      %1321 = vmax.xlane.f32.xlu0 %v1320
      %v1322 = vpop.xlane.xlu0 %1321
      %v1323 = vsel %vm1319, %v1318, -inf
      %1324 = vmax.xlane.f32.xlu0 %v1323
      %v1325 = vpop.xlane.xlu0 %1324
      %v1326 = vsub.f32 %v1317, %v1322
      %v1327 = vsub.f32 %v1318, %v1325
      %v1328 = vmul.f32 %v1326, 1.442695
      %v1329 = vpow.pop %v1328
      %v1330 = vmul.f32 %v1327, 1.442695
      %v1331 = vpow.pop %v1330
      %v1332 = vsel %vm1319, %v1329, 0.0
      %1333 = vadd.xlane.f32.xlu0 %v1332
      %v1334 = vpop.xlane.xlu0 %1333
      %v1335 = vsel %vm1319, %v1331, 0.0
      %1336 = vadd.xlane.f32.xlu0 %v1335
      %v1337 = vpop.xlane.xlu0 %1336
      %v1338 = vrcp.pop %v1334
      %v1339 = vrcp.pop %v1337
      %v1340 = vmul.f32 %v1329, %v1338
      %v1341 = vmul.f32 %v1331, %v1339
      %v1342 = vpack.c.bf16 %v1341, %v1340
      %v1343 = vpack.c.bf16 %v1263, %v1259
      %v1345 = vsel %vm1319, %v1342, 0
      %1347 = vmatprep.subr.bf16.mxu0 0
      %1348 = vmatpush1.bf16.msra.mxu0 %v1343
      %1349 = vmatprep.subr.bf16.mxu0 0
      %1350 = vmatpush1.bf16.msra.mxu0 0
      %1351 = vmatprep.subr.bf16.mxu0 0
      %1352 = vmatpush1.bf16.msra.mxu0 0
      %1353 = vmatprep.subr.bf16.mxu0 0
      %1354 = vmatpush1.bf16.msra.mxu0 0
      %1355 = vmatprep.subr.bf16.mxu0 0
      %1356 = vmatpush1.bf16.msra.mxu0 0
      %1357 = vmatprep.subr.bf16.mxu0 0
      %1358 = vmatpush1.bf16.msra.mxu0 0
      %1359 = vmatprep.subr.bf16.mxu0 0
      %1360 = vmatpush1.bf16.msra.mxu0 0
      %1361 = vmatprep.subr.bf16.mxu0 0
      %1362 = vmatpush1.bf16.msra.mxu0 0
      %1363 = vmatprep.subr.bf16.mxu0 0
      %1364 = vmatpush1.bf16.msra.mxu0 0
      %1365 = vmatprep.subr.bf16.mxu0 0
      %1366 = vmatpush1.bf16.msra.mxu0 0
      %1367 = vmatprep.subr.bf16.mxu0 0
      %1368 = vmatpush1.bf16.msra.mxu0 0
      %1369 = vmatprep.subr.bf16.mxu0 0
      %1370 = vmatpush1.bf16.msra.mxu0 0
      %1371 = vmatprep.subr.bf16.mxu0 0
      %1372 = vmatpush1.bf16.msra.mxu0 0
      %1373 = vmatprep.subr.bf16.mxu0 0
      %1374 = vmatpush1.bf16.msra.mxu0 0
      %1375 = vmatprep.subr.bf16.mxu0 0
      %1376 = vmatpush1.bf16.msra.mxu0 0
      %1377 = vmatprep.subr.bf16.mxu0 0
      %1378 = vmatpush1.bf16.msra.mxu0 0
      %1379 = vmatprep.mubr.bf16.mxu0 0
      %1380 = vmatmul.mubr.bf16.gmra.mrb[0].mxu0 %v1345
      %v1381 = vpop.f32.mrb[0].mxu0
      %v1382 = vadd.f32 0.0, %v1381
      %v1383 = vpop.f32.mrb[0].mxu0
      %v1384 = vpop.f32.mrb[0].mxu0
      %v1385 = vadd.f32 0.0, %v1384
      %v1386 = vpop.f32.mrb[0].mxu0
      %1387 = vdwg.mxu0
      %1389 = vrot.lane.b32.xlu0 %v1267, 96
      %v1390 = vpop.permute.xlu0 %1389
      %1392 = vrot.lane.b32.xlu0 %v1268, 96
      %v1393 = vpop.permute.xlu0 %1392
      %v1395 = vsel %vm1269, %v1390, 0
      %v1398 = vsel %vm1269, %v1393, 0
      %1400 = vmatprep.subr.bf16.mxu0 0
      %1401 = vmatpush1.bf16.xpose.msra.mxu0 %v1398
      %1402 = vmatprep.subr.bf16.mxu0 0
      %1403 = vmatpush1.bf16.xpose.msra.mxu0 0
      %1404 = vmatprep.subr.bf16.mxu0 0
      %1405 = vmatpush1.bf16.xpose.msra.mxu0 0
      %1406 = vmatprep.subr.bf16.mxu0 0
      %1407 = vmatpush1.bf16.xpose.msra.mxu0 0
      %1408 = vmatprep.subr.bf16.mxu0 0
      %1409 = vmatpush1.bf16.xpose.msra.mxu0 0
      %1410 = vmatprep.subr.bf16.mxu0 0
      %1411 = vmatpush1.bf16.xpose.msra.mxu0 0
      %1412 = vmatprep.subr.bf16.mxu0 0
      %1413 = vmatpush1.bf16.xpose.msra.mxu0 0
      %1414 = vmatprep.subr.bf16.mxu0 0
      %1415 = vmatpush1.bf16.xpose.msra.mxu0 0
      %1416 = vmatprep.subr.bf16.mxu0 0
      %1417 = vmatpush1.bf16.xpose.msra.mxu0 0
      %1418 = vmatprep.subr.bf16.mxu0 0
      %1419 = vmatpush1.bf16.xpose.msra.mxu0 0
      %1420 = vmatprep.subr.bf16.mxu0 0
      %1421 = vmatpush1.bf16.xpose.msra.mxu0 0
      %1422 = vmatprep.subr.bf16.mxu0 0
      %1423 = vmatpush1.bf16.xpose.msra.mxu0 0
      %1424 = vmatprep.subr.bf16.mxu0 0
      %1425 = vmatpush1.bf16.xpose.msra.mxu0 0
      %1426 = vmatprep.subr.bf16.mxu0 0
      %1427 = vmatpush1.bf16.xpose.msra.mxu0 0
      %1428 = vmatprep.subr.bf16.mxu0 0
      %1429 = vmatpush1.bf16.xpose.msra.mxu0 0
      %1430 = vmatprep.subr.bf16.mxu0 0
      %1431 = vmatpush1.bf16.xpose.msra.mxu0 0
      %1432 = vmatprep.mubr.bf16.mxu0 0
      %1433 = vmatmul.mubr.bf16.gmra.mrb[0].mxu0 %v1395
      %v1434 = vpop.f32.mrb[0].mxu0
      %v1435 = vadd.f32 0.0, %v1434
      %v1436 = vpop.f32.mrb[0].mxu0
      %v1437 = vpop.f32.mrb[0].mxu0
      %v1438 = vadd.f32 0.0, %v1437
      %v1439 = vpop.f32.mrb[0].mxu0
      %1440 = vdwg.mxu0
      %v1441 = vmul.f32 %v1435, 0.17677669
      %v1442 = vmul.f32 %v1438, 0.17677669
      %v1443 = vsel %vm1319, %v1441, -inf
      %1444 = vmax.xlane.f32.xlu0 %v1443
      %v1445 = vpop.xlane.xlu0 %1444
      %v1446 = vsel %vm1319, %v1442, -inf
      %1447 = vmax.xlane.f32.xlu0 %v1446
      %v1448 = vpop.xlane.xlu0 %1447
      %v1449 = vsub.f32 %v1441, %v1445
      %v1450 = vsub.f32 %v1442, %v1448
      %v1451 = vmul.f32 %v1449, 1.442695
      %v1452 = vpow.pop %v1451
      %v1453 = vmul.f32 %v1450, 1.442695
      %v1454 = vpow.pop %v1453
      %v1455 = vsel %vm1319, %v1452, 0.0
      %1456 = vadd.xlane.f32.xlu0 %v1455
      %v1457 = vpop.xlane.xlu0 %1456
      %v1458 = vsel %vm1319, %v1454, 0.0
      %1459 = vadd.xlane.f32.xlu0 %v1458
      %v1460 = vpop.xlane.xlu0 %1459
      %v1461 = vrcp.pop %v1457
      %v1462 = vrcp.pop %v1460
      %v1463 = vmul.f32 %v1452, %v1461
      %v1464 = vmul.f32 %v1454, %v1462
      %v1465 = vpack.c.bf16 %v1464, %v1463
      %1467 = vrot.lane.b32.xlu0 %v1343, 96
      %v1468 = vpop.permute.xlu0 %1467
      %v1471 = vsel %vm1319, %v1465, 0
      %1473 = vmatprep.subr.bf16.mxu0 0
      %1474 = vmatpush1.bf16.msra.mxu0 %v1468
      %1475 = vmatprep.subr.bf16.mxu0 0
      %1476 = vmatpush1.bf16.msra.mxu0 0
      %1477 = vmatprep.subr.bf16.mxu0 0
      %1478 = vmatpush1.bf16.msra.mxu0 0
      %1479 = vmatprep.subr.bf16.mxu0 0
      %1480 = vmatpush1.bf16.msra.mxu0 0
      %1481 = vmatprep.subr.bf16.mxu0 0
      %1482 = vmatpush1.bf16.msra.mxu0 0
      %1483 = vmatprep.subr.bf16.mxu0 0
      %1484 = vmatpush1.bf16.msra.mxu0 0
      %1485 = vmatprep.subr.bf16.mxu0 0
      %1486 = vmatpush1.bf16.msra.mxu0 0
      %1487 = vmatprep.subr.bf16.mxu0 0
      %1488 = vmatpush1.bf16.msra.mxu0 0
      %1489 = vmatprep.subr.bf16.mxu0 0
      %1490 = vmatpush1.bf16.msra.mxu0 0
      %1491 = vmatprep.subr.bf16.mxu0 0
      %1492 = vmatpush1.bf16.msra.mxu0 0
      %1493 = vmatprep.subr.bf16.mxu0 0
      %1494 = vmatpush1.bf16.msra.mxu0 0
      %1495 = vmatprep.subr.bf16.mxu0 0
      %1496 = vmatpush1.bf16.msra.mxu0 0
      %1497 = vmatprep.subr.bf16.mxu0 0
      %1498 = vmatpush1.bf16.msra.mxu0 0
      %1499 = vmatprep.subr.bf16.mxu0 0
      %1500 = vmatpush1.bf16.msra.mxu0 0
      %1501 = vmatprep.subr.bf16.mxu0 0
      %1502 = vmatpush1.bf16.msra.mxu0 0
      %1503 = vmatprep.subr.bf16.mxu0 0
      %1504 = vmatpush1.bf16.msra.mxu0 0
      %1505 = vmatprep.mubr.bf16.mxu0 0
      %1506 = vmatmul.mubr.bf16.gmra.mrb[0].mxu0 %v1471
      %v1507 = vpop.f32.mrb[0].mxu0
      %v1508 = vadd.f32 0.0, %v1507
      %v1509 = vpop.f32.mrb[0].mxu0
      %v1510 = vpop.f32.mrb[0].mxu0
      %v1511 = vadd.f32 0.0, %v1510
      %v1512 = vpop.f32.mrb[0].mxu0
      %1513 = vdwg.mxu0
      %1514 = vrot.lane.b32.xlu0 %v1267, 64
      %v1515 = vpop.permute.xlu0 %1514
      %1516 = vrot.lane.b32.xlu0 %v1268, 64
      %v1517 = vpop.permute.xlu0 %1516
      %v1519 = vsel %vm1269, %v1515, 0
      %v1522 = vsel %vm1269, %v1517, 0
      %1524 = vmatprep.subr.bf16.mxu0 0
      %1525 = vmatpush1.bf16.xpose.msra.mxu0 %v1522
      %1526 = vmatprep.subr.bf16.mxu0 0
      %1527 = vmatpush1.bf16.xpose.msra.mxu0 0
      %1528 = vmatprep.subr.bf16.mxu0 0
      %1529 = vmatpush1.bf16.xpose.msra.mxu0 0
      %1530 = vmatprep.subr.bf16.mxu0 0
      %1531 = vmatpush1.bf16.xpose.msra.mxu0 0
      %1532 = vmatprep.subr.bf16.mxu0 0
      %1533 = vmatpush1.bf16.xpose.msra.mxu0 0
      %1534 = vmatprep.subr.bf16.mxu0 0
      %1535 = vmatpush1.bf16.xpose.msra.mxu0 0
      %1536 = vmatprep.subr.bf16.mxu0 0
      %1537 = vmatpush1.bf16.xpose.msra.mxu0 0
      %1538 = vmatprep.subr.bf16.mxu0 0
      %1539 = vmatpush1.bf16.xpose.msra.mxu0 0
      %1540 = vmatprep.subr.bf16.mxu0 0
      %1541 = vmatpush1.bf16.xpose.msra.mxu0 0
      %1542 = vmatprep.subr.bf16.mxu0 0
      %1543 = vmatpush1.bf16.xpose.msra.mxu0 0
      %1544 = vmatprep.subr.bf16.mxu0 0
      %1545 = vmatpush1.bf16.xpose.msra.mxu0 0
      %1546 = vmatprep.subr.bf16.mxu0 0
      %1547 = vmatpush1.bf16.xpose.msra.mxu0 0
      %1548 = vmatprep.subr.bf16.mxu0 0
      %1549 = vmatpush1.bf16.xpose.msra.mxu0 0
      %1550 = vmatprep.subr.bf16.mxu0 0
      %1551 = vmatpush1.bf16.xpose.msra.mxu0 0
      %1552 = vmatprep.subr.bf16.mxu0 0
      %1553 = vmatpush1.bf16.xpose.msra.mxu0 0
      %1554 = vmatprep.subr.bf16.mxu0 0
      %1555 = vmatpush1.bf16.xpose.msra.mxu0 0
      %1556 = vmatprep.mubr.bf16.mxu0 0
      %1557 = vmatmul.mubr.bf16.gmra.mrb[0].mxu0 %v1519
      %v1558 = vpop.f32.mrb[0].mxu0
      %v1559 = vadd.f32 0.0, %v1558
      %v1560 = vpop.f32.mrb[0].mxu0
      %v1561 = vpop.f32.mrb[0].mxu0
      %v1562 = vadd.f32 0.0, %v1561
      %v1563 = vpop.f32.mrb[0].mxu0
      %1564 = vdwg.mxu0
      %v1565 = vmul.f32 %v1559, 0.17677669
      %v1566 = vmul.f32 %v1562, 0.17677669
      %v1567 = vsel %vm1319, %v1565, -inf
      %1568 = vmax.xlane.f32.xlu0 %v1567
      %v1569 = vpop.xlane.xlu0 %1568
      %v1570 = vsel %vm1319, %v1566, -inf
      %1571 = vmax.xlane.f32.xlu0 %v1570
      %v1572 = vpop.xlane.xlu0 %1571
      %v1573 = vsub.f32 %v1565, %v1569
      %v1574 = vsub.f32 %v1566, %v1572
      %v1575 = vmul.f32 %v1573, 1.442695
      %v1576 = vpow.pop %v1575
      %v1577 = vmul.f32 %v1574, 1.442695
      %v1578 = vpow.pop %v1577
      %v1579 = vsel %vm1319, %v1576, 0.0
      %1580 = vadd.xlane.f32.xlu0 %v1579
      %v1581 = vpop.xlane.xlu0 %1580
      %v1582 = vsel %vm1319, %v1578, 0.0
      %1583 = vadd.xlane.f32.xlu0 %v1582
      %v1584 = vpop.xlane.xlu0 %1583
      %v1585 = vrcp.pop %v1581
      %v1586 = vrcp.pop %v1584
      %v1587 = vmul.f32 %v1576, %v1585
      %v1588 = vmul.f32 %v1578, %v1586
      %v1589 = vpack.c.bf16 %v1588, %v1587
      %1590 = vrot.lane.b32.xlu0 %v1343, 64
      %v1591 = vpop.permute.xlu0 %1590
      %v1594 = vsel %vm1319, %v1589, 0
      %1596 = vmatprep.subr.bf16.mxu0 0
      %1597 = vmatpush1.bf16.msra.mxu0 %v1591
      %1598 = vmatprep.subr.bf16.mxu0 0
      %1599 = vmatpush1.bf16.msra.mxu0 0
      %1600 = vmatprep.subr.bf16.mxu0 0
      %1601 = vmatpush1.bf16.msra.mxu0 0
      %1602 = vmatprep.subr.bf16.mxu0 0
      %1603 = vmatpush1.bf16.msra.mxu0 0
      %1604 = vmatprep.subr.bf16.mxu0 0
      %1605 = vmatpush1.bf16.msra.mxu0 0
      %1606 = vmatprep.subr.bf16.mxu0 0
      %1607 = vmatpush1.bf16.msra.mxu0 0
      %1608 = vmatprep.subr.bf16.mxu0 0
      %1609 = vmatpush1.bf16.msra.mxu0 0
      %1610 = vmatprep.subr.bf16.mxu0 0
      %1611 = vmatpush1.bf16.msra.mxu0 0
      %1612 = vmatprep.subr.bf16.mxu0 0
      %1613 = vmatpush1.bf16.msra.mxu0 0
      %1614 = vmatprep.subr.bf16.mxu0 0
      %1615 = vmatpush1.bf16.msra.mxu0 0
      %1616 = vmatprep.subr.bf16.mxu0 0
      %1617 = vmatpush1.bf16.msra.mxu0 0
      %1618 = vmatprep.subr.bf16.mxu0 0
      %1619 = vmatpush1.bf16.msra.mxu0 0
      %1620 = vmatprep.subr.bf16.mxu0 0
      %1621 = vmatpush1.bf16.msra.mxu0 0
      %1622 = vmatprep.subr.bf16.mxu0 0
      %1623 = vmatpush1.bf16.msra.mxu0 0
      %1624 = vmatprep.subr.bf16.mxu0 0
      %1625 = vmatpush1.bf16.msra.mxu0 0
      %1626 = vmatprep.subr.bf16.mxu0 0
      %1627 = vmatpush1.bf16.msra.mxu0 0
      %1628 = vmatprep.mubr.bf16.mxu0 0
      %1629 = vmatmul.mubr.bf16.gmra.mrb[0].mxu0 %v1594
      %v1630 = vpop.f32.mrb[0].mxu0
      %v1631 = vadd.f32 0.0, %v1630
      %v1632 = vpop.f32.mrb[0].mxu0
      %v1633 = vpop.f32.mrb[0].mxu0
      %v1634 = vadd.f32 0.0, %v1633
      %v1635 = vpop.f32.mrb[0].mxu0
      %1636 = vdwg.mxu0
      %1637 = vrot.lane.b32.xlu0 %v1267, 32
      %v1638 = vpop.permute.xlu0 %1637
      %1639 = vrot.lane.b32.xlu0 %v1268, 32
      %v1640 = vpop.permute.xlu0 %1639
      %v1642 = vsel %vm1269, %v1638, 0
      %v1645 = vsel %vm1269, %v1640, 0
      %1647 = vmatprep.subr.bf16.mxu0 0
      %1648 = vmatpush1.bf16.xpose.msra.mxu0 %v1645
      %1649 = vmatprep.subr.bf16.mxu0 0
      %1650 = vmatpush1.bf16.xpose.msra.mxu0 0
      %1651 = vmatprep.subr.bf16.mxu0 0
      %1652 = vmatpush1.bf16.xpose.msra.mxu0 0
      %1653 = vmatprep.subr.bf16.mxu0 0
      %1654 = vmatpush1.bf16.xpose.msra.mxu0 0
      %1655 = vmatprep.subr.bf16.mxu0 0
      %1656 = vmatpush1.bf16.xpose.msra.mxu0 0
      %1657 = vmatprep.subr.bf16.mxu0 0
      %1658 = vmatpush1.bf16.xpose.msra.mxu0 0
      %1659 = vmatprep.subr.bf16.mxu0 0
      %1660 = vmatpush1.bf16.xpose.msra.mxu0 0
      %1661 = vmatprep.subr.bf16.mxu0 0
      %1662 = vmatpush1.bf16.xpose.msra.mxu0 0
      %1663 = vmatprep.subr.bf16.mxu0 0
      %1664 = vmatpush1.bf16.xpose.msra.mxu0 0
      %1665 = vmatprep.subr.bf16.mxu0 0
      %1666 = vmatpush1.bf16.xpose.msra.mxu0 0
      %1667 = vmatprep.subr.bf16.mxu0 0
      %1668 = vmatpush1.bf16.xpose.msra.mxu0 0
      %1669 = vmatprep.subr.bf16.mxu0 0
      %1670 = vmatpush1.bf16.xpose.msra.mxu0 0
      %1671 = vmatprep.subr.bf16.mxu0 0
      %1672 = vmatpush1.bf16.xpose.msra.mxu0 0
      %1673 = vmatprep.subr.bf16.mxu0 0
      %1674 = vmatpush1.bf16.xpose.msra.mxu0 0
      %1675 = vmatprep.subr.bf16.mxu0 0
      %1676 = vmatpush1.bf16.xpose.msra.mxu0 0
      %1677 = vmatprep.subr.bf16.mxu0 0
      %1678 = vmatpush1.bf16.xpose.msra.mxu0 0
      %1679 = vmatprep.mubr.bf16.mxu0 0
      %1680 = vmatmul.mubr.bf16.gmra.mrb[0].mxu0 %v1642
      %v1681 = vpop.f32.mrb[0].mxu0
      %v1682 = vadd.f32 0.0, %v1681
      %v1683 = vpop.f32.mrb[0].mxu0
      %v1684 = vpop.f32.mrb[0].mxu0
      %v1685 = vadd.f32 0.0, %v1684
      %v1686 = vpop.f32.mrb[0].mxu0
      %1687 = vdwg.mxu0
      %v1688 = vmul.f32 %v1682, 0.17677669
      %v1689 = vmul.f32 %v1685, 0.17677669
      %v1690 = vsel %vm1319, %v1688, -inf
      %1691 = vmax.xlane.f32.xlu0 %v1690
      %v1692 = vpop.xlane.xlu0 %1691
      %v1693 = vsel %vm1319, %v1689, -inf
      %1694 = vmax.xlane.f32.xlu0 %v1693
      %v1695 = vpop.xlane.xlu0 %1694
      %v1696 = vsub.f32 %v1688, %v1692
      %v1697 = vsub.f32 %v1689, %v1695
      %v1698 = vmul.f32 %v1696, 1.442695
      %v1699 = vpow.pop %v1698
      %v1700 = vmul.f32 %v1697, 1.442695
      %v1701 = vpow.pop %v1700
      %v1702 = vsel %vm1319, %v1699, 0.0
      %1703 = vadd.xlane.f32.xlu0 %v1702
      %v1704 = vpop.xlane.xlu0 %1703
      %v1705 = vsel %vm1319, %v1701, 0.0
      %1706 = vadd.xlane.f32.xlu0 %v1705
      %v1707 = vpop.xlane.xlu0 %1706
      %v1708 = vrcp.pop %v1704
      %v1709 = vrcp.pop %v1707
      %v1710 = vmul.f32 %v1699, %v1708
      %v1711 = vmul.f32 %v1701, %v1709
      %v1712 = vpack.c.bf16 %v1711, %v1710
      %1713 = vrot.lane.b32.xlu0 %v1343, 32
      %v1714 = vpop.permute.xlu0 %1713
      %v1717 = vsel %vm1319, %v1712, 0
      %1719 = vmatprep.subr.bf16.mxu0 0
      %1720 = vmatpush1.bf16.msra.mxu0 %v1714
      %1721 = vmatprep.subr.bf16.mxu0 0
      %1722 = vmatpush1.bf16.msra.mxu0 0
      %1723 = vmatprep.subr.bf16.mxu0 0
      %1724 = vmatpush1.bf16.msra.mxu0 0
      %1725 = vmatprep.subr.bf16.mxu0 0
      %1726 = vmatpush1.bf16.msra.mxu0 0
      %1727 = vmatprep.subr.bf16.mxu0 0
      %1728 = vmatpush1.bf16.msra.mxu0 0
      %1729 = vmatprep.subr.bf16.mxu0 0
      %1730 = vmatpush1.bf16.msra.mxu0 0
      %1731 = vmatprep.subr.bf16.mxu0 0
      %1732 = vmatpush1.bf16.msra.mxu0 0
      %1733 = vmatprep.subr.bf16.mxu0 0
      %1734 = vmatpush1.bf16.msra.mxu0 0
      %1735 = vmatprep.subr.bf16.mxu0 0
      %1736 = vmatpush1.bf16.msra.mxu0 0
      %1737 = vmatprep.subr.bf16.mxu0 0
      %1738 = vmatpush1.bf16.msra.mxu0 0
      %1739 = vmatprep.subr.bf16.mxu0 0
      %1740 = vmatpush1.bf16.msra.mxu0 0
      %1741 = vmatprep.subr.bf16.mxu0 0
      %1742 = vmatpush1.bf16.msra.mxu0 0
      %1743 = vmatprep.subr.bf16.mxu0 0
      %1744 = vmatpush1.bf16.msra.mxu0 0
      %1745 = vmatprep.subr.bf16.mxu0 0
      %1746 = vmatpush1.bf16.msra.mxu0 0
      %1747 = vmatprep.subr.bf16.mxu0 0
      %1748 = vmatpush1.bf16.msra.mxu0 0
      %1749 = vmatprep.subr.bf16.mxu0 0
      %1750 = vmatpush1.bf16.msra.mxu0 0
      %1751 = vmatprep.mubr.bf16.mxu0 0
      %1752 = vmatmul.mubr.bf16.gmra.mrb[0].mxu0 %v1717
      %v1753 = vpop.f32.mrb[0].mxu0
      %v1754 = vadd.f32 0.0, %v1753
      %v1755 = vpop.f32.mrb[0].mxu0
      %v1756 = vpop.f32.mrb[0].mxu0
      %v1757 = vadd.f32 0.0, %v1756
      %v1758 = vpop.f32.mrb[0].mxu0
      %1759 = vdwg.mxu0
      %v1760 = vpack.c.bf16 %v771, %v767
      %v1761 = vpack.c.bf16 %v1222, %v1218
      %v1763 = vsel %vm1269, %v1760, 0
      %v1766 = vsel %vm1269, %v1761, 0
      %1768 = vmatprep.subr.bf16.mxu0 0
      %1769 = vmatpush1.bf16.xpose.msra.mxu0 %v1766
      %1770 = vmatprep.subr.bf16.mxu0 0
      %1771 = vmatpush1.bf16.xpose.msra.mxu0 0
      %1772 = vmatprep.subr.bf16.mxu0 0
      %1773 = vmatpush1.bf16.xpose.msra.mxu0 0
      %1774 = vmatprep.subr.bf16.mxu0 0
      %1775 = vmatpush1.bf16.xpose.msra.mxu0 0
      %1776 = vmatprep.subr.bf16.mxu0 0
      %1777 = vmatpush1.bf16.xpose.msra.mxu0 0
      %1778 = vmatprep.subr.bf16.mxu0 0
      %1779 = vmatpush1.bf16.xpose.msra.mxu0 0
      %1780 = vmatprep.subr.bf16.mxu0 0
      %1781 = vmatpush1.bf16.xpose.msra.mxu0 0
      %1782 = vmatprep.subr.bf16.mxu0 0
      %1783 = vmatpush1.bf16.xpose.msra.mxu0 0
      %1784 = vmatprep.subr.bf16.mxu0 0
      %1785 = vmatpush1.bf16.xpose.msra.mxu0 0
      %1786 = vmatprep.subr.bf16.mxu0 0
      %1787 = vmatpush1.bf16.xpose.msra.mxu0 0
      %1788 = vmatprep.subr.bf16.mxu0 0
      %1789 = vmatpush1.bf16.xpose.msra.mxu0 0
      %1790 = vmatprep.subr.bf16.mxu0 0
      %1791 = vmatpush1.bf16.xpose.msra.mxu0 0
      %1792 = vmatprep.subr.bf16.mxu0 0
      %1793 = vmatpush1.bf16.xpose.msra.mxu0 0
      %1794 = vmatprep.subr.bf16.mxu0 0
      %1795 = vmatpush1.bf16.xpose.msra.mxu0 0
      %1796 = vmatprep.subr.bf16.mxu0 0
      %1797 = vmatpush1.bf16.xpose.msra.mxu0 0
      %1798 = vmatprep.subr.bf16.mxu0 0
      %1799 = vmatpush1.bf16.xpose.msra.mxu0 0
      %1800 = vmatprep.mubr.bf16.mxu0 0
      %1801 = vmatmul.mubr.bf16.gmra.mrb[0].mxu0 %v1763
      %v1802 = vpop.f32.mrb[0].mxu0
      %v1803 = vadd.f32 0.0, %v1802
      %v1804 = vpop.f32.mrb[0].mxu0
      %v1805 = vpop.f32.mrb[0].mxu0
      %v1806 = vadd.f32 0.0, %v1805
      %v1807 = vpop.f32.mrb[0].mxu0
      %1808 = vdwg.mxu0
      %v1809 = vmul.f32 %v1803, 0.17677669
      %v1810 = vmul.f32 %v1806, 0.17677669
      %v1811 = vsel %vm1319, %v1809, -inf
      %1812 = vmax.xlane.f32.xlu0 %v1811
      %v1813 = vpop.xlane.xlu0 %1812
      %v1814 = vsel %vm1319, %v1810, -inf
      %1815 = vmax.xlane.f32.xlu0 %v1814
      %v1816 = vpop.xlane.xlu0 %1815
      %v1817 = vsub.f32 %v1809, %v1813
      %v1818 = vsub.f32 %v1810, %v1816
      %v1819 = vmul.f32 %v1817, 1.442695
      %v1820 = vpow.pop %v1819
      %v1821 = vmul.f32 %v1818, 1.442695
      %v1822 = vpow.pop %v1821
      %v1823 = vsel %vm1319, %v1820, 0.0
      %1824 = vadd.xlane.f32.xlu0 %v1823
      %v1825 = vpop.xlane.xlu0 %1824
      %v1826 = vsel %vm1319, %v1822, 0.0
      %1827 = vadd.xlane.f32.xlu0 %v1826
      %v1828 = vpop.xlane.xlu0 %1827
      %v1829 = vrcp.pop %v1825
      %v1830 = vrcp.pop %v1828
      %v1831 = vmul.f32 %v1820, %v1829
      %v1832 = vmul.f32 %v1822, %v1830
      %v1833 = vpack.c.bf16 %v1832, %v1831
      %v1834 = vpack.c.bf16 %v1265, %v1261
      %v1836 = vsel %vm1319, %v1833, 0
      %1838 = vmatprep.subr.bf16.mxu0 0
      %1839 = vmatpush1.bf16.msra.mxu0 %v1834
      %1840 = vmatprep.subr.bf16.mxu0 0
      %1841 = vmatpush1.bf16.msra.mxu0 0
      %1842 = vmatprep.subr.bf16.mxu0 0
      %1843 = vmatpush1.bf16.msra.mxu0 0
      %1844 = vmatprep.subr.bf16.mxu0 0
      %1845 = vmatpush1.bf16.msra.mxu0 0
      %1846 = vmatprep.subr.bf16.mxu0 0
      %1847 = vmatpush1.bf16.msra.mxu0 0
      %1848 = vmatprep.subr.bf16.mxu0 0
      %1849 = vmatpush1.bf16.msra.mxu0 0
      %1850 = vmatprep.subr.bf16.mxu0 0
      %1851 = vmatpush1.bf16.msra.mxu0 0
      %1852 = vmatprep.subr.bf16.mxu0 0
      %1853 = vmatpush1.bf16.msra.mxu0 0
      %1854 = vmatprep.subr.bf16.mxu0 0
      %1855 = vmatpush1.bf16.msra.mxu0 0
      %1856 = vmatprep.subr.bf16.mxu0 0
      %1857 = vmatpush1.bf16.msra.mxu0 0
      %1858 = vmatprep.subr.bf16.mxu0 0
      %1859 = vmatpush1.bf16.msra.mxu0 0
      %1860 = vmatprep.subr.bf16.mxu0 0
      %1861 = vmatpush1.bf16.msra.mxu0 0
      %1862 = vmatprep.subr.bf16.mxu0 0
      %1863 = vmatpush1.bf16.msra.mxu0 0
      %1864 = vmatprep.subr.bf16.mxu0 0
      %1865 = vmatpush1.bf16.msra.mxu0 0
      %1866 = vmatprep.subr.bf16.mxu0 0
      %1867 = vmatpush1.bf16.msra.mxu0 0
      %1868 = vmatprep.subr.bf16.mxu0 0
      %1869 = vmatpush1.bf16.msra.mxu0 0
      %1870 = vmatprep.mubr.bf16.mxu0 0
      %1871 = vmatmul.mubr.bf16.gmra.mrb[0].mxu0 %v1836
      %v1872 = vpop.f32.mrb[0].mxu0
      %v1873 = vadd.f32 0.0, %v1872
      %v1874 = vpop.f32.mrb[0].mxu0
      %v1875 = vpop.f32.mrb[0].mxu0
      %v1876 = vadd.f32 0.0, %v1875
      %v1877 = vpop.f32.mrb[0].mxu0
      %1878 = vdwg.mxu0
      %1880 = vrot.lane.b32.xlu0 %v1760, 96
      %v1881 = vpop.permute.xlu0 %1880
      %1883 = vrot.lane.b32.xlu0 %v1761, 96
      %v1884 = vpop.permute.xlu0 %1883
      %v1886 = vsel %vm1269, %v1881, 0
      %v1889 = vsel %vm1269, %v1884, 0
      %1891 = vmatprep.subr.bf16.mxu0 0
      %1892 = vmatpush1.bf16.xpose.msra.mxu0 %v1889
      %1893 = vmatprep.subr.bf16.mxu0 0
      %1894 = vmatpush1.bf16.xpose.msra.mxu0 0
      %1895 = vmatprep.subr.bf16.mxu0 0
      %1896 = vmatpush1.bf16.xpose.msra.mxu0 0
      %1897 = vmatprep.subr.bf16.mxu0 0
      %1898 = vmatpush1.bf16.xpose.msra.mxu0 0
      %1899 = vmatprep.subr.bf16.mxu0 0
      %1900 = vmatpush1.bf16.xpose.msra.mxu0 0
      %1901 = vmatprep.subr.bf16.mxu0 0
      %1902 = vmatpush1.bf16.xpose.msra.mxu0 0
      %1903 = vmatprep.subr.bf16.mxu0 0
      %1904 = vmatpush1.bf16.xpose.msra.mxu0 0
      %1905 = vmatprep.subr.bf16.mxu0 0
      %1906 = vmatpush1.bf16.xpose.msra.mxu0 0
      %1907 = vmatprep.subr.bf16.mxu0 0
      %1908 = vmatpush1.bf16.xpose.msra.mxu0 0
      %1909 = vmatprep.subr.bf16.mxu0 0
      %1910 = vmatpush1.bf16.xpose.msra.mxu0 0
      %1911 = vmatprep.subr.bf16.mxu0 0
      %1912 = vmatpush1.bf16.xpose.msra.mxu0 0
      %1913 = vmatprep.subr.bf16.mxu0 0
      %1914 = vmatpush1.bf16.xpose.msra.mxu0 0
      %1915 = vmatprep.subr.bf16.mxu0 0
      %1916 = vmatpush1.bf16.xpose.msra.mxu0 0
      %1917 = vmatprep.subr.bf16.mxu0 0
      %1918 = vmatpush1.bf16.xpose.msra.mxu0 0
      %1919 = vmatprep.subr.bf16.mxu0 0
      %1920 = vmatpush1.bf16.xpose.msra.mxu0 0
      %1921 = vmatprep.subr.bf16.mxu0 0
      %1922 = vmatpush1.bf16.xpose.msra.mxu0 0
      %1923 = vmatprep.mubr.bf16.mxu0 0
      %1924 = vmatmul.mubr.bf16.gmra.mrb[0].mxu0 %v1886
      %v1925 = vpop.f32.mrb[0].mxu0
      %v1926 = vadd.f32 0.0, %v1925
      %v1927 = vpop.f32.mrb[0].mxu0
      %v1928 = vpop.f32.mrb[0].mxu0
      %v1929 = vadd.f32 0.0, %v1928
      %v1930 = vpop.f32.mrb[0].mxu0
      %1931 = vdwg.mxu0
      %v1932 = vmul.f32 %v1926, 0.17677669
      %v1933 = vmul.f32 %v1929, 0.17677669
      %v1934 = vsel %vm1319, %v1932, -inf
      %1935 = vmax.xlane.f32.xlu0 %v1934
      %v1936 = vpop.xlane.xlu0 %1935
      %v1937 = vsel %vm1319, %v1933, -inf
      %1938 = vmax.xlane.f32.xlu0 %v1937
      %v1939 = vpop.xlane.xlu0 %1938
      %v1940 = vsub.f32 %v1932, %v1936
      %v1941 = vsub.f32 %v1933, %v1939
      %v1942 = vmul.f32 %v1940, 1.442695
      %v1943 = vpow.pop %v1942
      %v1944 = vmul.f32 %v1941, 1.442695
      %v1945 = vpow.pop %v1944
      %v1946 = vsel %vm1319, %v1943, 0.0
      %1947 = vadd.xlane.f32.xlu0 %v1946
      %v1948 = vpop.xlane.xlu0 %1947
      %v1949 = vsel %vm1319, %v1945, 0.0
      %1950 = vadd.xlane.f32.xlu0 %v1949
      %v1951 = vpop.xlane.xlu0 %1950
      %v1952 = vrcp.pop %v1948
      %v1953 = vrcp.pop %v1951
      %v1954 = vmul.f32 %v1943, %v1952
      %v1955 = vmul.f32 %v1945, %v1953
      %v1956 = vpack.c.bf16 %v1955, %v1954
      %1958 = vrot.lane.b32.xlu0 %v1834, 96
      %v1959 = vpop.permute.xlu0 %1958
      %v1962 = vsel %vm1319, %v1956, 0
      %1964 = vmatprep.subr.bf16.mxu0 0
      %1965 = vmatpush1.bf16.msra.mxu0 %v1959
      %1966 = vmatprep.subr.bf16.mxu0 0
      %1967 = vmatpush1.bf16.msra.mxu0 0
      %1968 = vmatprep.subr.bf16.mxu0 0
      %1969 = vmatpush1.bf16.msra.mxu0 0
      %1970 = vmatprep.subr.bf16.mxu0 0
      %1971 = vmatpush1.bf16.msra.mxu0 0
      %1972 = vmatprep.subr.bf16.mxu0 0
      %1973 = vmatpush1.bf16.msra.mxu0 0
      %1974 = vmatprep.subr.bf16.mxu0 0
      %1975 = vmatpush1.bf16.msra.mxu0 0
      %1976 = vmatprep.subr.bf16.mxu0 0
      %1977 = vmatpush1.bf16.msra.mxu0 0
      %1978 = vmatprep.subr.bf16.mxu0 0
      %1979 = vmatpush1.bf16.msra.mxu0 0
      %1980 = vmatprep.subr.bf16.mxu0 0
      %1981 = vmatpush1.bf16.msra.mxu0 0
      %1982 = vmatprep.subr.bf16.mxu0 0
      %1983 = vmatpush1.bf16.msra.mxu0 0
      %1984 = vmatprep.subr.bf16.mxu0 0
      %1985 = vmatpush1.bf16.msra.mxu0 0
      %1986 = vmatprep.subr.bf16.mxu0 0
      %1987 = vmatpush1.bf16.msra.mxu0 0
      %1988 = vmatprep.subr.bf16.mxu0 0
      %1989 = vmatpush1.bf16.msra.mxu0 0
      %1990 = vmatprep.subr.bf16.mxu0 0
      %1991 = vmatpush1.bf16.msra.mxu0 0
      %1992 = vmatprep.subr.bf16.mxu0 0
      %1993 = vmatpush1.bf16.msra.mxu0 0
      %1994 = vmatprep.subr.bf16.mxu0 0
      %1995 = vmatpush1.bf16.msra.mxu0 0
      %1996 = vmatprep.mubr.bf16.mxu0 0
      %1997 = vmatmul.mubr.bf16.gmra.mrb[0].mxu0 %v1962
      %v1998 = vpop.f32.mrb[0].mxu0
      %v1999 = vadd.f32 0.0, %v1998
      %v2000 = vpop.f32.mrb[0].mxu0
      %v2001 = vpop.f32.mrb[0].mxu0
      %v2002 = vadd.f32 0.0, %v2001
      %v2003 = vpop.f32.mrb[0].mxu0
      %2004 = vdwg.mxu0
      %2005 = vrot.lane.b32.xlu0 %v1760, 64
      %v2006 = vpop.permute.xlu0 %2005
      %2007 = vrot.lane.b32.xlu0 %v1761, 64
      %v2008 = vpop.permute.xlu0 %2007
      %v2010 = vsel %vm1269, %v2006, 0
      %v2013 = vsel %vm1269, %v2008, 0
      %2015 = vmatprep.subr.bf16.mxu0 0
      %2016 = vmatpush1.bf16.xpose.msra.mxu0 %v2013
      %2017 = vmatprep.subr.bf16.mxu0 0
      %2018 = vmatpush1.bf16.xpose.msra.mxu0 0
      %2019 = vmatprep.subr.bf16.mxu0 0
      %2020 = vmatpush1.bf16.xpose.msra.mxu0 0
      %2021 = vmatprep.subr.bf16.mxu0 0
      %2022 = vmatpush1.bf16.xpose.msra.mxu0 0
      %2023 = vmatprep.subr.bf16.mxu0 0
      %2024 = vmatpush1.bf16.xpose.msra.mxu0 0
      %2025 = vmatprep.subr.bf16.mxu0 0
      %2026 = vmatpush1.bf16.xpose.msra.mxu0 0
      %2027 = vmatprep.subr.bf16.mxu0 0
      %2028 = vmatpush1.bf16.xpose.msra.mxu0 0
      %2029 = vmatprep.subr.bf16.mxu0 0
      %2030 = vmatpush1.bf16.xpose.msra.mxu0 0
      %2031 = vmatprep.subr.bf16.mxu0 0
      %2032 = vmatpush1.bf16.xpose.msra.mxu0 0
      %2033 = vmatprep.subr.bf16.mxu0 0
      %2034 = vmatpush1.bf16.xpose.msra.mxu0 0
      %2035 = vmatprep.subr.bf16.mxu0 0
      %2036 = vmatpush1.bf16.xpose.msra.mxu0 0
      %2037 = vmatprep.subr.bf16.mxu0 0
      %2038 = vmatpush1.bf16.xpose.msra.mxu0 0
      %2039 = vmatprep.subr.bf16.mxu0 0
      %2040 = vmatpush1.bf16.xpose.msra.mxu0 0
      %2041 = vmatprep.subr.bf16.mxu0 0
      %2042 = vmatpush1.bf16.xpose.msra.mxu0 0
      %2043 = vmatprep.subr.bf16.mxu0 0
      %2044 = vmatpush1.bf16.xpose.msra.mxu0 0
      %2045 = vmatprep.subr.bf16.mxu0 0
      %2046 = vmatpush1.bf16.xpose.msra.mxu0 0
      %2047 = vmatprep.mubr.bf16.mxu0 0
      %2048 = vmatmul.mubr.bf16.gmra.mrb[0].mxu0 %v2010
      %v2049 = vpop.f32.mrb[0].mxu0
      %v2050 = vadd.f32 0.0, %v2049
      %v2051 = vpop.f32.mrb[0].mxu0
      %v2052 = vpop.f32.mrb[0].mxu0
      %v2053 = vadd.f32 0.0, %v2052
      %v2054 = vpop.f32.mrb[0].mxu0
      %2055 = vdwg.mxu0
      %v2056 = vmul.f32 %v2050, 0.17677669
      %v2057 = vmul.f32 %v2053, 0.17677669
      %v2058 = vsel %vm1319, %v2056, -inf
      %2059 = vmax.xlane.f32.xlu0 %v2058
      %v2060 = vpop.xlane.xlu0 %2059
      %v2061 = vsel %vm1319, %v2057, -inf
      %2062 = vmax.xlane.f32.xlu0 %v2061
      %v2063 = vpop.xlane.xlu0 %2062
      %v2064 = vsub.f32 %v2056, %v2060
      %v2065 = vsub.f32 %v2057, %v2063
      %v2066 = vmul.f32 %v2064, 1.442695
      %v2067 = vpow.pop %v2066
      %v2068 = vmul.f32 %v2065, 1.442695
      %v2069 = vpow.pop %v2068
      %v2070 = vsel %vm1319, %v2067, 0.0
      %2071 = vadd.xlane.f32.xlu0 %v2070
      %v2072 = vpop.xlane.xlu0 %2071
      %v2073 = vsel %vm1319, %v2069, 0.0
      %2074 = vadd.xlane.f32.xlu0 %v2073
      %v2075 = vpop.xlane.xlu0 %2074
      %v2076 = vrcp.pop %v2072
      %v2077 = vrcp.pop %v2075
      %v2078 = vmul.f32 %v2067, %v2076
      %v2079 = vmul.f32 %v2069, %v2077
      %v2080 = vpack.c.bf16 %v2079, %v2078
      %2081 = vrot.lane.b32.xlu0 %v1834, 64
      %v2082 = vpop.permute.xlu0 %2081
      %v2085 = vsel %vm1319, %v2080, 0
      %2087 = vmatprep.subr.bf16.mxu0 0
      %2088 = vmatpush1.bf16.msra.mxu0 %v2082
      %2089 = vmatprep.subr.bf16.mxu0 0
      %2090 = vmatpush1.bf16.msra.mxu0 0
      %2091 = vmatprep.subr.bf16.mxu0 0
      %2092 = vmatpush1.bf16.msra.mxu0 0
      %2093 = vmatprep.subr.bf16.mxu0 0
      %2094 = vmatpush1.bf16.msra.mxu0 0
      %2095 = vmatprep.subr.bf16.mxu0 0
      %2096 = vmatpush1.bf16.msra.mxu0 0
      %2097 = vmatprep.subr.bf16.mxu0 0
      %2098 = vmatpush1.bf16.msra.mxu0 0
      %2099 = vmatprep.subr.bf16.mxu0 0
      %2100 = vmatpush1.bf16.msra.mxu0 0
      %2101 = vmatprep.subr.bf16.mxu0 0
      %2102 = vmatpush1.bf16.msra.mxu0 0
      %2103 = vmatprep.subr.bf16.mxu0 0
      %2104 = vmatpush1.bf16.msra.mxu0 0
      %2105 = vmatprep.subr.bf16.mxu0 0
      %2106 = vmatpush1.bf16.msra.mxu0 0
      %2107 = vmatprep.subr.bf16.mxu0 0
      %2108 = vmatpush1.bf16.msra.mxu0 0
      %2109 = vmatprep.subr.bf16.mxu0 0
      %2110 = vmatpush1.bf16.msra.mxu0 0
      %2111 = vmatprep.subr.bf16.mxu0 0
      %2112 = vmatpush1.bf16.msra.mxu0 0
      %2113 = vmatprep.subr.bf16.mxu0 0
      %2114 = vmatpush1.bf16.msra.mxu0 0
      %2115 = vmatprep.subr.bf16.mxu0 0
      %2116 = vmatpush1.bf16.msra.mxu0 0
      %2117 = vmatprep.subr.bf16.mxu0 0
      %2118 = vmatpush1.bf16.msra.mxu0 0
      %2119 = vmatprep.mubr.bf16.mxu0 0
      %2120 = vmatmul.mubr.bf16.gmra.mrb[0].mxu0 %v2085
      %v2121 = vpop.f32.mrb[0].mxu0
      %v2122 = vadd.f32 0.0, %v2121
      %v2123 = vpop.f32.mrb[0].mxu0
      %v2124 = vpop.f32.mrb[0].mxu0
      %v2125 = vadd.f32 0.0, %v2124
      %v2126 = vpop.f32.mrb[0].mxu0
      %2127 = vdwg.mxu0
      %2128 = vrot.lane.b32.xlu0 %v1760, 32
      %v2129 = vpop.permute.xlu0 %2128
      %2130 = vrot.lane.b32.xlu0 %v1761, 32
      %v2131 = vpop.permute.xlu0 %2130
      %v2133 = vsel %vm1269, %v2129, 0
      %v2136 = vsel %vm1269, %v2131, 0
      %2138 = vmatprep.subr.bf16.mxu0 0
      %2139 = vmatpush1.bf16.xpose.msra.mxu0 %v2136
      %2140 = vmatprep.subr.bf16.mxu0 0
      %2141 = vmatpush1.bf16.xpose.msra.mxu0 0
      %2142 = vmatprep.subr.bf16.mxu0 0
      %2143 = vmatpush1.bf16.xpose.msra.mxu0 0
      %2144 = vmatprep.subr.bf16.mxu0 0
      %2145 = vmatpush1.bf16.xpose.msra.mxu0 0
      %2146 = vmatprep.subr.bf16.mxu0 0
      %2147 = vmatpush1.bf16.xpose.msra.mxu0 0
      %2148 = vmatprep.subr.bf16.mxu0 0
      %2149 = vmatpush1.bf16.xpose.msra.mxu0 0
      %2150 = vmatprep.subr.bf16.mxu0 0
      %2151 = vmatpush1.bf16.xpose.msra.mxu0 0
      %2152 = vmatprep.subr.bf16.mxu0 0
      %2153 = vmatpush1.bf16.xpose.msra.mxu0 0
      %2154 = vmatprep.subr.bf16.mxu0 0
      %2155 = vmatpush1.bf16.xpose.msra.mxu0 0
      %2156 = vmatprep.subr.bf16.mxu0 0
      %2157 = vmatpush1.bf16.xpose.msra.mxu0 0
      %2158 = vmatprep.subr.bf16.mxu0 0
      %2159 = vmatpush1.bf16.xpose.msra.mxu0 0
      %2160 = vmatprep.subr.bf16.mxu0 0
      %2161 = vmatpush1.bf16.xpose.msra.mxu0 0
      %2162 = vmatprep.subr.bf16.mxu0 0
      %2163 = vmatpush1.bf16.xpose.msra.mxu0 0
      %2164 = vmatprep.subr.bf16.mxu0 0
      %2165 = vmatpush1.bf16.xpose.msra.mxu0 0
      %2166 = vmatprep.subr.bf16.mxu0 0
      %2167 = vmatpush1.bf16.xpose.msra.mxu0 0
      %2168 = vmatprep.subr.bf16.mxu0 0
      %2169 = vmatpush1.bf16.xpose.msra.mxu0 0
      %2170 = vmatprep.mubr.bf16.mxu0 0
      %2171 = vmatmul.mubr.bf16.gmra.mrb[0].mxu0 %v2133
      %v2172 = vpop.f32.mrb[0].mxu0
      %v2173 = vadd.f32 0.0, %v2172
      %v2174 = vpop.f32.mrb[0].mxu0
      %v2175 = vpop.f32.mrb[0].mxu0
      %v2176 = vadd.f32 0.0, %v2175
      %v2177 = vpop.f32.mrb[0].mxu0
      %2178 = vdwg.mxu0
      %v2179 = vmul.f32 %v2173, 0.17677669
      %v2180 = vmul.f32 %v2176, 0.17677669
      %v2181 = vsel %vm1319, %v2179, -inf
      %2182 = vmax.xlane.f32.xlu0 %v2181
      %v2183 = vpop.xlane.xlu0 %2182
      %v2184 = vsel %vm1319, %v2180, -inf
      %2185 = vmax.xlane.f32.xlu0 %v2184
      %v2186 = vpop.xlane.xlu0 %2185
      %v2187 = vsub.f32 %v2179, %v2183
      %v2188 = vsub.f32 %v2180, %v2186
      %v2189 = vmul.f32 %v2187, 1.442695
      %v2190 = vpow.pop %v2189
      %v2191 = vmul.f32 %v2188, 1.442695
      %v2192 = vpow.pop %v2191
      %v2193 = vsel %vm1319, %v2190, 0.0
      %2194 = vadd.xlane.f32.xlu0 %v2193
      %v2195 = vpop.xlane.xlu0 %2194
      %v2196 = vsel %vm1319, %v2192, 0.0
      %2197 = vadd.xlane.f32.xlu0 %v2196
      %v2198 = vpop.xlane.xlu0 %2197
      %v2199 = vrcp.pop %v2195
      %v2200 = vrcp.pop %v2198
      %v2201 = vmul.f32 %v2190, %v2199
      %v2202 = vmul.f32 %v2192, %v2200
      %v2203 = vpack.c.bf16 %v2202, %v2201
      %2204 = vrot.lane.b32.xlu0 %v1834, 32
      %v2205 = vpop.permute.xlu0 %2204
      %v2208 = vsel %vm1319, %v2203, 0
      %2210 = vmatprep.subr.bf16.mxu0 0
      %2211 = vmatpush1.bf16.msra.mxu0 %v2205
      %2212 = vmatprep.subr.bf16.mxu0 0
      %2213 = vmatpush1.bf16.msra.mxu0 0
      %2214 = vmatprep.subr.bf16.mxu0 0
      %2215 = vmatpush1.bf16.msra.mxu0 0
      %2216 = vmatprep.subr.bf16.mxu0 0
      %2217 = vmatpush1.bf16.msra.mxu0 0
      %2218 = vmatprep.subr.bf16.mxu0 0
      %2219 = vmatpush1.bf16.msra.mxu0 0
      %2220 = vmatprep.subr.bf16.mxu0 0
      %2221 = vmatpush1.bf16.msra.mxu0 0
      %2222 = vmatprep.subr.bf16.mxu0 0
      %2223 = vmatpush1.bf16.msra.mxu0 0
      %2224 = vmatprep.subr.bf16.mxu0 0
      %2225 = vmatpush1.bf16.msra.mxu0 0
      %2226 = vmatprep.subr.bf16.mxu0 0
      %2227 = vmatpush1.bf16.msra.mxu0 0
      %2228 = vmatprep.subr.bf16.mxu0 0
      %2229 = vmatpush1.bf16.msra.mxu0 0
      %2230 = vmatprep.subr.bf16.mxu0 0
      %2231 = vmatpush1.bf16.msra.mxu0 0
      %2232 = vmatprep.subr.bf16.mxu0 0
      %2233 = vmatpush1.bf16.msra.mxu0 0
      %2234 = vmatprep.subr.bf16.mxu0 0
      %2235 = vmatpush1.bf16.msra.mxu0 0
      %2236 = vmatprep.subr.bf16.mxu0 0
      %2237 = vmatpush1.bf16.msra.mxu0 0
      %2238 = vmatprep.subr.bf16.mxu0 0
      %2239 = vmatpush1.bf16.msra.mxu0 0
      %2240 = vmatprep.subr.bf16.mxu0 0
      %2241 = vmatpush1.bf16.msra.mxu0 0
      %2242 = vmatprep.mubr.bf16.mxu0 0
      %2243 = vmatmul.mubr.bf16.gmra.mrb[0].mxu0 %v2208
      %v2244 = vpop.f32.mrb[0].mxu0
      %v2245 = vadd.f32 0.0, %v2244
      %v2246 = vpop.f32.mrb[0].mxu0
      %v2247 = vpop.f32.mrb[0].mxu0
      %v2248 = vadd.f32 0.0, %v2247
      %v2249 = vpop.f32.mrb[0].mxu0
      %2250 = vdwg.mxu0
      %2253 = vrot.lane.b32.xlu0 %v1508, 32
      %v2254 = vpop.permute.xlu0 %2253
      %2255 = vrot.lane.b32.xlu0 %v1511, 32
      %v2256 = vpop.permute.xlu0 %2255
      %2261 = vrot.lane.b32.xlu0 %v1631, 64
      %v2262 = vpop.permute.xlu0 %2261
      %2263 = vrot.lane.b32.xlu0 %v1634, 64
      %v2264 = vpop.permute.xlu0 %2263
      %2269 = vrot.lane.b32.xlu0 %v1754, 96
      %v2270 = vpop.permute.xlu0 %2269
      %2271 = vrot.lane.b32.xlu0 %v1757, 96
      %v2272 = vpop.permute.xlu0 %2271
      %2277 = vrot.lane.b32.xlu0 %v1999, 32
      %v2278 = vpop.permute.xlu0 %2277
      %2279 = vrot.lane.b32.xlu0 %v2002, 32
      %v2280 = vpop.permute.xlu0 %2279
      %2285 = vrot.lane.b32.xlu0 %v2122, 64
      %v2286 = vpop.permute.xlu0 %2285
      %2287 = vrot.lane.b32.xlu0 %v2125, 64
      %v2288 = vpop.permute.xlu0 %2287
      %2293 = vrot.lane.b32.xlu0 %v2245, 96
      %v2294 = vpop.permute.xlu0 %2293
      %2295 = vrot.lane.b32.xlu0 %v2248, 96
      %v2296 = vpop.permute.xlu0 %2295
      %v2299 = vsel %vm1269, %v1382, %v2254
      %v2300 = vsel %vm1269, %v1385, %v2256
      %vm2301 = vcmask 523264
      %v2302 = vsel %vm2301, %v2299, %v2262
      %v2303 = vsel %vm2301, %v2300, %v2264
      %vm2304 = vcmask 785408
      %v2305 = vsel %vm2304, %v2302, %v2270
      %v2306 = vsel %vm2304, %v2303, %v2272
      %v2307 = vsel %vm1269, %v1873, %v2278
      %v2308 = vsel %vm1269, %v1876, %v2280
      %v2309 = vsel %vm2301, %v2307, %v2286
      %v2310 = vsel %vm2301, %v2308, %v2288
      %v2311 = vsel %vm2304, %v2309, %v2294
      %v2312 = vsel %vm2304, %v2310, %v2296
      %v2313 = vpack.c.bf16 %v2306, %v2305
      %v2314 = vpack.c.bf16 %v2312, %v2311
      %v2315 = vld [vmem:[%s6] sm:$0xff]
      %v2316 = vld [vmem:[%s6 + $0x8] sm:$0xff]
      %v2317 = vld [vmem:[%s6 + $0x10] sm:$0xff]
      %v2318 = vld [vmem:[%s6 + $0x18] sm:$0xff]
      %v2319 = vld [vmem:[%s6 + $0x20] sm:$0xff]
      %v2320 = vld [vmem:[%s6 + $0x28] sm:$0xff]
      %v2321 = vld [vmem:[%s6 + $0x30] sm:$0xff]
      %v2322 = vld [vmem:[%s6 + $0x38] sm:$0xff]
      %v2323 = vld [vmem:[%s6 + $0x40] sm:$0xff]
      %v2324 = vld [vmem:[%s6 + $0x48] sm:$0xff]
      %v2325 = vld [vmem:[%s6 + $0x50] sm:$0xff]
      %v2326 = vld [vmem:[%s6 + $0x58] sm:$0xff]
      %v2327 = vld [vmem:[%s6 + $0x60] sm:$0xff]
      %v2328 = vld [vmem:[%s6 + $0x68] sm:$0xff]
      %v2329 = vld [vmem:[%s6 + $0x70] sm:$0xff]
      %v2330 = vld [vmem:[%s6 + $0x78] sm:$0xff]
      %v2331 = vld [vmem:[%s6 + $0x80] sm:$0xff]
      %v2332 = vld [vmem:[%s6 + $0x88] sm:$0xff]
      %v2333 = vld [vmem:[%s6 + $0x90] sm:$0xff]
      %v2334 = vld [vmem:[%s6 + $0x98] sm:$0xff]
      %v2335 = vld [vmem:[%s6 + $0xa0] sm:$0xff]
      %v2336 = vld [vmem:[%s6 + $0xa8] sm:$0xff]
      %v2337 = vld [vmem:[%s6 + $0xb0] sm:$0xff]
      %v2338 = vld [vmem:[%s6 + $0xb8] sm:$0xff]
      %v2339 = vld [vmem:[%s6 + $0xc0] sm:$0xff]
      %v2340 = vld [vmem:[%s6 + $0xc8] sm:$0xff]
      %v2341 = vld [vmem:[%s6 + $0xd0] sm:$0xff]
      %v2342 = vld [vmem:[%s6 + $0xd8] sm:$0xff]
      %v2343 = vld [vmem:[%s6 + $0xe0] sm:$0xff]
      %v2344 = vld [vmem:[%s6 + $0xe8] sm:$0xff]
      %v2345 = vld [vmem:[%s6 + $0xf0] sm:$0xff]
      %v2346 = vld [vmem:[%s6 + $0xf8] sm:$0xff]
      %v2347 = vld [vmem:[%s7] sm:$0x3]
      %v2349 = vlaneseq
      %v2350 = vshrl.u32 %v2349, 7
      %v2351 = vsub.s32 0, %v2350
      %v2352 = vrot.slane %v2347, %v2351
      %v2353 = vlaneseq
      %v2354 = vshrl.u32 %v2353, 7
      %v2355 = vsub.s32 1, %v2354
      %v2356 = vrot.slane %v2347, %v2355
      %v2391 = vunpack.c.l.b16 %v2315
      %v2392 = vunpack.c.h.b16 %v2315
      %v2393 = vunpack.c.l.b16 %v2316
      %v2394 = vunpack.c.h.b16 %v2316
      %v2395 = vunpack.c.l.b16 %v2317
      %v2396 = vunpack.c.h.b16 %v2317
      %v2397 = vunpack.c.l.b16 %v2318
      %v2398 = vunpack.c.h.b16 %v2318
      %v2399 = vunpack.c.l.b16 %v2319
      %v2400 = vunpack.c.h.b16 %v2319
      %v2401 = vunpack.c.l.b16 %v2320
      %v2402 = vunpack.c.h.b16 %v2320
      %v2403 = vunpack.c.l.b16 %v2321
      %v2404 = vunpack.c.h.b16 %v2321
      %v2405 = vunpack.c.l.b16 %v2322
      %v2406 = vunpack.c.h.b16 %v2322
      %v2407 = vunpack.c.l.b16 %v2323
      %v2408 = vunpack.c.h.b16 %v2323
      %v2409 = vunpack.c.l.b16 %v2324
      %v2410 = vunpack.c.h.b16 %v2324
      %v2411 = vunpack.c.l.b16 %v2325
      %v2412 = vunpack.c.h.b16 %v2325
      %v2413 = vunpack.c.l.b16 %v2326
      %v2414 = vunpack.c.h.b16 %v2326
      %v2415 = vunpack.c.l.b16 %v2327
      %v2416 = vunpack.c.h.b16 %v2327
      %v2417 = vunpack.c.l.b16 %v2328
      %v2418 = vunpack.c.h.b16 %v2328
      %v2419 = vunpack.c.l.b16 %v2329
      %v2420 = vunpack.c.h.b16 %v2329
      %v2421 = vunpack.c.l.b16 %v2330
      %v2422 = vunpack.c.h.b16 %v2330
      %v2423 = vunpack.c.l.b16 %v2331
      %v2424 = vunpack.c.h.b16 %v2331
      %v2425 = vunpack.c.l.b16 %v2332
      %v2426 = vunpack.c.h.b16 %v2332
      %v2427 = vunpack.c.l.b16 %v2333
      %v2428 = vunpack.c.h.b16 %v2333
      %v2429 = vunpack.c.l.b16 %v2334
      %v2430 = vunpack.c.h.b16 %v2334
      %v2431 = vunpack.c.l.b16 %v2335
      %v2432 = vunpack.c.h.b16 %v2335
      %v2433 = vunpack.c.l.b16 %v2336
      %v2434 = vunpack.c.h.b16 %v2336
      %v2435 = vunpack.c.l.b16 %v2337
      %v2436 = vunpack.c.h.b16 %v2337
      %v2437 = vunpack.c.l.b16 %v2338
      %v2438 = vunpack.c.h.b16 %v2338
      %v2439 = vunpack.c.l.b16 %v2339
      %v2440 = vunpack.c.h.b16 %v2339
      %v2441 = vunpack.c.l.b16 %v2340
      %v2442 = vunpack.c.h.b16 %v2340
      %v2443 = vunpack.c.l.b16 %v2341
      %v2444 = vunpack.c.h.b16 %v2341
      %v2445 = vunpack.c.l.b16 %v2342
      %v2446 = vunpack.c.h.b16 %v2342
      %v2447 = vunpack.c.l.b16 %v2343
      %v2448 = vunpack.c.h.b16 %v2343
      %v2449 = vunpack.c.l.b16 %v2344
      %v2450 = vunpack.c.h.b16 %v2344
      %v2451 = vunpack.c.l.b16 %v2345
      %v2452 = vunpack.c.h.b16 %v2345
      %v2453 = vunpack.c.l.b16 %v2346
      %v2454 = vunpack.c.h.b16 %v2346
      %v2455 = vpack.c.b16 %v2393, %v2391
      %v2456 = vpack.c.b16 %v2394, %v2392
      %v2457 = vpack.c.b16 %v2397, %v2395
      %v2458 = vpack.c.b16 %v2398, %v2396
      %v2459 = vpack.c.b16 %v2401, %v2399
      %v2460 = vpack.c.b16 %v2402, %v2400
      %v2461 = vpack.c.b16 %v2405, %v2403
      %v2462 = vpack.c.b16 %v2406, %v2404
      %v2463 = vpack.c.b16 %v2409, %v2407
      %v2464 = vpack.c.b16 %v2410, %v2408
      %v2465 = vpack.c.b16 %v2413, %v2411
      %v2466 = vpack.c.b16 %v2414, %v2412
      %v2467 = vpack.c.b16 %v2417, %v2415
      %v2468 = vpack.c.b16 %v2418, %v2416
      %v2469 = vpack.c.b16 %v2421, %v2419
      %v2470 = vpack.c.b16 %v2422, %v2420
      %v2471 = vpack.c.b16 %v2425, %v2423
      %v2472 = vpack.c.b16 %v2426, %v2424
      %v2473 = vpack.c.b16 %v2429, %v2427
      %v2474 = vpack.c.b16 %v2430, %v2428
      %v2475 = vpack.c.b16 %v2433, %v2431
      %v2476 = vpack.c.b16 %v2434, %v2432
      %v2477 = vpack.c.b16 %v2437, %v2435
      %v2478 = vpack.c.b16 %v2438, %v2436
      %v2479 = vpack.c.b16 %v2441, %v2439
      %v2480 = vpack.c.b16 %v2442, %v2440
      %v2481 = vpack.c.b16 %v2445, %v2443
      %v2482 = vpack.c.b16 %v2446, %v2444
      %v2483 = vpack.c.b16 %v2449, %v2447
      %v2484 = vpack.c.b16 %v2450, %v2448
      %v2485 = vpack.c.b16 %v2453, %v2451
      %v2486 = vpack.c.b16 %v2454, %v2452
      %2519 = vmatprep.subr.bf16.mxu0 %v2456
      %2520 = vmatpush1.bf16.msra.mxu0 %v2455
      %2521 = vmatprep.subr.bf16.mxu0 %v2458
      %2522 = vmatpush1.bf16.msra.mxu0 %v2457
      %2523 = vmatprep.subr.bf16.mxu0 %v2460
      %2524 = vmatpush1.bf16.msra.mxu0 %v2459
      %2525 = vmatprep.subr.bf16.mxu0 %v2462
      %2526 = vmatpush1.bf16.msra.mxu0 %v2461
      %2527 = vmatprep.subr.bf16.mxu0 %v2464
      %2528 = vmatpush1.bf16.msra.mxu0 %v2463
      %2529 = vmatprep.subr.bf16.mxu0 %v2466
      %2530 = vmatpush1.bf16.msra.mxu0 %v2465
      %2531 = vmatprep.subr.bf16.mxu0 %v2468
      %2532 = vmatpush1.bf16.msra.mxu0 %v2467
      %2533 = vmatprep.subr.bf16.mxu0 %v2470
      %2534 = vmatpush1.bf16.msra.mxu0 %v2469
      %2535 = vmatprep.subr.bf16.mxu0 %v2472
      %2536 = vmatpush1.bf16.msra.mxu0 %v2471
      %2537 = vmatprep.subr.bf16.mxu0 %v2474
      %2538 = vmatpush1.bf16.msra.mxu0 %v2473
      %2539 = vmatprep.subr.bf16.mxu0 %v2476
      %2540 = vmatpush1.bf16.msra.mxu0 %v2475
      %2541 = vmatprep.subr.bf16.mxu0 %v2478
      %2542 = vmatpush1.bf16.msra.mxu0 %v2477
      %2543 = vmatprep.subr.bf16.mxu0 %v2480
      %2544 = vmatpush1.bf16.msra.mxu0 %v2479
      %2545 = vmatprep.subr.bf16.mxu0 %v2482
      %2546 = vmatpush1.bf16.msra.mxu0 %v2481
      %2547 = vmatprep.subr.bf16.mxu0 %v2484
      %2548 = vmatpush1.bf16.msra.mxu0 %v2483
      %2549 = vmatprep.subr.bf16.mxu0 %v2486
      %2550 = vmatpush1.bf16.msra.mxu0 %v2485
      %2551 = vmatprep.mubr.bf16.mxu0 %v2314
      %2552 = vmatmul.mubr.bf16.gmra.mrb[0].mxu0 %v2313
      %v2553 = vpop.f32.mrb[0].mxu0
      %v2554 = vadd.f32 %v2352, %v2553
      %v2555 = vpop.f32.mrb[0].mxu0
      %v2556 = vadd.f32 %v2356, %v2555
      %v2557 = vpop.f32.mrb[0].mxu0
      %v2558 = vadd.f32 %v2352, %v2557
      %v2559 = vpop.f32.mrb[0].mxu0
      %v2560 = vadd.f32 %v2356, %v2559
      %2561 = vdwg.mxu0
      %v2562 = vld [vmem:[%s8] sm:$0x3f]
      %v2563 = vld [vmem:[%s8 + $0x8] sm:$0x3f]
      %v2564 = vadd.f32 %v516, %v2554
      %v2565 = vadd.f32 %v517, %v2556
      %v2566 = vadd.f32 %v518, %v2558
      %v2567 = vadd.f32 %v519, %v2560
      %v2568 = vadd.f32 %v2564, %v2565
      %2569 = vadd.xlane.f32.xlu0 %v2568
      %v2570 = vpop.xlane.xlu0 %2569
      %v2571 = vadd.f32 %v2566, %v2567
      %2572 = vadd.xlane.f32.xlu0 %v2571
      %v2573 = vpop.xlane.xlu0 %2572
      %v2574 = vrcp.pop 256.0
      %v2575 = vmul.f32 %v2570, %v2574
      %v2576 = vmul.f32 %v2573, %v2574
      %v2577 = vsub.f32 %v2564, %v2575
      %v2578 = vsub.f32 %v2565, %v2575
      %v2579 = vsub.f32 %v2566, %v2576
      %v2580 = vsub.f32 %v2567, %v2576
      %v2581 = vmul.f32 %v2577, %v2577
      %v2582 = vmul.f32 %v2578, %v2578
      %v2583 = vmul.f32 %v2579, %v2579
      %v2584 = vmul.f32 %v2580, %v2580
      %v2585 = vadd.f32 %v2581, %v2582
      %2586 = vadd.xlane.f32.xlu0 %v2585
      %v2587 = vpop.xlane.xlu0 %2586
      %v2588 = vadd.f32 %v2583, %v2584
      %2589 = vadd.xlane.f32.xlu0 %v2588
      %v2590 = vpop.xlane.xlu0 %2589
      %v2591 = vmul.f32 %v2587, %v2574
      %v2592 = vmul.f32 %v2590, %v2574
      %v2593 = vadd.f32 %v2591, 1e-05
      %v2594 = vadd.f32 %v2592, 1e-05
      %v2595 = vrsqrt.pop %v2593
      %v2596 = vrsqrt.pop %v2594
      %v2597 = vmul.f32 %v2577, %v2595
      %v2598 = vmul.f32 %v2578, %v2595
      %v2599 = vmul.f32 %v2579, %v2596
      %v2600 = vmul.f32 %v2580, %v2596
      %v2601 = vlaneseq
      %v2602 = vshrl.u32 %v2601, 7
      %v2603 = vsub.s32 0, %v2602
      %v2604 = vrot.slane %v2562, %v2603
      %v2605 = vlaneseq
      %v2606 = vshrl.u32 %v2605, 7
      %v2607 = vsub.s32 0, %v2606
      %v2608 = vrot.slane %v2563, %v2607
      %v2609 = vmul.f32 %v2597, %v2604
      %v2610 = vmul.f32 %v2598, %v2608
      %v2611 = vmul.f32 %v2599, %v2604
      %v2612 = vmul.f32 %v2600, %v2608
      %v2613 = vlaneseq
      %v2614 = vshrl.u32 %v2613, 7
      %v2615 = vsub.s32 1, %v2614
      %v2616 = vrot.slane %v2562, %v2615
      %v2617 = vlaneseq
      %v2618 = vshrl.u32 %v2617, 7
      %v2619 = vsub.s32 1, %v2618
      %v2620 = vrot.slane %v2563, %v2619
      %v2621 = vadd.f32 %v2609, %v2616
      %v2622 = vadd.f32 %v2610, %v2620
      %v2623 = vadd.f32 %v2611, %v2616
      %v2624 = vadd.f32 %v2612, %v2620
      %v2625 = vpack.c.bf16 %v2623, %v2621
      %v2626 = vpack.c.bf16 %v2624, %v2622
      %v2627 = vld [vmem:[%s9] sm:$0xff]
      %v2628 = vld [vmem:[%s9 + $0x8] sm:$0xff]
      %v2629 = vld [vmem:[%s9 + $0x10] sm:$0xff]
      %v2630 = vld [vmem:[%s9 + $0x18] sm:$0xff]
      %v2631 = vld [vmem:[%s9 + $0x20] sm:$0xff]
      %v2632 = vld [vmem:[%s9 + $0x28] sm:$0xff]
      %v2633 = vld [vmem:[%s9 + $0x30] sm:$0xff]
      %v2634 = vld [vmem:[%s9 + $0x38] sm:$0xff]
      %v2635 = vld [vmem:[%s9 + $0x40] sm:$0xff]
      %v2636 = vld [vmem:[%s9 + $0x48] sm:$0xff]
      %v2637 = vld [vmem:[%s9 + $0x50] sm:$0xff]
      %v2638 = vld [vmem:[%s9 + $0x58] sm:$0xff]
      %v2639 = vld [vmem:[%s9 + $0x60] sm:$0xff]
      %v2640 = vld [vmem:[%s9 + $0x68] sm:$0xff]
      %v2641 = vld [vmem:[%s9 + $0x70] sm:$0xff]
      %v2642 = vld [vmem:[%s9 + $0x78] sm:$0xff]
      %v2643 = vld [vmem:[%s9 + $0x80] sm:$0xff]
      %v2644 = vld [vmem:[%s9 + $0x88] sm:$0xff]
      %v2645 = vld [vmem:[%s9 + $0x90] sm:$0xff]
      %v2646 = vld [vmem:[%s9 + $0x98] sm:$0xff]
      %v2647 = vld [vmem:[%s9 + $0xa0] sm:$0xff]
      %v2648 = vld [vmem:[%s9 + $0xa8] sm:$0xff]
      %v2649 = vld [vmem:[%s9 + $0xb0] sm:$0xff]
      %v2650 = vld [vmem:[%s9 + $0xb8] sm:$0xff]
      %v2651 = vld [vmem:[%s9 + $0xc0] sm:$0xff]
      %v2652 = vld [vmem:[%s9 + $0xc8] sm:$0xff]
      %v2653 = vld [vmem:[%s9 + $0xd0] sm:$0xff]
      %v2654 = vld [vmem:[%s9 + $0xd8] sm:$0xff]
      %v2655 = vld [vmem:[%s9 + $0xe0] sm:$0xff]
      %v2656 = vld [vmem:[%s9 + $0xe8] sm:$0xff]
      %v2657 = vld [vmem:[%s9 + $0xf0] sm:$0xff]
      %v2658 = vld [vmem:[%s9 + $0xf8] sm:$0xff]
      %v2659 = vld [vmem:[%s10] sm:$0x3]
      %v2661 = vlaneseq
      %v2662 = vshrl.u32 %v2661, 7
      %v2663 = vsub.s32 0, %v2662
      %v2664 = vrot.slane %v2659, %v2663
      %v2665 = vlaneseq
      %v2666 = vshrl.u32 %v2665, 7
      %v2667 = vsub.s32 1, %v2666
      %v2668 = vrot.slane %v2659, %v2667
      %v2703 = vunpack.c.l.b16 %v2627
      %v2704 = vunpack.c.h.b16 %v2627
      %v2705 = vunpack.c.l.b16 %v2628
      %v2706 = vunpack.c.h.b16 %v2628
      %v2707 = vunpack.c.l.b16 %v2629
      %v2708 = vunpack.c.h.b16 %v2629
      %v2709 = vunpack.c.l.b16 %v2630
      %v2710 = vunpack.c.h.b16 %v2630
      %v2711 = vunpack.c.l.b16 %v2631
      %v2712 = vunpack.c.h.b16 %v2631
      %v2713 = vunpack.c.l.b16 %v2632
      %v2714 = vunpack.c.h.b16 %v2632
      %v2715 = vunpack.c.l.b16 %v2633
      %v2716 = vunpack.c.h.b16 %v2633
      %v2717 = vunpack.c.l.b16 %v2634
      %v2718 = vunpack.c.h.b16 %v2634
      %v2719 = vunpack.c.l.b16 %v2635
      %v2720 = vunpack.c.h.b16 %v2635
      %v2721 = vunpack.c.l.b16 %v2636
      %v2722 = vunpack.c.h.b16 %v2636
      %v2723 = vunpack.c.l.b16 %v2637
      %v2724 = vunpack.c.h.b16 %v2637
      %v2725 = vunpack.c.l.b16 %v2638
      %v2726 = vunpack.c.h.b16 %v2638
      %v2727 = vunpack.c.l.b16 %v2639
      %v2728 = vunpack.c.h.b16 %v2639
      %v2729 = vunpack.c.l.b16 %v2640
      %v2730 = vunpack.c.h.b16 %v2640
      %v2731 = vunpack.c.l.b16 %v2641
      %v2732 = vunpack.c.h.b16 %v2641
      %v2733 = vunpack.c.l.b16 %v2642
      %v2734 = vunpack.c.h.b16 %v2642
      %v2735 = vunpack.c.l.b16 %v2643
      %v2736 = vunpack.c.h.b16 %v2643
      %v2737 = vunpack.c.l.b16 %v2644
      %v2738 = vunpack.c.h.b16 %v2644
      %v2739 = vunpack.c.l.b16 %v2645
      %v2740 = vunpack.c.h.b16 %v2645
      %v2741 = vunpack.c.l.b16 %v2646
      %v2742 = vunpack.c.h.b16 %v2646
      %v2743 = vunpack.c.l.b16 %v2647
      %v2744 = vunpack.c.h.b16 %v2647
      %v2745 = vunpack.c.l.b16 %v2648
      %v2746 = vunpack.c.h.b16 %v2648
      %v2747 = vunpack.c.l.b16 %v2649
      %v2748 = vunpack.c.h.b16 %v2649
      %v2749 = vunpack.c.l.b16 %v2650
      %v2750 = vunpack.c.h.b16 %v2650
      %v2751 = vunpack.c.l.b16 %v2651
      %v2752 = vunpack.c.h.b16 %v2651
      %v2753 = vunpack.c.l.b16 %v2652
      %v2754 = vunpack.c.h.b16 %v2652
      %v2755 = vunpack.c.l.b16 %v2653
      %v2756 = vunpack.c.h.b16 %v2653
      %v2757 = vunpack.c.l.b16 %v2654
      %v2758 = vunpack.c.h.b16 %v2654
      %v2759 = vunpack.c.l.b16 %v2655
      %v2760 = vunpack.c.h.b16 %v2655
      %v2761 = vunpack.c.l.b16 %v2656
      %v2762 = vunpack.c.h.b16 %v2656
      %v2763 = vunpack.c.l.b16 %v2657
      %v2764 = vunpack.c.h.b16 %v2657
      %v2765 = vunpack.c.l.b16 %v2658
      %v2766 = vunpack.c.h.b16 %v2658
      %v2767 = vpack.c.b16 %v2705, %v2703
      %v2768 = vpack.c.b16 %v2706, %v2704
      %v2769 = vpack.c.b16 %v2709, %v2707
      %v2770 = vpack.c.b16 %v2710, %v2708
      %v2771 = vpack.c.b16 %v2713, %v2711
      %v2772 = vpack.c.b16 %v2714, %v2712
      %v2773 = vpack.c.b16 %v2717, %v2715
      %v2774 = vpack.c.b16 %v2718, %v2716
      %v2775 = vpack.c.b16 %v2721, %v2719
      %v2776 = vpack.c.b16 %v2722, %v2720
      %v2777 = vpack.c.b16 %v2725, %v2723
      %v2778 = vpack.c.b16 %v2726, %v2724
      %v2779 = vpack.c.b16 %v2729, %v2727
      %v2780 = vpack.c.b16 %v2730, %v2728
      %v2781 = vpack.c.b16 %v2733, %v2731
      %v2782 = vpack.c.b16 %v2734, %v2732
      %v2783 = vpack.c.b16 %v2737, %v2735
      %v2784 = vpack.c.b16 %v2738, %v2736
      %v2785 = vpack.c.b16 %v2741, %v2739
      %v2786 = vpack.c.b16 %v2742, %v2740
      %v2787 = vpack.c.b16 %v2745, %v2743
      %v2788 = vpack.c.b16 %v2746, %v2744
      %v2789 = vpack.c.b16 %v2749, %v2747
      %v2790 = vpack.c.b16 %v2750, %v2748
      %v2791 = vpack.c.b16 %v2753, %v2751
      %v2792 = vpack.c.b16 %v2754, %v2752
      %v2793 = vpack.c.b16 %v2757, %v2755
      %v2794 = vpack.c.b16 %v2758, %v2756
      %v2795 = vpack.c.b16 %v2761, %v2759
      %v2796 = vpack.c.b16 %v2762, %v2760
      %v2797 = vpack.c.b16 %v2765, %v2763
      %v2798 = vpack.c.b16 %v2766, %v2764
      %2831 = vmatprep.subr.bf16.mxu0 %v2768
      %2832 = vmatpush1.bf16.msra.mxu0 %v2767
      %2833 = vmatprep.subr.bf16.mxu0 %v2770
      %2834 = vmatpush1.bf16.msra.mxu0 %v2769
      %2835 = vmatprep.subr.bf16.mxu0 %v2772
      %2836 = vmatpush1.bf16.msra.mxu0 %v2771
      %2837 = vmatprep.subr.bf16.mxu0 %v2774
      %2838 = vmatpush1.bf16.msra.mxu0 %v2773
      %2839 = vmatprep.subr.bf16.mxu0 %v2776
      %2840 = vmatpush1.bf16.msra.mxu0 %v2775
      %2841 = vmatprep.subr.bf16.mxu0 %v2778
      %2842 = vmatpush1.bf16.msra.mxu0 %v2777
      %2843 = vmatprep.subr.bf16.mxu0 %v2780
      %2844 = vmatpush1.bf16.msra.mxu0 %v2779
      %2845 = vmatprep.subr.bf16.mxu0 %v2782
      %2846 = vmatpush1.bf16.msra.mxu0 %v2781
      %2847 = vmatprep.subr.bf16.mxu0 %v2784
      %2848 = vmatpush1.bf16.msra.mxu0 %v2783
      %2849 = vmatprep.subr.bf16.mxu0 %v2786
      %2850 = vmatpush1.bf16.msra.mxu0 %v2785
      %2851 = vmatprep.subr.bf16.mxu0 %v2788
      %2852 = vmatpush1.bf16.msra.mxu0 %v2787
      %2853 = vmatprep.subr.bf16.mxu0 %v2790
      %2854 = vmatpush1.bf16.msra.mxu0 %v2789
      %2855 = vmatprep.subr.bf16.mxu0 %v2792
      %2856 = vmatpush1.bf16.msra.mxu0 %v2791
      %2857 = vmatprep.subr.bf16.mxu0 %v2794
      %2858 = vmatpush1.bf16.msra.mxu0 %v2793
      %2859 = vmatprep.subr.bf16.mxu0 %v2796
      %2860 = vmatpush1.bf16.msra.mxu0 %v2795
      %2861 = vmatprep.subr.bf16.mxu0 %v2798
      %2862 = vmatpush1.bf16.msra.mxu0 %v2797
      %2863 = vmatprep.mubr.bf16.mxu0 %v2626
      %2864 = vmatmul.mubr.bf16.gmra.mrb[0].mxu0 %v2625
      %v2865 = vpop.f32.mrb[0].mxu0
      %v2866 = vadd.f32 %v2664, %v2865
      %v2867 = vpop.f32.mrb[0].mxu0
      %v2868 = vadd.f32 %v2668, %v2867
      %v2869 = vpop.f32.mrb[0].mxu0
      %v2870 = vadd.f32 %v2664, %v2869
      %v2871 = vpop.f32.mrb[0].mxu0
      %v2872 = vadd.f32 %v2668, %v2871
      %2873 = vdwg.mxu0
      %v2874 = vmul.f32 %v2866, 0.5
      %v2875 = vmul.f32 %v2868, 0.5
      %v2876 = vmul.f32 %v2870, 0.5
      %v2877 = vmul.f32 %v2872, 0.5
      %v2878 = vmul.f32 %v2866, 0.70710677
      %v2879 = vmul.f32 %v2868, 0.70710677
      %v2880 = vmul.f32 %v2870, 0.70710677
      %v2881 = vmul.f32 %v2872, 0.70710677
      %v2882 = verf.f32.pop %v2878
      %v2883 = verf.f32.pop %v2879
      %v2884 = verf.f32.pop %v2880
      %v2885 = verf.f32.pop %v2881
      %v2886 = vadd.f32 %v2882, 1.0
      %v2887 = vadd.f32 %v2883, 1.0
      %v2888 = vadd.f32 %v2884, 1.0
      %v2889 = vadd.f32 %v2885, 1.0
      %v2890 = vmul.f32 %v2874, %v2886
      %v2891 = vmul.f32 %v2875, %v2887
      %v2892 = vmul.f32 %v2876, %v2888
      %v2893 = vmul.f32 %v2877, %v2889
      %v2894 = vpack.c.bf16 %v2892, %v2890
      %v2895 = vpack.c.bf16 %v2893, %v2891
      %v2896 = vld [vmem:[%s11] sm:$0xff]
      %v2897 = vld [vmem:[%s11 + $0x8] sm:$0xff]
      %v2898 = vld [vmem:[%s11 + $0x10] sm:$0xff]
      %v2899 = vld [vmem:[%s11 + $0x18] sm:$0xff]
      %v2900 = vld [vmem:[%s11 + $0x20] sm:$0xff]
      %v2901 = vld [vmem:[%s11 + $0x28] sm:$0xff]
      %v2902 = vld [vmem:[%s11 + $0x30] sm:$0xff]
      %v2903 = vld [vmem:[%s11 + $0x38] sm:$0xff]
      %v2904 = vld [vmem:[%s11 + $0x40] sm:$0xff]
      %v2905 = vld [vmem:[%s11 + $0x48] sm:$0xff]
      %v2906 = vld [vmem:[%s11 + $0x50] sm:$0xff]
      %v2907 = vld [vmem:[%s11 + $0x58] sm:$0xff]
      %v2908 = vld [vmem:[%s11 + $0x60] sm:$0xff]
      %v2909 = vld [vmem:[%s11 + $0x68] sm:$0xff]
      %v2910 = vld [vmem:[%s11 + $0x70] sm:$0xff]
      %v2911 = vld [vmem:[%s11 + $0x78] sm:$0xff]
      %v2912 = vld [vmem:[%s11 + $0x80] sm:$0xff]
      %v2913 = vld [vmem:[%s11 + $0x88] sm:$0xff]
      %v2914 = vld [vmem:[%s11 + $0x90] sm:$0xff]
      %v2915 = vld [vmem:[%s11 + $0x98] sm:$0xff]
      %v2916 = vld [vmem:[%s11 + $0xa0] sm:$0xff]
      %v2917 = vld [vmem:[%s11 + $0xa8] sm:$0xff]
      %v2918 = vld [vmem:[%s11 + $0xb0] sm:$0xff]
      %v2919 = vld [vmem:[%s11 + $0xb8] sm:$0xff]
      %v2920 = vld [vmem:[%s11 + $0xc0] sm:$0xff]
      %v2921 = vld [vmem:[%s11 + $0xc8] sm:$0xff]
      %v2922 = vld [vmem:[%s11 + $0xd0] sm:$0xff]
      %v2923 = vld [vmem:[%s11 + $0xd8] sm:$0xff]
      %v2924 = vld [vmem:[%s11 + $0xe0] sm:$0xff]
      %v2925 = vld [vmem:[%s11 + $0xe8] sm:$0xff]
      %v2926 = vld [vmem:[%s11 + $0xf0] sm:$0xff]
      %v2927 = vld [vmem:[%s11 + $0xf8] sm:$0xff]
      %v2928 = vld [vmem:[%s12] sm:$0x3]
      %v2930 = vlaneseq
      %v2931 = vshrl.u32 %v2930, 7
      %v2932 = vsub.s32 0, %v2931
      %v2933 = vrot.slane %v2928, %v2932
      %v2934 = vlaneseq
      %v2935 = vshrl.u32 %v2934, 7
      %v2936 = vsub.s32 1, %v2935
      %v2937 = vrot.slane %v2928, %v2936
      %v2972 = vunpack.c.l.b16 %v2896
      %v2973 = vunpack.c.h.b16 %v2896
      %v2974 = vunpack.c.l.b16 %v2897
      %v2975 = vunpack.c.h.b16 %v2897
      %v2976 = vunpack.c.l.b16 %v2898
      %v2977 = vunpack.c.h.b16 %v2898
      %v2978 = vunpack.c.l.b16 %v2899
      %v2979 = vunpack.c.h.b16 %v2899
      %v2980 = vunpack.c.l.b16 %v2900
      %v2981 = vunpack.c.h.b16 %v2900
      %v2982 = vunpack.c.l.b16 %v2901
      %v2983 = vunpack.c.h.b16 %v2901
      %v2984 = vunpack.c.l.b16 %v2902
      %v2985 = vunpack.c.h.b16 %v2902
      %v2986 = vunpack.c.l.b16 %v2903
      %v2987 = vunpack.c.h.b16 %v2903
      %v2988 = vunpack.c.l.b16 %v2904
      %v2989 = vunpack.c.h.b16 %v2904
      %v2990 = vunpack.c.l.b16 %v2905
      %v2991 = vunpack.c.h.b16 %v2905
      %v2992 = vunpack.c.l.b16 %v2906
      %v2993 = vunpack.c.h.b16 %v2906
      %v2994 = vunpack.c.l.b16 %v2907
      %v2995 = vunpack.c.h.b16 %v2907
      %v2996 = vunpack.c.l.b16 %v2908
      %v2997 = vunpack.c.h.b16 %v2908
      %v2998 = vunpack.c.l.b16 %v2909
      %v2999 = vunpack.c.h.b16 %v2909
      %v3000 = vunpack.c.l.b16 %v2910
      %v3001 = vunpack.c.h.b16 %v2910
      %v3002 = vunpack.c.l.b16 %v2911
      %v3003 = vunpack.c.h.b16 %v2911
      %v3004 = vunpack.c.l.b16 %v2912
      %v3005 = vunpack.c.h.b16 %v2912
      %v3006 = vunpack.c.l.b16 %v2913
      %v3007 = vunpack.c.h.b16 %v2913
      %v3008 = vunpack.c.l.b16 %v2914
      %v3009 = vunpack.c.h.b16 %v2914
      %v3010 = vunpack.c.l.b16 %v2915
      %v3011 = vunpack.c.h.b16 %v2915
      %v3012 = vunpack.c.l.b16 %v2916
      %v3013 = vunpack.c.h.b16 %v2916
      %v3014 = vunpack.c.l.b16 %v2917
      %v3015 = vunpack.c.h.b16 %v2917
      %v3016 = vunpack.c.l.b16 %v2918
      %v3017 = vunpack.c.h.b16 %v2918
      %v3018 = vunpack.c.l.b16 %v2919
      %v3019 = vunpack.c.h.b16 %v2919
      %v3020 = vunpack.c.l.b16 %v2920
      %v3021 = vunpack.c.h.b16 %v2920
      %v3022 = vunpack.c.l.b16 %v2921
      %v3023 = vunpack.c.h.b16 %v2921
      %v3024 = vunpack.c.l.b16 %v2922
      %v3025 = vunpack.c.h.b16 %v2922
      %v3026 = vunpack.c.l.b16 %v2923
      %v3027 = vunpack.c.h.b16 %v2923
      %v3028 = vunpack.c.l.b16 %v2924
      %v3029 = vunpack.c.h.b16 %v2924
      %v3030 = vunpack.c.l.b16 %v2925
      %v3031 = vunpack.c.h.b16 %v2925
      %v3032 = vunpack.c.l.b16 %v2926
      %v3033 = vunpack.c.h.b16 %v2926
      %v3034 = vunpack.c.l.b16 %v2927
      %v3035 = vunpack.c.h.b16 %v2927
      %v3036 = vpack.c.b16 %v2974, %v2972
      %v3037 = vpack.c.b16 %v2975, %v2973
      %v3038 = vpack.c.b16 %v2978, %v2976
      %v3039 = vpack.c.b16 %v2979, %v2977
      %v3040 = vpack.c.b16 %v2982, %v2980
      %v3041 = vpack.c.b16 %v2983, %v2981
      %v3042 = vpack.c.b16 %v2986, %v2984
      %v3043 = vpack.c.b16 %v2987, %v2985
      %v3044 = vpack.c.b16 %v2990, %v2988
      %v3045 = vpack.c.b16 %v2991, %v2989
      %v3046 = vpack.c.b16 %v2994, %v2992
      %v3047 = vpack.c.b16 %v2995, %v2993
      %v3048 = vpack.c.b16 %v2998, %v2996
      %v3049 = vpack.c.b16 %v2999, %v2997
      %v3050 = vpack.c.b16 %v3002, %v3000
      %v3051 = vpack.c.b16 %v3003, %v3001
      %v3052 = vpack.c.b16 %v3006, %v3004
      %v3053 = vpack.c.b16 %v3007, %v3005
      %v3054 = vpack.c.b16 %v3010, %v3008
      %v3055 = vpack.c.b16 %v3011, %v3009
      %v3056 = vpack.c.b16 %v3014, %v3012
      %v3057 = vpack.c.b16 %v3015, %v3013
      %v3058 = vpack.c.b16 %v3018, %v3016
      %v3059 = vpack.c.b16 %v3019, %v3017
      %v3060 = vpack.c.b16 %v3022, %v3020
      %v3061 = vpack.c.b16 %v3023, %v3021
      %v3062 = vpack.c.b16 %v3026, %v3024
      %v3063 = vpack.c.b16 %v3027, %v3025
      %v3064 = vpack.c.b16 %v3030, %v3028
      %v3065 = vpack.c.b16 %v3031, %v3029
      %v3066 = vpack.c.b16 %v3034, %v3032
      %v3067 = vpack.c.b16 %v3035, %v3033
      %3100 = vmatprep.subr.bf16.mxu0 %v3037
      %3101 = vmatpush1.bf16.msra.mxu0 %v3036
      %3102 = vmatprep.subr.bf16.mxu0 %v3039
      %3103 = vmatpush1.bf16.msra.mxu0 %v3038
      %3104 = vmatprep.subr.bf16.mxu0 %v3041
      %3105 = vmatpush1.bf16.msra.mxu0 %v3040
      %3106 = vmatprep.subr.bf16.mxu0 %v3043
      %3107 = vmatpush1.bf16.msra.mxu0 %v3042
      %3108 = vmatprep.subr.bf16.mxu0 %v3045
      %3109 = vmatpush1.bf16.msra.mxu0 %v3044
      %3110 = vmatprep.subr.bf16.mxu0 %v3047
      %3111 = vmatpush1.bf16.msra.mxu0 %v3046
      %3112 = vmatprep.subr.bf16.mxu0 %v3049
      %3113 = vmatpush1.bf16.msra.mxu0 %v3048
      %3114 = vmatprep.subr.bf16.mxu0 %v3051
      %3115 = vmatpush1.bf16.msra.mxu0 %v3050
      %3116 = vmatprep.subr.bf16.mxu0 %v3053
      %3117 = vmatpush1.bf16.msra.mxu0 %v3052
      %3118 = vmatprep.subr.bf16.mxu0 %v3055
      %3119 = vmatpush1.bf16.msra.mxu0 %v3054
      %3120 = vmatprep.subr.bf16.mxu0 %v3057
      %3121 = vmatpush1.bf16.msra.mxu0 %v3056
      %3122 = vmatprep.subr.bf16.mxu0 %v3059
      %3123 = vmatpush1.bf16.msra.mxu0 %v3058
      %3124 = vmatprep.subr.bf16.mxu0 %v3061
      %3125 = vmatpush1.bf16.msra.mxu0 %v3060
      %3126 = vmatprep.subr.bf16.mxu0 %v3063
      %3127 = vmatpush1.bf16.msra.mxu0 %v3062
      %3128 = vmatprep.subr.bf16.mxu0 %v3065
      %3129 = vmatpush1.bf16.msra.mxu0 %v3064
      %3130 = vmatprep.subr.bf16.mxu0 %v3067
      %3131 = vmatpush1.bf16.msra.mxu0 %v3066
      %3132 = vmatprep.mubr.bf16.mxu0 %v2895
      %3133 = vmatmul.mubr.bf16.gmra.mrb[0].mxu0 %v2894
      %v3134 = vpop.f32.mrb[0].mxu0
      %v3135 = vadd.f32 %v2933, %v3134
      %v3136 = vpop.f32.mrb[0].mxu0
      %v3137 = vadd.f32 %v2937, %v3136
      %v3138 = vpop.f32.mrb[0].mxu0
      %v3139 = vadd.f32 %v2933, %v3138
      %v3140 = vpop.f32.mrb[0].mxu0
      %v3141 = vadd.f32 %v2937, %v3140
      %3142 = vdwg.mxu0
      %v3143 = vadd.f32 %v2621, %v3135
      %v3144 = vadd.f32 %v2622, %v3137
      %v3145 = vadd.f32 %v2623, %v3139
      %v3146 = vadd.f32 %v2624, %v3141
      %v3147 = vadd.f32 %v3143, %v3144
      %3148 = vadd.xlane.f32.xlu0 %v3147
      %v3149 = vpop.xlane.xlu0 %3148
      %v3150 = vadd.f32 %v3145, %v3146
      %3151 = vadd.xlane.f32.xlu0 %v3150
      %v3152 = vpop.xlane.xlu0 %3151
      %v3153 = vmul.f32 %v3149, %v2574
      %v3154 = vmul.f32 %v3152, %v2574
      %v3155 = vsub.f32 %v3143, %v3153
      %v3156 = vsub.f32 %v3144, %v3153
      %v3157 = vsub.f32 %v3145, %v3154
      %v3158 = vsub.f32 %v3146, %v3154
      %v3159 = vmul.f32 %v3155, %v3155
      %v3160 = vmul.f32 %v3156, %v3156
      %v3161 = vmul.f32 %v3157, %v3157
      %v3162 = vmul.f32 %v3158, %v3158
      %v3163 = vadd.f32 %v3159, %v3160
      %3164 = vadd.xlane.f32.xlu0 %v3163
      %v3165 = vpop.xlane.xlu0 %3164
      %v3166 = vadd.f32 %v3161, %v3162
      %3167 = vadd.xlane.f32.xlu0 %v3166
      %v3168 = vpop.xlane.xlu0 %3167
      %v3169 = vmul.f32 %v3165, %v2574
      %v3170 = vmul.f32 %v3168, %v2574
      %v3171 = vadd.f32 %v3169, 1e-05
      %v3172 = vadd.f32 %v3170, 1e-05
      %v3173 = vrsqrt.pop %v3171
      %v3174 = vrsqrt.pop %v3172
      %v3175 = vmul.f32 %v3155, %v3173
      %v3176 = vmul.f32 %v3156, %v3173
      %v3177 = vmul.f32 %v3157, %v3174
      %v3178 = vmul.f32 %v3158, %v3174
      %v3179 = vlaneseq
      %v3180 = vshrl.u32 %v3179, 7
      %v3181 = vsub.s32 2, %v3180
      %v3182 = vrot.slane %v2562, %v3181
      %v3183 = vlaneseq
      %v3184 = vshrl.u32 %v3183, 7
      %v3185 = vsub.s32 2, %v3184
      %v3186 = vrot.slane %v2563, %v3185
      %v3187 = vmul.f32 %v3175, %v3182
      %v3188 = vmul.f32 %v3176, %v3186
      %v3189 = vmul.f32 %v3177, %v3182
      %v3190 = vmul.f32 %v3178, %v3186
      %v3191 = vlaneseq
      %v3192 = vshrl.u32 %v3191, 7
      %v3193 = vsub.s32 3, %v3192
      %v3194 = vrot.slane %v2562, %v3193
      %v3195 = vlaneseq
      %v3196 = vshrl.u32 %v3195, 7
      %v3197 = vsub.s32 3, %v3196
      %v3198 = vrot.slane %v2563, %v3197
      %v3199 = vadd.f32 %v3187, %v3194
      %v3200 = vadd.f32 %v3188, %v3198
      %v3201 = vadd.f32 %v3189, %v3194
      %v3202 = vadd.f32 %v3190, %v3198
      %v3203 = vadd.f32 %v3199, %v3200
      %3204 = vadd.xlane.f32.xlu0 %v3203
      %v3205 = vpop.xlane.xlu0 %3204
      %v3206 = vadd.f32 %v3201, %v3202
      %3207 = vadd.xlane.f32.xlu0 %v3206
      %v3208 = vpop.xlane.xlu0 %3207
      %v3209 = vmul.f32 %v3205, %v2574
      %v3210 = vmul.f32 %v3208, %v2574
      %v3211 = vsub.f32 %v3199, %v3209
      %v3212 = vsub.f32 %v3200, %v3209
      %v3213 = vsub.f32 %v3201, %v3210
      %v3214 = vsub.f32 %v3202, %v3210
      %v3215 = vmul.f32 %v3211, %v3211
      %v3216 = vmul.f32 %v3212, %v3212
      %v3217 = vmul.f32 %v3213, %v3213
      %v3218 = vmul.f32 %v3214, %v3214
      %v3219 = vadd.f32 %v3215, %v3216
      %3220 = vadd.xlane.f32.xlu0 %v3219
      %v3221 = vpop.xlane.xlu0 %3220
      %v3222 = vadd.f32 %v3217, %v3218
      %3223 = vadd.xlane.f32.xlu0 %v3222
      %v3224 = vpop.xlane.xlu0 %3223
      %v3225 = vmul.f32 %v3221, %v2574
      %v3226 = vmul.f32 %v3224, %v2574
      %v3227 = vadd.f32 %v3225, 1e-05
      %v3228 = vadd.f32 %v3226, 1e-05
      %v3229 = vrsqrt.pop %v3227
      %v3230 = vrsqrt.pop %v3228
      %v3231 = vmul.f32 %v3211, %v3229
      %v3232 = vmul.f32 %v3212, %v3229
      %v3233 = vmul.f32 %v3213, %v3230
      %v3234 = vmul.f32 %v3214, %v3230
      %v3235 = vlaneseq
      %v3236 = vshrl.u32 %v3235, 7
      %v3237 = vsub.s32 4, %v3236
      %v3238 = vrot.slane %v2562, %v3237
      %v3239 = vlaneseq
      %v3240 = vshrl.u32 %v3239, 7
      %v3241 = vsub.s32 4, %v3240
      %v3242 = vrot.slane %v2563, %v3241
      %v3243 = vmul.f32 %v3231, %v3238
      %v3244 = vmul.f32 %v3232, %v3242
      %v3245 = vmul.f32 %v3233, %v3238
      %v3246 = vmul.f32 %v3234, %v3242
      %v3247 = vlaneseq
      %v3248 = vshrl.u32 %v3247, 7
      %v3249 = vsub.s32 5, %v3248
      %v3250 = vrot.slane %v2562, %v3249
      %v3251 = vlaneseq
      %v3252 = vshrl.u32 %v3251, 7
      %v3253 = vsub.s32 5, %v3252
      %v3254 = vrot.slane %v2563, %v3253
      %v3255 = vadd.f32 %v3243, %v3250
      %v3256 = vadd.f32 %v3244, %v3254
      %v3257 = vadd.f32 %v3245, %v3250
      %v3258 = vadd.f32 %v3246, %v3254
      %v3259 = vld [vmem:[%s13] sm:$0xff]
      %v3260 = vld [vmem:[%s13 + $0x8] sm:$0xff]
      %v3261 = vld [vmem:[%s13 + $0x10] sm:$0xff]
      %v3262 = vld [vmem:[%s13 + $0x18] sm:$0xff]
      %v3263 = vld [vmem:[%s13 + $0x20] sm:$0xff]
      %v3264 = vld [vmem:[%s13 + $0x28] sm:$0xff]
      %v3265 = vld [vmem:[%s13 + $0x30] sm:$0xff]
      %v3266 = vld [vmem:[%s13 + $0x38] sm:$0xff]
      %v3267 = vld [vmem:[%s13 + $0x40] sm:$0xff]
      %v3268 = vld [vmem:[%s13 + $0x48] sm:$0xff]
      %v3269 = vld [vmem:[%s13 + $0x50] sm:$0xff]
      %v3270 = vld [vmem:[%s13 + $0x58] sm:$0xff]
      %v3271 = vld [vmem:[%s13 + $0x60] sm:$0xff]
      %v3272 = vld [vmem:[%s13 + $0x68] sm:$0xff]
      %v3273 = vld [vmem:[%s13 + $0x70] sm:$0xff]
      %v3274 = vld [vmem:[%s13 + $0x78] sm:$0xff]
      %v3275 = vld [vmem:[%s13 + $0x80] sm:$0xff]
      %v3276 = vld [vmem:[%s13 + $0x88] sm:$0xff]
      %v3277 = vld [vmem:[%s13 + $0x90] sm:$0xff]
      %v3278 = vld [vmem:[%s13 + $0x98] sm:$0xff]
      %v3279 = vld [vmem:[%s13 + $0xa0] sm:$0xff]
      %v3280 = vld [vmem:[%s13 + $0xa8] sm:$0xff]
      %v3281 = vld [vmem:[%s13 + $0xb0] sm:$0xff]
      %v3282 = vld [vmem:[%s13 + $0xb8] sm:$0xff]
      %v3283 = vld [vmem:[%s13 + $0xc0] sm:$0xff]
      %v3284 = vld [vmem:[%s13 + $0xc8] sm:$0xff]
      %v3285 = vld [vmem:[%s13 + $0xd0] sm:$0xff]
      %v3286 = vld [vmem:[%s13 + $0xd8] sm:$0xff]
      %v3287 = vld [vmem:[%s13 + $0xe0] sm:$0xff]
      %v3288 = vld [vmem:[%s13 + $0xe8] sm:$0xff]
      %v3289 = vld [vmem:[%s13 + $0xf0] sm:$0xff]
      %v3290 = vld [vmem:[%s13 + $0xf8] sm:$0xff]
      %v3291 = vld [vmem:[%s14] sm:$0x1]
      %v3293 = vlaneseq
      %v3294 = vshrl.u32 %v3293, 7
      %v3295 = vsub.s32 0, %v3294
      %v3296 = vrot.slane %v3291, %v3295
      %3298 = vmatprep.subr.mxu0 0.0
      %3299 = vmatpush1.msra.mxu0 %v3259
      %3300 = vmatprep.subr.mxu0 0.0
      %3301 = vmatpush1.msra.mxu0 %v3260
      %3302 = vmatprep.subr.mxu0 0.0
      %3303 = vmatpush1.msra.mxu0 %v3261
      %3304 = vmatprep.subr.mxu0 0.0
      %3305 = vmatpush1.msra.mxu0 %v3262
      %3306 = vmatprep.subr.mxu0 0.0
      %3307 = vmatpush1.msra.mxu0 %v3263
      %3308 = vmatprep.subr.mxu0 0.0
      %3309 = vmatpush1.msra.mxu0 %v3264
      %3310 = vmatprep.subr.mxu0 0.0
      %3311 = vmatpush1.msra.mxu0 %v3265
      %3312 = vmatprep.subr.mxu0 0.0
      %3313 = vmatpush1.msra.mxu0 %v3266
      %3314 = vmatprep.subr.mxu0 0.0
      %3315 = vmatpush1.msra.mxu0 %v3267
      %3316 = vmatprep.subr.mxu0 0.0
      %3317 = vmatpush1.msra.mxu0 %v3268
      %3318 = vmatprep.subr.mxu0 0.0
      %3319 = vmatpush1.msra.mxu0 %v3269
      %3320 = vmatprep.subr.mxu0 0.0
      %3321 = vmatpush1.msra.mxu0 %v3270
      %3322 = vmatprep.subr.mxu0 0.0
      %3323 = vmatpush1.msra.mxu0 %v3271
      %3324 = vmatprep.subr.mxu0 0.0
      %3325 = vmatpush1.msra.mxu0 %v3272
      %3326 = vmatprep.subr.mxu0 0.0
      %3327 = vmatpush1.msra.mxu0 %v3273
      %3328 = vmatprep.subr.mxu0 0.0
      %3329 = vmatpush1.msra.mxu0 %v3274
      %3330 = vmatprep.subr.mxu0 0.0
      %3331 = vmatpush1.msra.mxu0 %v3275
      %3332 = vmatprep.subr.mxu0 0.0
      %3333 = vmatpush1.msra.mxu0 %v3276
      %3334 = vmatprep.subr.mxu0 0.0
      %3335 = vmatpush1.msra.mxu0 %v3277
      %3336 = vmatprep.subr.mxu0 0.0
      %3337 = vmatpush1.msra.mxu0 %v3278
      %3338 = vmatprep.subr.mxu0 0.0
      %3339 = vmatpush1.msra.mxu0 %v3279
      %3340 = vmatprep.subr.mxu0 0.0
      %3341 = vmatpush1.msra.mxu0 %v3280
      %3342 = vmatprep.subr.mxu0 0.0
      %3343 = vmatpush1.msra.mxu0 %v3281
      %3344 = vmatprep.subr.mxu0 0.0
      %3345 = vmatpush1.msra.mxu0 %v3282
      %3346 = vmatprep.subr.mxu0 0.0
      %3347 = vmatpush1.msra.mxu0 %v3283
      %3348 = vmatprep.subr.mxu0 0.0
      %3349 = vmatpush1.msra.mxu0 %v3284
      %3350 = vmatprep.subr.mxu0 0.0
      %3351 = vmatpush1.msra.mxu0 %v3285
      %3352 = vmatprep.subr.mxu0 0.0
      %3353 = vmatpush1.msra.mxu0 %v3286
      %3354 = vmatprep.subr.mxu0 0.0
      %3355 = vmatpush1.msra.mxu0 %v3287
      %3356 = vmatprep.subr.mxu0 0.0
      %3357 = vmatpush1.msra.mxu0 %v3288
      %3358 = vmatprep.subr.mxu0 0.0
      %3359 = vmatpush1.msra.mxu0 %v3289
      %3360 = vmatprep.subr.mxu0 0.0
      %3361 = vmatpush1.msra.mxu0 %v3290
      %3362 = vmatprep.mubr.f32.mxu0 %v3256
      %3363 = vmatmul.mubr.f32.gmra.mrb[0].mxu0 %v3255
      %v3364 = vpop.f32.mrb[0].mxu0
      %v3365 = vadd.f32 %v3296, %v3364
      %v3366 = vpop.f32.mrb[0].mxu0
      %3367 = vmatprep.mubr.f32.mxu0 %v3258
      %3368 = vmatmul.mubr.f32.gmra.mrb[0].mxu0 %v3257
      %v3369 = vpop.f32.mrb[0].mxu0
      %v3370 = vadd.f32 %v3296, %v3369
      %v3371 = vpop.f32.mrb[0].mxu0
      %3372 = vdwg.mxu0
      %vm3373 = vcmask 15360
      %3374 = vst.msk [vmem:[%s514] sm:$0xff] %vm3373, %v3365
      %3375 = vst.msk [vmem:[%s514 + $0x8] sm:$0xff] %vm3373, %v3370
      %p3376 = scmp.lt.s32.totalorder %s26, 1
      %s3377 = scalar_select %p3376, %s26, 1
      %s3378 = smul.addr %s3377, 2
      %s3379 = smul.addr %s3378, 8
      %s3380 = scalar_lea.vmem %s15, %s3379
      // Predicated region
      $region81: #{trajectory_decoder_forward.5} parent=79 // pred_check
        %p3381 = pneg %p369
      $region82: #{trajectory_decoder_forward.5} parent=79 // pred_check_branch
        %3383 = sbr.rel (%p3381) target = $region84
      $region83: #{trajectory_decoder_forward.5} parent=79 // pred_region
        _
      $region84: #{trajectory_decoder_forward.5} parent=79 // pred_fallthru
        _
    $region80: #{trajectory_decoder_forward.5} parent=5 // pred_fallthru
      _
    %p3384 = scmp.le.s32.totalorder 2, %s21
    // Predicated region
    $region85: #{trajectory_decoder_forward.5} parent=5 // pred_check
      %p3385 = pneg %p3384
    $region86: #{trajectory_decoder_forward.5} parent=5 // pred_check_branch
      %3387 = sbr.rel (%p3385) target = $region88
    $region87: #{trajectory_decoder_forward.5} parent=5 // pred_region
      %s3388 = ssub.s32 %s21, 2
      // Predicated region
      $region89: #{trajectory_decoder_forward.5} parent=87 // pred_check
        %p3389 = pneg %p375
      $region90: #{trajectory_decoder_forward.5} parent=87 // pred_check_branch
        %3391 = sbr.rel (%p3389) target = $region92
      $region91: #{trajectory_decoder_forward.5} parent=87 // pred_region
        %p3392 = scmp.lt.s32.totalorder %s27, 1
        %s3393 = scalar_select %p3392, %s27, 1
        %s3394 = smul.addr %s3393, 2
        %s3395 = smul.addr %s3394, 8
        %s3396 = scalar_lea.vmem %s15, %s3395
      $region92: #{trajectory_decoder_forward.5} parent=87 // pred_fallthru
        _
    $region88: #{trajectory_decoder_forward.5} parent=5 // pred_fallthru
      _
  $region6: #{trajectory_decoder_forward.5} parent=0 // loop_footer
    %s25 = sadd.s32 1, %s21
  $region7: #{trajectory_decoder_forward.5} parent=0 // loop_footer_branch
    %20 = sbr.rel target = $region3
  $region8: #{trajectory_decoder_forward.5} parent=0 // loop_exit
    _

// kernel: trajectory_decoder_forward.4
$region0: #{trajectory_decoder_forward.4}
  #allocation0 [shape = 'u32[]', space=smem, size = 0x4, offset = 0x4, fixed_abs, tag = 'smem constant byte address 0x4 - core index']
  #allocation1 [shape = 'u32[144,128]{1,0:T(1,128)}', space=vmem, size = 0x12000, scoped, tag = 'internal scratch']
  %s0 = inlined_call_operand.vmem [shape: f32[2,16,768], index: 0, kind: input, shape index: {}]
  %s1 = inlined_call_operand.vmem [shape: f32[2,16,8], index: 1, kind: input, shape index: {}]
  %s2 = inlined_call_operand.vmem [shape: f32[2,16,256], index: 2, kind: input, shape index: {}]
  %s3 = inlined_call_operand.vmem [shape: bf16[256,256], index: 3, kind: input, shape index: {}]
  %s4 = inlined_call_operand.vmem [shape: f32[1,256], index: 4, kind: input, shape index: {}]
  %s5 = inlined_call_operand.vmem [shape: f32[1,256], index: 5, kind: input, shape index: {}]
  %s6 = inlined_call_operand.vmem [shape: f32[1,256], index: 6, kind: input, shape index: {}]
  %s7 = inlined_call_operand.vmem [shape: f32[2,16,256], index: 7, kind: output, shape index: {}]
  %s8 = sld [smem:[#allocation0]]
  $region61: #{trajectory_decoder_forward.4} parent=0
    _
  %s10 = ssub.s32 1, %s8
  %s11 = scalar_select 0, %s10, %s8
  loop: start=0, step=1, limit=4
  $region2: #{trajectory_decoder_forward.4} parent=0 // loop_pre_header
    _
  $region3: #{trajectory_decoder_forward.4} parent=0 // loop_header
    %s13 = sphi 0, %s17
    %p14 = scmp.ge.s32.totalorder %s13, 4
    %s23 = sphi 0, %s25
    %s26 = sphi 0, %s23
    %s27 = sphi 0, %s26
    %s43 = sphi 0, %s27
    %s49 = sphi 0, %s51
    %s52 = sphi 0, %s49
    %s53 = sphi 0, %s52
    %s69 = sphi 0, %s53
    %s75 = sphi 0, %s77
    %s78 = sphi 0, %s75
    %s79 = sphi 0, %s78
    %s95 = sphi 0, %s79
    %s99 = sphi 0, %s99
    %s101 = sphi 0, %s99
    %s102 = sphi 0, %s101
    %s116 = sphi 0, %s102
    %s120 = sphi 0, %s120
    %s122 = sphi 0, %s120
    %s123 = sphi 0, %s122
    %s137 = sphi 0, %s123
    %s141 = sphi 0, %s141
    %s143 = sphi 0, %s141
    %s144 = sphi 0, %s143
    %s158 = sphi 0, %s144
    %s162 = sphi 0, %s162
    %s164 = sphi 0, %s162
    %s165 = sphi 0, %s164
    %s179 = sphi 0, %s165
    %s185 = sphi 0, %s187
    %s188 = sphi 0, %s185
    %s189 = sphi 0, %s188
    %s205 = sphi 0, %s189
  $region4: #{trajectory_decoder_forward.4} parent=0 // loop_header_branch
    %16 = sbr.rel (%p14) target = $region8
  $region5: #{trajectory_decoder_forward.4} parent=0 // loop_body
    %s18 = ssub.s32 %s13, 1
    %s19 = ssub.s32 %s13, 2
    %s20 = sadd.s32 %s13, 1
    %s21 = ssub.s32 %s13, %s20
    %p22 = scmp.eq.s32.totalorder %s21, 0
    %s24 = sadd.s32 %s23, 1
    %s25 = scalar_select %p22, %s23, %s24
    %p28 = pneg %p22
    %p29 = scmp.eq.s32.totalorder %s13, 1
    %p30 = por %p28, %p29
    %p31 = scmp.ne.s32.totalorder %s23, %s26
    %p32 = scmp.eq.s32.totalorder %s13, 0
    %p33 = por %p31, %p32
    %p34 = scmp.ne.s32.totalorder %s23, %s26
    %p35 = scmp.eq.s32.totalorder %s18, 1
    %p36 = por %p34, %p35
    %p37 = scmp.ne.s32.totalorder %s26, %s27
    %p38 = scmp.eq.s32.totalorder %s18, 0
    %p39 = por %p37, %p38
    %p40 = scmp.ne.s32.totalorder %s26, %s27
    %p41 = scmp.eq.s32.totalorder %s19, 1
    %p42 = por %p40, %p41
    %p44 = scmp.ne.s32.totalorder %s27, %s43
    %p45 = scmp.eq.s32.totalorder %s19, 0
    %p46 = por %p44, %p45
    %s47 = ssub.s32 %s13, %s20
    %p48 = scmp.eq.s32.totalorder %s47, 0
    %s50 = sadd.s32 %s49, 1
    %s51 = scalar_select %p48, %s49, %s50
    %p54 = pneg %p48
    %p55 = scmp.eq.s32.totalorder %s13, 1
    %p56 = por %p54, %p55
    %p57 = scmp.ne.s32.totalorder %s49, %s52
    %p58 = scmp.eq.s32.totalorder %s13, 0
    %p59 = por %p57, %p58
    %p60 = scmp.ne.s32.totalorder %s49, %s52
    %p61 = scmp.eq.s32.totalorder %s18, 1
    %p62 = por %p60, %p61
    %p63 = scmp.ne.s32.totalorder %s52, %s53
    %p64 = scmp.eq.s32.totalorder %s18, 0
    %p65 = por %p63, %p64
    %p66 = scmp.ne.s32.totalorder %s52, %s53
    %p67 = scmp.eq.s32.totalorder %s19, 1
    %p68 = por %p66, %p67
    %p70 = scmp.ne.s32.totalorder %s53, %s69
    %p71 = scmp.eq.s32.totalorder %s19, 0
    %p72 = por %p70, %p71
    %s73 = ssub.s32 %s13, %s20
    %p74 = scmp.eq.s32.totalorder %s73, 0
    %s76 = sadd.s32 %s75, 1
    %s77 = scalar_select %p74, %s75, %s76
    %p80 = pneg %p74
    %p81 = scmp.eq.s32.totalorder %s13, 1
    %p82 = por %p80, %p81
    %p83 = scmp.ne.s32.totalorder %s75, %s78
    %p84 = scmp.eq.s32.totalorder %s13, 0
    %p85 = por %p83, %p84
    %p86 = scmp.ne.s32.totalorder %s75, %s78
    %p87 = scmp.eq.s32.totalorder %s18, 1
    %p88 = por %p86, %p87
    %p89 = scmp.ne.s32.totalorder %s78, %s79
    %p90 = scmp.eq.s32.totalorder %s18, 0
    %p91 = por %p89, %p90
    %p92 = scmp.ne.s32.totalorder %s78, %s79
    %p93 = scmp.eq.s32.totalorder %s19, 1
    %p94 = por %p92, %p93
    %p96 = scmp.ne.s32.totalorder %s79, %s95
    %p97 = scmp.eq.s32.totalorder %s19, 0
    %p98 = por %p96, %p97
    %s100 = sadd.s32 %s99, 1
    %p103 = scmp.eq.s32.totalorder %s13, 1
    %p104 = scmp.ne.s32.totalorder %s99, %s101
    %p105 = scmp.eq.s32.totalorder %s13, 0
    %p106 = por %p104, %p105
    %p107 = scmp.ne.s32.totalorder %s99, %s101
    %p108 = scmp.eq.s32.totalorder %s18, 1
    %p109 = por %p107, %p108
    %p110 = scmp.ne.s32.totalorder %s101, %s102
    %p111 = scmp.eq.s32.totalorder %s18, 0
    %p112 = por %p110, %p111
    %p113 = scmp.ne.s32.totalorder %s101, %s102
    %p114 = scmp.eq.s32.totalorder %s19, 1
    %p115 = por %p113, %p114
    %p117 = scmp.ne.s32.totalorder %s102, %s116
    %p118 = scmp.eq.s32.totalorder %s19, 0
    %p119 = por %p117, %p118
    %s121 = sadd.s32 %s120, 1
    %p124 = scmp.eq.s32.totalorder %s13, 1
    %p125 = scmp.ne.s32.totalorder %s120, %s122
    %p126 = scmp.eq.s32.totalorder %s13, 0
    %p127 = por %p125, %p126
    %p128 = scmp.ne.s32.totalorder %s120, %s122
    %p129 = scmp.eq.s32.totalorder %s18, 1
    %p130 = por %p128, %p129
    %p131 = scmp.ne.s32.totalorder %s122, %s123
    %p132 = scmp.eq.s32.totalorder %s18, 0
    %p133 = por %p131, %p132
    %p134 = scmp.ne.s32.totalorder %s122, %s123
    %p135 = scmp.eq.s32.totalorder %s19, 1
    %p136 = por %p134, %p135
    %p138 = scmp.ne.s32.totalorder %s123, %s137
    %p139 = scmp.eq.s32.totalorder %s19, 0
    %p140 = por %p138, %p139
    %s142 = sadd.s32 %s141, 1
    %p145 = scmp.eq.s32.totalorder %s13, 1
    %p146 = scmp.ne.s32.totalorder %s141, %s143
    %p147 = scmp.eq.s32.totalorder %s13, 0
    %p148 = por %p146, %p147
    %p149 = scmp.ne.s32.totalorder %s141, %s143
    %p150 = scmp.eq.s32.totalorder %s18, 1
    %p151 = por %p149, %p150
    %p152 = scmp.ne.s32.totalorder %s143, %s144
    %p153 = scmp.eq.s32.totalorder %s18, 0
    %p154 = por %p152, %p153
    %p155 = scmp.ne.s32.totalorder %s143, %s144
    %p156 = scmp.eq.s32.totalorder %s19, 1
    %p157 = por %p155, %p156
    %p159 = scmp.ne.s32.totalorder %s144, %s158
    %p160 = scmp.eq.s32.totalorder %s19, 0
    %p161 = por %p159, %p160
    %s163 = sadd.s32 %s162, 1
    %p166 = scmp.eq.s32.totalorder %s13, 1
    %p167 = scmp.ne.s32.totalorder %s162, %s164
    %p168 = scmp.eq.s32.totalorder %s13, 0
    %p169 = por %p167, %p168
    %p170 = scmp.ne.s32.totalorder %s162, %s164
    %p171 = scmp.eq.s32.totalorder %s18, 1
    %p172 = por %p170, %p171
    %p173 = scmp.ne.s32.totalorder %s164, %s165
    %p174 = scmp.eq.s32.totalorder %s18, 0
    %p175 = por %p173, %p174
    %p176 = scmp.ne.s32.totalorder %s164, %s165
    %p177 = scmp.eq.s32.totalorder %s19, 1
    %p178 = por %p176, %p177
    %p180 = scmp.ne.s32.totalorder %s165, %s179
    %p181 = scmp.eq.s32.totalorder %s19, 0
    %p182 = por %p180, %p181
    %s183 = ssub.s32 %s13, %s20
    %p184 = scmp.eq.s32.totalorder %s183, 0
    %s186 = sadd.s32 %s185, 1
    %s187 = scalar_select %p184, %s185, %s186
    %p190 = pneg %p184
    %p191 = scmp.eq.s32.totalorder %s13, 1
    %p192 = por %p190, %p191
    %p193 = scmp.ne.s32.totalorder %s185, %s188
    %p194 = scmp.eq.s32.totalorder %s13, 0
    %p195 = por %p193, %p194
    %p196 = scmp.ne.s32.totalorder %s185, %s188
    %p197 = scmp.eq.s32.totalorder %s18, 1
    %p198 = por %p196, %p197
    %p199 = scmp.ne.s32.totalorder %s188, %s189
    %p200 = scmp.eq.s32.totalorder %s18, 0
    %p201 = por %p199, %p200
    %p202 = scmp.ne.s32.totalorder %s188, %s189
    %p203 = scmp.eq.s32.totalorder %s19, 1
    %p204 = por %p202, %p203
    %p206 = scmp.ne.s32.totalorder %s189, %s205
    %p207 = scmp.eq.s32.totalorder %s19, 0
    %p208 = por %p206, %p207
    %p209 = scmp.le.s32.totalorder 1, %s13
    %p210 = scmp.lt.s32.totalorder %s13, 3
    %p211 = pnand %p209, %p210
    %p212 = pneg %p211
    // Predicated region
    $region9: #{trajectory_decoder_forward.4} parent=5 // pred_check
      _
    $region10: #{trajectory_decoder_forward.4} parent=5 // pred_check_branch
      %214 = sbr.rel (%p211) target = $region12
    $region11: #{trajectory_decoder_forward.4} parent=5 // pred_region
      %s215 = ssub.s32 %s13, 1
      // Predicated region
      $region13: #{trajectory_decoder_forward.4} parent=11 // pred_check
        %p216 = pneg %p112
      $region14: #{trajectory_decoder_forward.4} parent=11 // pred_check_branch
        %218 = sbr.rel (%p216) target = $region16
      $region15: #{trajectory_decoder_forward.4} parent=11 // pred_region
        _
      $region16: #{trajectory_decoder_forward.4} parent=11 // pred_fallthru
        _
      // Predicated region
      $region17: #{trajectory_decoder_forward.4} parent=11 // pred_check
        %p219 = pneg %p133
      $region18: #{trajectory_decoder_forward.4} parent=11 // pred_check_branch
        %221 = sbr.rel (%p219) target = $region20
      $region19: #{trajectory_decoder_forward.4} parent=11 // pred_region
        _
      $region20: #{trajectory_decoder_forward.4} parent=11 // pred_fallthru
        _
      // Predicated region
      $region21: #{trajectory_decoder_forward.4} parent=11 // pred_check
        %p222 = pneg %p154
      $region22: #{trajectory_decoder_forward.4} parent=11 // pred_check_branch
        %224 = sbr.rel (%p222) target = $region24
      $region23: #{trajectory_decoder_forward.4} parent=11 // pred_region
        _
      $region24: #{trajectory_decoder_forward.4} parent=11 // pred_fallthru
        _
      // Predicated region
      $region25: #{trajectory_decoder_forward.4} parent=11 // pred_check
        %p225 = pneg %p175
      $region26: #{trajectory_decoder_forward.4} parent=11 // pred_check_branch
        %227 = sbr.rel (%p225) target = $region28
      $region27: #{trajectory_decoder_forward.4} parent=11 // pred_region
        _
      $region28: #{trajectory_decoder_forward.4} parent=11 // pred_fallthru
        _
    $region12: #{trajectory_decoder_forward.4} parent=5 // pred_fallthru
      _
    %p228 = scmp.lt.s32.totalorder %s13, 2
    // Predicated region
    $region29: #{trajectory_decoder_forward.4} parent=5 // pred_check
      %p229 = pneg %p228
    $region30: #{trajectory_decoder_forward.4} parent=5 // pred_check_branch
      %231 = sbr.rel (%p229) target = $region32
    $region31: #{trajectory_decoder_forward.4} parent=5 // pred_region
      // Predicated region
      $region33: #{trajectory_decoder_forward.4} parent=31 // pred_check
        %p232 = pneg %p33
      $region34: #{trajectory_decoder_forward.4} parent=31 // pred_check_branch
        %234 = sbr.rel (%p232) target = $region36
      $region35: #{trajectory_decoder_forward.4} parent=31 // pred_region
        %p235 = scmp.lt.s32.totalorder %s13, 1
        %s236 = scalar_select %p235, %s13, 1
        %s237 = smul.addr %s236, 12
        %s238 = smul.addr %s237, 8
        %s239 = scalar_lea.vmem %s0, %s238
      $region36: #{trajectory_decoder_forward.4} parent=31 // pred_fallthru
        _
      // Predicated region
      $region37: #{trajectory_decoder_forward.4} parent=31 // pred_check
        %p240 = pneg %p59
      $region38: #{trajectory_decoder_forward.4} parent=31 // pred_check_branch
        %242 = sbr.rel (%p240) target = $region40
      $region39: #{trajectory_decoder_forward.4} parent=31 // pred_region
        %p243 = scmp.lt.s32.totalorder %s13, 1
        %s244 = scalar_select %p243, %s13, 1
        %s245 = smul.addr %s244, 2
        %s246 = smul.addr %s245, 8
        %s247 = scalar_lea.vmem %s1, %s246
      $region40: #{trajectory_decoder_forward.4} parent=31 // pred_fallthru
        _
      // Predicated region
      $region41: #{trajectory_decoder_forward.4} parent=31 // pred_check
        %p248 = pneg %p85
      $region42: #{trajectory_decoder_forward.4} parent=31 // pred_check_branch
        %250 = sbr.rel (%p248) target = $region44
      $region43: #{trajectory_decoder_forward.4} parent=31 // pred_region
        %p251 = scmp.lt.s32.totalorder %s13, 1
        %s252 = scalar_select %p251, %s13, 1
        %s253 = smul.addr %s252, 4
        %s254 = smul.addr %s253, 8
        %s255 = scalar_lea.vmem %s2, %s254
      $region44: #{trajectory_decoder_forward.4} parent=31 // pred_fallthru
        _
    $region32: #{trajectory_decoder_forward.4} parent=5 // pred_fallthru
      _
    %p256 = scmp.le.s32.totalorder 1, %s13
    %p257 = scmp.lt.s32.totalorder %s13, 3
    %p258 = pnand %p256, %p257
    %p259 = pneg %p258
    // Predicated region
    $region45: #{trajectory_decoder_forward.4} parent=5 // pred_check
      _
    $region46: #{trajectory_decoder_forward.4} parent=5 // pred_check_branch
      %261 = sbr.rel (%p258) target = $region48
    $region47: #{trajectory_decoder_forward.4} parent=5 // pred_region
      %s262 = ssub.s32 %s13, 1
      %p263 = scmp.lt.s32.totalorder %s18, 1
      %s264 = scalar_select %p263, %s18, 1
      %s265 = smul.addr %s264, 12
      %s266 = smul.addr %s265, 8
      %s267 = scalar_lea.vmem %s0, %s266
      %p268 = pneg %p39
      %p269 = pneg %p36
      %p270 = scmp.lt.s32.totalorder %s18, 1
      %s271 = scalar_select %p270, %s18, 1
      %s272 = smul.addr %s271, 2
      %s273 = smul.addr %s272, 8
      %s274 = scalar_lea.vmem %s1, %s273
      %p275 = pneg %p65
      %p276 = pneg %p62
      %p277 = scmp.lt.s32.totalorder %s18, 1
      %s278 = scalar_select %p277, %s18, 1
      %s279 = smul.addr %s278, 4
      %s280 = smul.addr %s279, 8
      %s281 = scalar_lea.vmem %s2, %s280
      %p282 = pneg %p91
      %p283 = pneg %p88
      %p284 = pneg %p112
      %p285 = pneg %p109
      %p286 = pneg %p133
      %p287 = pneg %p130
      %p288 = pneg %p154
      %p289 = pneg %p151
      %p290 = pneg %p175
      %p291 = pneg %p172
      %p292 = pneg %p201
      %p293 = pneg %p198
      %p294 = scmp.lt.s32.totalorder %s18, 1
      %s295 = scalar_select %p294, %s18, 1
      %s296 = smul.addr %s295, 4
      %s297 = smul.addr %s296, 8
      %s298 = scalar_lea.vmem %s7, %s297
      %p299 = scmp.lt.s32.totalorder %s18, 1
      %s300 = scalar_select %p299, %s18, 1
      %s301 = smul.addr %s300, 12
      %s302 = smul.addr %s301, 8
      %s303 = scalar_lea.vmem %s0, %s302
      %p304 = scmp.lt.s32.totalorder %s18, 1
      %s305 = scalar_select %p304, %s18, 1
      %s306 = smul.addr %s305, 2
      %s307 = smul.addr %s306, 8
      %s308 = scalar_lea.vmem %s1, %s307
      %p309 = scmp.lt.s32.totalorder %s18, 1
      %s310 = scalar_select %p309, %s18, 1
      %s311 = smul.addr %s310, 4
      %s312 = smul.addr %s311, 8
      %s313 = scalar_lea.vmem %s2, %s312
      %p314 = scmp.lt.s32.totalorder %s18, 1
      %s315 = scalar_select %p314, %s18, 1
      %s316 = smul.addr %s315, 4
      %s317 = smul.addr %s316, 8
      %s318 = scalar_lea.vmem %s7, %s317
      %v320 = vld [vmem:[%s303] sm:$0xff]
      %v321 = vld [vmem:[%s303 + $0x8] sm:$0xff]
      %v322 = vld [vmem:[%s303 + $0x10] sm:$0xff]
      %v323 = vld [vmem:[%s303 + $0x18] sm:$0xff]
      %v324 = vld [vmem:[%s303 + $0x20] sm:$0xff]
      %v325 = vld [vmem:[%s303 + $0x28] sm:$0xff]
      %v326 = vld [vmem:[%s303 + $0x30] sm:$0xff]
      %v327 = vld [vmem:[%s303 + $0x38] sm:$0xff]
      %v328 = vld [vmem:[%s303 + $0x40] sm:$0xff]
      %v329 = vld [vmem:[%s303 + $0x48] sm:$0xff]
      %v330 = vld [vmem:[%s303 + $0x50] sm:$0xff]
      %v331 = vld [vmem:[%s303 + $0x58] sm:$0xff]
      %v332 = vld [vmem:[%s308] sm:$0xff]
      %v333 = vld [vmem:[%s308 + $0x8] sm:$0xff]
      %v334 = vld [vmem:[%s313] sm:$0xff]
      %v335 = vld [vmem:[%s313 + $0x8] sm:$0xff]
      %v336 = vld [vmem:[%s313 + $0x10] sm:$0xff]
      %v337 = vld [vmem:[%s313 + $0x18] sm:$0xff]
      %v338 = vlaneseq
      %v339 = vshrl.u32 %v338, 7
      %v340 = vadd.s32 %v339, 8
      %v341 = vlaneseq
      %v342 = vand.u32 %v341, 127
      %vm343 = vcmp.gt.s32.totalorder %v342, %v339
      %vm344 = vcmp.gt.s32.totalorder %v342, %v340
      %vm345 = vcmp.le.s32.totalorder %v342, %v339
      %vm346 = vcmp.le.s32.totalorder %v342, %v340
      %v347 = vsel %vm345, 1, 0
      %v348 = vsel %vm346, 1, 0
      %v349 = vcvt.s32.f32 %v347
      %v350 = vcvt.s32.f32 %v348
      %v351 = vpack.c.bf16 %v326, %v320
      %v352 = vpack.c.bf16 %v328, %v322
      %vm353 = vcmask 261120
      %v355 = vsel %vm353, %v351, 0
      %v358 = vsel %vm353, %v352, 0
      %360 = vmatprep.subr.bf16.mxu0 0
      %361 = vmatpush1.bf16.xpose.msra.mxu0 %v358
      %362 = vmatprep.subr.bf16.mxu0 0
      %363 = vmatpush1.bf16.xpose.msra.mxu0 0
      %364 = vmatprep.subr.bf16.mxu0 0
      %365 = vmatpush1.bf16.xpose.msra.mxu0 0
      %366 = vmatprep.subr.bf16.mxu0 0
      %367 = vmatpush1.bf16.xpose.msra.mxu0 0
      %368 = vmatprep.subr.bf16.mxu0 0
      %369 = vmatpush1.bf16.xpose.msra.mxu0 0
      %370 = vmatprep.subr.bf16.mxu0 0
      %371 = vmatpush1.bf16.xpose.msra.mxu0 0
      %372 = vmatprep.subr.bf16.mxu0 0
      %373 = vmatpush1.bf16.xpose.msra.mxu0 0
      %374 = vmatprep.subr.bf16.mxu0 0
      %375 = vmatpush1.bf16.xpose.msra.mxu0 0
      %376 = vmatprep.subr.bf16.mxu0 0
      %377 = vmatpush1.bf16.xpose.msra.mxu0 0
      %378 = vmatprep.subr.bf16.mxu0 0
      %379 = vmatpush1.bf16.xpose.msra.mxu0 0
      %380 = vmatprep.subr.bf16.mxu0 0
      %381 = vmatpush1.bf16.xpose.msra.mxu0 0
      %382 = vmatprep.subr.bf16.mxu0 0
      %383 = vmatpush1.bf16.xpose.msra.mxu0 0
      %384 = vmatprep.subr.bf16.mxu0 0
      %385 = vmatpush1.bf16.xpose.msra.mxu0 0
      %386 = vmatprep.subr.bf16.mxu0 0
      %387 = vmatpush1.bf16.xpose.msra.mxu0 0
      %388 = vmatprep.subr.bf16.mxu0 0
      %389 = vmatpush1.bf16.xpose.msra.mxu0 0
      %390 = vmatprep.subr.bf16.mxu0 0
      %391 = vmatpush1.bf16.xpose.msra.mxu0 0
      %392 = vmatprep.mubr.bf16.mxu0 0
      %393 = vmatmul.mubr.bf16.gmra.mrb[0].mxu0 %v355
      %v394 = vpop.f32.mrb[0].mxu0
      %v395 = vadd.f32 0.0, %v394
      %v396 = vpop.f32.mrb[0].mxu0
      %v397 = vpop.f32.mrb[0].mxu0
      %v398 = vadd.f32 0.0, %v397
      %v399 = vpop.f32.mrb[0].mxu0
      %400 = vdwg.mxu0
      %v401 = vmul.f32 %v395, 0.17677669
      %v402 = vmul.f32 %v398, 0.17677669
      %v403 = vsel %vm343, -1e+30, %v401
      %v404 = vsel %vm344, -1e+30, %v402
      %vm405 = vcmask 130048
      %v406 = vsel %vm405, %v403, -inf
      %407 = vmax.xlane.f32.xlu0 %v406
      %v408 = vpop.xlane.xlu0 %407
      %v409 = vsel %vm405, %v404, -inf
      %410 = vmax.xlane.f32.xlu0 %v409
      %v411 = vpop.xlane.xlu0 %410
      %v412 = vsub.f32 %v403, %v408
      %v413 = vsub.f32 %v404, %v411
      %v414 = vmul.f32 %v412, 1.442695
      %v415 = vpow.pop %v414
      %v416 = vmul.f32 %v413, 1.442695
      %v417 = vpow.pop %v416
      %v418 = vsel %vm405, %v415, 0.0
      %419 = vadd.xlane.f32.xlu0 %v418
      %v420 = vpop.xlane.xlu0 %419
      %v421 = vsel %vm405, %v417, 0.0
      %422 = vadd.xlane.f32.xlu0 %v421
      %v423 = vpop.xlane.xlu0 %422
      %v424 = vrcp.pop %v420
      %v425 = vrcp.pop %v423
      %v426 = vmul.f32 %v415, %v424
      %v427 = vmul.f32 %v417, %v425
      %v428 = vpack.c.bf16 %v427, %v426
      %v429 = vpack.c.bf16 %v330, %v324
      %v431 = vsel %vm405, %v428, 0
      %433 = vmatprep.subr.bf16.mxu0 0
      %434 = vmatpush1.bf16.msra.mxu0 %v429
      %435 = vmatprep.subr.bf16.mxu0 0
      %436 = vmatpush1.bf16.msra.mxu0 0
      %437 = vmatprep.subr.bf16.mxu0 0
      %438 = vmatpush1.bf16.msra.mxu0 0
      %439 = vmatprep.subr.bf16.mxu0 0
      %440 = vmatpush1.bf16.msra.mxu0 0
      %441 = vmatprep.subr.bf16.mxu0 0
      %442 = vmatpush1.bf16.msra.mxu0 0
      %443 = vmatprep.subr.bf16.mxu0 0
      %444 = vmatpush1.bf16.msra.mxu0 0
      %445 = vmatprep.subr.bf16.mxu0 0
      %446 = vmatpush1.bf16.msra.mxu0 0
      %447 = vmatprep.subr.bf16.mxu0 0
      %448 = vmatpush1.bf16.msra.mxu0 0
      %449 = vmatprep.subr.bf16.mxu0 0
      %450 = vmatpush1.bf16.msra.mxu0 0
      %451 = vmatprep.subr.bf16.mxu0 0
      %452 = vmatpush1.bf16.msra.mxu0 0
      %453 = vmatprep.subr.bf16.mxu0 0
      %454 = vmatpush1.bf16.msra.mxu0 0
      %455 = vmatprep.subr.bf16.mxu0 0
      %456 = vmatpush1.bf16.msra.mxu0 0
      %457 = vmatprep.subr.bf16.mxu0 0
      %458 = vmatpush1.bf16.msra.mxu0 0
      %459 = vmatprep.subr.bf16.mxu0 0
      %460 = vmatpush1.bf16.msra.mxu0 0
      %461 = vmatprep.subr.bf16.mxu0 0
      %462 = vmatpush1.bf16.msra.mxu0 0
      %463 = vmatprep.subr.bf16.mxu0 0
      %464 = vmatpush1.bf16.msra.mxu0 0
      %465 = vmatprep.mubr.bf16.mxu0 0
      %466 = vmatmul.mubr.bf16.gmra.mrb[0].mxu0 %v431
      %v467 = vpop.f32.mrb[0].mxu0
      %v468 = vadd.f32 0.0, %v467
      %v469 = vpop.f32.mrb[0].mxu0
      %v470 = vpop.f32.mrb[0].mxu0
      %v471 = vadd.f32 0.0, %v470
      %v472 = vpop.f32.mrb[0].mxu0
      %473 = vdwg.mxu0
      %v475 = vsel %vm405, %v349, 0
      %v478 = vsel %vm405, %v350, 0
      %480 = vmatprep.subr.mxu0 0.0
      %481 = vmatpush1.msra.mxu0 %v324
      %482 = vmatprep.subr.mxu0 0.0
      %483 = vmatpush1.msra.mxu0 %v330
      %484 = vmatprep.subr.mxu0 0.0
      %485 = vmatpush1.msra.mxu0 0.0
      %486 = vmatprep.subr.mxu0 0.0
      %487 = vmatpush1.msra.mxu0 0.0
      %488 = vmatprep.subr.mxu0 0.0
      %489 = vmatpush1.msra.mxu0 0.0
      %490 = vmatprep.subr.mxu0 0.0
      %491 = vmatpush1.msra.mxu0 0.0
      %492 = vmatprep.subr.mxu0 0.0
      %493 = vmatpush1.msra.mxu0 0.0
      %494 = vmatprep.subr.mxu0 0.0
      %495 = vmatpush1.msra.mxu0 0.0
      %496 = vmatprep.subr.mxu0 0.0
      %497 = vmatpush1.msra.mxu0 0.0
      %498 = vmatprep.subr.mxu0 0.0
      %499 = vmatpush1.msra.mxu0 0.0
      %500 = vmatprep.subr.mxu0 0.0
      %501 = vmatpush1.msra.mxu0 0.0
      %502 = vmatprep.subr.mxu0 0.0
      %503 = vmatpush1.msra.mxu0 0.0
      %504 = vmatprep.subr.mxu0 0.0
      %505 = vmatpush1.msra.mxu0 0.0
      %506 = vmatprep.subr.mxu0 0.0
      %507 = vmatpush1.msra.mxu0 0.0
      %508 = vmatprep.subr.mxu0 0.0
      %509 = vmatpush1.msra.mxu0 0.0
      %510 = vmatprep.subr.mxu0 0.0
      %511 = vmatpush1.msra.mxu0 0.0
      %512 = vmatprep.subr.mxu0 0.0
      %513 = vmatpush1.msra.mxu0 0.0
      %514 = vmatprep.subr.mxu0 0.0
      %515 = vmatpush1.msra.mxu0 0.0
      %516 = vmatprep.subr.mxu0 0.0
      %517 = vmatpush1.msra.mxu0 0.0
      %518 = vmatprep.subr.mxu0 0.0
      %519 = vmatpush1.msra.mxu0 0.0
      %520 = vmatprep.subr.mxu0 0.0
      %521 = vmatpush1.msra.mxu0 0.0
      %522 = vmatprep.subr.mxu0 0.0
      %523 = vmatpush1.msra.mxu0 0.0
      %524 = vmatprep.subr.mxu0 0.0
      %525 = vmatpush1.msra.mxu0 0.0
      %526 = vmatprep.subr.mxu0 0.0
      %527 = vmatpush1.msra.mxu0 0.0
      %528 = vmatprep.subr.mxu0 0.0
      %529 = vmatpush1.msra.mxu0 0.0
      %530 = vmatprep.subr.mxu0 0.0
      %531 = vmatpush1.msra.mxu0 0.0
      %532 = vmatprep.subr.mxu0 0.0
      %533 = vmatpush1.msra.mxu0 0.0
      %534 = vmatprep.subr.mxu0 0.0
      %535 = vmatpush1.msra.mxu0 0.0
      %536 = vmatprep.subr.mxu0 0.0
      %537 = vmatpush1.msra.mxu0 0.0
      %538 = vmatprep.subr.mxu0 0.0
      %539 = vmatpush1.msra.mxu0 0.0
      %540 = vmatprep.subr.mxu0 0.0
      %541 = vmatpush1.msra.mxu0 0.0
      %542 = vmatprep.subr.mxu0 0.0
      %543 = vmatpush1.msra.mxu0 0.0
      %544 = vmatprep.mubr.f32.mxu0 0.0
      %545 = vmatmul.mubr.f32.gmra.mrb[0].mxu0 %v475
      %v546 = vpop.f32.mrb[0].mxu0
      %v547 = vadd.f32 0.0, %v546
      %v548 = vpop.f32.mrb[0].mxu0
      %549 = vmatprep.mubr.f32.mxu0 0.0
      %550 = vmatmul.mubr.f32.gmra.mrb[0].mxu0 %v478
      %v551 = vpop.f32.mrb[0].mxu0
      %v552 = vadd.f32 0.0, %v551
      %v553 = vpop.f32.mrb[0].mxu0
      %554 = vdwg.mxu0
      %vm555 = vcmp.gt.f32.partialorder %v332, 0.5
      %vm556 = vcmp.gt.f32.partialorder %v333, 0.5
      %v557 = vsel %vm555, 1, 0
      %v558 = vsel %vm556, 1, 0
      %559 = vset.pattern.permute.xlu0 0
      %560 = vperm.xlu0 %559, %v557
      %v561 = vpop.permute.xlu0 %560
      %562 = vset.pattern.permute.xlu0 0
      %563 = vperm.xlu0 %562, %v558
      %v564 = vpop.permute.xlu0 %563
      %vm565 = vcmp.eq.s32.totalorder %v561, 1
      %vm566 = vcmp.eq.s32.totalorder %v564, 1
      %v567 = vsel %vm565, %v468, %v547
      %v568 = vsel %vm566, %v471, %v552
      %570 = vrot.lane.b32.xlu0 %v351, 96
      %v571 = vpop.permute.xlu0 %570
      %573 = vrot.lane.b32.xlu0 %v352, 96
      %v574 = vpop.permute.xlu0 %573
      %v576 = vsel %vm353, %v571, 0
      %v579 = vsel %vm353, %v574, 0
      %581 = vmatprep.subr.bf16.mxu0 0
      %582 = vmatpush1.bf16.xpose.msra.mxu0 %v579
      %583 = vmatprep.subr.bf16.mxu0 0
      %584 = vmatpush1.bf16.xpose.msra.mxu0 0
      %585 = vmatprep.subr.bf16.mxu0 0
      %586 = vmatpush1.bf16.xpose.msra.mxu0 0
      %587 = vmatprep.subr.bf16.mxu0 0
      %588 = vmatpush1.bf16.xpose.msra.mxu0 0
      %589 = vmatprep.subr.bf16.mxu0 0
      %590 = vmatpush1.bf16.xpose.msra.mxu0 0
      %591 = vmatprep.subr.bf16.mxu0 0
      %592 = vmatpush1.bf16.xpose.msra.mxu0 0
      %593 = vmatprep.subr.bf16.mxu0 0
      %594 = vmatpush1.bf16.xpose.msra.mxu0 0
      %595 = vmatprep.subr.bf16.mxu0 0
      %596 = vmatpush1.bf16.xpose.msra.mxu0 0
      %597 = vmatprep.subr.bf16.mxu0 0
      %598 = vmatpush1.bf16.xpose.msra.mxu0 0
      %599 = vmatprep.subr.bf16.mxu0 0
      %600 = vmatpush1.bf16.xpose.msra.mxu0 0
      %601 = vmatprep.subr.bf16.mxu0 0
      %602 = vmatpush1.bf16.xpose.msra.mxu0 0
      %603 = vmatprep.subr.bf16.mxu0 0
      %604 = vmatpush1.bf16.xpose.msra.mxu0 0
      %605 = vmatprep.subr.bf16.mxu0 0
      %606 = vmatpush1.bf16.xpose.msra.mxu0 0
      %607 = vmatprep.subr.bf16.mxu0 0
      %608 = vmatpush1.bf16.xpose.msra.mxu0 0
      %609 = vmatprep.subr.bf16.mxu0 0
      %610 = vmatpush1.bf16.xpose.msra.mxu0 0
      %611 = vmatprep.subr.bf16.mxu0 0
      %612 = vmatpush1.bf16.xpose.msra.mxu0 0
      %613 = vmatprep.mubr.bf16.mxu0 0
      %614 = vmatmul.mubr.bf16.gmra.mrb[0].mxu0 %v576
      %v615 = vpop.f32.mrb[0].mxu0
      %v616 = vadd.f32 0.0, %v615
      %v617 = vpop.f32.mrb[0].mxu0
      %v618 = vpop.f32.mrb[0].mxu0
      %v619 = vadd.f32 0.0, %v618
      %v620 = vpop.f32.mrb[0].mxu0
      %621 = vdwg.mxu0
      %v622 = vmul.f32 %v616, 0.17677669
      %v623 = vmul.f32 %v619, 0.17677669
      %v624 = vsel %vm343, -1e+30, %v622
      %v625 = vsel %vm344, -1e+30, %v623
      %v626 = vsel %vm405, %v624, -inf
      %627 = vmax.xlane.f32.xlu0 %v626
      %v628 = vpop.xlane.xlu0 %627
      %v629 = vsel %vm405, %v625, -inf
      %630 = vmax.xlane.f32.xlu0 %v629
      %v631 = vpop.xlane.xlu0 %630
      %v632 = vsub.f32 %v624, %v628
      %v633 = vsub.f32 %v625, %v631
      %v634 = vmul.f32 %v632, 1.442695
      %v635 = vpow.pop %v634
      %v636 = vmul.f32 %v633, 1.442695
      %v637 = vpow.pop %v636
      %v638 = vsel %vm405, %v635, 0.0
      %639 = vadd.xlane.f32.xlu0 %v638
      %v640 = vpop.xlane.xlu0 %639
      %v641 = vsel %vm405, %v637, 0.0
      %642 = vadd.xlane.f32.xlu0 %v641
      %v643 = vpop.xlane.xlu0 %642
      %v644 = vrcp.pop %v640
      %v645 = vrcp.pop %v643
      %v646 = vmul.f32 %v635, %v644
      %v647 = vmul.f32 %v637, %v645
      %v648 = vpack.c.bf16 %v647, %v646
      %650 = vrot.lane.b32.xlu0 %v429, 96
      %v651 = vpop.permute.xlu0 %650
      %v654 = vsel %vm405, %v648, 0
      %656 = vmatprep.subr.bf16.mxu0 0
      %657 = vmatpush1.bf16.msra.mxu0 %v651
      %658 = vmatprep.subr.bf16.mxu0 0
      %659 = vmatpush1.bf16.msra.mxu0 0
      %660 = vmatprep.subr.bf16.mxu0 0
      %661 = vmatpush1.bf16.msra.mxu0 0
      %662 = vmatprep.subr.bf16.mxu0 0
      %663 = vmatpush1.bf16.msra.mxu0 0
      %664 = vmatprep.subr.bf16.mxu0 0
      %665 = vmatpush1.bf16.msra.mxu0 0
      %666 = vmatprep.subr.bf16.mxu0 0
      %667 = vmatpush1.bf16.msra.mxu0 0
      %668 = vmatprep.subr.bf16.mxu0 0
      %669 = vmatpush1.bf16.msra.mxu0 0
      %670 = vmatprep.subr.bf16.mxu0 0
      %671 = vmatpush1.bf16.msra.mxu0 0
      %672 = vmatprep.subr.bf16.mxu0 0
      %673 = vmatpush1.bf16.msra.mxu0 0
      %674 = vmatprep.subr.bf16.mxu0 0
      %675 = vmatpush1.bf16.msra.mxu0 0
      %676 = vmatprep.subr.bf16.mxu0 0
      %677 = vmatpush1.bf16.msra.mxu0 0
      %678 = vmatprep.subr.bf16.mxu0 0
      %679 = vmatpush1.bf16.msra.mxu0 0
      %680 = vmatprep.subr.bf16.mxu0 0
      %681 = vmatpush1.bf16.msra.mxu0 0
      %682 = vmatprep.subr.bf16.mxu0 0
      %683 = vmatpush1.bf16.msra.mxu0 0
      %684 = vmatprep.subr.bf16.mxu0 0
      %685 = vmatpush1.bf16.msra.mxu0 0
      %686 = vmatprep.subr.bf16.mxu0 0
      %687 = vmatpush1.bf16.msra.mxu0 0
      %688 = vmatprep.mubr.bf16.mxu0 0
      %689 = vmatmul.mubr.bf16.gmra.mrb[0].mxu0 %v654
      %v690 = vpop.f32.mrb[0].mxu0
      %v691 = vadd.f32 0.0, %v690
      %v692 = vpop.f32.mrb[0].mxu0
      %v693 = vpop.f32.mrb[0].mxu0
      %v694 = vadd.f32 0.0, %v693
      %v695 = vpop.f32.mrb[0].mxu0
      %696 = vdwg.mxu0
      %699 = vrot.lane.b32.xlu0 %v324, 96
      %v700 = vpop.permute.xlu0 %699
      %701 = vrot.lane.b32.xlu0 %v330, 96
      %v702 = vpop.permute.xlu0 %701
      %705 = vmatprep.subr.mxu0 0.0
      %706 = vmatpush1.msra.mxu0 %v700
      %707 = vmatprep.subr.mxu0 0.0
      %708 = vmatpush1.msra.mxu0 %v702
      %709 = vmatprep.subr.mxu0 0.0
      %710 = vmatpush1.msra.mxu0 0.0
      %711 = vmatprep.subr.mxu0 0.0
      %712 = vmatpush1.msra.mxu0 0.0
      %713 = vmatprep.subr.mxu0 0.0
      %714 = vmatpush1.msra.mxu0 0.0
      %715 = vmatprep.subr.mxu0 0.0
      %716 = vmatpush1.msra.mxu0 0.0
      %717 = vmatprep.subr.mxu0 0.0
      %718 = vmatpush1.msra.mxu0 0.0
      %719 = vmatprep.subr.mxu0 0.0
      %720 = vmatpush1.msra.mxu0 0.0
      %721 = vmatprep.subr.mxu0 0.0
      %722 = vmatpush1.msra.mxu0 0.0
      %723 = vmatprep.subr.mxu0 0.0
      %724 = vmatpush1.msra.mxu0 0.0
      %725 = vmatprep.subr.mxu0 0.0
      %726 = vmatpush1.msra.mxu0 0.0
      %727 = vmatprep.subr.mxu0 0.0
      %728 = vmatpush1.msra.mxu0 0.0
      %729 = vmatprep.subr.mxu0 0.0
      %730 = vmatpush1.msra.mxu0 0.0
      %731 = vmatprep.subr.mxu0 0.0
      %732 = vmatpush1.msra.mxu0 0.0
      %733 = vmatprep.subr.mxu0 0.0
      %734 = vmatpush1.msra.mxu0 0.0
      %735 = vmatprep.subr.mxu0 0.0
      %736 = vmatpush1.msra.mxu0 0.0
      %737 = vmatprep.subr.mxu0 0.0
      %738 = vmatpush1.msra.mxu0 0.0
      %739 = vmatprep.subr.mxu0 0.0
      %740 = vmatpush1.msra.mxu0 0.0
      %741 = vmatprep.subr.mxu0 0.0
      %742 = vmatpush1.msra.mxu0 0.0
      %743 = vmatprep.subr.mxu0 0.0
      %744 = vmatpush1.msra.mxu0 0.0
      %745 = vmatprep.subr.mxu0 0.0
      %746 = vmatpush1.msra.mxu0 0.0
      %747 = vmatprep.subr.mxu0 0.0
      %748 = vmatpush1.msra.mxu0 0.0
      %749 = vmatprep.subr.mxu0 0.0
      %750 = vmatpush1.msra.mxu0 0.0
      %751 = vmatprep.subr.mxu0 0.0
      %752 = vmatpush1.msra.mxu0 0.0
      %753 = vmatprep.subr.mxu0 0.0
      %754 = vmatpush1.msra.mxu0 0.0
      %755 = vmatprep.subr.mxu0 0.0
      %756 = vmatpush1.msra.mxu0 0.0
      %757 = vmatprep.subr.mxu0 0.0
      %758 = vmatpush1.msra.mxu0 0.0
      %759 = vmatprep.subr.mxu0 0.0
      %760 = vmatpush1.msra.mxu0 0.0
      %761 = vmatprep.subr.mxu0 0.0
      %762 = vmatpush1.msra.mxu0 0.0
      %763 = vmatprep.subr.mxu0 0.0
      %764 = vmatpush1.msra.mxu0 0.0
      %765 = vmatprep.subr.mxu0 0.0
      %766 = vmatpush1.msra.mxu0 0.0
      %767 = vmatprep.subr.mxu0 0.0
      %768 = vmatpush1.msra.mxu0 0.0
      %769 = vmatprep.mubr.f32.mxu0 0.0
      %770 = vmatmul.mubr.f32.gmra.mrb[0].mxu0 %v475
      %v771 = vpop.f32.mrb[0].mxu0
      %v772 = vadd.f32 0.0, %v771
      %v773 = vpop.f32.mrb[0].mxu0
      %774 = vmatprep.mubr.f32.mxu0 0.0
      %775 = vmatmul.mubr.f32.gmra.mrb[0].mxu0 %v478
      %v776 = vpop.f32.mrb[0].mxu0
      %v777 = vadd.f32 0.0, %v776
      %v778 = vpop.f32.mrb[0].mxu0
      %779 = vdwg.mxu0
      %780 = vset.pattern.permute.xlu0 1
      %781 = vperm.xlu0 %780, %v557
      %v782 = vpop.permute.xlu0 %781
      %783 = vset.pattern.permute.xlu0 1
      %784 = vperm.xlu0 %783, %v558
      %v785 = vpop.permute.xlu0 %784
      %vm786 = vcmp.eq.s32.totalorder %v782, 1
      %vm787 = vcmp.eq.s32.totalorder %v785, 1
      %v788 = vsel %vm786, %v691, %v772
      %v789 = vsel %vm787, %v694, %v777
      %790 = vrot.lane.b32.xlu0 %v351, 64
      %v791 = vpop.permute.xlu0 %790
      %792 = vrot.lane.b32.xlu0 %v352, 64
      %v793 = vpop.permute.xlu0 %792
      %v795 = vsel %vm353, %v791, 0
      %v798 = vsel %vm353, %v793, 0
      %800 = vmatprep.subr.bf16.mxu0 0
      %801 = vmatpush1.bf16.xpose.msra.mxu0 %v798
      %802 = vmatprep.subr.bf16.mxu0 0
      %803 = vmatpush1.bf16.xpose.msra.mxu0 0
      %804 = vmatprep.subr.bf16.mxu0 0
      %805 = vmatpush1.bf16.xpose.msra.mxu0 0
      %806 = vmatprep.subr.bf16.mxu0 0
      %807 = vmatpush1.bf16.xpose.msra.mxu0 0
      %808 = vmatprep.subr.bf16.mxu0 0
      %809 = vmatpush1.bf16.xpose.msra.mxu0 0
      %810 = vmatprep.subr.bf16.mxu0 0
      %811 = vmatpush1.bf16.xpose.msra.mxu0 0
      %812 = vmatprep.subr.bf16.mxu0 0
      %813 = vmatpush1.bf16.xpose.msra.mxu0 0
      %814 = vmatprep.subr.bf16.mxu0 0
      %815 = vmatpush1.bf16.xpose.msra.mxu0 0
      %816 = vmatprep.subr.bf16.mxu0 0
      %817 = vmatpush1.bf16.xpose.msra.mxu0 0
      %818 = vmatprep.subr.bf16.mxu0 0
      %819 = vmatpush1.bf16.xpose.msra.mxu0 0
      %820 = vmatprep.subr.bf16.mxu0 0
      %821 = vmatpush1.bf16.xpose.msra.mxu0 0
      %822 = vmatprep.subr.bf16.mxu0 0
      %823 = vmatpush1.bf16.xpose.msra.mxu0 0
      %824 = vmatprep.subr.bf16.mxu0 0
      %825 = vmatpush1.bf16.xpose.msra.mxu0 0
      %826 = vmatprep.subr.bf16.mxu0 0
      %827 = vmatpush1.bf16.xpose.msra.mxu0 0
      %828 = vmatprep.subr.bf16.mxu0 0
      %829 = vmatpush1.bf16.xpose.msra.mxu0 0
      %830 = vmatprep.subr.bf16.mxu0 0
      %831 = vmatpush1.bf16.xpose.msra.mxu0 0
      %832 = vmatprep.mubr.bf16.mxu0 0
      %833 = vmatmul.mubr.bf16.gmra.mrb[0].mxu0 %v795
      %v834 = vpop.f32.mrb[0].mxu0
      %v835 = vadd.f32 0.0, %v834
      %v836 = vpop.f32.mrb[0].mxu0
      %v837 = vpop.f32.mrb[0].mxu0
      %v838 = vadd.f32 0.0, %v837
      %v839 = vpop.f32.mrb[0].mxu0
      %840 = vdwg.mxu0
      %v841 = vmul.f32 %v835, 0.17677669
      %v842 = vmul.f32 %v838, 0.17677669
      %v843 = vsel %vm343, -1e+30, %v841
      %v844 = vsel %vm344, -1e+30, %v842
      %v845 = vsel %vm405, %v843, -inf
      %846 = vmax.xlane.f32.xlu0 %v845
      %v847 = vpop.xlane.xlu0 %846
      %v848 = vsel %vm405, %v844, -inf
      %849 = vmax.xlane.f32.xlu0 %v848
      %v850 = vpop.xlane.xlu0 %849
      %v851 = vsub.f32 %v843, %v847
      %v852 = vsub.f32 %v844, %v850
      %v853 = vmul.f32 %v851, 1.442695
      %v854 = vpow.pop %v853
      %v855 = vmul.f32 %v852, 1.442695
      %v856 = vpow.pop %v855
      %v857 = vsel %vm405, %v854, 0.0
      %858 = vadd.xlane.f32.xlu0 %v857
      %v859 = vpop.xlane.xlu0 %858
      %v860 = vsel %vm405, %v856, 0.0
      %861 = vadd.xlane.f32.xlu0 %v860
      %v862 = vpop.xlane.xlu0 %861
      %v863 = vrcp.pop %v859
      %v864 = vrcp.pop %v862
      %v865 = vmul.f32 %v854, %v863
      %v866 = vmul.f32 %v856, %v864
      %v867 = vpack.c.bf16 %v866, %v865
      %868 = vrot.lane.b32.xlu0 %v429, 64
      %v869 = vpop.permute.xlu0 %868
      %v872 = vsel %vm405, %v867, 0
      %874 = vmatprep.subr.bf16.mxu0 0
      %875 = vmatpush1.bf16.msra.mxu0 %v869
      %876 = vmatprep.subr.bf16.mxu0 0
      %877 = vmatpush1.bf16.msra.mxu0 0
      %878 = vmatprep.subr.bf16.mxu0 0
      %879 = vmatpush1.bf16.msra.mxu0 0
      %880 = vmatprep.subr.bf16.mxu0 0
      %881 = vmatpush1.bf16.msra.mxu0 0
      %882 = vmatprep.subr.bf16.mxu0 0
      %883 = vmatpush1.bf16.msra.mxu0 0
      %884 = vmatprep.subr.bf16.mxu0 0
      %885 = vmatpush1.bf16.msra.mxu0 0
      %886 = vmatprep.subr.bf16.mxu0 0
      %887 = vmatpush1.bf16.msra.mxu0 0
      %888 = vmatprep.subr.bf16.mxu0 0
      %889 = vmatpush1.bf16.msra.mxu0 0
      %890 = vmatprep.subr.bf16.mxu0 0
      %891 = vmatpush1.bf16.msra.mxu0 0
      %892 = vmatprep.subr.bf16.mxu0 0
      %893 = vmatpush1.bf16.msra.mxu0 0
      %894 = vmatprep.subr.bf16.mxu0 0
      %895 = vmatpush1.bf16.msra.mxu0 0
      %896 = vmatprep.subr.bf16.mxu0 0
      %897 = vmatpush1.bf16.msra.mxu0 0
      %898 = vmatprep.subr.bf16.mxu0 0
      %899 = vmatpush1.bf16.msra.mxu0 0
      %900 = vmatprep.subr.bf16.mxu0 0
      %901 = vmatpush1.bf16.msra.mxu0 0
      %902 = vmatprep.subr.bf16.mxu0 0
      %903 = vmatpush1.bf16.msra.mxu0 0
      %904 = vmatprep.subr.bf16.mxu0 0
      %905 = vmatpush1.bf16.msra.mxu0 0
      %906 = vmatprep.mubr.bf16.mxu0 0
      %907 = vmatmul.mubr.bf16.gmra.mrb[0].mxu0 %v872
      %v908 = vpop.f32.mrb[0].mxu0
      %v909 = vadd.f32 0.0, %v908
      %v910 = vpop.f32.mrb[0].mxu0
      %v911 = vpop.f32.mrb[0].mxu0
      %v912 = vadd.f32 0.0, %v911
      %v913 = vpop.f32.mrb[0].mxu0
      %914 = vdwg.mxu0
      %915 = vrot.lane.b32.xlu0 %v324, 64
      %v916 = vpop.permute.xlu0 %915
      %917 = vrot.lane.b32.xlu0 %v330, 64
      %v918 = vpop.permute.xlu0 %917
      %921 = vmatprep.subr.mxu0 0.0
      %922 = vmatpush1.msra.mxu0 %v916
      %923 = vmatprep.subr.mxu0 0.0
      %924 = vmatpush1.msra.mxu0 %v918
      %925 = vmatprep.subr.mxu0 0.0
      %926 = vmatpush1.msra.mxu0 0.0
      %927 = vmatprep.subr.mxu0 0.0
      %928 = vmatpush1.msra.mxu0 0.0
      %929 = vmatprep.subr.mxu0 0.0
      %930 = vmatpush1.msra.mxu0 0.0
      %931 = vmatprep.subr.mxu0 0.0
      %932 = vmatpush1.msra.mxu0 0.0
      %933 = vmatprep.subr.mxu0 0.0
      %934 = vmatpush1.msra.mxu0 0.0
      %935 = vmatprep.subr.mxu0 0.0
      %936 = vmatpush1.msra.mxu0 0.0
      %937 = vmatprep.subr.mxu0 0.0
      %938 = vmatpush1.msra.mxu0 0.0
      %939 = vmatprep.subr.mxu0 0.0
      %940 = vmatpush1.msra.mxu0 0.0
      %941 = vmatprep.subr.mxu0 0.0
      %942 = vmatpush1.msra.mxu0 0.0
      %943 = vmatprep.subr.mxu0 0.0
      %944 = vmatpush1.msra.mxu0 0.0
      %945 = vmatprep.subr.mxu0 0.0
      %946 = vmatpush1.msra.mxu0 0.0
      %947 = vmatprep.subr.mxu0 0.0
      %948 = vmatpush1.msra.mxu0 0.0
      %949 = vmatprep.subr.mxu0 0.0
      %950 = vmatpush1.msra.mxu0 0.0
      %951 = vmatprep.subr.mxu0 0.0
      %952 = vmatpush1.msra.mxu0 0.0
      %953 = vmatprep.subr.mxu0 0.0
      %954 = vmatpush1.msra.mxu0 0.0
      %955 = vmatprep.subr.mxu0 0.0
      %956 = vmatpush1.msra.mxu0 0.0
      %957 = vmatprep.subr.mxu0 0.0
      %958 = vmatpush1.msra.mxu0 0.0
      %959 = vmatprep.subr.mxu0 0.0
      %960 = vmatpush1.msra.mxu0 0.0
      %961 = vmatprep.subr.mxu0 0.0
      %962 = vmatpush1.msra.mxu0 0.0
      %963 = vmatprep.subr.mxu0 0.0
      %964 = vmatpush1.msra.mxu0 0.0
      %965 = vmatprep.subr.mxu0 0.0
      %966 = vmatpush1.msra.mxu0 0.0
      %967 = vmatprep.subr.mxu0 0.0
      %968 = vmatpush1.msra.mxu0 0.0
      %969 = vmatprep.subr.mxu0 0.0
      %970 = vmatpush1.msra.mxu0 0.0
      %971 = vmatprep.subr.mxu0 0.0
      %972 = vmatpush1.msra.mxu0 0.0
      %973 = vmatprep.subr.mxu0 0.0
      %974 = vmatpush1.msra.mxu0 0.0
      %975 = vmatprep.subr.mxu0 0.0
      %976 = vmatpush1.msra.mxu0 0.0
      %977 = vmatprep.subr.mxu0 0.0
      %978 = vmatpush1.msra.mxu0 0.0
      %979 = vmatprep.subr.mxu0 0.0
      %980 = vmatpush1.msra.mxu0 0.0
      %981 = vmatprep.subr.mxu0 0.0
      %982 = vmatpush1.msra.mxu0 0.0
      %983 = vmatprep.subr.mxu0 0.0
      %984 = vmatpush1.msra.mxu0 0.0
      %985 = vmatprep.mubr.f32.mxu0 0.0
      %986 = vmatmul.mubr.f32.gmra.mrb[0].mxu0 %v475
      %v987 = vpop.f32.mrb[0].mxu0
      %v988 = vadd.f32 0.0, %v987
      %v989 = vpop.f32.mrb[0].mxu0
      %990 = vmatprep.mubr.f32.mxu0 0.0
      %991 = vmatmul.mubr.f32.gmra.mrb[0].mxu0 %v478
      %v992 = vpop.f32.mrb[0].mxu0
      %v993 = vadd.f32 0.0, %v992
      %v994 = vpop.f32.mrb[0].mxu0
      %995 = vdwg.mxu0
      %996 = vset.pattern.permute.xlu0 2
      %997 = vperm.xlu0 %996, %v557
      %v998 = vpop.permute.xlu0 %997
      %999 = vset.pattern.permute.xlu0 2
      %1000 = vperm.xlu0 %999, %v558
      %v1001 = vpop.permute.xlu0 %1000
      %vm1002 = vcmp.eq.s32.totalorder %v998, 1
      %vm1003 = vcmp.eq.s32.totalorder %v1001, 1
      %v1004 = vsel %vm1002, %v909, %v988
      %v1005 = vsel %vm1003, %v912, %v993
      %1006 = vrot.lane.b32.xlu0 %v351, 32
      %v1007 = vpop.permute.xlu0 %1006
      %1008 = vrot.lane.b32.xlu0 %v352, 32
      %v1009 = vpop.permute.xlu0 %1008
      %v1011 = vsel %vm353, %v1007, 0
      %v1014 = vsel %vm353, %v1009, 0
      %1016 = vmatprep.subr.bf16.mxu0 0
      %1017 = vmatpush1.bf16.xpose.msra.mxu0 %v1014
      %1018 = vmatprep.subr.bf16.mxu0 0
      %1019 = vmatpush1.bf16.xpose.msra.mxu0 0
      %1020 = vmatprep.subr.bf16.mxu0 0
      %1021 = vmatpush1.bf16.xpose.msra.mxu0 0
      %1022 = vmatprep.subr.bf16.mxu0 0
      %1023 = vmatpush1.bf16.xpose.msra.mxu0 0
      %1024 = vmatprep.subr.bf16.mxu0 0
      %1025 = vmatpush1.bf16.xpose.msra.mxu0 0
      %1026 = vmatprep.subr.bf16.mxu0 0
      %1027 = vmatpush1.bf16.xpose.msra.mxu0 0
      %1028 = vmatprep.subr.bf16.mxu0 0
      %1029 = vmatpush1.bf16.xpose.msra.mxu0 0
      %1030 = vmatprep.subr.bf16.mxu0 0
      %1031 = vmatpush1.bf16.xpose.msra.mxu0 0
      %1032 = vmatprep.subr.bf16.mxu0 0
      %1033 = vmatpush1.bf16.xpose.msra.mxu0 0
      %1034 = vmatprep.subr.bf16.mxu0 0
      %1035 = vmatpush1.bf16.xpose.msra.mxu0 0
      %1036 = vmatprep.subr.bf16.mxu0 0
      %1037 = vmatpush1.bf16.xpose.msra.mxu0 0
      %1038 = vmatprep.subr.bf16.mxu0 0
      %1039 = vmatpush1.bf16.xpose.msra.mxu0 0
      %1040 = vmatprep.subr.bf16.mxu0 0
      %1041 = vmatpush1.bf16.xpose.msra.mxu0 0
      %1042 = vmatprep.subr.bf16.mxu0 0
      %1043 = vmatpush1.bf16.xpose.msra.mxu0 0
      %1044 = vmatprep.subr.bf16.mxu0 0
      %1045 = vmatpush1.bf16.xpose.msra.mxu0 0
      %1046 = vmatprep.subr.bf16.mxu0 0
      %1047 = vmatpush1.bf16.xpose.msra.mxu0 0
      %1048 = vmatprep.mubr.bf16.mxu0 0
      %1049 = vmatmul.mubr.bf16.gmra.mrb[0].mxu0 %v1011
      %v1050 = vpop.f32.mrb[0].mxu0
      %v1051 = vadd.f32 0.0, %v1050
      %v1052 = vpop.f32.mrb[0].mxu0
      %v1053 = vpop.f32.mrb[0].mxu0
      %v1054 = vadd.f32 0.0, %v1053
      %v1055 = vpop.f32.mrb[0].mxu0
      %1056 = vdwg.mxu0
      %v1057 = vmul.f32 %v1051, 0.17677669
      %v1058 = vmul.f32 %v1054, 0.17677669
      %v1059 = vsel %vm343, -1e+30, %v1057
      %v1060 = vsel %vm344, -1e+30, %v1058
      %v1061 = vsel %vm405, %v1059, -inf
      %1062 = vmax.xlane.f32.xlu0 %v1061
      %v1063 = vpop.xlane.xlu0 %1062
      %v1064 = vsel %vm405, %v1060, -inf
      %1065 = vmax.xlane.f32.xlu0 %v1064
      %v1066 = vpop.xlane.xlu0 %1065
      %v1067 = vsub.f32 %v1059, %v1063
      %v1068 = vsub.f32 %v1060, %v1066
      %v1069 = vmul.f32 %v1067, 1.442695
      %v1070 = vpow.pop %v1069
      %v1071 = vmul.f32 %v1068, 1.442695
      %v1072 = vpow.pop %v1071
      %v1073 = vsel %vm405, %v1070, 0.0
      %1074 = vadd.xlane.f32.xlu0 %v1073
      %v1075 = vpop.xlane.xlu0 %1074
      %v1076 = vsel %vm405, %v1072, 0.0
      %1077 = vadd.xlane.f32.xlu0 %v1076
      %v1078 = vpop.xlane.xlu0 %1077
      %v1079 = vrcp.pop %v1075
      %v1080 = vrcp.pop %v1078
      %v1081 = vmul.f32 %v1070, %v1079
      %v1082 = vmul.f32 %v1072, %v1080
      %v1083 = vpack.c.bf16 %v1082, %v1081
      %1084 = vrot.lane.b32.xlu0 %v429, 32
      %v1085 = vpop.permute.xlu0 %1084
      %v1088 = vsel %vm405, %v1083, 0
      %1090 = vmatprep.subr.bf16.mxu0 0
      %1091 = vmatpush1.bf16.msra.mxu0 %v1085
      %1092 = vmatprep.subr.bf16.mxu0 0
      %1093 = vmatpush1.bf16.msra.mxu0 0
      %1094 = vmatprep.subr.bf16.mxu0 0
      %1095 = vmatpush1.bf16.msra.mxu0 0
      %1096 = vmatprep.subr.bf16.mxu0 0
      %1097 = vmatpush1.bf16.msra.mxu0 0
      %1098 = vmatprep.subr.bf16.mxu0 0
      %1099 = vmatpush1.bf16.msra.mxu0 0
      %1100 = vmatprep.subr.bf16.mxu0 0
      %1101 = vmatpush1.bf16.msra.mxu0 0
      %1102 = vmatprep.subr.bf16.mxu0 0
      %1103 = vmatpush1.bf16.msra.mxu0 0
      %1104 = vmatprep.subr.bf16.mxu0 0
      %1105 = vmatpush1.bf16.msra.mxu0 0
      %1106 = vmatprep.subr.bf16.mxu0 0
      %1107 = vmatpush1.bf16.msra.mxu0 0
      %1108 = vmatprep.subr.bf16.mxu0 0
      %1109 = vmatpush1.bf16.msra.mxu0 0
      %1110 = vmatprep.subr.bf16.mxu0 0
      %1111 = vmatpush1.bf16.msra.mxu0 0
      %1112 = vmatprep.subr.bf16.mxu0 0
      %1113 = vmatpush1.bf16.msra.mxu0 0
      %1114 = vmatprep.subr.bf16.mxu0 0
      %1115 = vmatpush1.bf16.msra.mxu0 0
      %1116 = vmatprep.subr.bf16.mxu0 0
      %1117 = vmatpush1.bf16.msra.mxu0 0
      %1118 = vmatprep.subr.bf16.mxu0 0
      %1119 = vmatpush1.bf16.msra.mxu0 0
      %1120 = vmatprep.subr.bf16.mxu0 0
      %1121 = vmatpush1.bf16.msra.mxu0 0
      %1122 = vmatprep.mubr.bf16.mxu0 0
      %1123 = vmatmul.mubr.bf16.gmra.mrb[0].mxu0 %v1088
      %v1124 = vpop.f32.mrb[0].mxu0
      %v1125 = vadd.f32 0.0, %v1124
      %v1126 = vpop.f32.mrb[0].mxu0
      %v1127 = vpop.f32.mrb[0].mxu0
      %v1128 = vadd.f32 0.0, %v1127
      %v1129 = vpop.f32.mrb[0].mxu0
      %1130 = vdwg.mxu0
      %1131 = vrot.lane.b32.xlu0 %v324, 32
      %v1132 = vpop.permute.xlu0 %1131
      %1133 = vrot.lane.b32.xlu0 %v330, 32
      %v1134 = vpop.permute.xlu0 %1133
      %1137 = vmatprep.subr.mxu0 0.0
      %1138 = vmatpush1.msra.mxu0 %v1132
      %1139 = vmatprep.subr.mxu0 0.0
      %1140 = vmatpush1.msra.mxu0 %v1134
      %1141 = vmatprep.subr.mxu0 0.0
      %1142 = vmatpush1.msra.mxu0 0.0
      %1143 = vmatprep.subr.mxu0 0.0
      %1144 = vmatpush1.msra.mxu0 0.0
      %1145 = vmatprep.subr.mxu0 0.0
      %1146 = vmatpush1.msra.mxu0 0.0
      %1147 = vmatprep.subr.mxu0 0.0
      %1148 = vmatpush1.msra.mxu0 0.0
      %1149 = vmatprep.subr.mxu0 0.0
      %1150 = vmatpush1.msra.mxu0 0.0
      %1151 = vmatprep.subr.mxu0 0.0
      %1152 = vmatpush1.msra.mxu0 0.0
      %1153 = vmatprep.subr.mxu0 0.0
      %1154 = vmatpush1.msra.mxu0 0.0
      %1155 = vmatprep.subr.mxu0 0.0
      %1156 = vmatpush1.msra.mxu0 0.0
      %1157 = vmatprep.subr.mxu0 0.0
      %1158 = vmatpush1.msra.mxu0 0.0
      %1159 = vmatprep.subr.mxu0 0.0
      %1160 = vmatpush1.msra.mxu0 0.0
      %1161 = vmatprep.subr.mxu0 0.0
      %1162 = vmatpush1.msra.mxu0 0.0
      %1163 = vmatprep.subr.mxu0 0.0
      %1164 = vmatpush1.msra.mxu0 0.0
      %1165 = vmatprep.subr.mxu0 0.0
      %1166 = vmatpush1.msra.mxu0 0.0
      %1167 = vmatprep.subr.mxu0 0.0
      %1168 = vmatpush1.msra.mxu0 0.0
      %1169 = vmatprep.subr.mxu0 0.0
      %1170 = vmatpush1.msra.mxu0 0.0
      %1171 = vmatprep.subr.mxu0 0.0
      %1172 = vmatpush1.msra.mxu0 0.0
      %1173 = vmatprep.subr.mxu0 0.0
      %1174 = vmatpush1.msra.mxu0 0.0
      %1175 = vmatprep.subr.mxu0 0.0
      %1176 = vmatpush1.msra.mxu0 0.0
      %1177 = vmatprep.subr.mxu0 0.0
      %1178 = vmatpush1.msra.mxu0 0.0
      %1179 = vmatprep.subr.mxu0 0.0
      %1180 = vmatpush1.msra.mxu0 0.0
      %1181 = vmatprep.subr.mxu0 0.0
      %1182 = vmatpush1.msra.mxu0 0.0
      %1183 = vmatprep.subr.mxu0 0.0
      %1184 = vmatpush1.msra.mxu0 0.0
      %1185 = vmatprep.subr.mxu0 0.0
      %1186 = vmatpush1.msra.mxu0 0.0
      %1187 = vmatprep.subr.mxu0 0.0
      %1188 = vmatpush1.msra.mxu0 0.0
      %1189 = vmatprep.subr.mxu0 0.0
      %1190 = vmatpush1.msra.mxu0 0.0
      %1191 = vmatprep.subr.mxu0 0.0
      %1192 = vmatpush1.msra.mxu0 0.0
      %1193 = vmatprep.subr.mxu0 0.0
      %1194 = vmatpush1.msra.mxu0 0.0
      %1195 = vmatprep.subr.mxu0 0.0
      %1196 = vmatpush1.msra.mxu0 0.0
      %1197 = vmatprep.subr.mxu0 0.0
      %1198 = vmatpush1.msra.mxu0 0.0
      %1199 = vmatprep.subr.mxu0 0.0
      %1200 = vmatpush1.msra.mxu0 0.0
      %1201 = vmatprep.mubr.f32.mxu0 0.0
      %1202 = vmatmul.mubr.f32.gmra.mrb[0].mxu0 %v475
      %v1203 = vpop.f32.mrb[0].mxu0
      %v1204 = vadd.f32 0.0, %v1203
      %v1205 = vpop.f32.mrb[0].mxu0
      %1206 = vmatprep.mubr.f32.mxu0 0.0
      %1207 = vmatmul.mubr.f32.gmra.mrb[0].mxu0 %v478
      %v1208 = vpop.f32.mrb[0].mxu0
      %v1209 = vadd.f32 0.0, %v1208
      %v1210 = vpop.f32.mrb[0].mxu0
      %1211 = vdwg.mxu0
      %1212 = vset.pattern.permute.xlu0 3
      %1213 = vperm.xlu0 %1212, %v557
      %v1214 = vpop.permute.xlu0 %1213
      %1215 = vset.pattern.permute.xlu0 3
      %1216 = vperm.xlu0 %1215, %v558
      %v1217 = vpop.permute.xlu0 %1216
      %vm1218 = vcmp.eq.s32.totalorder %v1214, 1
      %vm1219 = vcmp.eq.s32.totalorder %v1217, 1
      %v1220 = vsel %vm1218, %v1125, %v1204
      %v1221 = vsel %vm1219, %v1128, %v1209
      %v1222 = vpack.c.bf16 %v327, %v321
      %v1223 = vpack.c.bf16 %v329, %v323
      %v1225 = vsel %vm353, %v1222, 0
      %v1228 = vsel %vm353, %v1223, 0
      %1230 = vmatprep.subr.bf16.mxu0 0
      %1231 = vmatpush1.bf16.xpose.msra.mxu0 %v1228
      %1232 = vmatprep.subr.bf16.mxu0 0
      %1233 = vmatpush1.bf16.xpose.msra.mxu0 0
      %1234 = vmatprep.subr.bf16.mxu0 0
      %1235 = vmatpush1.bf16.xpose.msra.mxu0 0
      %1236 = vmatprep.subr.bf16.mxu0 0
      %1237 = vmatpush1.bf16.xpose.msra.mxu0 0
      %1238 = vmatprep.subr.bf16.mxu0 0
      %1239 = vmatpush1.bf16.xpose.msra.mxu0 0
      %1240 = vmatprep.subr.bf16.mxu0 0
      %1241 = vmatpush1.bf16.xpose.msra.mxu0 0
      %1242 = vmatprep.subr.bf16.mxu0 0
      %1243 = vmatpush1.bf16.xpose.msra.mxu0 0
      %1244 = vmatprep.subr.bf16.mxu0 0
      %1245 = vmatpush1.bf16.xpose.msra.mxu0 0
      %1246 = vmatprep.subr.bf16.mxu0 0
      %1247 = vmatpush1.bf16.xpose.msra.mxu0 0
      %1248 = vmatprep.subr.bf16.mxu0 0
      %1249 = vmatpush1.bf16.xpose.msra.mxu0 0
      %1250 = vmatprep.subr.bf16.mxu0 0
      %1251 = vmatpush1.bf16.xpose.msra.mxu0 0
      %1252 = vmatprep.subr.bf16.mxu0 0
      %1253 = vmatpush1.bf16.xpose.msra.mxu0 0
      %1254 = vmatprep.subr.bf16.mxu0 0
      %1255 = vmatpush1.bf16.xpose.msra.mxu0 0
      %1256 = vmatprep.subr.bf16.mxu0 0
      %1257 = vmatpush1.bf16.xpose.msra.mxu0 0
      %1258 = vmatprep.subr.bf16.mxu0 0
      %1259 = vmatpush1.bf16.xpose.msra.mxu0 0
      %1260 = vmatprep.subr.bf16.mxu0 0
      %1261 = vmatpush1.bf16.xpose.msra.mxu0 0
      %1262 = vmatprep.mubr.bf16.mxu0 0
      %1263 = vmatmul.mubr.bf16.gmra.mrb[0].mxu0 %v1225
      %v1264 = vpop.f32.mrb[0].mxu0
      %v1265 = vadd.f32 0.0, %v1264
      %v1266 = vpop.f32.mrb[0].mxu0
      %v1267 = vpop.f32.mrb[0].mxu0
      %v1268 = vadd.f32 0.0, %v1267
      %v1269 = vpop.f32.mrb[0].mxu0
      %1270 = vdwg.mxu0
      %v1271 = vmul.f32 %v1265, 0.17677669
      %v1272 = vmul.f32 %v1268, 0.17677669
      %v1273 = vsel %vm343, -1e+30, %v1271
      %v1274 = vsel %vm344, -1e+30, %v1272
      %v1275 = vsel %vm405, %v1273, -inf
      %1276 = vmax.xlane.f32.xlu0 %v1275
      %v1277 = vpop.xlane.xlu0 %1276
      %v1278 = vsel %vm405, %v1274, -inf
      %1279 = vmax.xlane.f32.xlu0 %v1278
      %v1280 = vpop.xlane.xlu0 %1279
      %v1281 = vsub.f32 %v1273, %v1277
      %v1282 = vsub.f32 %v1274, %v1280
      %v1283 = vmul.f32 %v1281, 1.442695
      %v1284 = vpow.pop %v1283
      %v1285 = vmul.f32 %v1282, 1.442695
      %v1286 = vpow.pop %v1285
      %v1287 = vsel %vm405, %v1284, 0.0
      %1288 = vadd.xlane.f32.xlu0 %v1287
      %v1289 = vpop.xlane.xlu0 %1288
      %v1290 = vsel %vm405, %v1286, 0.0
      %1291 = vadd.xlane.f32.xlu0 %v1290
      %v1292 = vpop.xlane.xlu0 %1291
      %v1293 = vrcp.pop %v1289
      %v1294 = vrcp.pop %v1292
      %v1295 = vmul.f32 %v1284, %v1293
      %v1296 = vmul.f32 %v1286, %v1294
      %v1297 = vpack.c.bf16 %v1296, %v1295
      %v1298 = vpack.c.bf16 %v331, %v325
      %v1300 = vsel %vm405, %v1297, 0
      %1302 = vmatprep.subr.bf16.mxu0 0
      %1303 = vmatpush1.bf16.msra.mxu0 %v1298
      %1304 = vmatprep.subr.bf16.mxu0 0
      %1305 = vmatpush1.bf16.msra.mxu0 0
      %1306 = vmatprep.subr.bf16.mxu0 0
      %1307 = vmatpush1.bf16.msra.mxu0 0
      %1308 = vmatprep.subr.bf16.mxu0 0
      %1309 = vmatpush1.bf16.msra.mxu0 0
      %1310 = vmatprep.subr.bf16.mxu0 0
      %1311 = vmatpush1.bf16.msra.mxu0 0
      %1312 = vmatprep.subr.bf16.mxu0 0
      %1313 = vmatpush1.bf16.msra.mxu0 0
      %1314 = vmatprep.subr.bf16.mxu0 0
      %1315 = vmatpush1.bf16.msra.mxu0 0
      %1316 = vmatprep.subr.bf16.mxu0 0
      %1317 = vmatpush1.bf16.msra.mxu0 0
      %1318 = vmatprep.subr.bf16.mxu0 0
      %1319 = vmatpush1.bf16.msra.mxu0 0
      %1320 = vmatprep.subr.bf16.mxu0 0
      %1321 = vmatpush1.bf16.msra.mxu0 0
      %1322 = vmatprep.subr.bf16.mxu0 0
      %1323 = vmatpush1.bf16.msra.mxu0 0
      %1324 = vmatprep.subr.bf16.mxu0 0
      %1325 = vmatpush1.bf16.msra.mxu0 0
      %1326 = vmatprep.subr.bf16.mxu0 0
      %1327 = vmatpush1.bf16.msra.mxu0 0
      %1328 = vmatprep.subr.bf16.mxu0 0
      %1329 = vmatpush1.bf16.msra.mxu0 0
      %1330 = vmatprep.subr.bf16.mxu0 0
      %1331 = vmatpush1.bf16.msra.mxu0 0
      %1332 = vmatprep.subr.bf16.mxu0 0
      %1333 = vmatpush1.bf16.msra.mxu0 0
      %1334 = vmatprep.mubr.bf16.mxu0 0
      %1335 = vmatmul.mubr.bf16.gmra.mrb[0].mxu0 %v1300
      %v1336 = vpop.f32.mrb[0].mxu0
      %v1337 = vadd.f32 0.0, %v1336
      %v1338 = vpop.f32.mrb[0].mxu0
      %v1339 = vpop.f32.mrb[0].mxu0
      %v1340 = vadd.f32 0.0, %v1339
      %v1341 = vpop.f32.mrb[0].mxu0
      %1342 = vdwg.mxu0
      %1343 = vmatprep.subr.mxu0 0.0
      %1344 = vmatpush1.msra.mxu0 %v325
      %1345 = vmatprep.subr.mxu0 0.0
      %1346 = vmatpush1.msra.mxu0 %v331
      %1347 = vmatprep.subr.mxu0 0.0
      %1348 = vmatpush1.msra.mxu0 0.0
      %1349 = vmatprep.subr.mxu0 0.0
      %1350 = vmatpush1.msra.mxu0 0.0
      %1351 = vmatprep.subr.mxu0 0.0
      %1352 = vmatpush1.msra.mxu0 0.0
      %1353 = vmatprep.subr.mxu0 0.0
      %1354 = vmatpush1.msra.mxu0 0.0
      %1355 = vmatprep.subr.mxu0 0.0
      %1356 = vmatpush1.msra.mxu0 0.0
      %1357 = vmatprep.subr.mxu0 0.0
      %1358 = vmatpush1.msra.mxu0 0.0
      %1359 = vmatprep.subr.mxu0 0.0
      %1360 = vmatpush1.msra.mxu0 0.0
      %1361 = vmatprep.subr.mxu0 0.0
      %1362 = vmatpush1.msra.mxu0 0.0
      %1363 = vmatprep.subr.mxu0 0.0
      %1364 = vmatpush1.msra.mxu0 0.0
      %1365 = vmatprep.subr.mxu0 0.0
      %1366 = vmatpush1.msra.mxu0 0.0
      %1367 = vmatprep.subr.mxu0 0.0
      %1368 = vmatpush1.msra.mxu0 0.0
      %1369 = vmatprep.subr.mxu0 0.0
      %1370 = vmatpush1.msra.mxu0 0.0
      %1371 = vmatprep.subr.mxu0 0.0
      %1372 = vmatpush1.msra.mxu0 0.0
      %1373 = vmatprep.subr.mxu0 0.0
      %1374 = vmatpush1.msra.mxu0 0.0
      %1375 = vmatprep.subr.mxu0 0.0
      %1376 = vmatpush1.msra.mxu0 0.0
      %1377 = vmatprep.subr.mxu0 0.0
      %1378 = vmatpush1.msra.mxu0 0.0
      %1379 = vmatprep.subr.mxu0 0.0
      %1380 = vmatpush1.msra.mxu0 0.0
      %1381 = vmatprep.subr.mxu0 0.0
      %1382 = vmatpush1.msra.mxu0 0.0
      %1383 = vmatprep.subr.mxu0 0.0
      %1384 = vmatpush1.msra.mxu0 0.0
      %1385 = vmatprep.subr.mxu0 0.0
      %1386 = vmatpush1.msra.mxu0 0.0
      %1387 = vmatprep.subr.mxu0 0.0
      %1388 = vmatpush1.msra.mxu0 0.0
      %1389 = vmatprep.subr.mxu0 0.0
      %1390 = vmatpush1.msra.mxu0 0.0
      %1391 = vmatprep.subr.mxu0 0.0
      %1392 = vmatpush1.msra.mxu0 0.0
      %1393 = vmatprep.subr.mxu0 0.0
      %1394 = vmatpush1.msra.mxu0 0.0
      %1395 = vmatprep.subr.mxu0 0.0
      %1396 = vmatpush1.msra.mxu0 0.0
      %1397 = vmatprep.subr.mxu0 0.0
      %1398 = vmatpush1.msra.mxu0 0.0
      %1399 = vmatprep.subr.mxu0 0.0
      %1400 = vmatpush1.msra.mxu0 0.0
      %1401 = vmatprep.subr.mxu0 0.0
      %1402 = vmatpush1.msra.mxu0 0.0
      %1403 = vmatprep.subr.mxu0 0.0
      %1404 = vmatpush1.msra.mxu0 0.0
      %1405 = vmatprep.subr.mxu0 0.0
      %1406 = vmatpush1.msra.mxu0 0.0
      %1407 = vmatprep.mubr.f32.mxu0 0.0
      %1408 = vmatmul.mubr.f32.gmra.mrb[0].mxu0 %v475
      %v1409 = vpop.f32.mrb[0].mxu0
      %v1410 = vadd.f32 0.0, %v1409
      %v1411 = vpop.f32.mrb[0].mxu0
      %1412 = vmatprep.mubr.f32.mxu0 0.0
      %1413 = vmatmul.mubr.f32.gmra.mrb[0].mxu0 %v478
      %v1414 = vpop.f32.mrb[0].mxu0
      %v1415 = vadd.f32 0.0, %v1414
      %v1416 = vpop.f32.mrb[0].mxu0
      %1417 = vdwg.mxu0
      %1418 = vset.pattern.permute.xlu0 4
      %1419 = vperm.xlu0 %1418, %v557
      %v1420 = vpop.permute.xlu0 %1419
      %1421 = vset.pattern.permute.xlu0 4
      %1422 = vperm.xlu0 %1421, %v558
      %v1423 = vpop.permute.xlu0 %1422
      %vm1424 = vcmp.eq.s32.totalorder %v1420, 1
      %vm1425 = vcmp.eq.s32.totalorder %v1423, 1
      %v1426 = vsel %vm1424, %v1337, %v1410
      %v1427 = vsel %vm1425, %v1340, %v1415
      %1429 = vrot.lane.b32.xlu0 %v1222, 96
      %v1430 = vpop.permute.xlu0 %1429
      %1432 = vrot.lane.b32.xlu0 %v1223, 96
      %v1433 = vpop.permute.xlu0 %1432
      %v1435 = vsel %vm353, %v1430, 0
      %v1438 = vsel %vm353, %v1433, 0
      %1440 = vmatprep.subr.bf16.mxu0 0
      %1441 = vmatpush1.bf16.xpose.msra.mxu0 %v1438
      %1442 = vmatprep.subr.bf16.mxu0 0
      %1443 = vmatpush1.bf16.xpose.msra.mxu0 0
      %1444 = vmatprep.subr.bf16.mxu0 0
      %1445 = vmatpush1.bf16.xpose.msra.mxu0 0
      %1446 = vmatprep.subr.bf16.mxu0 0
      %1447 = vmatpush1.bf16.xpose.msra.mxu0 0
      %1448 = vmatprep.subr.bf16.mxu0 0
      %1449 = vmatpush1.bf16.xpose.msra.mxu0 0
      %1450 = vmatprep.subr.bf16.mxu0 0
      %1451 = vmatpush1.bf16.xpose.msra.mxu0 0
      %1452 = vmatprep.subr.bf16.mxu0 0
      %1453 = vmatpush1.bf16.xpose.msra.mxu0 0
      %1454 = vmatprep.subr.bf16.mxu0 0
      %1455 = vmatpush1.bf16.xpose.msra.mxu0 0
      %1456 = vmatprep.subr.bf16.mxu0 0
      %1457 = vmatpush1.bf16.xpose.msra.mxu0 0
      %1458 = vmatprep.subr.bf16.mxu0 0
      %1459 = vmatpush1.bf16.xpose.msra.mxu0 0
      %1460 = vmatprep.subr.bf16.mxu0 0
      %1461 = vmatpush1.bf16.xpose.msra.mxu0 0
      %1462 = vmatprep.subr.bf16.mxu0 0
      %1463 = vmatpush1.bf16.xpose.msra.mxu0 0
      %1464 = vmatprep.subr.bf16.mxu0 0
      %1465 = vmatpush1.bf16.xpose.msra.mxu0 0
      %1466 = vmatprep.subr.bf16.mxu0 0
      %1467 = vmatpush1.bf16.xpose.msra.mxu0 0
      %1468 = vmatprep.subr.bf16.mxu0 0
      %1469 = vmatpush1.bf16.xpose.msra.mxu0 0
      %1470 = vmatprep.subr.bf16.mxu0 0
      %1471 = vmatpush1.bf16.xpose.msra.mxu0 0
      %1472 = vmatprep.mubr.bf16.mxu0 0
      %1473 = vmatmul.mubr.bf16.gmra.mrb[0].mxu0 %v1435
      %v1474 = vpop.f32.mrb[0].mxu0
      %v1475 = vadd.f32 0.0, %v1474
      %v1476 = vpop.f32.mrb[0].mxu0
      %v1477 = vpop.f32.mrb[0].mxu0
      %v1478 = vadd.f32 0.0, %v1477
      %v1479 = vpop.f32.mrb[0].mxu0
      %1480 = vdwg.mxu0
      %v1481 = vmul.f32 %v1475, 0.17677669
      %v1482 = vmul.f32 %v1478, 0.17677669
      %v1483 = vsel %vm343, -1e+30, %v1481
      %v1484 = vsel %vm344, -1e+30, %v1482
      %v1485 = vsel %vm405, %v1483, -inf
      %1486 = vmax.xlane.f32.xlu0 %v1485
      %v1487 = vpop.xlane.xlu0 %1486
      %v1488 = vsel %vm405, %v1484, -inf
      %1489 = vmax.xlane.f32.xlu0 %v1488
      %v1490 = vpop.xlane.xlu0 %1489
      %v1491 = vsub.f32 %v1483, %v1487
      %v1492 = vsub.f32 %v1484, %v1490
      %v1493 = vmul.f32 %v1491, 1.442695
      %v1494 = vpow.pop %v1493
      %v1495 = vmul.f32 %v1492, 1.442695
      %v1496 = vpow.pop %v1495
      %v1497 = vsel %vm405, %v1494, 0.0
      %1498 = vadd.xlane.f32.xlu0 %v1497
      %v1499 = vpop.xlane.xlu0 %1498
      %v1500 = vsel %vm405, %v1496, 0.0
      %1501 = vadd.xlane.f32.xlu0 %v1500
      %v1502 = vpop.xlane.xlu0 %1501
      %v1503 = vrcp.pop %v1499
      %v1504 = vrcp.pop %v1502
      %v1505 = vmul.f32 %v1494, %v1503
      %v1506 = vmul.f32 %v1496, %v1504
      %v1507 = vpack.c.bf16 %v1506, %v1505
      %1509 = vrot.lane.b32.xlu0 %v1298, 96
      %v1510 = vpop.permute.xlu0 %1509
      %v1513 = vsel %vm405, %v1507, 0
      %1515 = vmatprep.subr.bf16.mxu0 0
      %1516 = vmatpush1.bf16.msra.mxu0 %v1510
      %1517 = vmatprep.subr.bf16.mxu0 0
      %1518 = vmatpush1.bf16.msra.mxu0 0
      %1519 = vmatprep.subr.bf16.mxu0 0
      %1520 = vmatpush1.bf16.msra.mxu0 0
      %1521 = vmatprep.subr.bf16.mxu0 0
      %1522 = vmatpush1.bf16.msra.mxu0 0
      %1523 = vmatprep.subr.bf16.mxu0 0
      %1524 = vmatpush1.bf16.msra.mxu0 0
      %1525 = vmatprep.subr.bf16.mxu0 0
      %1526 = vmatpush1.bf16.msra.mxu0 0
      %1527 = vmatprep.subr.bf16.mxu0 0
      %1528 = vmatpush1.bf16.msra.mxu0 0
      %1529 = vmatprep.subr.bf16.mxu0 0
      %1530 = vmatpush1.bf16.msra.mxu0 0
      %1531 = vmatprep.subr.bf16.mxu0 0
      %1532 = vmatpush1.bf16.msra.mxu0 0
      %1533 = vmatprep.subr.bf16.mxu0 0
      %1534 = vmatpush1.bf16.msra.mxu0 0
      %1535 = vmatprep.subr.bf16.mxu0 0
      %1536 = vmatpush1.bf16.msra.mxu0 0
      %1537 = vmatprep.subr.bf16.mxu0 0
      %1538 = vmatpush1.bf16.msra.mxu0 0
      %1539 = vmatprep.subr.bf16.mxu0 0
      %1540 = vmatpush1.bf16.msra.mxu0 0
      %1541 = vmatprep.subr.bf16.mxu0 0
      %1542 = vmatpush1.bf16.msra.mxu0 0
      %1543 = vmatprep.subr.bf16.mxu0 0
      %1544 = vmatpush1.bf16.msra.mxu0 0
      %1545 = vmatprep.subr.bf16.mxu0 0
      %1546 = vmatpush1.bf16.msra.mxu0 0
      %1547 = vmatprep.mubr.bf16.mxu0 0
      %1548 = vmatmul.mubr.bf16.gmra.mrb[0].mxu0 %v1513
      %v1549 = vpop.f32.mrb[0].mxu0
      %v1550 = vadd.f32 0.0, %v1549
      %v1551 = vpop.f32.mrb[0].mxu0
      %v1552 = vpop.f32.mrb[0].mxu0
      %v1553 = vadd.f32 0.0, %v1552
      %v1554 = vpop.f32.mrb[0].mxu0
      %1555 = vdwg.mxu0
      %1558 = vrot.lane.b32.xlu0 %v325, 96
      %v1559 = vpop.permute.xlu0 %1558
      %1560 = vrot.lane.b32.xlu0 %v331, 96
      %v1561 = vpop.permute.xlu0 %1560
      %1564 = vmatprep.subr.mxu0 0.0
      %1565 = vmatpush1.msra.mxu0 %v1559
      %1566 = vmatprep.subr.mxu0 0.0
      %1567 = vmatpush1.msra.mxu0 %v1561
      %1568 = vmatprep.subr.mxu0 0.0
      %1569 = vmatpush1.msra.mxu0 0.0
      %1570 = vmatprep.subr.mxu0 0.0
      %1571 = vmatpush1.msra.mxu0 0.0
      %1572 = vmatprep.subr.mxu0 0.0
      %1573 = vmatpush1.msra.mxu0 0.0
      %1574 = vmatprep.subr.mxu0 0.0
      %1575 = vmatpush1.msra.mxu0 0.0
      %1576 = vmatprep.subr.mxu0 0.0
      %1577 = vmatpush1.msra.mxu0 0.0
      %1578 = vmatprep.subr.mxu0 0.0
      %1579 = vmatpush1.msra.mxu0 0.0
      %1580 = vmatprep.subr.mxu0 0.0
      %1581 = vmatpush1.msra.mxu0 0.0
      %1582 = vmatprep.subr.mxu0 0.0
      %1583 = vmatpush1.msra.mxu0 0.0
      %1584 = vmatprep.subr.mxu0 0.0
      %1585 = vmatpush1.msra.mxu0 0.0
      %1586 = vmatprep.subr.mxu0 0.0
      %1587 = vmatpush1.msra.mxu0 0.0
      %1588 = vmatprep.subr.mxu0 0.0
      %1589 = vmatpush1.msra.mxu0 0.0
      %1590 = vmatprep.subr.mxu0 0.0
      %1591 = vmatpush1.msra.mxu0 0.0
      %1592 = vmatprep.subr.mxu0 0.0
      %1593 = vmatpush1.msra.mxu0 0.0
      %1594 = vmatprep.subr.mxu0 0.0
      %1595 = vmatpush1.msra.mxu0 0.0
      %1596 = vmatprep.subr.mxu0 0.0
      %1597 = vmatpush1.msra.mxu0 0.0
      %1598 = vmatprep.subr.mxu0 0.0
      %1599 = vmatpush1.msra.mxu0 0.0
      %1600 = vmatprep.subr.mxu0 0.0
      %1601 = vmatpush1.msra.mxu0 0.0
      %1602 = vmatprep.subr.mxu0 0.0
      %1603 = vmatpush1.msra.mxu0 0.0
      %1604 = vmatprep.subr.mxu0 0.0
      %1605 = vmatpush1.msra.mxu0 0.0
      %1606 = vmatprep.subr.mxu0 0.0
      %1607 = vmatpush1.msra.mxu0 0.0
      %1608 = vmatprep.subr.mxu0 0.0
      %1609 = vmatpush1.msra.mxu0 0.0
      %1610 = vmatprep.subr.mxu0 0.0
      %1611 = vmatpush1.msra.mxu0 0.0
      %1612 = vmatprep.subr.mxu0 0.0
      %1613 = vmatpush1.msra.mxu0 0.0
      %1614 = vmatprep.subr.mxu0 0.0
      %1615 = vmatpush1.msra.mxu0 0.0
      %1616 = vmatprep.subr.mxu0 0.0
      %1617 = vmatpush1.msra.mxu0 0.0
      %1618 = vmatprep.subr.mxu0 0.0
      %1619 = vmatpush1.msra.mxu0 0.0
      %1620 = vmatprep.subr.mxu0 0.0
      %1621 = vmatpush1.msra.mxu0 0.0
      %1622 = vmatprep.subr.mxu0 0.0
      %1623 = vmatpush1.msra.mxu0 0.0
      %1624 = vmatprep.subr.mxu0 0.0
      %1625 = vmatpush1.msra.mxu0 0.0
      %1626 = vmatprep.subr.mxu0 0.0
      %1627 = vmatpush1.msra.mxu0 0.0
      %1628 = vmatprep.mubr.f32.mxu0 0.0
      %1629 = vmatmul.mubr.f32.gmra.mrb[0].mxu0 %v475
      %v1630 = vpop.f32.mrb[0].mxu0
      %v1631 = vadd.f32 0.0, %v1630
      %v1632 = vpop.f32.mrb[0].mxu0
      %1633 = vmatprep.mubr.f32.mxu0 0.0
      %1634 = vmatmul.mubr.f32.gmra.mrb[0].mxu0 %v478
      %v1635 = vpop.f32.mrb[0].mxu0
      %v1636 = vadd.f32 0.0, %v1635
      %v1637 = vpop.f32.mrb[0].mxu0
      %1638 = vdwg.mxu0
      %1639 = vset.pattern.permute.xlu0 5
      %1640 = vperm.xlu0 %1639, %v557
      %v1641 = vpop.permute.xlu0 %1640
      %1642 = vset.pattern.permute.xlu0 5
      %1643 = vperm.xlu0 %1642, %v558
      %v1644 = vpop.permute.xlu0 %1643
      %vm1645 = vcmp.eq.s32.totalorder %v1641, 1
      %vm1646 = vcmp.eq.s32.totalorder %v1644, 1
      %v1647 = vsel %vm1645, %v1550, %v1631
      %v1648 = vsel %vm1646, %v1553, %v1636
      %1649 = vrot.lane.b32.xlu0 %v1222, 64
      %v1650 = vpop.permute.xlu0 %1649
      %1651 = vrot.lane.b32.xlu0 %v1223, 64
      %v1652 = vpop.permute.xlu0 %1651
      %v1654 = vsel %vm353, %v1650, 0
      %v1657 = vsel %vm353, %v1652, 0
      %1659 = vmatprep.subr.bf16.mxu0 0
      %1660 = vmatpush1.bf16.xpose.msra.mxu0 %v1657
      %1661 = vmatprep.subr.bf16.mxu0 0
      %1662 = vmatpush1.bf16.xpose.msra.mxu0 0
      %1663 = vmatprep.subr.bf16.mxu0 0
      %1664 = vmatpush1.bf16.xpose.msra.mxu0 0
      %1665 = vmatprep.subr.bf16.mxu0 0
      %1666 = vmatpush1.bf16.xpose.msra.mxu0 0
      %1667 = vmatprep.subr.bf16.mxu0 0
      %1668 = vmatpush1.bf16.xpose.msra.mxu0 0
      %1669 = vmatprep.subr.bf16.mxu0 0
      %1670 = vmatpush1.bf16.xpose.msra.mxu0 0
      %1671 = vmatprep.subr.bf16.mxu0 0
      %1672 = vmatpush1.bf16.xpose.msra.mxu0 0
      %1673 = vmatprep.subr.bf16.mxu0 0
      %1674 = vmatpush1.bf16.xpose.msra.mxu0 0
      %1675 = vmatprep.subr.bf16.mxu0 0
      %1676 = vmatpush1.bf16.xpose.msra.mxu0 0
      %1677 = vmatprep.subr.bf16.mxu0 0
      %1678 = vmatpush1.bf16.xpose.msra.mxu0 0
      %1679 = vmatprep.subr.bf16.mxu0 0
      %1680 = vmatpush1.bf16.xpose.msra.mxu0 0
      %1681 = vmatprep.subr.bf16.mxu0 0
      %1682 = vmatpush1.bf16.xpose.msra.mxu0 0
      %1683 = vmatprep.subr.bf16.mxu0 0
      %1684 = vmatpush1.bf16.xpose.msra.mxu0 0
      %1685 = vmatprep.subr.bf16.mxu0 0
      %1686 = vmatpush1.bf16.xpose.msra.mxu0 0
      %1687 = vmatprep.subr.bf16.mxu0 0
      %1688 = vmatpush1.bf16.xpose.msra.mxu0 0
      %1689 = vmatprep.subr.bf16.mxu0 0
      %1690 = vmatpush1.bf16.xpose.msra.mxu0 0
      %1691 = vmatprep.mubr.bf16.mxu0 0
      %1692 = vmatmul.mubr.bf16.gmra.mrb[0].mxu0 %v1654
      %v1693 = vpop.f32.mrb[0].mxu0
      %v1694 = vadd.f32 0.0, %v1693
      %v1695 = vpop.f32.mrb[0].mxu0
      %v1696 = vpop.f32.mrb[0].mxu0
      %v1697 = vadd.f32 0.0, %v1696
      %v1698 = vpop.f32.mrb[0].mxu0
      %1699 = vdwg.mxu0
      %v1700 = vmul.f32 %v1694, 0.17677669
      %v1701 = vmul.f32 %v1697, 0.17677669
      %v1702 = vsel %vm343, -1e+30, %v1700
      %v1703 = vsel %vm344, -1e+30, %v1701
      %v1704 = vsel %vm405, %v1702, -inf
      %1705 = vmax.xlane.f32.xlu0 %v1704
      %v1706 = vpop.xlane.xlu0 %1705
      %v1707 = vsel %vm405, %v1703, -inf
      %1708 = vmax.xlane.f32.xlu0 %v1707
      %v1709 = vpop.xlane.xlu0 %1708
      %v1710 = vsub.f32 %v1702, %v1706
      %v1711 = vsub.f32 %v1703, %v1709
      %v1712 = vmul.f32 %v1710, 1.442695
      %v1713 = vpow.pop %v1712
      %v1714 = vmul.f32 %v1711, 1.442695
      %v1715 = vpow.pop %v1714
      %v1716 = vsel %vm405, %v1713, 0.0
      %1717 = vadd.xlane.f32.xlu0 %v1716
      %v1718 = vpop.xlane.xlu0 %1717
      %v1719 = vsel %vm405, %v1715, 0.0
      %1720 = vadd.xlane.f32.xlu0 %v1719
      %v1721 = vpop.xlane.xlu0 %1720
      %v1722 = vrcp.pop %v1718
      %v1723 = vrcp.pop %v1721
      %v1724 = vmul.f32 %v1713, %v1722
      %v1725 = vmul.f32 %v1715, %v1723
      %v1726 = vpack.c.bf16 %v1725, %v1724
      %1727 = vrot.lane.b32.xlu0 %v1298, 64
      %v1728 = vpop.permute.xlu0 %1727
      %v1731 = vsel %vm405, %v1726, 0
      %1733 = vmatprep.subr.bf16.mxu0 0
      %1734 = vmatpush1.bf16.msra.mxu0 %v1728
      %1735 = vmatprep.subr.bf16.mxu0 0
      %1736 = vmatpush1.bf16.msra.mxu0 0
      %1737 = vmatprep.subr.bf16.mxu0 0
      %1738 = vmatpush1.bf16.msra.mxu0 0
      %1739 = vmatprep.subr.bf16.mxu0 0
      %1740 = vmatpush1.bf16.msra.mxu0 0
      %1741 = vmatprep.subr.bf16.mxu0 0
      %1742 = vmatpush1.bf16.msra.mxu0 0
      %1743 = vmatprep.subr.bf16.mxu0 0
      %1744 = vmatpush1.bf16.msra.mxu0 0
      %1745 = vmatprep.subr.bf16.mxu0 0
      %1746 = vmatpush1.bf16.msra.mxu0 0
      %1747 = vmatprep.subr.bf16.mxu0 0
      %1748 = vmatpush1.bf16.msra.mxu0 0
      %1749 = vmatprep.subr.bf16.mxu0 0
      %1750 = vmatpush1.bf16.msra.mxu0 0
      %1751 = vmatprep.subr.bf16.mxu0 0
      %1752 = vmatpush1.bf16.msra.mxu0 0
      %1753 = vmatprep.subr.bf16.mxu0 0
      %1754 = vmatpush1.bf16.msra.mxu0 0
      %1755 = vmatprep.subr.bf16.mxu0 0
      %1756 = vmatpush1.bf16.msra.mxu0 0
      %1757 = vmatprep.subr.bf16.mxu0 0
      %1758 = vmatpush1.bf16.msra.mxu0 0
      %1759 = vmatprep.subr.bf16.mxu0 0
      %1760 = vmatpush1.bf16.msra.mxu0 0
      %1761 = vmatprep.subr.bf16.mxu0 0
      %1762 = vmatpush1.bf16.msra.mxu0 0
      %1763 = vmatprep.subr.bf16.mxu0 0
      %1764 = vmatpush1.bf16.msra.mxu0 0
      %1765 = vmatprep.mubr.bf16.mxu0 0
      %1766 = vmatmul.mubr.bf16.gmra.mrb[0].mxu0 %v1731
      %v1767 = vpop.f32.mrb[0].mxu0
      %v1768 = vadd.f32 0.0, %v1767
      %v1769 = vpop.f32.mrb[0].mxu0
      %v1770 = vpop.f32.mrb[0].mxu0
      %v1771 = vadd.f32 0.0, %v1770
      %v1772 = vpop.f32.mrb[0].mxu0
      %1773 = vdwg.mxu0
      %1774 = vrot.lane.b32.xlu0 %v325, 64
      %v1775 = vpop.permute.xlu0 %1774
      %1776 = vrot.lane.b32.xlu0 %v331, 64
      %v1777 = vpop.permute.xlu0 %1776
      %1780 = vmatprep.subr.mxu0 0.0
      %1781 = vmatpush1.msra.mxu0 %v1775
      %1782 = vmatprep.subr.mxu0 0.0
      %1783 = vmatpush1.msra.mxu0 %v1777
      %1784 = vmatprep.subr.mxu0 0.0
      %1785 = vmatpush1.msra.mxu0 0.0
      %1786 = vmatprep.subr.mxu0 0.0
      %1787 = vmatpush1.msra.mxu0 0.0
      %1788 = vmatprep.subr.mxu0 0.0
      %1789 = vmatpush1.msra.mxu0 0.0
      %1790 = vmatprep.subr.mxu0 0.0
      %1791 = vmatpush1.msra.mxu0 0.0
      %1792 = vmatprep.subr.mxu0 0.0
      %1793 = vmatpush1.msra.mxu0 0.0
      %1794 = vmatprep.subr.mxu0 0.0
      %1795 = vmatpush1.msra.mxu0 0.0
      %1796 = vmatprep.subr.mxu0 0.0
      %1797 = vmatpush1.msra.mxu0 0.0
      %1798 = vmatprep.subr.mxu0 0.0
      %1799 = vmatpush1.msra.mxu0 0.0
      %1800 = vmatprep.subr.mxu0 0.0
      %1801 = vmatpush1.msra.mxu0 0.0
      %1802 = vmatprep.subr.mxu0 0.0
      %1803 = vmatpush1.msra.mxu0 0.0
      %1804 = vmatprep.subr.mxu0 0.0
      %1805 = vmatpush1.msra.mxu0 0.0
      %1806 = vmatprep.subr.mxu0 0.0
      %1807 = vmatpush1.msra.mxu0 0.0
      %1808 = vmatprep.subr.mxu0 0.0
      %1809 = vmatpush1.msra.mxu0 0.0
      %1810 = vmatprep.subr.mxu0 0.0
      %1811 = vmatpush1.msra.mxu0 0.0
      %1812 = vmatprep.subr.mxu0 0.0
      %1813 = vmatpush1.msra.mxu0 0.0
      %1814 = vmatprep.subr.mxu0 0.0
      %1815 = vmatpush1.msra.mxu0 0.0
      %1816 = vmatprep.subr.mxu0 0.0
      %1817 = vmatpush1.msra.mxu0 0.0
      %1818 = vmatprep.subr.mxu0 0.0
      %1819 = vmatpush1.msra.mxu0 0.0
      %1820 = vmatprep.subr.mxu0 0.0
      %1821 = vmatpush1.msra.mxu0 0.0
      %1822 = vmatprep.subr.mxu0 0.0
      %1823 = vmatpush1.msra.mxu0 0.0
      %1824 = vmatprep.subr.mxu0 0.0
      %1825 = vmatpush1.msra.mxu0 0.0
      %1826 = vmatprep.subr.mxu0 0.0
      %1827 = vmatpush1.msra.mxu0 0.0
      %1828 = vmatprep.subr.mxu0 0.0
      %1829 = vmatpush1.msra.mxu0 0.0
      %1830 = vmatprep.subr.mxu0 0.0
      %1831 = vmatpush1.msra.mxu0 0.0
      %1832 = vmatprep.subr.mxu0 0.0
      %1833 = vmatpush1.msra.mxu0 0.0
      %1834 = vmatprep.subr.mxu0 0.0
      %1835 = vmatpush1.msra.mxu0 0.0
      %1836 = vmatprep.subr.mxu0 0.0
      %1837 = vmatpush1.msra.mxu0 0.0
      %1838 = vmatprep.subr.mxu0 0.0
      %1839 = vmatpush1.msra.mxu0 0.0
      %1840 = vmatprep.subr.mxu0 0.0
      %1841 = vmatpush1.msra.mxu0 0.0
      %1842 = vmatprep.subr.mxu0 0.0
      %1843 = vmatpush1.msra.mxu0 0.0
      %1844 = vmatprep.mubr.f32.mxu0 0.0
      %1845 = vmatmul.mubr.f32.gmra.mrb[0].mxu0 %v475
      %v1846 = vpop.f32.mrb[0].mxu0
      %v1847 = vadd.f32 0.0, %v1846
      %v1848 = vpop.f32.mrb[0].mxu0
      %1849 = vmatprep.mubr.f32.mxu0 0.0
      %1850 = vmatmul.mubr.f32.gmra.mrb[0].mxu0 %v478
      %v1851 = vpop.f32.mrb[0].mxu0
      %v1852 = vadd.f32 0.0, %v1851
      %v1853 = vpop.f32.mrb[0].mxu0
      %1854 = vdwg.mxu0
      %1855 = vset.pattern.permute.xlu0 6
      %1856 = vperm.xlu0 %1855, %v557
      %v1857 = vpop.permute.xlu0 %1856
      %1858 = vset.pattern.permute.xlu0 6
      %1859 = vperm.xlu0 %1858, %v558
      %v1860 = vpop.permute.xlu0 %1859
      %vm1861 = vcmp.eq.s32.totalorder %v1857, 1
      %vm1862 = vcmp.eq.s32.totalorder %v1860, 1
      %v1863 = vsel %vm1861, %v1768, %v1847
      %v1864 = vsel %vm1862, %v1771, %v1852
      %1865 = vrot.lane.b32.xlu0 %v1222, 32
      %v1866 = vpop.permute.xlu0 %1865
      %1867 = vrot.lane.b32.xlu0 %v1223, 32
      %v1868 = vpop.permute.xlu0 %1867
      %v1870 = vsel %vm353, %v1866, 0
      %v1873 = vsel %vm353, %v1868, 0
      %1875 = vmatprep.subr.bf16.mxu0 0
      %1876 = vmatpush1.bf16.xpose.msra.mxu0 %v1873
      %1877 = vmatprep.subr.bf16.mxu0 0
      %1878 = vmatpush1.bf16.xpose.msra.mxu0 0
      %1879 = vmatprep.subr.bf16.mxu0 0
      %1880 = vmatpush1.bf16.xpose.msra.mxu0 0
      %1881 = vmatprep.subr.bf16.mxu0 0
      %1882 = vmatpush1.bf16.xpose.msra.mxu0 0
      %1883 = vmatprep.subr.bf16.mxu0 0
      %1884 = vmatpush1.bf16.xpose.msra.mxu0 0
      %1885 = vmatprep.subr.bf16.mxu0 0
      %1886 = vmatpush1.bf16.xpose.msra.mxu0 0
      %1887 = vmatprep.subr.bf16.mxu0 0
      %1888 = vmatpush1.bf16.xpose.msra.mxu0 0
      %1889 = vmatprep.subr.bf16.mxu0 0
      %1890 = vmatpush1.bf16.xpose.msra.mxu0 0
      %1891 = vmatprep.subr.bf16.mxu0 0
      %1892 = vmatpush1.bf16.xpose.msra.mxu0 0
      %1893 = vmatprep.subr.bf16.mxu0 0
      %1894 = vmatpush1.bf16.xpose.msra.mxu0 0
      %1895 = vmatprep.subr.bf16.mxu0 0
      %1896 = vmatpush1.bf16.xpose.msra.mxu0 0
      %1897 = vmatprep.subr.bf16.mxu0 0
      %1898 = vmatpush1.bf16.xpose.msra.mxu0 0
      %1899 = vmatprep.subr.bf16.mxu0 0
      %1900 = vmatpush1.bf16.xpose.msra.mxu0 0
      %1901 = vmatprep.subr.bf16.mxu0 0
      %1902 = vmatpush1.bf16.xpose.msra.mxu0 0
      %1903 = vmatprep.subr.bf16.mxu0 0
      %1904 = vmatpush1.bf16.xpose.msra.mxu0 0
      %1905 = vmatprep.subr.bf16.mxu0 0
      %1906 = vmatpush1.bf16.xpose.msra.mxu0 0
      %1907 = vmatprep.mubr.bf16.mxu0 0
      %1908 = vmatmul.mubr.bf16.gmra.mrb[0].mxu0 %v1870
      %v1909 = vpop.f32.mrb[0].mxu0
      %v1910 = vadd.f32 0.0, %v1909
      %v1911 = vpop.f32.mrb[0].mxu0
      %v1912 = vpop.f32.mrb[0].mxu0
      %v1913 = vadd.f32 0.0, %v1912
      %v1914 = vpop.f32.mrb[0].mxu0
      %1915 = vdwg.mxu0
      %v1916 = vmul.f32 %v1910, 0.17677669
      %v1917 = vmul.f32 %v1913, 0.17677669
      %v1918 = vsel %vm343, -1e+30, %v1916
      %v1919 = vsel %vm344, -1e+30, %v1917
      %v1920 = vsel %vm405, %v1918, -inf
      %1921 = vmax.xlane.f32.xlu0 %v1920
      %v1922 = vpop.xlane.xlu0 %1921
      %v1923 = vsel %vm405, %v1919, -inf
      %1924 = vmax.xlane.f32.xlu0 %v1923
      %v1925 = vpop.xlane.xlu0 %1924
      %v1926 = vsub.f32 %v1918, %v1922
      %v1927 = vsub.f32 %v1919, %v1925
      %v1928 = vmul.f32 %v1926, 1.442695
      %v1929 = vpow.pop %v1928
      %v1930 = vmul.f32 %v1927, 1.442695
      %v1931 = vpow.pop %v1930
      %v1932 = vsel %vm405, %v1929, 0.0
      %1933 = vadd.xlane.f32.xlu0 %v1932
      %v1934 = vpop.xlane.xlu0 %1933
      %v1935 = vsel %vm405, %v1931, 0.0
      %1936 = vadd.xlane.f32.xlu0 %v1935
      %v1937 = vpop.xlane.xlu0 %1936
      %v1938 = vrcp.pop %v1934
      %v1939 = vrcp.pop %v1937
      %v1940 = vmul.f32 %v1929, %v1938
      %v1941 = vmul.f32 %v1931, %v1939
      %v1942 = vpack.c.bf16 %v1941, %v1940
      %1943 = vrot.lane.b32.xlu0 %v1298, 32
      %v1944 = vpop.permute.xlu0 %1943
      %v1947 = vsel %vm405, %v1942, 0
      %1949 = vmatprep.subr.bf16.mxu0 0
      %1950 = vmatpush1.bf16.msra.mxu0 %v1944
      %1951 = vmatprep.subr.bf16.mxu0 0
      %1952 = vmatpush1.bf16.msra.mxu0 0
      %1953 = vmatprep.subr.bf16.mxu0 0
      %1954 = vmatpush1.bf16.msra.mxu0 0
      %1955 = vmatprep.subr.bf16.mxu0 0
      %1956 = vmatpush1.bf16.msra.mxu0 0
      %1957 = vmatprep.subr.bf16.mxu0 0
      %1958 = vmatpush1.bf16.msra.mxu0 0
      %1959 = vmatprep.subr.bf16.mxu0 0
      %1960 = vmatpush1.bf16.msra.mxu0 0
      %1961 = vmatprep.subr.bf16.mxu0 0
      %1962 = vmatpush1.bf16.msra.mxu0 0
      %1963 = vmatprep.subr.bf16.mxu0 0
      %1964 = vmatpush1.bf16.msra.mxu0 0
      %1965 = vmatprep.subr.bf16.mxu0 0
      %1966 = vmatpush1.bf16.msra.mxu0 0
      %1967 = vmatprep.subr.bf16.mxu0 0
      %1968 = vmatpush1.bf16.msra.mxu0 0
      %1969 = vmatprep.subr.bf16.mxu0 0
      %1970 = vmatpush1.bf16.msra.mxu0 0
      %1971 = vmatprep.subr.bf16.mxu0 0
      %1972 = vmatpush1.bf16.msra.mxu0 0
      %1973 = vmatprep.subr.bf16.mxu0 0
      %1974 = vmatpush1.bf16.msra.mxu0 0
      %1975 = vmatprep.subr.bf16.mxu0 0
      %1976 = vmatpush1.bf16.msra.mxu0 0
      %1977 = vmatprep.subr.bf16.mxu0 0
      %1978 = vmatpush1.bf16.msra.mxu0 0
      %1979 = vmatprep.subr.bf16.mxu0 0
      %1980 = vmatpush1.bf16.msra.mxu0 0
      %1981 = vmatprep.mubr.bf16.mxu0 0
      %1982 = vmatmul.mubr.bf16.gmra.mrb[0].mxu0 %v1947
      %v1983 = vpop.f32.mrb[0].mxu0
      %v1984 = vadd.f32 0.0, %v1983
      %v1985 = vpop.f32.mrb[0].mxu0
      %v1986 = vpop.f32.mrb[0].mxu0
      %v1987 = vadd.f32 0.0, %v1986
      %v1988 = vpop.f32.mrb[0].mxu0
      %1989 = vdwg.mxu0
      %1990 = vrot.lane.b32.xlu0 %v325, 32
      %v1991 = vpop.permute.xlu0 %1990
      %1992 = vrot.lane.b32.xlu0 %v331, 32
      %v1993 = vpop.permute.xlu0 %1992
      %1996 = vmatprep.subr.mxu0 0.0
      %1997 = vmatpush1.msra.mxu0 %v1991
      %1998 = vmatprep.subr.mxu0 0.0
      %1999 = vmatpush1.msra.mxu0 %v1993
      %2000 = vmatprep.subr.mxu0 0.0
      %2001 = vmatpush1.msra.mxu0 0.0
      %2002 = vmatprep.subr.mxu0 0.0
      %2003 = vmatpush1.msra.mxu0 0.0
      %2004 = vmatprep.subr.mxu0 0.0
      %2005 = vmatpush1.msra.mxu0 0.0
      %2006 = vmatprep.subr.mxu0 0.0
      %2007 = vmatpush1.msra.mxu0 0.0
      %2008 = vmatprep.subr.mxu0 0.0
      %2009 = vmatpush1.msra.mxu0 0.0
      %2010 = vmatprep.subr.mxu0 0.0
      %2011 = vmatpush1.msra.mxu0 0.0
      %2012 = vmatprep.subr.mxu0 0.0
      %2013 = vmatpush1.msra.mxu0 0.0
      %2014 = vmatprep.subr.mxu0 0.0
      %2015 = vmatpush1.msra.mxu0 0.0
      %2016 = vmatprep.subr.mxu0 0.0
      %2017 = vmatpush1.msra.mxu0 0.0
      %2018 = vmatprep.subr.mxu0 0.0
      %2019 = vmatpush1.msra.mxu0 0.0
      %2020 = vmatprep.subr.mxu0 0.0
      %2021 = vmatpush1.msra.mxu0 0.0
      %2022 = vmatprep.subr.mxu0 0.0
      %2023 = vmatpush1.msra.mxu0 0.0
      %2024 = vmatprep.subr.mxu0 0.0
      %2025 = vmatpush1.msra.mxu0 0.0
      %2026 = vmatprep.subr.mxu0 0.0
      %2027 = vmatpush1.msra.mxu0 0.0
      %2028 = vmatprep.subr.mxu0 0.0
      %2029 = vmatpush1.msra.mxu0 0.0
      %2030 = vmatprep.subr.mxu0 0.0
      %2031 = vmatpush1.msra.mxu0 0.0
      %2032 = vmatprep.subr.mxu0 0.0
      %2033 = vmatpush1.msra.mxu0 0.0
      %2034 = vmatprep.subr.mxu0 0.0
      %2035 = vmatpush1.msra.mxu0 0.0
      %2036 = vmatprep.subr.mxu0 0.0
      %2037 = vmatpush1.msra.mxu0 0.0
      %2038 = vmatprep.subr.mxu0 0.0
      %2039 = vmatpush1.msra.mxu0 0.0
      %2040 = vmatprep.subr.mxu0 0.0
      %2041 = vmatpush1.msra.mxu0 0.0
      %2042 = vmatprep.subr.mxu0 0.0
      %2043 = vmatpush1.msra.mxu0 0.0
      %2044 = vmatprep.subr.mxu0 0.0
      %2045 = vmatpush1.msra.mxu0 0.0
      %2046 = vmatprep.subr.mxu0 0.0
      %2047 = vmatpush1.msra.mxu0 0.0
      %2048 = vmatprep.subr.mxu0 0.0
      %2049 = vmatpush1.msra.mxu0 0.0
      %2050 = vmatprep.subr.mxu0 0.0
      %2051 = vmatpush1.msra.mxu0 0.0
      %2052 = vmatprep.subr.mxu0 0.0
      %2053 = vmatpush1.msra.mxu0 0.0
      %2054 = vmatprep.subr.mxu0 0.0
      %2055 = vmatpush1.msra.mxu0 0.0
      %2056 = vmatprep.subr.mxu0 0.0
      %2057 = vmatpush1.msra.mxu0 0.0
      %2058 = vmatprep.subr.mxu0 0.0
      %2059 = vmatpush1.msra.mxu0 0.0
      %2060 = vmatprep.mubr.f32.mxu0 0.0
      %2061 = vmatmul.mubr.f32.gmra.mrb[0].mxu0 %v475
      %v2062 = vpop.f32.mrb[0].mxu0
      %v2063 = vadd.f32 0.0, %v2062
      %v2064 = vpop.f32.mrb[0].mxu0
      %2065 = vmatprep.mubr.f32.mxu0 0.0
      %2066 = vmatmul.mubr.f32.gmra.mrb[0].mxu0 %v478
      %v2067 = vpop.f32.mrb[0].mxu0
      %v2068 = vadd.f32 0.0, %v2067
      %v2069 = vpop.f32.mrb[0].mxu0
      %2070 = vdwg.mxu0
      %2071 = vset.pattern.permute.xlu0 7
      %2072 = vperm.xlu0 %2071, %v557
      %v2073 = vpop.permute.xlu0 %2072
      %2074 = vset.pattern.permute.xlu0 7
      %2075 = vperm.xlu0 %2074, %v558
      %v2076 = vpop.permute.xlu0 %2075
      %vm2077 = vcmp.eq.s32.totalorder %v2073, 1
      %vm2078 = vcmp.eq.s32.totalorder %v2076, 1
      %v2079 = vsel %vm2077, %v1984, %v2063
      %v2080 = vsel %vm2078, %v1987, %v2068
      %v2082 = vrot.slane %v567, 1
      %2083 = vrot.lane.b32.xlu0 %v2082, 32
      %v2084 = vpop.permute.xlu0 %2083
      %v2086 = vrot.slane %v567, 2
      %2087 = vrot.lane.b32.xlu0 %v2086, 64
      %v2088 = vpop.permute.xlu0 %2087
      %v2090 = vrot.slane %v567, 3
      %2091 = vrot.lane.b32.xlu0 %v2090, 96
      %v2092 = vpop.permute.xlu0 %2091
      %v2094 = vrot.slane %v567, 4
      %v2096 = vrot.slane %v567, 5
      %2097 = vrot.lane.b32.xlu0 %v2096, 32
      %v2098 = vpop.permute.xlu0 %2097
      %v2100 = vrot.slane %v567, 6
      %2101 = vrot.lane.b32.xlu0 %v2100, 64
      %v2102 = vpop.permute.xlu0 %2101
      %v2104 = vrot.slane %v567, 7
      %2105 = vrot.lane.b32.xlu0 %v2104, 96
      %v2106 = vpop.permute.xlu0 %2105
      %v2108 = vsel %vm353, %v567, %v2084
      %vm2109 = vcmask 523264
      %v2110 = vsel %vm2109, %v2108, %v2088
      %vm2111 = vcmask 785408
      %v2112 = vsel %vm2111, %v2110, %v2092
      %v2113 = vsel %vm353, %v2094, %v2098
      %v2114 = vsel %vm2109, %v2113, %v2102
      %v2115 = vsel %vm2111, %v2114, %v2106
      %v2117 = vrot.slane %v568, 1
      %2118 = vrot.lane.b32.xlu0 %v2117, 32
      %v2119 = vpop.permute.xlu0 %2118
      %v2121 = vrot.slane %v568, 2
      %2122 = vrot.lane.b32.xlu0 %v2121, 64
      %v2123 = vpop.permute.xlu0 %2122
      %v2125 = vrot.slane %v568, 3
      %2126 = vrot.lane.b32.xlu0 %v2125, 96
      %v2127 = vpop.permute.xlu0 %2126
      %v2129 = vrot.slane %v568, 4
      %v2131 = vrot.slane %v568, 5
      %2132 = vrot.lane.b32.xlu0 %v2131, 32
      %v2133 = vpop.permute.xlu0 %2132
      %v2135 = vrot.slane %v568, 6
      %2136 = vrot.lane.b32.xlu0 %v2135, 64
      %v2137 = vpop.permute.xlu0 %2136
      %v2139 = vrot.slane %v568, 7
      %2140 = vrot.lane.b32.xlu0 %v2139, 96
      %v2141 = vpop.permute.xlu0 %2140
      %v2143 = vsel %vm353, %v568, %v2119
      %v2144 = vsel %vm2109, %v2143, %v2123
      %v2145 = vsel %vm2111, %v2144, %v2127
      %v2146 = vsel %vm353, %v2129, %v2133
      %v2147 = vsel %vm2109, %v2146, %v2137
      %v2148 = vsel %vm2111, %v2147, %v2141
      %v2150 = vrot.slane %v788, 1
      %2151 = vrot.lane.b32.xlu0 %v2150, 32
      %v2152 = vpop.permute.xlu0 %2151
      %v2154 = vrot.slane %v788, 2
      %2155 = vrot.lane.b32.xlu0 %v2154, 64
      %v2156 = vpop.permute.xlu0 %2155
      %v2158 = vrot.slane %v788, 3
      %2159 = vrot.lane.b32.xlu0 %v2158, 96
      %v2160 = vpop.permute.xlu0 %2159
      %v2162 = vrot.slane %v788, 4
      %v2164 = vrot.slane %v788, 5
      %2165 = vrot.lane.b32.xlu0 %v2164, 32
      %v2166 = vpop.permute.xlu0 %2165
      %v2168 = vrot.slane %v788, 6
      %2169 = vrot.lane.b32.xlu0 %v2168, 64
      %v2170 = vpop.permute.xlu0 %2169
      %v2172 = vrot.slane %v788, 7
      %2173 = vrot.lane.b32.xlu0 %v2172, 96
      %v2174 = vpop.permute.xlu0 %2173
      %v2176 = vsel %vm353, %v788, %v2152
      %v2177 = vsel %vm2109, %v2176, %v2156
      %v2178 = vsel %vm2111, %v2177, %v2160
      %v2179 = vsel %vm353, %v2162, %v2166
      %v2180 = vsel %vm2109, %v2179, %v2170
      %v2181 = vsel %vm2111, %v2180, %v2174
      %v2183 = vrot.slane %v789, 1
      %2184 = vrot.lane.b32.xlu0 %v2183, 32
      %v2185 = vpop.permute.xlu0 %2184
      %v2187 = vrot.slane %v789, 2
      %2188 = vrot.lane.b32.xlu0 %v2187, 64
      %v2189 = vpop.permute.xlu0 %2188
      %v2191 = vrot.slane %v789, 3
      %2192 = vrot.lane.b32.xlu0 %v2191, 96
      %v2193 = vpop.permute.xlu0 %2192
      %v2195 = vrot.slane %v789, 4
      %v2197 = vrot.slane %v789, 5
      %2198 = vrot.lane.b32.xlu0 %v2197, 32
      %v2199 = vpop.permute.xlu0 %2198
      %v2201 = vrot.slane %v789, 6
      %2202 = vrot.lane.b32.xlu0 %v2201, 64
      %v2203 = vpop.permute.xlu0 %2202
      %v2205 = vrot.slane %v789, 7
      %2206 = vrot.lane.b32.xlu0 %v2205, 96
      %v2207 = vpop.permute.xlu0 %2206
      %v2209 = vsel %vm353, %v789, %v2185
      %v2210 = vsel %vm2109, %v2209, %v2189
      %v2211 = vsel %vm2111, %v2210, %v2193
      %v2212 = vsel %vm353, %v2195, %v2199
      %v2213 = vsel %vm2109, %v2212, %v2203
      %v2214 = vsel %vm2111, %v2213, %v2207
      %v2216 = vrot.slane %v1004, 1
      %2217 = vrot.lane.b32.xlu0 %v2216, 32
      %v2218 = vpop.permute.xlu0 %2217
      %v2220 = vrot.slane %v1004, 2
      %2221 = vrot.lane.b32.xlu0 %v2220, 64
      %v2222 = vpop.permute.xlu0 %2221
      %v2224 = vrot.slane %v1004, 3
      %2225 = vrot.lane.b32.xlu0 %v2224, 96
      %v2226 = vpop.permute.xlu0 %2225
      %v2228 = vrot.slane %v1004, 4
      %v2230 = vrot.slane %v1004, 5
      %2231 = vrot.lane.b32.xlu0 %v2230, 32
      %v2232 = vpop.permute.xlu0 %2231
      %v2234 = vrot.slane %v1004, 6
      %2235 = vrot.lane.b32.xlu0 %v2234, 64
      %v2236 = vpop.permute.xlu0 %2235
      %v2238 = vrot.slane %v1004, 7
      %2239 = vrot.lane.b32.xlu0 %v2238, 96
      %v2240 = vpop.permute.xlu0 %2239
      %v2242 = vsel %vm353, %v1004, %v2218
      %v2243 = vsel %vm2109, %v2242, %v2222
      %v2244 = vsel %vm2111, %v2243, %v2226
      %v2245 = vsel %vm353, %v2228, %v2232
      %v2246 = vsel %vm2109, %v2245, %v2236
      %v2247 = vsel %vm2111, %v2246, %v2240
      %v2249 = vrot.slane %v1005, 1
      %2250 = vrot.lane.b32.xlu0 %v2249, 32
      %v2251 = vpop.permute.xlu0 %2250
      %v2253 = vrot.slane %v1005, 2
      %2254 = vrot.lane.b32.xlu0 %v2253, 64
      %v2255 = vpop.permute.xlu0 %2254
      %v2257 = vrot.slane %v1005, 3
      %2258 = vrot.lane.b32.xlu0 %v2257, 96
      %v2259 = vpop.permute.xlu0 %2258
      %v2261 = vrot.slane %v1005, 4
      %v2263 = vrot.slane %v1005, 5
      %2264 = vrot.lane.b32.xlu0 %v2263, 32
      %v2265 = vpop.permute.xlu0 %2264
      %v2267 = vrot.slane %v1005, 6
      %2268 = vrot.lane.b32.xlu0 %v2267, 64
      %v2269 = vpop.permute.xlu0 %2268
      %v2271 = vrot.slane %v1005, 7
      %2272 = vrot.lane.b32.xlu0 %v2271, 96
      %v2273 = vpop.permute.xlu0 %2272
      %v2275 = vsel %vm353, %v1005, %v2251
      %v2276 = vsel %vm2109, %v2275, %v2255
      %v2277 = vsel %vm2111, %v2276, %v2259
      %v2278 = vsel %vm353, %v2261, %v2265
      %v2279 = vsel %vm2109, %v2278, %v2269
      %v2280 = vsel %vm2111, %v2279, %v2273
      %v2282 = vrot.slane %v1220, 1
      %2283 = vrot.lane.b32.xlu0 %v2282, 32
      %v2284 = vpop.permute.xlu0 %2283
      %v2286 = vrot.slane %v1220, 2
      %2287 = vrot.lane.b32.xlu0 %v2286, 64
      %v2288 = vpop.permute.xlu0 %2287
      %v2290 = vrot.slane %v1220, 3
      %2291 = vrot.lane.b32.xlu0 %v2290, 96
      %v2292 = vpop.permute.xlu0 %2291
      %v2294 = vrot.slane %v1220, 4
      %v2296 = vrot.slane %v1220, 5
      %2297 = vrot.lane.b32.xlu0 %v2296, 32
      %v2298 = vpop.permute.xlu0 %2297
      %v2300 = vrot.slane %v1220, 6
      %2301 = vrot.lane.b32.xlu0 %v2300, 64
      %v2302 = vpop.permute.xlu0 %2301
      %v2304 = vrot.slane %v1220, 7
      %2305 = vrot.lane.b32.xlu0 %v2304, 96
      %v2306 = vpop.permute.xlu0 %2305
      %v2308 = vsel %vm353, %v1220, %v2284
      %v2309 = vsel %vm2109, %v2308, %v2288
      %v2310 = vsel %vm2111, %v2309, %v2292
      %v2311 = vsel %vm353, %v2294, %v2298
      %v2312 = vsel %vm2109, %v2311, %v2302
      %v2313 = vsel %vm2111, %v2312, %v2306
      %v2315 = vrot.slane %v1221, 1
      %2316 = vrot.lane.b32.xlu0 %v2315, 32
      %v2317 = vpop.permute.xlu0 %2316
      %v2319 = vrot.slane %v1221, 2
      %2320 = vrot.lane.b32.xlu0 %v2319, 64
      %v2321 = vpop.permute.xlu0 %2320
      %v2323 = vrot.slane %v1221, 3
      %2324 = vrot.lane.b32.xlu0 %v2323, 96
      %v2325 = vpop.permute.xlu0 %2324
      %v2327 = vrot.slane %v1221, 4
      %v2329 = vrot.slane %v1221, 5
      %2330 = vrot.lane.b32.xlu0 %v2329, 32
      %v2331 = vpop.permute.xlu0 %2330
      %v2333 = vrot.slane %v1221, 6
      %2334 = vrot.lane.b32.xlu0 %v2333, 64
      %v2335 = vpop.permute.xlu0 %2334
      %v2337 = vrot.slane %v1221, 7
      %2338 = vrot.lane.b32.xlu0 %v2337, 96
      %v2339 = vpop.permute.xlu0 %2338
      %v2341 = vsel %vm353, %v1221, %v2317
      %v2342 = vsel %vm2109, %v2341, %v2321
      %v2343 = vsel %vm2111, %v2342, %v2325
      %v2344 = vsel %vm353, %v2327, %v2331
      %v2345 = vsel %vm2109, %v2344, %v2335
      %v2346 = vsel %vm2111, %v2345, %v2339
      %v2348 = vrot.slane %v1426, 1
      %2349 = vrot.lane.b32.xlu0 %v2348, 32
      %v2350 = vpop.permute.xlu0 %2349
      %v2352 = vrot.slane %v1426, 2
      %2353 = vrot.lane.b32.xlu0 %v2352, 64
      %v2354 = vpop.permute.xlu0 %2353
      %v2356 = vrot.slane %v1426, 3
      %2357 = vrot.lane.b32.xlu0 %v2356, 96
      %v2358 = vpop.permute.xlu0 %2357
      %v2360 = vrot.slane %v1426, 4
      %v2362 = vrot.slane %v1426, 5
      %2363 = vrot.lane.b32.xlu0 %v2362, 32
      %v2364 = vpop.permute.xlu0 %2363
      %v2366 = vrot.slane %v1426, 6
      %2367 = vrot.lane.b32.xlu0 %v2366, 64
      %v2368 = vpop.permute.xlu0 %2367
      %v2370 = vrot.slane %v1426, 7
      %2371 = vrot.lane.b32.xlu0 %v2370, 96
      %v2372 = vpop.permute.xlu0 %2371
      %v2374 = vsel %vm353, %v1426, %v2350
      %v2375 = vsel %vm2109, %v2374, %v2354
      %v2376 = vsel %vm2111, %v2375, %v2358
      %v2377 = vsel %vm353, %v2360, %v2364
      %v2378 = vsel %vm2109, %v2377, %v2368
      %v2379 = vsel %vm2111, %v2378, %v2372
      %v2381 = vrot.slane %v1427, 1
      %2382 = vrot.lane.b32.xlu0 %v2381, 32
      %v2383 = vpop.permute.xlu0 %2382
      %v2385 = vrot.slane %v1427, 2
      %2386 = vrot.lane.b32.xlu0 %v2385, 64
      %v2387 = vpop.permute.xlu0 %2386
      %v2389 = vrot.slane %v1427, 3
      %2390 = vrot.lane.b32.xlu0 %v2389, 96
      %v2391 = vpop.permute.xlu0 %2390
      %v2393 = vrot.slane %v1427, 4
      %v2395 = vrot.slane %v1427, 5
      %2396 = vrot.lane.b32.xlu0 %v2395, 32
      %v2397 = vpop.permute.xlu0 %2396
      %v2399 = vrot.slane %v1427, 6
      %2400 = vrot.lane.b32.xlu0 %v2399, 64
      %v2401 = vpop.permute.xlu0 %2400
      %v2403 = vrot.slane %v1427, 7
      %2404 = vrot.lane.b32.xlu0 %v2403, 96
      %v2405 = vpop.permute.xlu0 %2404
      %v2407 = vsel %vm353, %v1427, %v2383
      %v2408 = vsel %vm2109, %v2407, %v2387
      %v2409 = vsel %vm2111, %v2408, %v2391
      %v2410 = vsel %vm353, %v2393, %v2397
      %v2411 = vsel %vm2109, %v2410, %v2401
      %v2412 = vsel %vm2111, %v2411, %v2405
      %v2414 = vrot.slane %v1647, 1
      %2415 = vrot.lane.b32.xlu0 %v2414, 32
      %v2416 = vpop.permute.xlu0 %2415
      %v2418 = vrot.slane %v1647, 2
      %2419 = vrot.lane.b32.xlu0 %v2418, 64
      %v2420 = vpop.permute.xlu0 %2419
      %v2422 = vrot.slane %v1647, 3
      %2423 = vrot.lane.b32.xlu0 %v2422, 96
      %v2424 = vpop.permute.xlu0 %2423
      %v2426 = vrot.slane %v1647, 4
      %v2428 = vrot.slane %v1647, 5
      %2429 = vrot.lane.b32.xlu0 %v2428, 32
      %v2430 = vpop.permute.xlu0 %2429
      %v2432 = vrot.slane %v1647, 6
      %2433 = vrot.lane.b32.xlu0 %v2432, 64
      %v2434 = vpop.permute.xlu0 %2433
      %v2436 = vrot.slane %v1647, 7
      %2437 = vrot.lane.b32.xlu0 %v2436, 96
      %v2438 = vpop.permute.xlu0 %2437
      %v2440 = vsel %vm353, %v1647, %v2416
      %v2441 = vsel %vm2109, %v2440, %v2420
      %v2442 = vsel %vm2111, %v2441, %v2424
      %v2443 = vsel %vm353, %v2426, %v2430
      %v2444 = vsel %vm2109, %v2443, %v2434
      %v2445 = vsel %vm2111, %v2444, %v2438
      %v2447 = vrot.slane %v1648, 1
      %2448 = vrot.lane.b32.xlu0 %v2447, 32
      %v2449 = vpop.permute.xlu0 %2448
      %v2451 = vrot.slane %v1648, 2
      %2452 = vrot.lane.b32.xlu0 %v2451, 64
      %v2453 = vpop.permute.xlu0 %2452
      %v2455 = vrot.slane %v1648, 3
      %2456 = vrot.lane.b32.xlu0 %v2455, 96
      %v2457 = vpop.permute.xlu0 %2456
      %v2459 = vrot.slane %v1648, 4
      %v2461 = vrot.slane %v1648, 5
      %2462 = vrot.lane.b32.xlu0 %v2461, 32
      %v2463 = vpop.permute.xlu0 %2462
      %v2465 = vrot.slane %v1648, 6
      %2466 = vrot.lane.b32.xlu0 %v2465, 64
      %v2467 = vpop.permute.xlu0 %2466
      %v2469 = vrot.slane %v1648, 7
      %2470 = vrot.lane.b32.xlu0 %v2469, 96
      %v2471 = vpop.permute.xlu0 %2470
      %v2473 = vsel %vm353, %v1648, %v2449
      %v2474 = vsel %vm2109, %v2473, %v2453
      %v2475 = vsel %vm2111, %v2474, %v2457
      %v2476 = vsel %vm353, %v2459, %v2463
      %v2477 = vsel %vm2109, %v2476, %v2467
      %v2478 = vsel %vm2111, %v2477, %v2471
      %v2480 = vrot.slane %v1863, 1
      %2481 = vrot.lane.b32.xlu0 %v2480, 32
      %v2482 = vpop.permute.xlu0 %2481
      %v2484 = vrot.slane %v1863, 2
      %2485 = vrot.lane.b32.xlu0 %v2484, 64
      %v2486 = vpop.permute.xlu0 %2485
      %v2488 = vrot.slane %v1863, 3
      %2489 = vrot.lane.b32.xlu0 %v2488, 96
      %v2490 = vpop.permute.xlu0 %2489
      %v2492 = vrot.slane %v1863, 4
      %v2494 = vrot.slane %v1863, 5
      %2495 = vrot.lane.b32.xlu0 %v2494, 32
      %v2496 = vpop.permute.xlu0 %2495
      %v2498 = vrot.slane %v1863, 6
      %2499 = vrot.lane.b32.xlu0 %v2498, 64
      %v2500 = vpop.permute.xlu0 %2499
      %v2502 = vrot.slane %v1863, 7
      %2503 = vrot.lane.b32.xlu0 %v2502, 96
      %v2504 = vpop.permute.xlu0 %2503
      %v2506 = vsel %vm353, %v1863, %v2482
      %v2507 = vsel %vm2109, %v2506, %v2486
      %v2508 = vsel %vm2111, %v2507, %v2490
      %v2509 = vsel %vm353, %v2492, %v2496
      %v2510 = vsel %vm2109, %v2509, %v2500
      %v2511 = vsel %vm2111, %v2510, %v2504
      %v2513 = vrot.slane %v1864, 1
      %2514 = vrot.lane.b32.xlu0 %v2513, 32
      %v2515 = vpop.permute.xlu0 %2514
      %v2517 = vrot.slane %v1864, 2
      %2518 = vrot.lane.b32.xlu0 %v2517, 64
      %v2519 = vpop.permute.xlu0 %2518
      %v2521 = vrot.slane %v1864, 3
      %2522 = vrot.lane.b32.xlu0 %v2521, 96
      %v2523 = vpop.permute.xlu0 %2522
      %v2525 = vrot.slane %v1864, 4
      %v2527 = vrot.slane %v1864, 5
      %2528 = vrot.lane.b32.xlu0 %v2527, 32
      %v2529 = vpop.permute.xlu0 %2528
      %v2531 = vrot.slane %v1864, 6
      %2532 = vrot.lane.b32.xlu0 %v2531, 64
      %v2533 = vpop.permute.xlu0 %2532
      %v2535 = vrot.slane %v1864, 7
      %2536 = vrot.lane.b32.xlu0 %v2535, 96
      %v2537 = vpop.permute.xlu0 %2536
      %v2539 = vsel %vm353, %v1864, %v2515
      %v2540 = vsel %vm2109, %v2539, %v2519
      %v2541 = vsel %vm2111, %v2540, %v2523
      %v2542 = vsel %vm353, %v2525, %v2529
      %v2543 = vsel %vm2109, %v2542, %v2533
      %v2544 = vsel %vm2111, %v2543, %v2537
      %v2546 = vrot.slane %v2079, 1
      %2547 = vrot.lane.b32.xlu0 %v2546, 32
      %v2548 = vpop.permute.xlu0 %2547
      %v2550 = vrot.slane %v2079, 2
      %2551 = vrot.lane.b32.xlu0 %v2550, 64
      %v2552 = vpop.permute.xlu0 %2551
      %v2554 = vrot.slane %v2079, 3
      %2555 = vrot.lane.b32.xlu0 %v2554, 96
      %v2556 = vpop.permute.xlu0 %2555
      %v2558 = vrot.slane %v2079, 4
      %v2560 = vrot.slane %v2079, 5
      %2561 = vrot.lane.b32.xlu0 %v2560, 32
      %v2562 = vpop.permute.xlu0 %2561
      %v2564 = vrot.slane %v2079, 6
      %2565 = vrot.lane.b32.xlu0 %v2564, 64
      %v2566 = vpop.permute.xlu0 %2565
      %v2568 = vrot.slane %v2079, 7
      %2569 = vrot.lane.b32.xlu0 %v2568, 96
      %v2570 = vpop.permute.xlu0 %2569
      %v2572 = vsel %vm353, %v2079, %v2548
      %v2573 = vsel %vm2109, %v2572, %v2552
      %v2574 = vsel %vm2111, %v2573, %v2556
      %v2575 = vsel %vm353, %v2558, %v2562
      %v2576 = vsel %vm2109, %v2575, %v2566
      %v2577 = vsel %vm2111, %v2576, %v2570
      %v2579 = vrot.slane %v2080, 1
      %2580 = vrot.lane.b32.xlu0 %v2579, 32
      %v2581 = vpop.permute.xlu0 %2580
      %v2583 = vrot.slane %v2080, 2
      %2584 = vrot.lane.b32.xlu0 %v2583, 64
      %v2585 = vpop.permute.xlu0 %2584
      %v2587 = vrot.slane %v2080, 3
      %2588 = vrot.lane.b32.xlu0 %v2587, 96
      %v2589 = vpop.permute.xlu0 %2588
      %v2591 = vrot.slane %v2080, 4
      %v2593 = vrot.slane %v2080, 5
      %2594 = vrot.lane.b32.xlu0 %v2593, 32
      %v2595 = vpop.permute.xlu0 %2594
      %v2597 = vrot.slane %v2080, 6
      %2598 = vrot.lane.b32.xlu0 %v2597, 64
      %v2599 = vpop.permute.xlu0 %2598
      %v2601 = vrot.slane %v2080, 7
      %2602 = vrot.lane.b32.xlu0 %v2601, 96
      %v2603 = vpop.permute.xlu0 %2602
      %v2605 = vsel %vm353, %v2080, %v2581
      %v2606 = vsel %vm2109, %v2605, %v2585
      %v2607 = vsel %vm2111, %v2606, %v2589
      %v2608 = vsel %vm353, %v2591, %v2595
      %v2609 = vsel %vm2109, %v2608, %v2599
      %v2610 = vsel %vm2111, %v2609, %v2603
      %v2613 = vrot.slane %v2145, 7
      %v2614 = vrot.slane %v2148, 7
      %v2619 = vrot.slane %v2178, 6
      %v2620 = vrot.slane %v2181, 6
      %v2625 = vrot.slane %v2211, 5
      %v2626 = vrot.slane %v2214, 5
      %v2631 = vrot.slane %v2244, 4
      %v2632 = vrot.slane %v2247, 4
      %v2637 = vrot.slane %v2277, 3
      %v2638 = vrot.slane %v2280, 3
      %v2643 = vrot.slane %v2310, 2
      %v2644 = vrot.slane %v2313, 2
      %v2649 = vrot.slane %v2343, 1
      %v2650 = vrot.slane %v2346, 1
      %v2655 = vrot.slane %v2409, 7
      %v2656 = vrot.slane %v2412, 7
      %v2661 = vrot.slane %v2442, 6
      %v2662 = vrot.slane %v2445, 6
      %v2667 = vrot.slane %v2475, 5
      %v2668 = vrot.slane %v2478, 5
      %v2673 = vrot.slane %v2508, 4
      %v2674 = vrot.slane %v2511, 4
      %v2679 = vrot.slane %v2541, 3
      %v2680 = vrot.slane %v2544, 3
      %v2685 = vrot.slane %v2574, 2
      %v2686 = vrot.slane %v2577, 2
      %v2691 = vrot.slane %v2607, 1
      %v2692 = vrot.slane %v2610, 1
      %vm2695 = vcmask 1040384
      %v2696 = vsel %vm2695, %v2112, %v2613
      %v2697 = vsel %vm2695, %v2115, %v2614
      %vm2698 = vcmask 1041408
      %v2699 = vsel %vm2698, %v2696, %v2619
      %v2700 = vsel %vm2698, %v2697, %v2620
      %vm2701 = vcmask 1042432
      %v2702 = vsel %vm2701, %v2699, %v2625
      %v2703 = vsel %vm2701, %v2700, %v2626
      %vm2704 = vcmask 1043456
      %v2705 = vsel %vm2704, %v2702, %v2631
      %v2706 = vsel %vm2704, %v2703, %v2632
      %vm2707 = vcmask 1044480
      %v2708 = vsel %vm2707, %v2705, %v2637
      %v2709 = vsel %vm2707, %v2706, %v2638
      %vm2710 = vcmask 1045504
      %v2711 = vsel %vm2710, %v2708, %v2643
      %v2712 = vsel %vm2710, %v2709, %v2644
      %vm2713 = vcmask 1046528
      %v2714 = vsel %vm2713, %v2711, %v2649
      %v2715 = vsel %vm2713, %v2712, %v2650
      %v2716 = vsel %vm2695, %v2376, %v2655
      %v2717 = vsel %vm2695, %v2379, %v2656
      %v2718 = vsel %vm2698, %v2716, %v2661
      %v2719 = vsel %vm2698, %v2717, %v2662
      %v2720 = vsel %vm2701, %v2718, %v2667
      %v2721 = vsel %vm2701, %v2719, %v2668
      %v2722 = vsel %vm2704, %v2720, %v2673
      %v2723 = vsel %vm2704, %v2721, %v2674
      %v2724 = vsel %vm2707, %v2722, %v2679
      %v2725 = vsel %vm2707, %v2723, %v2680
      %v2726 = vsel %vm2710, %v2724, %v2685
      %v2727 = vsel %vm2710, %v2725, %v2686
      %v2728 = vsel %vm2713, %v2726, %v2691
      %v2729 = vsel %vm2713, %v2727, %v2692
      %v2730 = vpack.c.bf16 %v2728, %v2714
      %v2731 = vpack.c.bf16 %v2729, %v2715
      %v2732 = vld [vmem:[%s3] sm:$0xff]
      %v2733 = vld [vmem:[%s3 + $0x8] sm:$0xff]
      %v2734 = vld [vmem:[%s3 + $0x10] sm:$0xff]
      %v2735 = vld [vmem:[%s3 + $0x18] sm:$0xff]
      %v2736 = vld [vmem:[%s3 + $0x20] sm:$0xff]
      %v2737 = vld [vmem:[%s3 + $0x28] sm:$0xff]
      %v2738 = vld [vmem:[%s3 + $0x30] sm:$0xff]
      %v2739 = vld [vmem:[%s3 + $0x38] sm:$0xff]
      %v2740 = vld [vmem:[%s3 + $0x40] sm:$0xff]
      %v2741 = vld [vmem:[%s3 + $0x48] sm:$0xff]
      %v2742 = vld [vmem:[%s3 + $0x50] sm:$0xff]
      %v2743 = vld [vmem:[%s3 + $0x58] sm:$0xff]
      %v2744 = vld [vmem:[%s3 + $0x60] sm:$0xff]
      %v2745 = vld [vmem:[%s3 + $0x68] sm:$0xff]
      %v2746 = vld [vmem:[%s3 + $0x70] sm:$0xff]
      %v2747 = vld [vmem:[%s3 + $0x78] sm:$0xff]
      %v2748 = vld [vmem:[%s3 + $0x80] sm:$0xff]
      %v2749 = vld [vmem:[%s3 + $0x88] sm:$0xff]
      %v2750 = vld [vmem:[%s3 + $0x90] sm:$0xff]
      %v2751 = vld [vmem:[%s3 + $0x98] sm:$0xff]
      %v2752 = vld [vmem:[%s3 + $0xa0] sm:$0xff]
      %v2753 = vld [vmem:[%s3 + $0xa8] sm:$0xff]
      %v2754 = vld [vmem:[%s3 + $0xb0] sm:$0xff]
      %v2755 = vld [vmem:[%s3 + $0xb8] sm:$0xff]
      %v2756 = vld [vmem:[%s3 + $0xc0] sm:$0xff]
      %v2757 = vld [vmem:[%s3 + $0xc8] sm:$0xff]
      %v2758 = vld [vmem:[%s3 + $0xd0] sm:$0xff]
      %v2759 = vld [vmem:[%s3 + $0xd8] sm:$0xff]
      %v2760 = vld [vmem:[%s3 + $0xe0] sm:$0xff]
      %v2761 = vld [vmem:[%s3 + $0xe8] sm:$0xff]
      %v2762 = vld [vmem:[%s3 + $0xf0] sm:$0xff]
      %v2763 = vld [vmem:[%s3 + $0xf8] sm:$0xff]
      %v2764 = vld [vmem:[%s4] sm:$0x3]
      %v2766 = vlaneseq
      %v2767 = vshrl.u32 %v2766, 7
      %v2768 = vsub.s32 0, %v2767
      %v2769 = vrot.slane %v2764, %v2768
      %v2770 = vlaneseq
      %v2771 = vshrl.u32 %v2770, 7
      %v2772 = vsub.s32 1, %v2771
      %v2773 = vrot.slane %v2764, %v2772
      %v2808 = vunpack.c.l.b16 %v2732
      %v2809 = vunpack.c.h.b16 %v2732
      %v2810 = vunpack.c.l.b16 %v2733
      %v2811 = vunpack.c.h.b16 %v2733
      %v2812 = vunpack.c.l.b16 %v2734
      %v2813 = vunpack.c.h.b16 %v2734
      %v2814 = vunpack.c.l.b16 %v2735
      %v2815 = vunpack.c.h.b16 %v2735
      %v2816 = vunpack.c.l.b16 %v2736
      %v2817 = vunpack.c.h.b16 %v2736
      %v2818 = vunpack.c.l.b16 %v2737
      %v2819 = vunpack.c.h.b16 %v2737
      %v2820 = vunpack.c.l.b16 %v2738
      %v2821 = vunpack.c.h.b16 %v2738
      %v2822 = vunpack.c.l.b16 %v2739
      %v2823 = vunpack.c.h.b16 %v2739
      %v2824 = vunpack.c.l.b16 %v2740
      %v2825 = vunpack.c.h.b16 %v2740
      %v2826 = vunpack.c.l.b16 %v2741
      %v2827 = vunpack.c.h.b16 %v2741
      %v2828 = vunpack.c.l.b16 %v2742
      %v2829 = vunpack.c.h.b16 %v2742
      %v2830 = vunpack.c.l.b16 %v2743
      %v2831 = vunpack.c.h.b16 %v2743
      %v2832 = vunpack.c.l.b16 %v2744
      %v2833 = vunpack.c.h.b16 %v2744
      %v2834 = vunpack.c.l.b16 %v2745
      %v2835 = vunpack.c.h.b16 %v2745
      %v2836 = vunpack.c.l.b16 %v2746
      %v2837 = vunpack.c.h.b16 %v2746
      %v2838 = vunpack.c.l.b16 %v2747
      %v2839 = vunpack.c.h.b16 %v2747
      %v2840 = vunpack.c.l.b16 %v2748
      %v2841 = vunpack.c.h.b16 %v2748
      %v2842 = vunpack.c.l.b16 %v2749
      %v2843 = vunpack.c.h.b16 %v2749
      %v2844 = vunpack.c.l.b16 %v2750
      %v2845 = vunpack.c.h.b16 %v2750
      %v2846 = vunpack.c.l.b16 %v2751
      %v2847 = vunpack.c.h.b16 %v2751
      %v2848 = vunpack.c.l.b16 %v2752
      %v2849 = vunpack.c.h.b16 %v2752
      %v2850 = vunpack.c.l.b16 %v2753
      %v2851 = vunpack.c.h.b16 %v2753
      %v2852 = vunpack.c.l.b16 %v2754
      %v2853 = vunpack.c.h.b16 %v2754
      %v2854 = vunpack.c.l.b16 %v2755
      %v2855 = vunpack.c.h.b16 %v2755
      %v2856 = vunpack.c.l.b16 %v2756
      %v2857 = vunpack.c.h.b16 %v2756
      %v2858 = vunpack.c.l.b16 %v2757
      %v2859 = vunpack.c.h.b16 %v2757
      %v2860 = vunpack.c.l.b16 %v2758
      %v2861 = vunpack.c.h.b16 %v2758
      %v2862 = vunpack.c.l.b16 %v2759
      %v2863 = vunpack.c.h.b16 %v2759
      %v2864 = vunpack.c.l.b16 %v2760
      %v2865 = vunpack.c.h.b16 %v2760
      %v2866 = vunpack.c.l.b16 %v2761
      %v2867 = vunpack.c.h.b16 %v2761
      %v2868 = vunpack.c.l.b16 %v2762
      %v2869 = vunpack.c.h.b16 %v2762
      %v2870 = vunpack.c.l.b16 %v2763
      %v2871 = vunpack.c.h.b16 %v2763
      %v2872 = vpack.c.b16 %v2810, %v2808
      %v2873 = vpack.c.b16 %v2811, %v2809
      %v2874 = vpack.c.b16 %v2814, %v2812
      %v2875 = vpack.c.b16 %v2815, %v2813
      %v2876 = vpack.c.b16 %v2818, %v2816
      %v2877 = vpack.c.b16 %v2819, %v2817
      %v2878 = vpack.c.b16 %v2822, %v2820
      %v2879 = vpack.c.b16 %v2823, %v2821
      %v2880 = vpack.c.b16 %v2826, %v2824
      %v2881 = vpack.c.b16 %v2827, %v2825
      %v2882 = vpack.c.b16 %v2830, %v2828
      %v2883 = vpack.c.b16 %v2831, %v2829
      %v2884 = vpack.c.b16 %v2834, %v2832
      %v2885 = vpack.c.b16 %v2835, %v2833
      %v2886 = vpack.c.b16 %v2838, %v2836
      %v2887 = vpack.c.b16 %v2839, %v2837
      %v2888 = vpack.c.b16 %v2842, %v2840
      %v2889 = vpack.c.b16 %v2843, %v2841
      %v2890 = vpack.c.b16 %v2846, %v2844
      %v2891 = vpack.c.b16 %v2847, %v2845
      %v2892 = vpack.c.b16 %v2850, %v2848
      %v2893 = vpack.c.b16 %v2851, %v2849
      %v2894 = vpack.c.b16 %v2854, %v2852
      %v2895 = vpack.c.b16 %v2855, %v2853
      %v2896 = vpack.c.b16 %v2858, %v2856
      %v2897 = vpack.c.b16 %v2859, %v2857
      %v2898 = vpack.c.b16 %v2862, %v2860
      %v2899 = vpack.c.b16 %v2863, %v2861
      %v2900 = vpack.c.b16 %v2866, %v2864
      %v2901 = vpack.c.b16 %v2867, %v2865
      %v2902 = vpack.c.b16 %v2870, %v2868
      %v2903 = vpack.c.b16 %v2871, %v2869
      %2936 = vmatprep.subr.bf16.mxu0 %v2873
      %2937 = vmatpush1.bf16.msra.mxu0 %v2872
      %2938 = vmatprep.subr.bf16.mxu0 %v2875
      %2939 = vmatpush1.bf16.msra.mxu0 %v2874
      %2940 = vmatprep.subr.bf16.mxu0 %v2877
      %2941 = vmatpush1.bf16.msra.mxu0 %v2876
      %2942 = vmatprep.subr.bf16.mxu0 %v2879
      %2943 = vmatpush1.bf16.msra.mxu0 %v2878
      %2944 = vmatprep.subr.bf16.mxu0 %v2881
      %2945 = vmatpush1.bf16.msra.mxu0 %v2880
      %2946 = vmatprep.subr.bf16.mxu0 %v2883
      %2947 = vmatpush1.bf16.msra.mxu0 %v2882
      %2948 = vmatprep.subr.bf16.mxu0 %v2885
      %2949 = vmatpush1.bf16.msra.mxu0 %v2884
      %2950 = vmatprep.subr.bf16.mxu0 %v2887
      %2951 = vmatpush1.bf16.msra.mxu0 %v2886
      %2952 = vmatprep.subr.bf16.mxu0 %v2889
      %2953 = vmatpush1.bf16.msra.mxu0 %v2888
      %2954 = vmatprep.subr.bf16.mxu0 %v2891
      %2955 = vmatpush1.bf16.msra.mxu0 %v2890
      %2956 = vmatprep.subr.bf16.mxu0 %v2893
      %2957 = vmatpush1.bf16.msra.mxu0 %v2892
      %2958 = vmatprep.subr.bf16.mxu0 %v2895
      %2959 = vmatpush1.bf16.msra.mxu0 %v2894
      %2960 = vmatprep.subr.bf16.mxu0 %v2897
      %2961 = vmatpush1.bf16.msra.mxu0 %v2896
      %2962 = vmatprep.subr.bf16.mxu0 %v2899
      %2963 = vmatpush1.bf16.msra.mxu0 %v2898
      %2964 = vmatprep.subr.bf16.mxu0 %v2901
      %2965 = vmatpush1.bf16.msra.mxu0 %v2900
      %2966 = vmatprep.subr.bf16.mxu0 %v2903
      %2967 = vmatpush1.bf16.msra.mxu0 %v2902
      %2968 = vmatprep.mubr.bf16.mxu0 %v2731
      %2969 = vmatmul.mubr.bf16.gmra.mrb[0].mxu0 %v2730
      %v2970 = vpop.f32.mrb[0].mxu0
      %v2971 = vadd.f32 %v2769, %v2970
      %v2972 = vpop.f32.mrb[0].mxu0
      %v2973 = vadd.f32 %v2773, %v2972
      %v2974 = vpop.f32.mrb[0].mxu0
      %v2975 = vadd.f32 %v2769, %v2974
      %v2976 = vpop.f32.mrb[0].mxu0
      %v2977 = vadd.f32 %v2773, %v2976
      %2978 = vdwg.mxu0
      %v2979 = vadd.f32 %v334, %v2971
      %v2980 = vadd.f32 %v335, %v2973
      %v2981 = vadd.f32 %v336, %v2975
      %v2982 = vadd.f32 %v337, %v2977
      %v2983 = vld [vmem:[%s5] sm:$0x3]
      %v2984 = vld [vmem:[%s6] sm:$0x3]
      %v2985 = vadd.f32 %v2979, %v2980
      %2986 = vadd.xlane.f32.xlu0 %v2985
      %v2987 = vpop.xlane.xlu0 %2986
      %v2988 = vadd.f32 %v2981, %v2982
      %2989 = vadd.xlane.f32.xlu0 %v2988
      %v2990 = vpop.xlane.xlu0 %2989
      %v2991 = vrcp.pop 256.0
      %v2992 = vmul.f32 %v2987, %v2991
      %v2993 = vmul.f32 %v2990, %v2991
      %v2994 = vsub.f32 %v2979, %v2992
      %v2995 = vsub.f32 %v2980, %v2992
      %v2996 = vsub.f32 %v2981, %v2993
      %v2997 = vsub.f32 %v2982, %v2993
      %v2998 = vmul.f32 %v2994, %v2994
      %v2999 = vmul.f32 %v2995, %v2995
      %v3000 = vmul.f32 %v2996, %v2996
      %v3001 = vmul.f32 %v2997, %v2997
      %v3002 = vadd.f32 %v2998, %v2999
      %3003 = vadd.xlane.f32.xlu0 %v3002
      %v3004 = vpop.xlane.xlu0 %3003
      %v3005 = vadd.f32 %v3000, %v3001
      %3006 = vadd.xlane.f32.xlu0 %v3005
      %v3007 = vpop.xlane.xlu0 %3006
      %v3008 = vmul.f32 %v3004, %v2991
      %v3009 = vmul.f32 %v3007, %v2991
      %v3010 = vadd.f32 %v3008, 1e-05
      %v3011 = vadd.f32 %v3009, 1e-05
      %v3012 = vrsqrt.pop %v3010
      %v3013 = vrsqrt.pop %v3011
      %v3014 = vmul.f32 %v2994, %v3012
      %v3015 = vmul.f32 %v2995, %v3012
      %v3016 = vmul.f32 %v2996, %v3013
      %v3017 = vmul.f32 %v2997, %v3013
      %v3019 = vlaneseq
      %v3020 = vshrl.u32 %v3019, 7
      %v3021 = vsub.s32 0, %v3020
      %v3022 = vrot.slane %v2983, %v3021
      %v3023 = vlaneseq
      %v3024 = vshrl.u32 %v3023, 7
      %v3025 = vsub.s32 1, %v3024
      %v3026 = vrot.slane %v2983, %v3025
      %v3029 = vmul.f32 %v3014, %v3022
      %v3030 = vmul.f32 %v3015, %v3026
      %v3031 = vmul.f32 %v3016, %v3022
      %v3032 = vmul.f32 %v3017, %v3026
      %v3034 = vlaneseq
      %v3035 = vshrl.u32 %v3034, 7
      %v3036 = vsub.s32 0, %v3035
      %v3037 = vrot.slane %v2984, %v3036
      %v3038 = vlaneseq
      %v3039 = vshrl.u32 %v3038, 7
      %v3040 = vsub.s32 1, %v3039
      %v3041 = vrot.slane %v2984, %v3040
      %v3044 = vadd.f32 %v3029, %v3037
      %v3045 = vadd.f32 %v3030, %v3041
      %v3046 = vadd.f32 %v3031, %v3037
      %v3047 = vadd.f32 %v3032, %v3041
      %3048 = vst [vmem:[%s318] sm:$0xff] %v3044
      %3049 = vst [vmem:[%s318 + $0x8] sm:$0xff] %v3045
      %3050 = vst [vmem:[%s318 + $0x10] sm:$0xff] %v3046
      %3051 = vst [vmem:[%s318 + $0x18] sm:$0xff] %v3047
      %p3052 = scmp.lt.s32.totalorder %s18, 1
      %s3053 = scalar_select %p3052, %s18, 1
      %s3054 = smul.addr %s3053, 4
      %s3055 = smul.addr %s3054, 8
      %s3056 = scalar_lea.vmem %s7, %s3055
      // Predicated region
      $region49: #{trajectory_decoder_forward.4} parent=47 // pred_check
        %p3057 = pneg %p198
      $region50: #{trajectory_decoder_forward.4} parent=47 // pred_check_branch
        %3059 = sbr.rel (%p3057) target = $region52
      $region51: #{trajectory_decoder_forward.4} parent=47 // pred_region
        _
      $region52: #{trajectory_decoder_forward.4} parent=47 // pred_fallthru
        _
    $region48: #{trajectory_decoder_forward.4} parent=5 // pred_fallthru
      _
    %p3060 = scmp.le.s32.totalorder 2, %s13
    // Predicated region
    $region53: #{trajectory_decoder_forward.4} parent=5 // pred_check
      %p3061 = pneg %p3060
    $region54: #{trajectory_decoder_forward.4} parent=5 // pred_check_branch
      %3063 = sbr.rel (%p3061) target = $region56
    $region55: #{trajectory_decoder_forward.4} parent=5 // pred_region
      %s3064 = ssub.s32 %s13, 2
      // Predicated region
      $region57: #{trajectory_decoder_forward.4} parent=55 // pred_check
        %p3065 = pneg %p204
      $region58: #{trajectory_decoder_forward.4} parent=55 // pred_check_branch
        %3067 = sbr.rel (%p3065) target = $region60
      $region59: #{trajectory_decoder_forward.4} parent=55 // pred_region
        %p3068 = scmp.lt.s32.totalorder %s19, 1
        %s3069 = scalar_select %p3068, %s19, 1
        %s3070 = smul.addr %s3069, 4
        %s3071 = smul.addr %s3070, 8
        %s3072 = scalar_lea.vmem %s7, %s3071
      $region60: #{trajectory_decoder_forward.4} parent=55 // pred_fallthru
        _
    $region56: #{trajectory_decoder_forward.4} parent=5 // pred_fallthru
      _
  $region6: #{trajectory_decoder_forward.4} parent=0 // loop_footer
    %s17 = sadd.s32 1, %s13
  $region7: #{trajectory_decoder_forward.4} parent=0 // loop_footer_branch
    %12 = sbr.rel target = $region3
  $region8: #{trajectory_decoder_forward.4} parent=0 // loop_exit
    _

</llo_original>
